<compile_context>
chip_gen: v7x
topology: tpu7x:2x2x1
jax: 0.10.0
libtpu: 0.0.40
codegen_flags: <defaults>
</compile_context>

<pallas_src>
import functools
import math

import jax
import jax.numpy as jnp
from jax.experimental import pallas as pl
from jax.experimental.pallas import tpu as pltpu

LANE = 128
CHUNK = 64            # magnitude-table chunk width (two-level gather), power of 2
CHUNK_SHIFT = 6       # log2(CHUNK)
MAX_GRP_LANES = 8192  # lanes per one-hot matmul (caps the live one-hot at ~4 MiB)
MAX_GROUPS_PER_STEP = 2  # 1-2 MXU matmuls per grid step


def _round_up(x, m):
    return ((x + m - 1) // m) * m


def _mod_add(a, b, bins: int):
    """(a + b) % bins without an integer divide.

    Power-of-two bins -> bitwise AND.  Otherwise a conditional subtract,
    assuming a, b are valid indices in [0, bins) (true for this module).
    """
    s = a + b
    if bins & (bins - 1) == 0:
        return s & (bins - 1)
    return jnp.where(s >= bins, s - bins, s)


# ----------------------------------------------------------------------------
# Stage 1: modular add + fused one-hot MXU gather (wide layout)
# ----------------------------------------------------------------------------
def _gather_kernel(idx_ref, tab_ref,
                   phase_out_ref, mag_out_ref, sig_ref, gph_ref, gmg_ref,
                   *, phase_bins, mag_bins, n_pad, n_hi, grp_w, n_grp):
    # idx_ref : (1, 4, W) int32  [ctx_phase, ctx_mag, self_phase, self_mag]
    # tab_ref : (r_pad, n_pad + CHUNK) f32, VMEM resident across grid steps
    # outputs : (1, 1, W) each
    idx = idx_ref[...]
    cp = idx[0, 0:1, :]
    cm = idx[0, 1:2, :]
    sp = idx[0, 2:3, :]
    sm = idx[0, 3:4, :]

    # modular accumulation on the whole wide row
    phase_out = _mod_add(cp, sp, phase_bins)          # (1, W) int32
    mag_out = _mod_add(cm, sm, mag_bins)              # (1, W) int32
    phase_out_ref[0, :, :] = phase_out
    mag_out_ref[0, :, :] = mag_out

    # two-level split of the magnitude index
    mag_hi = mag_out >> CHUNK_SHIFT                    # chunk id in [0, n_hi)
    mag_lo = mag_out & (CHUNK - 1)                     # offset within the chunk

    tab = tab_ref[...]                                 # (r_pad, k_tot)

    # 1-2 lane-concatenated one-hot matmuls per step; intermediates are
    # VMEM-sized arrays, so live ranges stay bounded.
    for g in range(n_grp):
        lo_c = g * grp_w
        hi_c = lo_c + grp_w
        p = phase_out[:, lo_c:hi_c]                    # (1, grp_w)
        lo = mag_lo[:, lo_c:hi_c]
        hi = mag_hi[:, lo_c:hi_c]

        # one-hot: two half-range compares + sublane concat -> (k_tot, grp_w)
        ph_oh = (jax.lax.broadcasted_iota(jnp.int32, (n_pad, grp_w), 0) == p
                 ).astype(jnp.float32)
        lo_oh = (jax.lax.broadcasted_iota(jnp.int32, (CHUNK, grp_w), 0) == lo
                 ).astype(jnp.float32)
        onehot = jnp.concatenate([ph_oh, lo_oh], axis=0)

        # single MXU gather for this group: phase val/grad + all mag chunk
        # candidates.  HIGHEST keeps f32 table values exact (one-hot is 0/1).
        gathered = jnp.dot(tab, onehot,
                           preferred_element_type=jnp.float32,
                           precision=jax.lax.Precision.HIGHEST)   # (r_pad, grp_w)

        phase_val = gathered[0:1, :]
        phase_grad = gathered[1:2, :]
        chunk_vals = gathered[8:8 + n_hi, :]           # (n_hi, grp_w)
        chunk_grads = gathered[8 + n_hi:8 + 2 * n_hi, :]

        # pick the right chunk per lane: masked sublane-sum over candidates
        sel = jax.lax.broadcasted_iota(jnp.int32, (n_hi, grp_w), 0) == hi
        mag_val = jnp.sum(jnp.where(sel, chunk_vals, 0.0), axis=0, keepdims=True)
        mag_grad = jnp.sum(jnp.where(sel, chunk_grads, 0.0), axis=0, keepdims=True)

        # lookup.forward semantics
        sig_ref[0, :, lo_c:hi_c] = phase_val * mag_val
        gph_ref[0, :, lo_c:hi_c] = phase_grad * mag_val
        gmg_ref[0, :, lo_c:hi_c] = phase_val * mag_grad


# ----------------------------------------------------------------------------
# Stage 2: quantize_signal + strength (natural layout, dense stores)
# ----------------------------------------------------------------------------
def _quantize_kernel(sig_ref, qsig_ref, strength_ref, *, levels, valid_d):
    sig = sig_ref[...]                                 # (tile_b, d_pad) f32
    d_pad = sig.shape[-1]

    if valid_d < d_pad:                                # mask padded lanes
        lane_ok = jax.lax.broadcasted_iota(jnp.int32, sig.shape, 1) < valid_d
        sig_min_in = jnp.where(lane_ok, sig, jnp.inf)
        sig_max_in = jnp.where(lane_ok, sig, -jnp.inf)
    else:
        lane_ok = None
        sig_min_in = sig
        sig_max_in = sig

    smin = jnp.min(sig_min_in, axis=-1, keepdims=True)  # (tile_b, 1)
    smax = jnp.max(sig_max_in, axis=-1, keepdims=True)
    rng = smax - smin
    has_rng = rng > 0.0
    inv_rng = jnp.where(has_rng, 1.0 / jnp.where(has_rng, rng, 1.0), 0.0)

    levels_f = float(levels)
    norm = (sig - smin) * inv_rng
    q = jnp.clip(jnp.floor(norm * levels_f), 0.0, levels_f - 1.0)
    qsig = q * (rng * (1.0 / levels_f)) + smin
    qsig_ref[...] = qsig                               # dense (tile_b, d_pad) store

    absq = jnp.abs(qsig)
    if lane_ok is not None:
        absq = jnp.where(lane_ok, absq, 0.0)
    strength = jnp.sum(absq, axis=-1, keepdims=True)   # (tile_b, 1)
    # lane-dense broadcast store; wrapper extracts column 0
    strength_ref[...] = jnp.broadcast_to(strength, strength_ref.shape)


# ----------------------------------------------------------------------------
# Fused lookup table (host side)
# ----------------------------------------------------------------------------
def _build_fused_table(phase_tables, mag_tables):
    """Block-structured MXU LHS:

    row 0 / 1                    : phase value / derivative over cols [0, n_pad)
    rows 8 .. 8+n_hi             : magnitude value, chunk c, over cols [n_pad, n_pad+CHUNK)
    rows 8+n_hi .. 8+2*n_hi      : magnitude derivative, chunk c
    """
    pt = jnp.asarray(phase_tables, jnp.float32)
    mt = jnp.asarray(mag_tables, jnp.float32)
    N = pt.shape[-1]
    M = mt.shape[-1]
    n_pad = _round_up(N, 8)
    m_pad = _round_up(M, CHUNK)
    n_hi = m_pad // CHUNK
    k_tot = n_pad + CHUNK
    r_pad = _round_up(8 + 2 * n_hi, 8)

    mt_p = jnp.zeros((2, m_pad), jnp.float32).at[:, :M].set(mt)
    val_fold = mt_p[0].reshape(n_hi, CHUNK)
    grad_fold = mt_p[1].reshape(n_hi, CHUNK)

    tab = jnp.zeros((r_pad, k_tot), jnp.float32)
    tab = tab.at[0, :N].set(pt[0])
    tab = tab.at[1, :N].set(pt[1])
    tab = tab.at[8:8 + n_hi, n_pad:].set(val_fold)
    tab = tab.at[8 + n_hi:8 + 2 * n_hi, n_pad:].set(grad_fold)
    return tab, n_pad, n_hi, k_tot, r_pad


# ----------------------------------------------------------------------------
# Wrapper
# ----------------------------------------------------------------------------
def quantized_phase_cell_forward(ctx_phase_idx, ctx_mag_idx,
                                 self_phase_idx, self_mag_idx,
                                 phase_tables, mag_tables,
                                 signal_quantization_levels: int = 16):
    """Pallas implementation of QuantizedPhaseCell.forward.

    Index inputs may be [vector_dim] (original module signature) or
    [batch, vector_dim] (many independent cells per call).  Lookup tables are
    [2, N] / [2, M] f32 (row 0 = value, row 1 = derivative).
    Returns (phase_out, mag_out, signal, strength, grad_phase, grad_mag).
    """
    single = jnp.ndim(ctx_phase_idx) == 1

    def to_2d(v):
        v = jnp.asarray(v, jnp.int32)
        return v[None, :] if v.ndim == 1 else v

    cp, cm, sp, sm = map(to_2d, (ctx_phase_idx, ctx_mag_idx,
                                 self_phase_idx, self_mag_idx))
    B, D = cp.shape
    N = int(phase_tables.shape[-1])
    M = int(mag_tables.shape[-1])
    D_pad = _round_up(D, LANE)

    # ---- tiling: cells per matmul group / groups (matmuls) per grid step ----
    grp_b = max(8, (MAX_GRP_LANES // D_pad) // 8 * 8)    # cells per matmul
    grp_b = min(grp_b, _round_up(B, 8))                  # don't over-pad tiny batches
    n_grp = min(max(1, -(-B // grp_b)), MAX_GROUPS_PER_STEP)
    tile_b = grp_b * n_grp                               # cells per grid step
    B_pad = _round_up(B, tile_b)
    n_steps = B_pad // tile_b                            # >=2 steps split across
    W = tile_b * D_pad                                   # v7x's two TensorCores
    grp_w = grp_b * D_pad

    def prep(a):                                         # pad + widen (free reshape)
        a = jnp.pad(a, ((0, B_pad - B), (0, D_pad - D)))
        return a.reshape(n_steps, W)

    packed = jnp.stack([prep(cp), prep(cm), prep(sp), prep(sm)], axis=1)  # (n_steps,4,W)

    tab, n_pad, n_hi, k_tot, r_pad = _build_fused_table(phase_tables, mag_tables)

    wide_f = jax.ShapeDtypeStruct((n_steps, 1, W), jnp.float32)
    wide_i = jax.ShapeDtypeStruct((n_steps, 1, W), jnp.int32)
    wide_spec = pl.BlockSpec((1, 1, W), lambda s: (s, 0, 0))

    gather = functools.partial(
        _gather_kernel, phase_bins=N, mag_bins=M, n_pad=n_pad, n_hi=n_hi,
        grp_w=grp_w, n_grp=n_grp)

    phase_out_w, mag_out_w, sig_w, gph_w, gmg_w = pl.pallas_call(
        gather,
        grid=(n_steps,),
        in_specs=[pl.BlockSpec((1, 4, W), lambda s: (s, 0, 0)),   # one packed DMA
                  pl.BlockSpec((r_pad, k_tot), lambda s: (0, 0))],  # resident table
        out_specs=(wide_spec,) * 5,
        out_shape=(wide_i, wide_i, wide_f, wide_f, wide_f),
        compiler_params=pltpu.CompilerParams(
            dimension_semantics=("parallel",),
            vmem_limit_bytes=32 * 1024 * 1024),
    )(packed, tab)

    # wide (n_steps, 1, W) row-major == natural (B_pad, D_pad) row-major:
    # these reshapes move no data.
    phase_out = phase_out_w.reshape(B_pad, D_pad)
    mag_out = mag_out_w.reshape(B_pad, D_pad)
    grad_phase = gph_w.reshape(B_pad, D_pad)
    grad_mag = gmg_w.reshape(B_pad, D_pad)
    signal_raw = sig_w.reshape(B_pad, D_pad)

    quant = functools.partial(_quantize_kernel,
                              levels=int(signal_quantization_levels), valid_d=D)
    row_spec = pl.BlockSpec((tile_b, D_pad), lambda i: (i, 0))
    qsig, strength = pl.pallas_call(
        quant,
        grid=(B_pad // tile_b,),
        in_specs=[row_spec],
        out_specs=(row_spec, pl.BlockSpec((tile_b, LANE), lambda i: (i, 0))),
        out_shape=(jax.ShapeDtypeStruct((B_pad, D_pad), jnp.float32),
                   jax.ShapeDtypeStruct((B_pad, LANE), jnp.float32)),
        compiler_params=pltpu.CompilerParams(
            dimension_semantics=("parallel",)),
    )(signal_raw)

    phase_out = phase_out[:B, :D]
    mag_out = mag_out[:B, :D]
    qsig = qsig[:B, :D]
    grad_phase = grad_phase[:B, :D]
    grad_mag = grad_mag[:B, :D]
    strength = strength[:B, 0]

    if single:
        return (phase_out[0], mag_out[0], qsig[0], strength[0],
                grad_phase[0], grad_mag[0])
    return phase_out, mag_out, qsig, strength, grad_phase, grad_mag


def _build_lookup_tables(N: int, M: int):
    """Deterministic synthetic high-resolution lookup tables."""
    idx_n = jnp.arange(N, dtype=jnp.float32)
    phase_val = jnp.cos(2.0 * math.pi * idx_n / N)
    phase_grad = -jnp.sin(2.0 * math.pi * idx_n / N) * (2.0 * math.pi / N)
    phase_tables = jnp.stack([phase_val, phase_grad], axis=0)    # (2, N)

    idx_m = jnp.arange(M, dtype=jnp.float32)
    mag_val = idx_m / float(M - 1)
    mag_grad = jnp.full((M,), 1.0 / float(M - 1), dtype=jnp.float32)
    mag_tables = jnp.stack([mag_val, mag_grad], axis=0)          # (2, M)
    return phase_tables, mag_tables


if __name__ == "__main__":
    vector_dim = 128          # vector_dim (lane axis)
    phase_bins = 64           # N (high-resolution: 64 phase bins)
    mag_bins = 1024           # M (high-resolution: 1024 magnitude bins)
    quant_levels = 16
    batch = 16                # independent cells evaluated in one call

    key = jax.random.PRNGKey(0)
    k1, k2, k3, k4 = jax.random.split(key, 4)
    ctx_phase = jax.random.randint(k1, (batch, vector_dim), 0, phase_bins, jnp.int32)
    ctx_mag = jax.random.randint(k2, (batch, vector_dim), 0, mag_bins, jnp.int32)
    self_phase = jax.random.randint(k3, (batch, vector_dim), 0, phase_bins, jnp.int32)
    self_mag = jax.random.randint(k4, (batch, vector_dim), 0, mag_bins, jnp.int32)

    phase_tables, mag_tables = _build_lookup_tables(phase_bins, mag_bins)

    outs = quantized_phase_cell_forward(
        ctx_phase, ctx_mag, self_phase, self_mag,
        phase_tables, mag_tables, signal_quantization_levels=quant_levels)
    outs = jax.block_until_ready(outs)
    p_out, m_out, sig_q, strength, gp, gm = outs

    # pure-JAX reference mirroring the PyTorch module (one cell per row)
    ref_p = (ctx_phase + self_phase) % phase_bins
    ref_m = (ctx_mag + self_mag) % mag_bins
    pv, pg = phase_tables[0][ref_p], phase_tables[1][ref_p]
    mv, mg = mag_tables[0][ref_m], mag_tables[1][ref_m]
    ref_sig = pv * mv
    ref_gp = pg * mv
    ref_gm = pv * mg
    smin = ref_sig.min(axis=1, keepdims=True)
    smax = ref_sig.max(axis=1, keepdims=True)
    rng = smax - smin
    norm = jnp.where(rng > 0, (ref_sig - smin) / rng, jnp.zeros_like(ref_sig))
    q = jnp.clip(jnp.floor(norm * quant_levels), 0, quant_levels - 1)
    ref_q = q / quant_levels * rng + smin
    ref_strength = jnp.sum(jnp.abs(ref_q), axis=1)

    assert jnp.array_equal(p_out, ref_p)
    assert jnp.array_equal(m_out, ref_m)
    assert jnp.allclose(sig_q, ref_q, atol=1e-5)
    assert jnp.allclose(gp, ref_gp, atol=1e-5)
    assert jnp.allclose(gm, ref_gm, atol=1e-5)
    assert jnp.allclose(strength, ref_strength, atol=1e-3)

    # original single-cell module signature ([vector_dim] inputs)
    single = quantized_phase_cell_forward(
        ctx_phase[0], ctx_mag[0], self_phase[0], self_mag[0],
        phase_tables, mag_tables, signal_quantization_levels=quant_levels)
    single = jax.block_until_ready(single)
    assert jnp.array_equal(single[0], ref_p[0])
    assert jnp.array_equal(single[1], ref_m[0])
    assert jnp.allclose(single[2], ref_q[0], atol=1e-5)
    assert jnp.allclose(single[3], ref_strength[0], atol=1e-3)

    print("KERNEL_OK")
</pallas_src>

<mosaic_0001>
module attributes {stable_mosaic.version = 11 : i64} {
  func.func @_gather_kernel(%arg0: i32, %arg1: memref<1x4x2048xi32, #tpu.memory_space<vmem>>, %arg2: memref<40x128xf32, #tpu.memory_space<vmem>>, %arg3: memref<1x1x2048xi32, #tpu.memory_space<vmem>>, %arg4: memref<1x1x2048xi32, #tpu.memory_space<vmem>>, %arg5: memref<1x1x2048xf32, #tpu.memory_space<vmem>>, %arg6: memref<1x1x2048xf32, #tpu.memory_space<vmem>>, %arg7: memref<1x1x2048xf32, #tpu.memory_space<vmem>>) attributes {dimension_semantics = [#tpu.dimension_semantics<parallel>], iteration_bounds = array<i64: 1>, scalar_prefetch = 0 : i64, scratch_operands = 0 : i64, tpu.core_type = #tpu.core_type<tc>, window_params = [{transform_indices = @transform_0, window_bounds = array<i64: 1, 4, 2048>}, {pipeline_mode = #tpu.pipeline_mode<synchronous>, transform_indices = @transform_1, window_bounds = array<i64: 40, 128>}, {transform_indices = @transform_2, window_bounds = array<i64: 1, 1, 2048>}, {transform_indices = @transform_3, window_bounds = array<i64: 1, 1, 2048>}, {transform_indices = @transform_4, window_bounds = array<i64: 1, 1, 2048>}, {transform_indices = @transform_5, window_bounds = array<i64: 1, 1, 2048>}, {transform_indices = @transform_6, window_bounds = array<i64: 1, 1, 2048>}]} {
    %c0 = arith.constant 0 : index
    %c0_0 = arith.constant 0 : index
    %c0_1 = arith.constant 0 : index
    %0 = vector.load %arg1[%c0, %c0_0, %c0_1] : memref<1x4x2048xi32, #tpu.memory_space<vmem>>, vector<1x4x2048xi32>
    %1 = vector.extract_strided_slice %0 {offsets = [0, 0, 0], sizes = [1, 1, 2048], strides = [1, 1, 1]} : vector<1x4x2048xi32> to vector<1x1x2048xi32>
    %2 = vector.shape_cast %1 : vector<1x1x2048xi32> to vector<1x2048xi32>
    %3 = vector.extract_strided_slice %0 {offsets = [0, 1, 0], sizes = [1, 1, 2048], strides = [1, 1, 1]} : vector<1x4x2048xi32> to vector<1x1x2048xi32>
    %4 = vector.shape_cast %3 : vector<1x1x2048xi32> to vector<1x2048xi32>
    %5 = vector.extract_strided_slice %0 {offsets = [0, 2, 0], sizes = [1, 1, 2048], strides = [1, 1, 1]} : vector<1x4x2048xi32> to vector<1x1x2048xi32>
    %6 = vector.shape_cast %5 : vector<1x1x2048xi32> to vector<1x2048xi32>
    %7 = vector.extract_strided_slice %0 {offsets = [0, 3, 0], sizes = [1, 1, 2048], strides = [1, 1, 1]} : vector<1x4x2048xi32> to vector<1x1x2048xi32>
    %8 = vector.shape_cast %7 : vector<1x1x2048xi32> to vector<1x2048xi32>
    %9 = arith.addi %2, %6 : vector<1x2048xi32>
    %c63_i32 = arith.constant 63 : i32
    %10 = vector.broadcast %c63_i32 : i32 to vector<1x2048xi32>
    %11 = arith.andi %9, %10 : vector<1x2048xi32>
    %12 = arith.addi %4, %8 : vector<1x2048xi32>
    %c1023_i32 = arith.constant 1023 : i32
    %13 = vector.broadcast %c1023_i32 : i32 to vector<1x2048xi32>
    %14 = arith.andi %12, %13 : vector<1x2048xi32>
    %c0_2 = arith.constant 0 : index
    %c0_3 = arith.constant 0 : index
    %c0_4 = arith.constant 0 : index
    %15 = vector.load %arg3[%c0_2, %c0_3, %c0_4] : memref<1x1x2048xi32, #tpu.memory_space<vmem>>, vector<1x1x2048xi32>
    %16 = vector.shape_cast %15 : vector<1x1x2048xi32> to vector<1x2048xi32>
    %17 = vector.shape_cast %11 : vector<1x2048xi32> to vector<1x1x2048xi32>
    tpu.vector_store %arg3[%c0_2, %c0_3, %c0_4], %17 {strides = array<i32>} : memref<1x1x2048xi32, #tpu.memory_space<vmem>>, vector<1x1x2048xi32>,
    %c0_5 = arith.constant 0 : index
    %c0_6 = arith.constant 0 : index
    %c0_7 = arith.constant 0 : index
    %18 = vector.load %arg4[%c0_5, %c0_6, %c0_7] : memref<1x1x2048xi32, #tpu.memory_space<vmem>>, vector<1x1x2048xi32>
    %19 = vector.shape_cast %18 : vector<1x1x2048xi32> to vector<1x2048xi32>
    %20 = vector.shape_cast %14 : vector<1x2048xi32> to vector<1x1x2048xi32>
    tpu.vector_store %arg4[%c0_5, %c0_6, %c0_7], %20 {strides = array<i32>} : memref<1x1x2048xi32, #tpu.memory_space<vmem>>, vector<1x1x2048xi32>,
    %c6_i32 = arith.constant 6 : i32
    %21 = vector.broadcast %c6_i32 : i32 to vector<1x2048xi32>
    %22 = arith.shrsi %14, %21 : vector<1x2048xi32>
    %c63_i32_8 = arith.constant 63 : i32
    %23 = vector.broadcast %c63_i32_8 : i32 to vector<1x2048xi32>
    %24 = arith.andi %14, %23 : vector<1x2048xi32>
    %c0_9 = arith.constant 0 : index
    %c0_10 = arith.constant 0 : index
    %25 = vector.load %arg2[%c0_9, %c0_10] : memref<40x128xf32, #tpu.memory_space<vmem>>, vector<40x128xf32>
    %26 = tpu.iota {dimensions = array<i32: 0>} : vector<64x2048xi32>
    %27 = vector.broadcast %11 : vector<1x2048xi32> to vector<64x2048xi32>
    %28 = arith.cmpi eq, %26, %27 : vector<64x2048xi32>
    %29 = arith.extui %28 : vector<64x2048xi1> to vector<64x2048xi32>
    %30 = arith.sitofp %29 : vector<64x2048xi32> to vector<64x2048xf32>
    %31 = tpu.iota {dimensions = array<i32: 0>} : vector<64x2048xi32>
    %32 = vector.broadcast %24 : vector<1x2048xi32> to vector<64x2048xi32>
    %33 = arith.cmpi eq, %31, %32 : vector<64x2048xi32>
    %34 = arith.extui %33 : vector<64x2048xi1> to vector<64x2048xi32>
    %35 = arith.sitofp %34 : vector<64x2048xi32> to vector<64x2048xf32>
    %36 = tpu.concatenate %30, %35 in 0 : vector<64x2048xf32>, vector<64x2048xf32> -> vector<128x2048xf32>
    %cst = arith.constant dense<0.000000e+00> : vector<40x2048xf32>
    %37 = tpu.matmul %25, %36, %cst {dimension_numbers = #tpu.dot_dimension_numbers<[1], [0], [0], [1], [0, 0, 1, 1], [], []>, precision = #tpu.contract_precision<fp32>} : vector<40x128xf32>, vector<128x2048xf32>, vector<40x2048xf32> -> vector<40x2048xf32>
    %38 = vector.extract_strided_slice %37 {offsets = [0, 0], sizes = [1, 2048], strides = [1, 1]} : vector<40x2048xf32> to vector<1x2048xf32>
    %39 = vector.extract_strided_slice %37 {offsets = [1, 0], sizes = [1, 2048], strides = [1, 1]} : vector<40x2048xf32> to vector<1x2048xf32>
    %40 = vector.extract_strided_slice %37 {offsets = [8, 0], sizes = [16, 2048], strides = [1, 1]} : vector<40x2048xf32> to vector<16x2048xf32>
    %41 = vector.extract_strided_slice %37 {offsets = [24, 0], sizes = [16, 2048], strides = [1, 1]} : vector<40x2048xf32> to vector<16x2048xf32>
    %42 = tpu.iota {dimensions = array<i32: 0>} : vector<16x2048xi32>
    %43 = vector.broadcast %22 : vector<1x2048xi32> to vector<16x2048xi32>
    %44 = arith.cmpi eq, %42, %43 : vector<16x2048xi32>
    %cst_11 = arith.constant 0.000000e+00 : f32
    %45 = vector.broadcast %cst_11 : f32 to vector<16x2048xf32>
    %46 = arith.select %44, %40, %45 : vector<16x2048xi1>, vector<16x2048xf32>
    %cst_12 = arith.constant dense<0.000000e+00> : vector<2048xf32>
    %47 = vector.multi_reduction <add>, %46, %cst_12 [0] : vector<16x2048xf32> to vector<2048xf32>
    %48 = vector.shape_cast %47 : vector<2048xf32> to vector<1x2048xf32>
    %cst_13 = arith.constant 0.000000e+00 : f32
    %49 = vector.broadcast %cst_13 : f32 to vector<16x2048xf32>
    %50 = arith.select %44, %41, %49 : vector<16x2048xi1>, vector<16x2048xf32>
    %cst_14 = arith.constant dense<0.000000e+00> : vector<2048xf32>
    %51 = vector.multi_reduction <add>, %50, %cst_14 [0] : vector<16x2048xf32> to vector<2048xf32>
    %52 = vector.shape_cast %51 : vector<2048xf32> to vector<1x2048xf32>
    %53 = arith.mulf %38, %48 : vector<1x2048xf32>
    %c0_15 = arith.constant 0 : index
    %c0_16 = arith.constant 0 : index
    %c0_17 = arith.constant 0 : index
    %54 = vector.load %arg5[%c0_15, %c0_16, %c0_17] : memref<1x1x2048xf32, #tpu.memory_space<vmem>>, vector<1x1x2048xf32>
    %55 = vector.shape_cast %54 : vector<1x1x2048xf32> to vector<1x2048xf32>
    %56 = vector.shape_cast %53 : vector<1x2048xf32> to vector<1x1x2048xf32>
    tpu.vector_store %arg5[%c0_15, %c0_16, %c0_17], %56 {strides = array<i32>} : memref<1x1x2048xf32, #tpu.memory_space<vmem>>, vector<1x1x2048xf32>,
    %57 = arith.mulf %39, %48 : vector<1x2048xf32>
    %c0_18 = arith.constant 0 : index
    %c0_19 = arith.constant 0 : index
    %c0_20 = arith.constant 0 : index
    %58 = vector.load %arg6[%c0_18, %c0_19, %c0_20] : memref<1x1x2048xf32, #tpu.memory_space<vmem>>, vector<1x1x2048xf32>
    %59 = vector.shape_cast %58 : vector<1x1x2048xf32> to vector<1x2048xf32>
    %60 = vector.shape_cast %57 : vector<1x2048xf32> to vector<1x1x2048xf32>
    tpu.vector_store %arg6[%c0_18, %c0_19, %c0_20], %60 {strides = array<i32>} : memref<1x1x2048xf32, #tpu.memory_space<vmem>>, vector<1x1x2048xf32>,
    %61 = arith.mulf %38, %52 : vector<1x2048xf32>
    %c0_21 = arith.constant 0 : index
    %c0_22 = arith.constant 0 : index
    %c0_23 = arith.constant 0 : index
    %62 = vector.load %arg7[%c0_21, %c0_22, %c0_23] : memref<1x1x2048xf32, #tpu.memory_space<vmem>>, vector<1x1x2048xf32>
    %63 = vector.shape_cast %62 : vector<1x1x2048xf32> to vector<1x2048xf32>
    %64 = vector.shape_cast %61 : vector<1x2048xf32> to vector<1x1x2048xf32>
    tpu.vector_store %arg7[%c0_21, %c0_22, %c0_23], %64 {strides = array<i32>} : memref<1x1x2048xf32, #tpu.memory_space<vmem>>, vector<1x1x2048xf32>,
    return
  }
  func.func @transform_0(%arg0: i32) -> (i32, i32, i32) {
    %c0_i32 = arith.constant 0 : i32
    %c0_i32_0 = arith.constant 0 : i32
    %c0_i32_1 = arith.constant 0 : i32
    return %arg0, %c0_i32, %c0_i32_0 : i32, i32, i32
  }
  func.func @transform_1(%arg0: i32) -> (i32, i32) {
    %c0_i32 = arith.constant 0 : i32
    %c0_i32_0 = arith.constant 0 : i32
    %c0_i32_1 = arith.constant 0 : i32
    return %c0_i32, %c0_i32_0 : i32, i32
  }
  func.func @transform_2(%arg0: i32) -> (i32, i32, i32) {
    %c0_i32 = arith.constant 0 : i32
    %c0_i32_0 = arith.constant 0 : i32
    %c0_i32_1 = arith.constant 0 : i32
    return %arg0, %c0_i32, %c0_i32_0 : i32, i32, i32
  }
  func.func @transform_3(%arg0: i32) -> (i32, i32, i32) {
    %c0_i32 = arith.constant 0 : i32
    %c0_i32_0 = arith.constant 0 : i32
    %c0_i32_1 = arith.constant 0 : i32
    return %arg0, %c0_i32, %c0_i32_0 : i32, i32, i32
  }
  func.func @transform_4(%arg0: i32) -> (i32, i32, i32) {
    %c0_i32 = arith.constant 0 : i32
    %c0_i32_0 = arith.constant 0 : i32
    %c0_i32_1 = arith.constant 0 : i32
    return %arg0, %c0_i32, %c0_i32_0 : i32, i32, i32
  }
  func.func @transform_5(%arg0: i32) -> (i32, i32, i32) {
    %c0_i32 = arith.constant 0 : i32
    %c0_i32_0 = arith.constant 0 : i32
    %c0_i32_1 = arith.constant 0 : i32
    return %arg0, %c0_i32, %c0_i32_0 : i32, i32, i32
  }
  func.func @transform_6(%arg0: i32) -> (i32, i32, i32) {
    %c0_i32 = arith.constant 0 : i32
    %c0_i32_0 = arith.constant 0 : i32
    %c0_i32_1 = arith.constant 0 : i32
    return %arg0, %c0_i32, %c0_i32_0 : i32, i32, i32
  }
}

</mosaic_0001>

<llo_original>
// kernel: tpu_custom_call.1
$region0: #{tpu_custom_call.1}
  #allocation0 [shape = 'u32[]', space=smem, size = 0x4, offset = 0x4, fixed_abs, tag = 'smem constant byte address 0x4 - core index']
  #allocation1 [shape = 'u32[144,128]{1,0:T(1,128)}', space=vmem, size = 0x12000, scoped, tag = 'internal scratch']
  %s0 = inlined_call_operand.hbm [shape: s32[1,4,2048], index: 0, kind: input, shape index: {}]
  %s1 = inlined_call_operand.hbm [shape: f32[40,128], index: 1, kind: input, shape index: {}]
  %s2 = inlined_call_operand.hbm [shape: s32[1,1,2048], index: 2, kind: output, shape index: {0}]
  %s3 = inlined_call_operand.hbm [shape: s32[1,1,2048], index: 3, kind: output, shape index: {1}]
  %s4 = inlined_call_operand.hbm [shape: f32[1,1,2048], index: 4, kind: output, shape index: {2}]
  %s5 = inlined_call_operand.hbm [shape: f32[1,1,2048], index: 5, kind: output, shape index: {3}]
  %s6 = inlined_call_operand.hbm [shape: f32[1,1,2048], index: 6, kind: output, shape index: {4}]
  %7 = xla_tuple %s2, %s3, %s4, %s5, %s6
  %s8 = sld [smem:[#allocation0]]
  $region58: #{tpu_custom_call.1} parent=0
    _
  %s10 = ssub.s32 1, %s8
  %s11 = scalar_select 0, %s10, %s8
  $region1: #{tpu_custom_call.1} parent=0
    #allocation2 [shape = 'u8[32768]{0}', space=vmem, size = 0x8000, scoped, tag = 'input window, operand 0, single buffered']
    #allocation3 [shape = 's32[1]{0}', space=sflag, size = 0x4, scoped, tag = 'scoped memory for tpu_custom_call.1']
    #allocation4 [shape = 's32[1]{0}', space=sflag, size = 0x4, scoped, tag = 'scoped memory for tpu_custom_call.1']
    #allocation5 [shape = 'u8[20480]{0}', space=vmem, size = 0x5000, scoped, tag = 'input window, operand 1, single buffered']
    #allocation6 [shape = 's32[1]{0}', space=sflag, size = 0x4, scoped, tag = 'scoped memory for tpu_custom_call.1']
    #allocation7 [shape = 'u8[8192]{0}', space=vmem, size = 0x2000, scoped, tag = 'output window, operand 0, single buffered']
    #allocation8 [shape = 'u8[8192]{0}', space=vmem, size = 0x2000, scoped, tag = 'output window, operand 1, single buffered']
    #allocation9 [shape = 's32[1]{0}', space=sflag, size = 0x4, scoped, tag = 'scoped memory for tpu_custom_call.1']
    #allocation10 [shape = 'u8[8192]{0}', space=vmem, size = 0x2000, scoped, tag = 'output window, operand 2, single buffered']
    #allocation11 [shape = 'u8[8192]{0}', space=vmem, size = 0x2000, scoped, tag = 'output window, operand 3, single buffered']
    #allocation12 [shape = 's32[1]{0}', space=sflag, size = 0x4, scoped, tag = 'scoped memory for tpu_custom_call.1']
    #allocation13 [shape = 'u8[8192]{0}', space=vmem, size = 0x2000, scoped, tag = 'output window, operand 4, single buffered']
    %12 = vsyncpa [#allocation3], 0
    %13 = vsyncpa [#allocation6], 0
    %14 = vsyncpa [#allocation4], 0
    %15 = vsyncpa [#allocation9], 0
    %16 = vsyncpa [#allocation12], 0
    // Predicated region
    $region2: #{tpu_custom_call.1} parent=1 // pred_check
      _
    $region3: #{tpu_custom_call.1} parent=1 // pred_check_branch
      %18 = sbr.rel (0) target = $region5
    $region4: #{tpu_custom_call.1} parent=1 // pred_region
      %s20 = ssub.s32 1024, 1024
      %21 = vsyncadd [#allocation3], %s20
      %s23 = sshll.u32 [#allocation2], 4
      %s24 = int_to_ptr.vmem [resolvable:$true] %s23
      %26 = dma.hbm_to_vmem [thread:$0]  %s0, 1024, %s24, [#allocation3]
    $region5: #{tpu_custom_call.1} parent=1 // pred_fallthru
      _
    // Predicated region
    $region6: #{tpu_custom_call.1} parent=1 // pred_check
      _
    $region7: #{tpu_custom_call.1} parent=1 // pred_check_branch
      %28 = sbr.rel (0) target = $region9
    $region8: #{tpu_custom_call.1} parent=1 // pred_region
      %s30 = ssub.s32 640, 640
      %31 = vsyncadd [#allocation6], %s30
      %s32 = sshll.u32 [#allocation5], 4
      %s33 = int_to_ptr.vmem [resolvable:$true] %s32
      %38 = dma.hbm_to_vmem [thread:$0]  %s1, 640, %s33, [#allocation6], 128, 128, 8
    $region9: #{tpu_custom_call.1} parent=1 // pred_fallthru
      _
    // Predicated region
    $region10: #{tpu_custom_call.1} parent=1 // pred_check
      _
    $region11: #{tpu_custom_call.1} parent=1 // pred_check_branch
      %40 = sbr.rel (0) target = $region13
    $region12: #{tpu_custom_call.1} parent=1 // pred_region
      %41 = dma.done [#allocation3], 1024
    $region13: #{tpu_custom_call.1} parent=1 // pred_fallthru
      _
    // Predicated region
    $region14: #{tpu_custom_call.1} parent=1 // pred_check
      _
    $region15: #{tpu_custom_call.1} parent=1 // pred_check_branch
      %43 = sbr.rel (0) target = $region17
    $region16: #{tpu_custom_call.1} parent=1 // pred_region
      %44 = dma.done [#allocation6], 640
    $region17: #{tpu_custom_call.1} parent=1 // pred_fallthru
      _
    %v45 = vld [vmem:[#allocation2] sm:$0xff]
    %v46 = vld [vmem:[#allocation2 + $0x8] sm:$0xff]
    %v47 = vld [vmem:[#allocation2 + $0x10] sm:$0xff]
    %v48 = vld [vmem:[#allocation2 + $0x18] sm:$0xff]
    %v49 = vld [vmem:[#allocation2 + $0x20] sm:$0xff]
    %v50 = vld [vmem:[#allocation2 + $0x28] sm:$0xff]
    %v51 = vld [vmem:[#allocation2 + $0x30] sm:$0xff]
    %v52 = vld [vmem:[#allocation2 + $0x38] sm:$0xff]
    %v53 = vrot.slane %v45, 6
    %v54 = vrot.slane %v53, 4
    %v55 = vrot.slane %v46, 6
    %v56 = vrot.slane %v55, 4
    %v57 = vrot.slane %v47, 6
    %v58 = vrot.slane %v57, 4
    %v59 = vrot.slane %v48, 6
    %v60 = vrot.slane %v59, 4
    %v61 = vrot.slane %v49, 6
    %v62 = vrot.slane %v61, 4
    %v63 = vrot.slane %v50, 6
    %v64 = vrot.slane %v63, 4
    %v65 = vrot.slane %v51, 6
    %v66 = vrot.slane %v65, 4
    %v67 = vrot.slane %v52, 6
    %v68 = vrot.slane %v67, 4
    %v69 = vadd.s32 %v45, %v54
    %v70 = vadd.s32 %v46, %v56
    %v71 = vadd.s32 %v47, %v58
    %v72 = vadd.s32 %v48, %v60
    %v73 = vadd.s32 %v49, %v62
    %v74 = vadd.s32 %v50, %v64
    %v75 = vadd.s32 %v51, %v66
    %v76 = vadd.s32 %v52, %v68
    %v77 = vand.u32 %v69, 63
    %v78 = vand.u32 %v70, 63
    %v79 = vand.u32 %v71, 63
    %v80 = vand.u32 %v72, 63
    %v81 = vand.u32 %v73, 63
    %v82 = vand.u32 %v74, 63
    %v83 = vand.u32 %v75, 63
    %v84 = vand.u32 %v76, 63
    %v85 = vand.u32 %v69, 1023
    %v86 = vand.u32 %v70, 1023
    %v87 = vand.u32 %v71, 1023
    %v88 = vand.u32 %v72, 1023
    %v89 = vand.u32 %v73, 1023
    %v90 = vand.u32 %v74, 1023
    %v91 = vand.u32 %v75, 1023
    %v92 = vand.u32 %v76, 1023
    %v94 = vunpack.c.l.s4 1966171168
    %v95 = vunpack.c.0.s8 %v94
    %v96 = vlaneseq
    %v97 = vshrl.u32 %v96, 7
    %v98 = vsub.s32 %v95, %v97
    %v99 = vrot.slane %v77, %v98
    %v101 = vunpack.c.l.s4 1966171168
    %v102 = vunpack.c.0.s8 %v101
    %v103 = vlaneseq
    %v104 = vshrl.u32 %v103, 7
    %v105 = vsub.s32 %v102, %v104
    %v106 = vrot.slane %v78, %v105
    %v108 = vunpack.c.l.s4 1966171168
    %v109 = vunpack.c.0.s8 %v108
    %v110 = vlaneseq
    %v111 = vshrl.u32 %v110, 7
    %v112 = vsub.s32 %v109, %v111
    %v113 = vrot.slane %v79, %v112
    %v115 = vunpack.c.l.s4 1966171168
    %v116 = vunpack.c.0.s8 %v115
    %v117 = vlaneseq
    %v118 = vshrl.u32 %v117, 7
    %v119 = vsub.s32 %v116, %v118
    %v120 = vrot.slane %v80, %v119
    %v121 = vcombine.low %v99, %v106
    %v122 = vcombine.low %v113, %v120
    %v124 = vunpack.c.l.s4 1966171168
    %v125 = vunpack.c.0.s8 %v124
    %v126 = vlaneseq
    %v127 = vshrl.u32 %v126, 7
    %v128 = vsub.s32 %v125, %v127
    %v129 = vrot.slane %v121, %v128
    %v131 = vunpack.c.l.s4 1966171168
    %v132 = vunpack.c.0.s8 %v131
    %v133 = vlaneseq
    %v134 = vshrl.u32 %v133, 7
    %v135 = vsub.s32 %v132, %v134
    %v136 = vrot.slane %v122, %v135
    %v137 = vcombine.low %v129, %v136
    %v139 = vunpack.c.l.s4 1966171168
    %v140 = vunpack.c.0.s8 %v139
    %v141 = vlaneseq
    %v142 = vshrl.u32 %v141, 7
    %v143 = vsub.s32 %v140, %v142
    %v144 = vrot.slane %v81, %v143
    %v146 = vunpack.c.l.s4 1966171168
    %v147 = vunpack.c.0.s8 %v146
    %v148 = vlaneseq
    %v149 = vshrl.u32 %v148, 7
    %v150 = vsub.s32 %v147, %v149
    %v151 = vrot.slane %v82, %v150
    %v153 = vunpack.c.l.s4 1966171168
    %v154 = vunpack.c.0.s8 %v153
    %v155 = vlaneseq
    %v156 = vshrl.u32 %v155, 7
    %v157 = vsub.s32 %v154, %v156
    %v158 = vrot.slane %v83, %v157
    %v160 = vunpack.c.l.s4 1966171168
    %v161 = vunpack.c.0.s8 %v160
    %v162 = vlaneseq
    %v163 = vshrl.u32 %v162, 7
    %v164 = vsub.s32 %v161, %v163
    %v165 = vrot.slane %v84, %v164
    %v166 = vcombine.low %v144, %v151
    %v167 = vcombine.low %v158, %v165
    %v169 = vunpack.c.l.s4 1966171168
    %v170 = vunpack.c.0.s8 %v169
    %v171 = vlaneseq
    %v172 = vshrl.u32 %v171, 7
    %v173 = vsub.s32 %v170, %v172
    %v174 = vrot.slane %v166, %v173
    %v176 = vunpack.c.l.s4 1966171168
    %v177 = vunpack.c.0.s8 %v176
    %v178 = vlaneseq
    %v179 = vshrl.u32 %v178, 7
    %v180 = vsub.s32 %v177, %v179
    %v181 = vrot.slane %v167, %v180
    %v182 = vcombine.low %v174, %v181
    %183 = vst [vmem:[#allocation7] sm:$0xff] %v137
    %184 = vst [vmem:[#allocation7 + $0x8] sm:$0xff] %v182
    %v186 = vunpack.c.l.s4 1966171168
    %v187 = vunpack.c.0.s8 %v186
    %v188 = vlaneseq
    %v189 = vshrl.u32 %v188, 7
    %v190 = vsub.s32 %v187, %v189
    %v191 = vrot.slane %v85, %v190
    %v193 = vunpack.c.l.s4 1966171168
    %v194 = vunpack.c.0.s8 %v193
    %v195 = vlaneseq
    %v196 = vshrl.u32 %v195, 7
    %v197 = vsub.s32 %v194, %v196
    %v198 = vrot.slane %v86, %v197
    %v200 = vunpack.c.l.s4 1966171168
    %v201 = vunpack.c.0.s8 %v200
    %v202 = vlaneseq
    %v203 = vshrl.u32 %v202, 7
    %v204 = vsub.s32 %v201, %v203
    %v205 = vrot.slane %v87, %v204
    %v207 = vunpack.c.l.s4 1966171168
    %v208 = vunpack.c.0.s8 %v207
    %v209 = vlaneseq
    %v210 = vshrl.u32 %v209, 7
    %v211 = vsub.s32 %v208, %v210
    %v212 = vrot.slane %v88, %v211
    %v213 = vcombine.high %v191, %v198
    %v214 = vcombine.high %v205, %v212
    %v216 = vunpack.c.l.s4 1966171168
    %v217 = vunpack.c.0.s8 %v216
    %v218 = vlaneseq
    %v219 = vshrl.u32 %v218, 7
    %v220 = vsub.s32 %v217, %v219
    %v221 = vrot.slane %v213, %v220
    %v223 = vunpack.c.l.s4 1966171168
    %v224 = vunpack.c.0.s8 %v223
    %v225 = vlaneseq
    %v226 = vshrl.u32 %v225, 7
    %v227 = vsub.s32 %v224, %v226
    %v228 = vrot.slane %v214, %v227
    %v229 = vcombine.low %v221, %v228
    %v231 = vunpack.c.l.s4 1966171168
    %v232 = vunpack.c.0.s8 %v231
    %v233 = vlaneseq
    %v234 = vshrl.u32 %v233, 7
    %v235 = vsub.s32 %v232, %v234
    %v236 = vrot.slane %v89, %v235
    %v238 = vunpack.c.l.s4 1966171168
    %v239 = vunpack.c.0.s8 %v238
    %v240 = vlaneseq
    %v241 = vshrl.u32 %v240, 7
    %v242 = vsub.s32 %v239, %v241
    %v243 = vrot.slane %v90, %v242
    %v245 = vunpack.c.l.s4 1966171168
    %v246 = vunpack.c.0.s8 %v245
    %v247 = vlaneseq
    %v248 = vshrl.u32 %v247, 7
    %v249 = vsub.s32 %v246, %v248
    %v250 = vrot.slane %v91, %v249
    %v252 = vunpack.c.l.s4 1966171168
    %v253 = vunpack.c.0.s8 %v252
    %v254 = vlaneseq
    %v255 = vshrl.u32 %v254, 7
    %v256 = vsub.s32 %v253, %v255
    %v257 = vrot.slane %v92, %v256
    %v258 = vcombine.high %v236, %v243
    %v259 = vcombine.high %v250, %v257
    %v261 = vunpack.c.l.s4 1966171168
    %v262 = vunpack.c.0.s8 %v261
    %v263 = vlaneseq
    %v264 = vshrl.u32 %v263, 7
    %v265 = vsub.s32 %v262, %v264
    %v266 = vrot.slane %v258, %v265
    %v268 = vunpack.c.l.s4 1966171168
    %v269 = vunpack.c.0.s8 %v268
    %v270 = vlaneseq
    %v271 = vshrl.u32 %v270, 7
    %v272 = vsub.s32 %v269, %v271
    %v273 = vrot.slane %v259, %v272
    %v274 = vcombine.low %v266, %v273
    %275 = vst [vmem:[#allocation8] sm:$0xff] %v229
    %276 = vst [vmem:[#allocation8 + $0x8] sm:$0xff] %v274
    %v277 = vshra.s32 %v85, 6
    %v278 = vshra.s32 %v86, 6
    %v279 = vshra.s32 %v87, 6
    %v280 = vshra.s32 %v88, 6
    %v281 = vshra.s32 %v89, 6
    %v282 = vshra.s32 %v90, 6
    %v283 = vshra.s32 %v91, 6
    %v284 = vshra.s32 %v92, 6
    %v285 = vand.u32 %v85, 63
    %v286 = vand.u32 %v86, 63
    %v287 = vand.u32 %v87, 63
    %v288 = vand.u32 %v88, 63
    %v289 = vand.u32 %v89, 63
    %v290 = vand.u32 %v90, 63
    %v291 = vand.u32 %v91, 63
    %v292 = vand.u32 %v92, 63
    %v293 = vld [vmem:[#allocation5] sm:$0xff]
    %v294 = vld [vmem:[#allocation5 + $0x8] sm:$0xff]
    %v295 = vld [vmem:[#allocation5 + $0x10] sm:$0xff]
    %v296 = vld [vmem:[#allocation5 + $0x18] sm:$0xff]
    %v297 = vld [vmem:[#allocation5 + $0x20] sm:$0xff]
    %v298 = vlaneseq
    %v299 = vshrl.u32 %v298, 7
    %v300 = vadd.s32 %v299, 8
    %v301 = vadd.s32 %v299, 16
    %v302 = vadd.s32 %v299, 24
    %v303 = vadd.s32 %v299, 32
    %v304 = vadd.s32 %v299, 40
    %v305 = vadd.s32 %v299, 48
    %v306 = vadd.s32 %v299, 56
    %v307 = vlaneseq
    %v308 = vshrl.u32 %v307, 7
    %v309 = vsub.s32 0, %v308
    %v310 = vrot.slane %v77, %v309
    %v311 = vlaneseq
    %v312 = vshrl.u32 %v311, 7
    %v313 = vsub.s32 4, %v312
    %v314 = vrot.slane %v77, %v313
    %v315 = vlaneseq
    %v316 = vshrl.u32 %v315, 7
    %v317 = vsub.s32 0, %v316
    %v318 = vrot.slane %v78, %v317
    %v319 = vlaneseq
    %v320 = vshrl.u32 %v319, 7
    %v321 = vsub.s32 4, %v320
    %v322 = vrot.slane %v78, %v321
    %v323 = vlaneseq
    %v324 = vshrl.u32 %v323, 7
    %v325 = vsub.s32 0, %v324
    %v326 = vrot.slane %v79, %v325
    %v327 = vlaneseq
    %v328 = vshrl.u32 %v327, 7
    %v329 = vsub.s32 4, %v328
    %v330 = vrot.slane %v79, %v329
    %v331 = vlaneseq
    %v332 = vshrl.u32 %v331, 7
    %v333 = vsub.s32 0, %v332
    %v334 = vrot.slane %v80, %v333
    %v335 = vlaneseq
    %v336 = vshrl.u32 %v335, 7
    %v337 = vsub.s32 4, %v336
    %v338 = vrot.slane %v80, %v337
    %v339 = vlaneseq
    %v340 = vshrl.u32 %v339, 7
    %v341 = vsub.s32 0, %v340
    %v342 = vrot.slane %v81, %v341
    %v343 = vlaneseq
    %v344 = vshrl.u32 %v343, 7
    %v345 = vsub.s32 4, %v344
    %v346 = vrot.slane %v81, %v345
    %v347 = vlaneseq
    %v348 = vshrl.u32 %v347, 7
    %v349 = vsub.s32 0, %v348
    %v350 = vrot.slane %v82, %v349
    %v351 = vlaneseq
    %v352 = vshrl.u32 %v351, 7
    %v353 = vsub.s32 4, %v352
    %v354 = vrot.slane %v82, %v353
    %v355 = vlaneseq
    %v356 = vshrl.u32 %v355, 7
    %v357 = vsub.s32 0, %v356
    %v358 = vrot.slane %v83, %v357
    %v359 = vlaneseq
    %v360 = vshrl.u32 %v359, 7
    %v361 = vsub.s32 4, %v360
    %v362 = vrot.slane %v83, %v361
    %v363 = vlaneseq
    %v364 = vshrl.u32 %v363, 7
    %v365 = vsub.s32 0, %v364
    %v366 = vrot.slane %v84, %v365
    %v367 = vlaneseq
    %v368 = vshrl.u32 %v367, 7
    %v369 = vsub.s32 4, %v368
    %v370 = vrot.slane %v84, %v369
    %v371 = vlaneseq
    %v372 = vshrl.u32 %v371, 7
    %v373 = vsub.s32 0, %v372
    %v374 = vrot.slane %v310, %v373
    %v375 = vlaneseq
    %v376 = vshrl.u32 %v375, 7
    %v377 = vsub.s32 0, %v376
    %v378 = vrot.slane %v314, %v377
    %v379 = vlaneseq
    %v380 = vshrl.u32 %v379, 7
    %v381 = vsub.s32 0, %v380
    %v382 = vrot.slane %v318, %v381
    %v383 = vlaneseq
    %v384 = vshrl.u32 %v383, 7
    %v385 = vsub.s32 0, %v384
    %v386 = vrot.slane %v322, %v385
    %v387 = vlaneseq
    %v388 = vshrl.u32 %v387, 7
    %v389 = vsub.s32 0, %v388
    %v390 = vrot.slane %v326, %v389
    %v391 = vlaneseq
    %v392 = vshrl.u32 %v391, 7
    %v393 = vsub.s32 0, %v392
    %v394 = vrot.slane %v330, %v393
    %v395 = vlaneseq
    %v396 = vshrl.u32 %v395, 7
    %v397 = vsub.s32 0, %v396
    %v398 = vrot.slane %v334, %v397
    %v399 = vlaneseq
    %v400 = vshrl.u32 %v399, 7
    %v401 = vsub.s32 0, %v400
    %v402 = vrot.slane %v338, %v401
    %v403 = vlaneseq
    %v404 = vshrl.u32 %v403, 7
    %v405 = vsub.s32 0, %v404
    %v406 = vrot.slane %v342, %v405
    %v407 = vlaneseq
    %v408 = vshrl.u32 %v407, 7
    %v409 = vsub.s32 0, %v408
    %v410 = vrot.slane %v346, %v409
    %v411 = vlaneseq
    %v412 = vshrl.u32 %v411, 7
    %v413 = vsub.s32 0, %v412
    %v414 = vrot.slane %v350, %v413
    %v415 = vlaneseq
    %v416 = vshrl.u32 %v415, 7
    %v417 = vsub.s32 0, %v416
    %v418 = vrot.slane %v354, %v417
    %v419 = vlaneseq
    %v420 = vshrl.u32 %v419, 7
    %v421 = vsub.s32 0, %v420
    %v422 = vrot.slane %v358, %v421
    %v423 = vlaneseq
    %v424 = vshrl.u32 %v423, 7
    %v425 = vsub.s32 0, %v424
    %v426 = vrot.slane %v362, %v425
    %v427 = vlaneseq
    %v428 = vshrl.u32 %v427, 7
    %v429 = vsub.s32 0, %v428
    %v430 = vrot.slane %v366, %v429
    %v431 = vlaneseq
    %v432 = vshrl.u32 %v431, 7
    %v433 = vsub.s32 0, %v432
    %v434 = vrot.slane %v370, %v433
    %vm435 = vcmp.eq.s32.totalorder %v299, %v374
    %vm436 = vcmp.eq.s32.totalorder %v299, %v378
    %vm437 = vcmp.eq.s32.totalorder %v299, %v382
    %vm438 = vcmp.eq.s32.totalorder %v299, %v386
    %vm439 = vcmp.eq.s32.totalorder %v299, %v390
    %vm440 = vcmp.eq.s32.totalorder %v299, %v394
    %vm441 = vcmp.eq.s32.totalorder %v299, %v398
    %vm442 = vcmp.eq.s32.totalorder %v299, %v402
    %vm443 = vcmp.eq.s32.totalorder %v299, %v406
    %vm444 = vcmp.eq.s32.totalorder %v299, %v410
    %vm445 = vcmp.eq.s32.totalorder %v299, %v414
    %vm446 = vcmp.eq.s32.totalorder %v299, %v418
    %vm447 = vcmp.eq.s32.totalorder %v299, %v422
    %vm448 = vcmp.eq.s32.totalorder %v299, %v426
    %vm449 = vcmp.eq.s32.totalorder %v299, %v430
    %vm450 = vcmp.eq.s32.totalorder %v299, %v434
    %vm451 = vcmp.eq.s32.totalorder %v300, %v374
    %vm452 = vcmp.eq.s32.totalorder %v300, %v378
    %vm453 = vcmp.eq.s32.totalorder %v300, %v382
    %vm454 = vcmp.eq.s32.totalorder %v300, %v386
    %vm455 = vcmp.eq.s32.totalorder %v300, %v390
    %vm456 = vcmp.eq.s32.totalorder %v300, %v394
    %vm457 = vcmp.eq.s32.totalorder %v300, %v398
    %vm458 = vcmp.eq.s32.totalorder %v300, %v402
    %vm459 = vcmp.eq.s32.totalorder %v300, %v406
    %vm460 = vcmp.eq.s32.totalorder %v300, %v410
    %vm461 = vcmp.eq.s32.totalorder %v300, %v414
    %vm462 = vcmp.eq.s32.totalorder %v300, %v418
    %vm463 = vcmp.eq.s32.totalorder %v300, %v422
    %vm464 = vcmp.eq.s32.totalorder %v300, %v426
    %vm465 = vcmp.eq.s32.totalorder %v300, %v430
    %vm466 = vcmp.eq.s32.totalorder %v300, %v434
    %vm467 = vcmp.eq.s32.totalorder %v301, %v374
    %vm468 = vcmp.eq.s32.totalorder %v301, %v378
    %vm469 = vcmp.eq.s32.totalorder %v301, %v382
    %vm470 = vcmp.eq.s32.totalorder %v301, %v386
    %vm471 = vcmp.eq.s32.totalorder %v301, %v390
    %vm472 = vcmp.eq.s32.totalorder %v301, %v394
    %vm473 = vcmp.eq.s32.totalorder %v301, %v398
    %vm474 = vcmp.eq.s32.totalorder %v301, %v402
    %vm475 = vcmp.eq.s32.totalorder %v301, %v406
    %vm476 = vcmp.eq.s32.totalorder %v301, %v410
    %vm477 = vcmp.eq.s32.totalorder %v301, %v414
    %vm478 = vcmp.eq.s32.totalorder %v301, %v418
    %vm479 = vcmp.eq.s32.totalorder %v301, %v422
    %vm480 = vcmp.eq.s32.totalorder %v301, %v426
    %vm481 = vcmp.eq.s32.totalorder %v301, %v430
    %vm482 = vcmp.eq.s32.totalorder %v301, %v434
    %vm483 = vcmp.eq.s32.totalorder %v302, %v374
    %vm484 = vcmp.eq.s32.totalorder %v302, %v378
    %vm485 = vcmp.eq.s32.totalorder %v302, %v382
    %vm486 = vcmp.eq.s32.totalorder %v302, %v386
    %vm487 = vcmp.eq.s32.totalorder %v302, %v390
    %vm488 = vcmp.eq.s32.totalorder %v302, %v394
    %vm489 = vcmp.eq.s32.totalorder %v302, %v398
    %vm490 = vcmp.eq.s32.totalorder %v302, %v402
    %vm491 = vcmp.eq.s32.totalorder %v302, %v406
    %vm492 = vcmp.eq.s32.totalorder %v302, %v410
    %vm493 = vcmp.eq.s32.totalorder %v302, %v414
    %vm494 = vcmp.eq.s32.totalorder %v302, %v418
    %vm495 = vcmp.eq.s32.totalorder %v302, %v422
    %vm496 = vcmp.eq.s32.totalorder %v302, %v426
    %vm497 = vcmp.eq.s32.totalorder %v302, %v430
    %vm498 = vcmp.eq.s32.totalorder %v302, %v434
    %vm499 = vcmp.eq.s32.totalorder %v303, %v374
    %vm500 = vcmp.eq.s32.totalorder %v303, %v378
    %vm501 = vcmp.eq.s32.totalorder %v303, %v382
    %vm502 = vcmp.eq.s32.totalorder %v303, %v386
    %vm503 = vcmp.eq.s32.totalorder %v303, %v390
    %vm504 = vcmp.eq.s32.totalorder %v303, %v394
    %vm505 = vcmp.eq.s32.totalorder %v303, %v398
    %vm506 = vcmp.eq.s32.totalorder %v303, %v402
    %vm507 = vcmp.eq.s32.totalorder %v303, %v406
    %vm508 = vcmp.eq.s32.totalorder %v303, %v410
    %vm509 = vcmp.eq.s32.totalorder %v303, %v414
    %vm510 = vcmp.eq.s32.totalorder %v303, %v418
    %vm511 = vcmp.eq.s32.totalorder %v303, %v422
    %vm512 = vcmp.eq.s32.totalorder %v303, %v426
    %vm513 = vcmp.eq.s32.totalorder %v303, %v430
    %vm514 = vcmp.eq.s32.totalorder %v303, %v434
    %vm515 = vcmp.eq.s32.totalorder %v304, %v374
    %vm516 = vcmp.eq.s32.totalorder %v304, %v378
    %vm517 = vcmp.eq.s32.totalorder %v304, %v382
    %vm518 = vcmp.eq.s32.totalorder %v304, %v386
    %vm519 = vcmp.eq.s32.totalorder %v304, %v390
    %vm520 = vcmp.eq.s32.totalorder %v304, %v394
    %vm521 = vcmp.eq.s32.totalorder %v304, %v398
    %vm522 = vcmp.eq.s32.totalorder %v304, %v402
    %vm523 = vcmp.eq.s32.totalorder %v304, %v406
    %vm524 = vcmp.eq.s32.totalorder %v304, %v410
    %vm525 = vcmp.eq.s32.totalorder %v304, %v414
    %vm526 = vcmp.eq.s32.totalorder %v304, %v418
    %vm527 = vcmp.eq.s32.totalorder %v304, %v422
    %vm528 = vcmp.eq.s32.totalorder %v304, %v426
    %vm529 = vcmp.eq.s32.totalorder %v304, %v430
    %vm530 = vcmp.eq.s32.totalorder %v304, %v434
    %vm531 = vcmp.eq.s32.totalorder %v305, %v374
    %vm532 = vcmp.eq.s32.totalorder %v305, %v378
    %vm533 = vcmp.eq.s32.totalorder %v305, %v382
    %vm534 = vcmp.eq.s32.totalorder %v305, %v386
    %vm535 = vcmp.eq.s32.totalorder %v305, %v390
    %vm536 = vcmp.eq.s32.totalorder %v305, %v394
    %vm537 = vcmp.eq.s32.totalorder %v305, %v398
    %vm538 = vcmp.eq.s32.totalorder %v305, %v402
    %vm539 = vcmp.eq.s32.totalorder %v305, %v406
    %vm540 = vcmp.eq.s32.totalorder %v305, %v410
    %vm541 = vcmp.eq.s32.totalorder %v305, %v414
    %vm542 = vcmp.eq.s32.totalorder %v305, %v418
    %vm543 = vcmp.eq.s32.totalorder %v305, %v422
    %vm544 = vcmp.eq.s32.totalorder %v305, %v426
    %vm545 = vcmp.eq.s32.totalorder %v305, %v430
    %vm546 = vcmp.eq.s32.totalorder %v305, %v434
    %vm547 = vcmp.eq.s32.totalorder %v306, %v374
    %vm548 = vcmp.eq.s32.totalorder %v306, %v378
    %vm549 = vcmp.eq.s32.totalorder %v306, %v382
    %vm550 = vcmp.eq.s32.totalorder %v306, %v386
    %vm551 = vcmp.eq.s32.totalorder %v306, %v390
    %vm552 = vcmp.eq.s32.totalorder %v306, %v394
    %vm553 = vcmp.eq.s32.totalorder %v306, %v398
    %vm554 = vcmp.eq.s32.totalorder %v306, %v402
    %vm555 = vcmp.eq.s32.totalorder %v306, %v406
    %vm556 = vcmp.eq.s32.totalorder %v306, %v410
    %vm557 = vcmp.eq.s32.totalorder %v306, %v414
    %vm558 = vcmp.eq.s32.totalorder %v306, %v418
    %vm559 = vcmp.eq.s32.totalorder %v306, %v422
    %vm560 = vcmp.eq.s32.totalorder %v306, %v426
    %vm561 = vcmp.eq.s32.totalorder %v306, %v430
    %vm562 = vcmp.eq.s32.totalorder %v306, %v434
    %v563 = vsel %vm435, 1, 0
    %v564 = vsel %vm436, 1, 0
    %v565 = vsel %vm437, 1, 0
    %v566 = vsel %vm438, 1, 0
    %v567 = vsel %vm439, 1, 0
    %v568 = vsel %vm440, 1, 0
    %v569 = vsel %vm441, 1, 0
    %v570 = vsel %vm442, 1, 0
    %v571 = vsel %vm443, 1, 0
    %v572 = vsel %vm444, 1, 0
    %v573 = vsel %vm445, 1, 0
    %v574 = vsel %vm446, 1, 0
    %v575 = vsel %vm447, 1, 0
    %v576 = vsel %vm448, 1, 0
    %v577 = vsel %vm449, 1, 0
    %v578 = vsel %vm450, 1, 0
    %v579 = vsel %vm451, 1, 0
    %v580 = vsel %vm452, 1, 0
    %v581 = vsel %vm453, 1, 0
    %v582 = vsel %vm454, 1, 0
    %v583 = vsel %vm455, 1, 0
    %v584 = vsel %vm456, 1, 0
    %v585 = vsel %vm457, 1, 0
    %v586 = vsel %vm458, 1, 0
    %v587 = vsel %vm459, 1, 0
    %v588 = vsel %vm460, 1, 0
    %v589 = vsel %vm461, 1, 0
    %v590 = vsel %vm462, 1, 0
    %v591 = vsel %vm463, 1, 0
    %v592 = vsel %vm464, 1, 0
    %v593 = vsel %vm465, 1, 0
    %v594 = vsel %vm466, 1, 0
    %v595 = vsel %vm467, 1, 0
    %v596 = vsel %vm468, 1, 0
    %v597 = vsel %vm469, 1, 0
    %v598 = vsel %vm470, 1, 0
    %v599 = vsel %vm471, 1, 0
    %v600 = vsel %vm472, 1, 0
    %v601 = vsel %vm473, 1, 0
    %v602 = vsel %vm474, 1, 0
    %v603 = vsel %vm475, 1, 0
    %v604 = vsel %vm476, 1, 0
    %v605 = vsel %vm477, 1, 0
    %v606 = vsel %vm478, 1, 0
    %v607 = vsel %vm479, 1, 0
    %v608 = vsel %vm480, 1, 0
    %v609 = vsel %vm481, 1, 0
    %v610 = vsel %vm482, 1, 0
    %v611 = vsel %vm483, 1, 0
    %v612 = vsel %vm484, 1, 0
    %v613 = vsel %vm485, 1, 0
    %v614 = vsel %vm486, 1, 0
    %v615 = vsel %vm487, 1, 0
    %v616 = vsel %vm488, 1, 0
    %v617 = vsel %vm489, 1, 0
    %v618 = vsel %vm490, 1, 0
    %v619 = vsel %vm491, 1, 0
    %v620 = vsel %vm492, 1, 0
    %v621 = vsel %vm493, 1, 0
    %v622 = vsel %vm494, 1, 0
    %v623 = vsel %vm495, 1, 0
    %v624 = vsel %vm496, 1, 0
    %v625 = vsel %vm497, 1, 0
    %v626 = vsel %vm498, 1, 0
    %v627 = vsel %vm499, 1, 0
    %v628 = vsel %vm500, 1, 0
    %v629 = vsel %vm501, 1, 0
    %v630 = vsel %vm502, 1, 0
    %v631 = vsel %vm503, 1, 0
    %v632 = vsel %vm504, 1, 0
    %v633 = vsel %vm505, 1, 0
    %v634 = vsel %vm506, 1, 0
    %v635 = vsel %vm507, 1, 0
    %v636 = vsel %vm508, 1, 0
    %v637 = vsel %vm509, 1, 0
    %v638 = vsel %vm510, 1, 0
    %v639 = vsel %vm511, 1, 0
    %v640 = vsel %vm512, 1, 0
    %v641 = vsel %vm513, 1, 0
    %v642 = vsel %vm514, 1, 0
    %v643 = vsel %vm515, 1, 0
    %v644 = vsel %vm516, 1, 0
    %v645 = vsel %vm517, 1, 0
    %v646 = vsel %vm518, 1, 0
    %v647 = vsel %vm519, 1, 0
    %v648 = vsel %vm520, 1, 0
    %v649 = vsel %vm521, 1, 0
    %v650 = vsel %vm522, 1, 0
    %v651 = vsel %vm523, 1, 0
    %v652 = vsel %vm524, 1, 0
    %v653 = vsel %vm525, 1, 0
    %v654 = vsel %vm526, 1, 0
    %v655 = vsel %vm527, 1, 0
    %v656 = vsel %vm528, 1, 0
    %v657 = vsel %vm529, 1, 0
    %v658 = vsel %vm530, 1, 0
    %v659 = vsel %vm531, 1, 0
    %v660 = vsel %vm532, 1, 0
    %v661 = vsel %vm533, 1, 0
    %v662 = vsel %vm534, 1, 0
    %v663 = vsel %vm535, 1, 0
    %v664 = vsel %vm536, 1, 0
    %v665 = vsel %vm537, 1, 0
    %v666 = vsel %vm538, 1, 0
    %v667 = vsel %vm539, 1, 0
    %v668 = vsel %vm540, 1, 0
    %v669 = vsel %vm541, 1, 0
    %v670 = vsel %vm542, 1, 0
    %v671 = vsel %vm543, 1, 0
    %v672 = vsel %vm544, 1, 0
    %v673 = vsel %vm545, 1, 0
    %v674 = vsel %vm546, 1, 0
    %v675 = vsel %vm547, 1, 0
    %v676 = vsel %vm548, 1, 0
    %v677 = vsel %vm549, 1, 0
    %v678 = vsel %vm550, 1, 0
    %v679 = vsel %vm551, 1, 0
    %v680 = vsel %vm552, 1, 0
    %v681 = vsel %vm553, 1, 0
    %v682 = vsel %vm554, 1, 0
    %v683 = vsel %vm555, 1, 0
    %v684 = vsel %vm556, 1, 0
    %v685 = vsel %vm557, 1, 0
    %v686 = vsel %vm558, 1, 0
    %v687 = vsel %vm559, 1, 0
    %v688 = vsel %vm560, 1, 0
    %v689 = vsel %vm561, 1, 0
    %v690 = vsel %vm562, 1, 0
    %v691 = vcvt.s32.f32 %v563
    %v692 = vcvt.s32.f32 %v564
    %v693 = vcvt.s32.f32 %v565
    %v694 = vcvt.s32.f32 %v566
    %v695 = vcvt.s32.f32 %v567
    %v696 = vcvt.s32.f32 %v568
    %v697 = vcvt.s32.f32 %v569
    %v698 = vcvt.s32.f32 %v570
    %v699 = vcvt.s32.f32 %v571
    %v700 = vcvt.s32.f32 %v572
    %v701 = vcvt.s32.f32 %v573
    %v702 = vcvt.s32.f32 %v574
    %v703 = vcvt.s32.f32 %v575
    %v704 = vcvt.s32.f32 %v576
    %v705 = vcvt.s32.f32 %v577
    %v706 = vcvt.s32.f32 %v578
    %v707 = vcvt.s32.f32 %v579
    %v708 = vcvt.s32.f32 %v580
    %v709 = vcvt.s32.f32 %v581
    %v710 = vcvt.s32.f32 %v582
    %v711 = vcvt.s32.f32 %v583
    %v712 = vcvt.s32.f32 %v584
    %v713 = vcvt.s32.f32 %v585
    %v714 = vcvt.s32.f32 %v586
    %v715 = vcvt.s32.f32 %v587
    %v716 = vcvt.s32.f32 %v588
    %v717 = vcvt.s32.f32 %v589
    %v718 = vcvt.s32.f32 %v590
    %v719 = vcvt.s32.f32 %v591
    %v720 = vcvt.s32.f32 %v592
    %v721 = vcvt.s32.f32 %v593
    %v722 = vcvt.s32.f32 %v594
    %v723 = vcvt.s32.f32 %v595
    %v724 = vcvt.s32.f32 %v596
    %v725 = vcvt.s32.f32 %v597
    %v726 = vcvt.s32.f32 %v598
    %v727 = vcvt.s32.f32 %v599
    %v728 = vcvt.s32.f32 %v600
    %v729 = vcvt.s32.f32 %v601
    %v730 = vcvt.s32.f32 %v602
    %v731 = vcvt.s32.f32 %v603
    %v732 = vcvt.s32.f32 %v604
    %v733 = vcvt.s32.f32 %v605
    %v734 = vcvt.s32.f32 %v606
    %v735 = vcvt.s32.f32 %v607
    %v736 = vcvt.s32.f32 %v608
    %v737 = vcvt.s32.f32 %v609
    %v738 = vcvt.s32.f32 %v610
    %v739 = vcvt.s32.f32 %v611
    %v740 = vcvt.s32.f32 %v612
    %v741 = vcvt.s32.f32 %v613
    %v742 = vcvt.s32.f32 %v614
    %v743 = vcvt.s32.f32 %v615
    %v744 = vcvt.s32.f32 %v616
    %v745 = vcvt.s32.f32 %v617
    %v746 = vcvt.s32.f32 %v618
    %v747 = vcvt.s32.f32 %v619
    %v748 = vcvt.s32.f32 %v620
    %v749 = vcvt.s32.f32 %v621
    %v750 = vcvt.s32.f32 %v622
    %v751 = vcvt.s32.f32 %v623
    %v752 = vcvt.s32.f32 %v624
    %v753 = vcvt.s32.f32 %v625
    %v754 = vcvt.s32.f32 %v626
    %v755 = vcvt.s32.f32 %v627
    %v756 = vcvt.s32.f32 %v628
    %v757 = vcvt.s32.f32 %v629
    %v758 = vcvt.s32.f32 %v630
    %v759 = vcvt.s32.f32 %v631
    %v760 = vcvt.s32.f32 %v632
    %v761 = vcvt.s32.f32 %v633
    %v762 = vcvt.s32.f32 %v634
    %v763 = vcvt.s32.f32 %v635
    %v764 = vcvt.s32.f32 %v636
    %v765 = vcvt.s32.f32 %v637
    %v766 = vcvt.s32.f32 %v638
    %v767 = vcvt.s32.f32 %v639
    %v768 = vcvt.s32.f32 %v640
    %v769 = vcvt.s32.f32 %v641
    %v770 = vcvt.s32.f32 %v642
    %v771 = vcvt.s32.f32 %v643
    %v772 = vcvt.s32.f32 %v644
    %v773 = vcvt.s32.f32 %v645
    %v774 = vcvt.s32.f32 %v646
    %v775 = vcvt.s32.f32 %v647
    %v776 = vcvt.s32.f32 %v648
    %v777 = vcvt.s32.f32 %v649
    %v778 = vcvt.s32.f32 %v650
    %v779 = vcvt.s32.f32 %v651
    %v780 = vcvt.s32.f32 %v652
    %v781 = vcvt.s32.f32 %v653
    %v782 = vcvt.s32.f32 %v654
    %v783 = vcvt.s32.f32 %v655
    %v784 = vcvt.s32.f32 %v656
    %v785 = vcvt.s32.f32 %v657
    %v786 = vcvt.s32.f32 %v658
    %v787 = vcvt.s32.f32 %v659
    %v788 = vcvt.s32.f32 %v660
    %v789 = vcvt.s32.f32 %v661
    %v790 = vcvt.s32.f32 %v662
    %v791 = vcvt.s32.f32 %v663
    %v792 = vcvt.s32.f32 %v664
    %v793 = vcvt.s32.f32 %v665
    %v794 = vcvt.s32.f32 %v666
    %v795 = vcvt.s32.f32 %v667
    %v796 = vcvt.s32.f32 %v668
    %v797 = vcvt.s32.f32 %v669
    %v798 = vcvt.s32.f32 %v670
    %v799 = vcvt.s32.f32 %v671
    %v800 = vcvt.s32.f32 %v672
    %v801 = vcvt.s32.f32 %v673
    %v802 = vcvt.s32.f32 %v674
    %v803 = vcvt.s32.f32 %v675
    %v804 = vcvt.s32.f32 %v676
    %v805 = vcvt.s32.f32 %v677
    %v806 = vcvt.s32.f32 %v678
    %v807 = vcvt.s32.f32 %v679
    %v808 = vcvt.s32.f32 %v680
    %v809 = vcvt.s32.f32 %v681
    %v810 = vcvt.s32.f32 %v682
    %v811 = vcvt.s32.f32 %v683
    %v812 = vcvt.s32.f32 %v684
    %v813 = vcvt.s32.f32 %v685
    %v814 = vcvt.s32.f32 %v686
    %v815 = vcvt.s32.f32 %v687
    %v816 = vcvt.s32.f32 %v688
    %v817 = vcvt.s32.f32 %v689
    %v818 = vcvt.s32.f32 %v690
    %v819 = vlaneseq
    %v820 = vshrl.u32 %v819, 7
    %v821 = vsub.s32 1, %v820
    %v822 = vrot.slane %v285, %v821
    %v823 = vlaneseq
    %v824 = vshrl.u32 %v823, 7
    %v825 = vsub.s32 5, %v824
    %v826 = vrot.slane %v285, %v825
    %v827 = vlaneseq
    %v828 = vshrl.u32 %v827, 7
    %v829 = vsub.s32 1, %v828
    %v830 = vrot.slane %v286, %v829
    %v831 = vlaneseq
    %v832 = vshrl.u32 %v831, 7
    %v833 = vsub.s32 5, %v832
    %v834 = vrot.slane %v286, %v833
    %v835 = vlaneseq
    %v836 = vshrl.u32 %v835, 7
    %v837 = vsub.s32 1, %v836
    %v838 = vrot.slane %v287, %v837
    %v839 = vlaneseq
    %v840 = vshrl.u32 %v839, 7
    %v841 = vsub.s32 5, %v840
    %v842 = vrot.slane %v287, %v841
    %v843 = vlaneseq
    %v844 = vshrl.u32 %v843, 7
    %v845 = vsub.s32 1, %v844
    %v846 = vrot.slane %v288, %v845
    %v847 = vlaneseq
    %v848 = vshrl.u32 %v847, 7
    %v849 = vsub.s32 5, %v848
    %v850 = vrot.slane %v288, %v849
    %v851 = vlaneseq
    %v852 = vshrl.u32 %v851, 7
    %v853 = vsub.s32 1, %v852
    %v854 = vrot.slane %v289, %v853
    %v855 = vlaneseq
    %v856 = vshrl.u32 %v855, 7
    %v857 = vsub.s32 5, %v856
    %v858 = vrot.slane %v289, %v857
    %v859 = vlaneseq
    %v860 = vshrl.u32 %v859, 7
    %v861 = vsub.s32 1, %v860
    %v862 = vrot.slane %v290, %v861
    %v863 = vlaneseq
    %v864 = vshrl.u32 %v863, 7
    %v865 = vsub.s32 5, %v864
    %v866 = vrot.slane %v290, %v865
    %v867 = vlaneseq
    %v868 = vshrl.u32 %v867, 7
    %v869 = vsub.s32 1, %v868
    %v870 = vrot.slane %v291, %v869
    %v871 = vlaneseq
    %v872 = vshrl.u32 %v871, 7
    %v873 = vsub.s32 5, %v872
    %v874 = vrot.slane %v291, %v873
    %v875 = vlaneseq
    %v876 = vshrl.u32 %v875, 7
    %v877 = vsub.s32 1, %v876
    %v878 = vrot.slane %v292, %v877
    %v879 = vlaneseq
    %v880 = vshrl.u32 %v879, 7
    %v881 = vsub.s32 5, %v880
    %v882 = vrot.slane %v292, %v881
    %v883 = vlaneseq
    %v884 = vshrl.u32 %v883, 7
    %v885 = vsub.s32 1, %v884
    %v886 = vrot.slane %v822, %v885
    %v887 = vlaneseq
    %v888 = vshrl.u32 %v887, 7
    %v889 = vsub.s32 1, %v888
    %v890 = vrot.slane %v826, %v889
    %v891 = vlaneseq
    %v892 = vshrl.u32 %v891, 7
    %v893 = vsub.s32 1, %v892
    %v894 = vrot.slane %v830, %v893
    %v895 = vlaneseq
    %v896 = vshrl.u32 %v895, 7
    %v897 = vsub.s32 1, %v896
    %v898 = vrot.slane %v834, %v897
    %v899 = vlaneseq
    %v900 = vshrl.u32 %v899, 7
    %v901 = vsub.s32 1, %v900
    %v902 = vrot.slane %v838, %v901
    %v903 = vlaneseq
    %v904 = vshrl.u32 %v903, 7
    %v905 = vsub.s32 1, %v904
    %v906 = vrot.slane %v842, %v905
    %v907 = vlaneseq
    %v908 = vshrl.u32 %v907, 7
    %v909 = vsub.s32 1, %v908
    %v910 = vrot.slane %v846, %v909
    %v911 = vlaneseq
    %v912 = vshrl.u32 %v911, 7
    %v913 = vsub.s32 1, %v912
    %v914 = vrot.slane %v850, %v913
    %v915 = vlaneseq
    %v916 = vshrl.u32 %v915, 7
    %v917 = vsub.s32 1, %v916
    %v918 = vrot.slane %v854, %v917
    %v919 = vlaneseq
    %v920 = vshrl.u32 %v919, 7
    %v921 = vsub.s32 1, %v920
    %v922 = vrot.slane %v858, %v921
    %v923 = vlaneseq
    %v924 = vshrl.u32 %v923, 7
    %v925 = vsub.s32 1, %v924
    %v926 = vrot.slane %v862, %v925
    %v927 = vlaneseq
    %v928 = vshrl.u32 %v927, 7
    %v929 = vsub.s32 1, %v928
    %v930 = vrot.slane %v866, %v929
    %v931 = vlaneseq
    %v932 = vshrl.u32 %v931, 7
    %v933 = vsub.s32 1, %v932
    %v934 = vrot.slane %v870, %v933
    %v935 = vlaneseq
    %v936 = vshrl.u32 %v935, 7
    %v937 = vsub.s32 1, %v936
    %v938 = vrot.slane %v874, %v937
    %v939 = vlaneseq
    %v940 = vshrl.u32 %v939, 7
    %v941 = vsub.s32 1, %v940
    %v942 = vrot.slane %v878, %v941
    %v943 = vlaneseq
    %v944 = vshrl.u32 %v943, 7
    %v945 = vsub.s32 1, %v944
    %v946 = vrot.slane %v882, %v945
    %vm947 = vcmp.eq.s32.totalorder %v299, %v886
    %vm948 = vcmp.eq.s32.totalorder %v299, %v890
    %vm949 = vcmp.eq.s32.totalorder %v299, %v894
    %vm950 = vcmp.eq.s32.totalorder %v299, %v898
    %vm951 = vcmp.eq.s32.totalorder %v299, %v902
    %vm952 = vcmp.eq.s32.totalorder %v299, %v906
    %vm953 = vcmp.eq.s32.totalorder %v299, %v910
    %vm954 = vcmp.eq.s32.totalorder %v299, %v914
    %vm955 = vcmp.eq.s32.totalorder %v299, %v918
    %vm956 = vcmp.eq.s32.totalorder %v299, %v922
    %vm957 = vcmp.eq.s32.totalorder %v299, %v926
    %vm958 = vcmp.eq.s32.totalorder %v299, %v930
    %vm959 = vcmp.eq.s32.totalorder %v299, %v934
    %vm960 = vcmp.eq.s32.totalorder %v299, %v938
    %vm961 = vcmp.eq.s32.totalorder %v299, %v942
    %vm962 = vcmp.eq.s32.totalorder %v299, %v946
    %vm963 = vcmp.eq.s32.totalorder %v300, %v886
    %vm964 = vcmp.eq.s32.totalorder %v300, %v890
    %vm965 = vcmp.eq.s32.totalorder %v300, %v894
    %vm966 = vcmp.eq.s32.totalorder %v300, %v898
    %vm967 = vcmp.eq.s32.totalorder %v300, %v902
    %vm968 = vcmp.eq.s32.totalorder %v300, %v906
    %vm969 = vcmp.eq.s32.totalorder %v300, %v910
    %vm970 = vcmp.eq.s32.totalorder %v300, %v914
    %vm971 = vcmp.eq.s32.totalorder %v300, %v918
    %vm972 = vcmp.eq.s32.totalorder %v300, %v922
    %vm973 = vcmp.eq.s32.totalorder %v300, %v926
    %vm974 = vcmp.eq.s32.totalorder %v300, %v930
    %vm975 = vcmp.eq.s32.totalorder %v300, %v934
    %vm976 = vcmp.eq.s32.totalorder %v300, %v938
    %vm977 = vcmp.eq.s32.totalorder %v300, %v942
    %vm978 = vcmp.eq.s32.totalorder %v300, %v946
    %vm979 = vcmp.eq.s32.totalorder %v301, %v886
    %vm980 = vcmp.eq.s32.totalorder %v301, %v890
    %vm981 = vcmp.eq.s32.totalorder %v301, %v894
    %vm982 = vcmp.eq.s32.totalorder %v301, %v898
    %vm983 = vcmp.eq.s32.totalorder %v301, %v902
    %vm984 = vcmp.eq.s32.totalorder %v301, %v906
    %vm985 = vcmp.eq.s32.totalorder %v301, %v910
    %vm986 = vcmp.eq.s32.totalorder %v301, %v914
    %vm987 = vcmp.eq.s32.totalorder %v301, %v918
    %vm988 = vcmp.eq.s32.totalorder %v301, %v922
    %vm989 = vcmp.eq.s32.totalorder %v301, %v926
    %vm990 = vcmp.eq.s32.totalorder %v301, %v930
    %vm991 = vcmp.eq.s32.totalorder %v301, %v934
    %vm992 = vcmp.eq.s32.totalorder %v301, %v938
    %vm993 = vcmp.eq.s32.totalorder %v301, %v942
    %vm994 = vcmp.eq.s32.totalorder %v301, %v946
    %vm995 = vcmp.eq.s32.totalorder %v302, %v886
    %vm996 = vcmp.eq.s32.totalorder %v302, %v890
    %vm997 = vcmp.eq.s32.totalorder %v302, %v894
    %vm998 = vcmp.eq.s32.totalorder %v302, %v898
    %vm999 = vcmp.eq.s32.totalorder %v302, %v902
    %vm1000 = vcmp.eq.s32.totalorder %v302, %v906
    %vm1001 = vcmp.eq.s32.totalorder %v302, %v910
    %vm1002 = vcmp.eq.s32.totalorder %v302, %v914
    %vm1003 = vcmp.eq.s32.totalorder %v302, %v918
    %vm1004 = vcmp.eq.s32.totalorder %v302, %v922
    %vm1005 = vcmp.eq.s32.totalorder %v302, %v926
    %vm1006 = vcmp.eq.s32.totalorder %v302, %v930
    %vm1007 = vcmp.eq.s32.totalorder %v302, %v934
    %vm1008 = vcmp.eq.s32.totalorder %v302, %v938
    %vm1009 = vcmp.eq.s32.totalorder %v302, %v942
    %vm1010 = vcmp.eq.s32.totalorder %v302, %v946
    %vm1011 = vcmp.eq.s32.totalorder %v303, %v886
    %vm1012 = vcmp.eq.s32.totalorder %v303, %v890
    %vm1013 = vcmp.eq.s32.totalorder %v303, %v894
    %vm1014 = vcmp.eq.s32.totalorder %v303, %v898
    %vm1015 = vcmp.eq.s32.totalorder %v303, %v902
    %vm1016 = vcmp.eq.s32.totalorder %v303, %v906
    %vm1017 = vcmp.eq.s32.totalorder %v303, %v910
    %vm1018 = vcmp.eq.s32.totalorder %v303, %v914
    %vm1019 = vcmp.eq.s32.totalorder %v303, %v918
    %vm1020 = vcmp.eq.s32.totalorder %v303, %v922
    %vm1021 = vcmp.eq.s32.totalorder %v303, %v926
    %vm1022 = vcmp.eq.s32.totalorder %v303, %v930
    %vm1023 = vcmp.eq.s32.totalorder %v303, %v934
    %vm1024 = vcmp.eq.s32.totalorder %v303, %v938
    %vm1025 = vcmp.eq.s32.totalorder %v303, %v942
    %vm1026 = vcmp.eq.s32.totalorder %v303, %v946
    %vm1027 = vcmp.eq.s32.totalorder %v304, %v886
    %vm1028 = vcmp.eq.s32.totalorder %v304, %v890
    %vm1029 = vcmp.eq.s32.totalorder %v304, %v894
    %vm1030 = vcmp.eq.s32.totalorder %v304, %v898
    %vm1031 = vcmp.eq.s32.totalorder %v304, %v902
    %vm1032 = vcmp.eq.s32.totalorder %v304, %v906
    %vm1033 = vcmp.eq.s32.totalorder %v304, %v910
    %vm1034 = vcmp.eq.s32.totalorder %v304, %v914
    %vm1035 = vcmp.eq.s32.totalorder %v304, %v918
    %vm1036 = vcmp.eq.s32.totalorder %v304, %v922
    %vm1037 = vcmp.eq.s32.totalorder %v304, %v926
    %vm1038 = vcmp.eq.s32.totalorder %v304, %v930
    %vm1039 = vcmp.eq.s32.totalorder %v304, %v934
    %vm1040 = vcmp.eq.s32.totalorder %v304, %v938
    %vm1041 = vcmp.eq.s32.totalorder %v304, %v942
    %vm1042 = vcmp.eq.s32.totalorder %v304, %v946
    %vm1043 = vcmp.eq.s32.totalorder %v305, %v886
    %vm1044 = vcmp.eq.s32.totalorder %v305, %v890
    %vm1045 = vcmp.eq.s32.totalorder %v305, %v894
    %vm1046 = vcmp.eq.s32.totalorder %v305, %v898
    %vm1047 = vcmp.eq.s32.totalorder %v305, %v902
    %vm1048 = vcmp.eq.s32.totalorder %v305, %v906
    %vm1049 = vcmp.eq.s32.totalorder %v305, %v910
    %vm1050 = vcmp.eq.s32.totalorder %v305, %v914
    %vm1051 = vcmp.eq.s32.totalorder %v305, %v918
    %vm1052 = vcmp.eq.s32.totalorder %v305, %v922
    %vm1053 = vcmp.eq.s32.totalorder %v305, %v926
    %vm1054 = vcmp.eq.s32.totalorder %v305, %v930
    %vm1055 = vcmp.eq.s32.totalorder %v305, %v934
    %vm1056 = vcmp.eq.s32.totalorder %v305, %v938
    %vm1057 = vcmp.eq.s32.totalorder %v305, %v942
    %vm1058 = vcmp.eq.s32.totalorder %v305, %v946
    %vm1059 = vcmp.eq.s32.totalorder %v306, %v886
    %vm1060 = vcmp.eq.s32.totalorder %v306, %v890
    %vm1061 = vcmp.eq.s32.totalorder %v306, %v894
    %vm1062 = vcmp.eq.s32.totalorder %v306, %v898
    %vm1063 = vcmp.eq.s32.totalorder %v306, %v902
    %vm1064 = vcmp.eq.s32.totalorder %v306, %v906
    %vm1065 = vcmp.eq.s32.totalorder %v306, %v910
    %vm1066 = vcmp.eq.s32.totalorder %v306, %v914
    %vm1067 = vcmp.eq.s32.totalorder %v306, %v918
    %vm1068 = vcmp.eq.s32.totalorder %v306, %v922
    %vm1069 = vcmp.eq.s32.totalorder %v306, %v926
    %vm1070 = vcmp.eq.s32.totalorder %v306, %v930
    %vm1071 = vcmp.eq.s32.totalorder %v306, %v934
    %vm1072 = vcmp.eq.s32.totalorder %v306, %v938
    %vm1073 = vcmp.eq.s32.totalorder %v306, %v942
    %vm1074 = vcmp.eq.s32.totalorder %v306, %v946
    %v1075 = vsel %vm947, 1, 0
    %v1076 = vsel %vm948, 1, 0
    %v1077 = vsel %vm949, 1, 0
    %v1078 = vsel %vm950, 1, 0
    %v1079 = vsel %vm951, 1, 0
    %v1080 = vsel %vm952, 1, 0
    %v1081 = vsel %vm953, 1, 0
    %v1082 = vsel %vm954, 1, 0
    %v1083 = vsel %vm955, 1, 0
    %v1084 = vsel %vm956, 1, 0
    %v1085 = vsel %vm957, 1, 0
    %v1086 = vsel %vm958, 1, 0
    %v1087 = vsel %vm959, 1, 0
    %v1088 = vsel %vm960, 1, 0
    %v1089 = vsel %vm961, 1, 0
    %v1090 = vsel %vm962, 1, 0
    %v1091 = vsel %vm963, 1, 0
    %v1092 = vsel %vm964, 1, 0
    %v1093 = vsel %vm965, 1, 0
    %v1094 = vsel %vm966, 1, 0
    %v1095 = vsel %vm967, 1, 0
    %v1096 = vsel %vm968, 1, 0
    %v1097 = vsel %vm969, 1, 0
    %v1098 = vsel %vm970, 1, 0
    %v1099 = vsel %vm971, 1, 0
    %v1100 = vsel %vm972, 1, 0
    %v1101 = vsel %vm973, 1, 0
    %v1102 = vsel %vm974, 1, 0
    %v1103 = vsel %vm975, 1, 0
    %v1104 = vsel %vm976, 1, 0
    %v1105 = vsel %vm977, 1, 0
    %v1106 = vsel %vm978, 1, 0
    %v1107 = vsel %vm979, 1, 0
    %v1108 = vsel %vm980, 1, 0
    %v1109 = vsel %vm981, 1, 0
    %v1110 = vsel %vm982, 1, 0
    %v1111 = vsel %vm983, 1, 0
    %v1112 = vsel %vm984, 1, 0
    %v1113 = vsel %vm985, 1, 0
    %v1114 = vsel %vm986, 1, 0
    %v1115 = vsel %vm987, 1, 0
    %v1116 = vsel %vm988, 1, 0
    %v1117 = vsel %vm989, 1, 0
    %v1118 = vsel %vm990, 1, 0
    %v1119 = vsel %vm991, 1, 0
    %v1120 = vsel %vm992, 1, 0
    %v1121 = vsel %vm993, 1, 0
    %v1122 = vsel %vm994, 1, 0
    %v1123 = vsel %vm995, 1, 0
    %v1124 = vsel %vm996, 1, 0
    %v1125 = vsel %vm997, 1, 0
    %v1126 = vsel %vm998, 1, 0
    %v1127 = vsel %vm999, 1, 0
    %v1128 = vsel %vm1000, 1, 0
    %v1129 = vsel %vm1001, 1, 0
    %v1130 = vsel %vm1002, 1, 0
    %v1131 = vsel %vm1003, 1, 0
    %v1132 = vsel %vm1004, 1, 0
    %v1133 = vsel %vm1005, 1, 0
    %v1134 = vsel %vm1006, 1, 0
    %v1135 = vsel %vm1007, 1, 0
    %v1136 = vsel %vm1008, 1, 0
    %v1137 = vsel %vm1009, 1, 0
    %v1138 = vsel %vm1010, 1, 0
    %v1139 = vsel %vm1011, 1, 0
    %v1140 = vsel %vm1012, 1, 0
    %v1141 = vsel %vm1013, 1, 0
    %v1142 = vsel %vm1014, 1, 0
    %v1143 = vsel %vm1015, 1, 0
    %v1144 = vsel %vm1016, 1, 0
    %v1145 = vsel %vm1017, 1, 0
    %v1146 = vsel %vm1018, 1, 0
    %v1147 = vsel %vm1019, 1, 0
    %v1148 = vsel %vm1020, 1, 0
    %v1149 = vsel %vm1021, 1, 0
    %v1150 = vsel %vm1022, 1, 0
    %v1151 = vsel %vm1023, 1, 0
    %v1152 = vsel %vm1024, 1, 0
    %v1153 = vsel %vm1025, 1, 0
    %v1154 = vsel %vm1026, 1, 0
    %v1155 = vsel %vm1027, 1, 0
    %v1156 = vsel %vm1028, 1, 0
    %v1157 = vsel %vm1029, 1, 0
    %v1158 = vsel %vm1030, 1, 0
    %v1159 = vsel %vm1031, 1, 0
    %v1160 = vsel %vm1032, 1, 0
    %v1161 = vsel %vm1033, 1, 0
    %v1162 = vsel %vm1034, 1, 0
    %v1163 = vsel %vm1035, 1, 0
    %v1164 = vsel %vm1036, 1, 0
    %v1165 = vsel %vm1037, 1, 0
    %v1166 = vsel %vm1038, 1, 0
    %v1167 = vsel %vm1039, 1, 0
    %v1168 = vsel %vm1040, 1, 0
    %v1169 = vsel %vm1041, 1, 0
    %v1170 = vsel %vm1042, 1, 0
    %v1171 = vsel %vm1043, 1, 0
    %v1172 = vsel %vm1044, 1, 0
    %v1173 = vsel %vm1045, 1, 0
    %v1174 = vsel %vm1046, 1, 0
    %v1175 = vsel %vm1047, 1, 0
    %v1176 = vsel %vm1048, 1, 0
    %v1177 = vsel %vm1049, 1, 0
    %v1178 = vsel %vm1050, 1, 0
    %v1179 = vsel %vm1051, 1, 0
    %v1180 = vsel %vm1052, 1, 0
    %v1181 = vsel %vm1053, 1, 0
    %v1182 = vsel %vm1054, 1, 0
    %v1183 = vsel %vm1055, 1, 0
    %v1184 = vsel %vm1056, 1, 0
    %v1185 = vsel %vm1057, 1, 0
    %v1186 = vsel %vm1058, 1, 0
    %v1187 = vsel %vm1059, 1, 0
    %v1188 = vsel %vm1060, 1, 0
    %v1189 = vsel %vm1061, 1, 0
    %v1190 = vsel %vm1062, 1, 0
    %v1191 = vsel %vm1063, 1, 0
    %v1192 = vsel %vm1064, 1, 0
    %v1193 = vsel %vm1065, 1, 0
    %v1194 = vsel %vm1066, 1, 0
    %v1195 = vsel %vm1067, 1, 0
    %v1196 = vsel %vm1068, 1, 0
    %v1197 = vsel %vm1069, 1, 0
    %v1198 = vsel %vm1070, 1, 0
    %v1199 = vsel %vm1071, 1, 0
    %v1200 = vsel %vm1072, 1, 0
    %v1201 = vsel %vm1073, 1, 0
    %v1202 = vsel %vm1074, 1, 0
    %v1203 = vcvt.s32.f32 %v1075
    %v1204 = vcvt.s32.f32 %v1076
    %v1205 = vcvt.s32.f32 %v1077
    %v1206 = vcvt.s32.f32 %v1078
    %v1207 = vcvt.s32.f32 %v1079
    %v1208 = vcvt.s32.f32 %v1080
    %v1209 = vcvt.s32.f32 %v1081
    %v1210 = vcvt.s32.f32 %v1082
    %v1211 = vcvt.s32.f32 %v1083
    %v1212 = vcvt.s32.f32 %v1084
    %v1213 = vcvt.s32.f32 %v1085
    %v1214 = vcvt.s32.f32 %v1086
    %v1215 = vcvt.s32.f32 %v1087
    %v1216 = vcvt.s32.f32 %v1088
    %v1217 = vcvt.s32.f32 %v1089
    %v1218 = vcvt.s32.f32 %v1090
    %v1219 = vcvt.s32.f32 %v1091
    %v1220 = vcvt.s32.f32 %v1092
    %v1221 = vcvt.s32.f32 %v1093
    %v1222 = vcvt.s32.f32 %v1094
    %v1223 = vcvt.s32.f32 %v1095
    %v1224 = vcvt.s32.f32 %v1096
    %v1225 = vcvt.s32.f32 %v1097
    %v1226 = vcvt.s32.f32 %v1098
    %v1227 = vcvt.s32.f32 %v1099
    %v1228 = vcvt.s32.f32 %v1100
    %v1229 = vcvt.s32.f32 %v1101
    %v1230 = vcvt.s32.f32 %v1102
    %v1231 = vcvt.s32.f32 %v1103
    %v1232 = vcvt.s32.f32 %v1104
    %v1233 = vcvt.s32.f32 %v1105
    %v1234 = vcvt.s32.f32 %v1106
    %v1235 = vcvt.s32.f32 %v1107
    %v1236 = vcvt.s32.f32 %v1108
    %v1237 = vcvt.s32.f32 %v1109
    %v1238 = vcvt.s32.f32 %v1110
    %v1239 = vcvt.s32.f32 %v1111
    %v1240 = vcvt.s32.f32 %v1112
    %v1241 = vcvt.s32.f32 %v1113
    %v1242 = vcvt.s32.f32 %v1114
    %v1243 = vcvt.s32.f32 %v1115
    %v1244 = vcvt.s32.f32 %v1116
    %v1245 = vcvt.s32.f32 %v1117
    %v1246 = vcvt.s32.f32 %v1118
    %v1247 = vcvt.s32.f32 %v1119
    %v1248 = vcvt.s32.f32 %v1120
    %v1249 = vcvt.s32.f32 %v1121
    %v1250 = vcvt.s32.f32 %v1122
    %v1251 = vcvt.s32.f32 %v1123
    %v1252 = vcvt.s32.f32 %v1124
    %v1253 = vcvt.s32.f32 %v1125
    %v1254 = vcvt.s32.f32 %v1126
    %v1255 = vcvt.s32.f32 %v1127
    %v1256 = vcvt.s32.f32 %v1128
    %v1257 = vcvt.s32.f32 %v1129
    %v1258 = vcvt.s32.f32 %v1130
    %v1259 = vcvt.s32.f32 %v1131
    %v1260 = vcvt.s32.f32 %v1132
    %v1261 = vcvt.s32.f32 %v1133
    %v1262 = vcvt.s32.f32 %v1134
    %v1263 = vcvt.s32.f32 %v1135
    %v1264 = vcvt.s32.f32 %v1136
    %v1265 = vcvt.s32.f32 %v1137
    %v1266 = vcvt.s32.f32 %v1138
    %v1267 = vcvt.s32.f32 %v1139
    %v1268 = vcvt.s32.f32 %v1140
    %v1269 = vcvt.s32.f32 %v1141
    %v1270 = vcvt.s32.f32 %v1142
    %v1271 = vcvt.s32.f32 %v1143
    %v1272 = vcvt.s32.f32 %v1144
    %v1273 = vcvt.s32.f32 %v1145
    %v1274 = vcvt.s32.f32 %v1146
    %v1275 = vcvt.s32.f32 %v1147
    %v1276 = vcvt.s32.f32 %v1148
    %v1277 = vcvt.s32.f32 %v1149
    %v1278 = vcvt.s32.f32 %v1150
    %v1279 = vcvt.s32.f32 %v1151
    %v1280 = vcvt.s32.f32 %v1152
    %v1281 = vcvt.s32.f32 %v1153
    %v1282 = vcvt.s32.f32 %v1154
    %v1283 = vcvt.s32.f32 %v1155
    %v1284 = vcvt.s32.f32 %v1156
    %v1285 = vcvt.s32.f32 %v1157
    %v1286 = vcvt.s32.f32 %v1158
    %v1287 = vcvt.s32.f32 %v1159
    %v1288 = vcvt.s32.f32 %v1160
    %v1289 = vcvt.s32.f32 %v1161
    %v1290 = vcvt.s32.f32 %v1162
    %v1291 = vcvt.s32.f32 %v1163
    %v1292 = vcvt.s32.f32 %v1164
    %v1293 = vcvt.s32.f32 %v1165
    %v1294 = vcvt.s32.f32 %v1166
    %v1295 = vcvt.s32.f32 %v1167
    %v1296 = vcvt.s32.f32 %v1168
    %v1297 = vcvt.s32.f32 %v1169
    %v1298 = vcvt.s32.f32 %v1170
    %v1299 = vcvt.s32.f32 %v1171
    %v1300 = vcvt.s32.f32 %v1172
    %v1301 = vcvt.s32.f32 %v1173
    %v1302 = vcvt.s32.f32 %v1174
    %v1303 = vcvt.s32.f32 %v1175
    %v1304 = vcvt.s32.f32 %v1176
    %v1305 = vcvt.s32.f32 %v1177
    %v1306 = vcvt.s32.f32 %v1178
    %v1307 = vcvt.s32.f32 %v1179
    %v1308 = vcvt.s32.f32 %v1180
    %v1309 = vcvt.s32.f32 %v1181
    %v1310 = vcvt.s32.f32 %v1182
    %v1311 = vcvt.s32.f32 %v1183
    %v1312 = vcvt.s32.f32 %v1184
    %v1313 = vcvt.s32.f32 %v1185
    %v1314 = vcvt.s32.f32 %v1186
    %v1315 = vcvt.s32.f32 %v1187
    %v1316 = vcvt.s32.f32 %v1188
    %v1317 = vcvt.s32.f32 %v1189
    %v1318 = vcvt.s32.f32 %v1190
    %v1319 = vcvt.s32.f32 %v1191
    %v1320 = vcvt.s32.f32 %v1192
    %v1321 = vcvt.s32.f32 %v1193
    %v1322 = vcvt.s32.f32 %v1194
    %v1323 = vcvt.s32.f32 %v1195
    %v1324 = vcvt.s32.f32 %v1196
    %v1325 = vcvt.s32.f32 %v1197
    %v1326 = vcvt.s32.f32 %v1198
    %v1327 = vcvt.s32.f32 %v1199
    %v1328 = vcvt.s32.f32 %v1200
    %v1329 = vcvt.s32.f32 %v1201
    %v1330 = vcvt.s32.f32 %v1202
    %v1331 = vand.u32 %v692, 4294901760
    %1332 = vmatprep.subr.mxu0 %v1331
    %v1333 = vand.u32 %v691, 4294901760
    %1334 = vmatpush1.msra.mxu0 %v1333
    %v1335 = vand.u32 %v708, 4294901760
    %1336 = vmatprep.subr.mxu0 %v1335
    %v1337 = vand.u32 %v707, 4294901760
    %1338 = vmatpush1.msra.mxu0 %v1337
    %v1339 = vand.u32 %v724, 4294901760
    %1340 = vmatprep.subr.mxu0 %v1339
    %v1341 = vand.u32 %v723, 4294901760
    %1342 = vmatpush1.msra.mxu0 %v1341
    %v1343 = vand.u32 %v740, 4294901760
    %1344 = vmatprep.subr.mxu0 %v1343
    %v1345 = vand.u32 %v739, 4294901760
    %1346 = vmatpush1.msra.mxu0 %v1345
    %v1347 = vand.u32 %v756, 4294901760
    %1348 = vmatprep.subr.mxu0 %v1347
    %v1349 = vand.u32 %v755, 4294901760
    %1350 = vmatpush1.msra.mxu0 %v1349
    %v1351 = vand.u32 %v772, 4294901760
    %1352 = vmatprep.subr.mxu0 %v1351
    %v1353 = vand.u32 %v771, 4294901760
    %1354 = vmatpush1.msra.mxu0 %v1353
    %v1355 = vand.u32 %v788, 4294901760
    %1356 = vmatprep.subr.mxu0 %v1355
    %v1357 = vand.u32 %v787, 4294901760
    %1358 = vmatpush1.msra.mxu0 %v1357
    %v1359 = vand.u32 %v804, 4294901760
    %1360 = vmatprep.subr.mxu0 %v1359
    %v1361 = vand.u32 %v803, 4294901760
    %1362 = vmatpush1.msra.mxu0 %v1361
    %v1363 = vand.u32 %v1204, 4294901760
    %1364 = vmatprep.subr.mxu0 %v1363
    %v1365 = vand.u32 %v1203, 4294901760
    %1366 = vmatpush1.msra.mxu0 %v1365
    %v1367 = vand.u32 %v1220, 4294901760
    %1368 = vmatprep.subr.mxu0 %v1367
    %v1369 = vand.u32 %v1219, 4294901760
    %1370 = vmatpush1.msra.mxu0 %v1369
    %v1371 = vand.u32 %v1236, 4294901760
    %1372 = vmatprep.subr.mxu0 %v1371
    %v1373 = vand.u32 %v1235, 4294901760
    %1374 = vmatpush1.msra.mxu0 %v1373
    %v1375 = vand.u32 %v1252, 4294901760
    %1376 = vmatprep.subr.mxu0 %v1375
    %v1377 = vand.u32 %v1251, 4294901760
    %1378 = vmatpush1.msra.mxu0 %v1377
    %v1379 = vand.u32 %v1268, 4294901760
    %1380 = vmatprep.subr.mxu0 %v1379
    %v1381 = vand.u32 %v1267, 4294901760
    %1382 = vmatpush1.msra.mxu0 %v1381
    %v1383 = vand.u32 %v1284, 4294901760
    %1384 = vmatprep.subr.mxu0 %v1383
    %v1385 = vand.u32 %v1283, 4294901760
    %1386 = vmatpush1.msra.mxu0 %v1385
    %v1387 = vand.u32 %v1300, 4294901760
    %1388 = vmatprep.subr.mxu0 %v1387
    %v1389 = vand.u32 %v1299, 4294901760
    %1390 = vmatpush1.msra.mxu0 %v1389
    %v1391 = vand.u32 %v1316, 4294901760
    %1392 = vmatprep.subr.mxu0 %v1391
    %v1393 = vand.u32 %v1315, 4294901760
    %1394 = vmatpush1.msra.mxu0 %v1393
    %1395 = vmatprep.subr.mxu0 0.0
    %1396 = vmatpush1.msra.mxu0 0.0
    %1397 = vmatprep.subr.mxu0 0.0
    %1398 = vmatpush1.msra.mxu0 0.0
    %1399 = vmatprep.subr.mxu0 0.0
    %1400 = vmatpush1.msra.mxu0 0.0
    %1401 = vmatprep.subr.mxu0 0.0
    %1402 = vmatpush1.msra.mxu0 0.0
    %1403 = vmatprep.subr.mxu0 0.0
    %1404 = vmatpush1.msra.mxu0 0.0
    %1405 = vmatprep.subr.mxu0 0.0
    %1406 = vmatpush1.msra.mxu0 0.0
    %1407 = vmatprep.subr.mxu0 0.0
    %1408 = vmatpush1.msra.mxu0 0.0
    %1409 = vmatprep.subr.mxu0 0.0
    %1410 = vmatpush1.msra.mxu0 0.0
    %1411 = vmatprep.subr.mxu0 0.0
    %1412 = vmatpush1.msra.mxu0 0.0
    %1413 = vmatprep.subr.mxu0 0.0
    %1414 = vmatpush1.msra.mxu0 0.0
    %1415 = vmatprep.subr.mxu0 0.0
    %1416 = vmatpush1.msra.mxu0 0.0
    %1417 = vmatprep.subr.mxu0 0.0
    %1418 = vmatpush1.msra.mxu0 0.0
    %1419 = vmatprep.subr.mxu0 0.0
    %1420 = vmatpush1.msra.mxu0 0.0
    %1421 = vmatprep.subr.mxu0 0.0
    %1422 = vmatpush1.msra.mxu0 0.0
    %1423 = vmatprep.subr.mxu0 0.0
    %1424 = vmatpush1.msra.mxu0 0.0
    %1425 = vmatprep.subr.mxu0 0.0
    %1426 = vmatpush1.msra.mxu0 0.0
    %1427 = vmatprep.mubr.f32.mxu0 0.0
    %v1428 = vand.u32 %v293, 4294901760
    %v1429 = vsub.f32 %v293, %v1428
    %v1430 = vand.u32 %v1429, 4294901760
    %v1431 = vsub.f32 %v1429, %v1430
    %v1432 = vand.u32 %v1431, 4294901760
    %1433 = vmatmul.mubr.f32.gmra.mrb[0].mxu0 %v1432
    %v1434 = vpop.f32.mrb[0].mxu0
    %v1435 = vadd.f32 0.0, %v1434
    %v1436 = vpop.f32.mrb[0].mxu0
    %v1437 = vadd.f32 0.0, %v1436
    %1438 = vmatprep.mubr.f32.mxu0 0.0
    %v1439 = vand.u32 %v294, 4294901760
    %v1440 = vsub.f32 %v294, %v1439
    %v1441 = vand.u32 %v1440, 4294901760
    %v1442 = vsub.f32 %v1440, %v1441
    %v1443 = vand.u32 %v1442, 4294901760
    %1444 = vmatmul.mubr.f32.gmra.mrb[0].mxu0 %v1443
    %v1445 = vpop.f32.mrb[0].mxu0
    %v1446 = vadd.f32 0.0, %v1445
    %v1447 = vpop.f32.mrb[0].mxu0
    %v1448 = vadd.f32 0.0, %v1447
    %1449 = vmatprep.mubr.f32.mxu0 0.0
    %v1450 = vand.u32 %v295, 4294901760
    %v1451 = vsub.f32 %v295, %v1450
    %v1452 = vand.u32 %v1451, 4294901760
    %v1453 = vsub.f32 %v1451, %v1452
    %v1454 = vand.u32 %v1453, 4294901760
    %1455 = vmatmul.mubr.f32.gmra.mrb[0].mxu0 %v1454
    %v1456 = vpop.f32.mrb[0].mxu0
    %v1457 = vadd.f32 0.0, %v1456
    %v1458 = vpop.f32.mrb[0].mxu0
    %v1459 = vadd.f32 0.0, %v1458
    %1460 = vmatprep.mubr.f32.mxu0 0.0
    %v1461 = vand.u32 %v296, 4294901760
    %v1462 = vsub.f32 %v296, %v1461
    %v1463 = vand.u32 %v1462, 4294901760
    %v1464 = vsub.f32 %v1462, %v1463
    %v1465 = vand.u32 %v1464, 4294901760
    %1466 = vmatmul.mubr.f32.gmra.mrb[0].mxu0 %v1465
    %v1467 = vpop.f32.mrb[0].mxu0
    %v1468 = vadd.f32 0.0, %v1467
    %v1469 = vpop.f32.mrb[0].mxu0
    %v1470 = vadd.f32 0.0, %v1469
    %1471 = vmatprep.mubr.f32.mxu0 0.0
    %v1472 = vand.u32 %v297, 4294901760
    %v1473 = vsub.f32 %v297, %v1472
    %v1474 = vand.u32 %v1473, 4294901760
    %v1475 = vsub.f32 %v1473, %v1474
    %v1476 = vand.u32 %v1475, 4294901760
    %1477 = vmatmul.mubr.f32.gmra.mrb[0].mxu0 %v1476
    %v1478 = vpop.f32.mrb[0].mxu0
    %v1479 = vadd.f32 0.0, %v1478
    %v1480 = vpop.f32.mrb[0].mxu0
    %v1481 = vadd.f32 0.0, %v1480
    %1482 = vdwg.mxu0
    %v1483 = vand.u32 %v692, 4294901760
    %v1484 = vsub.f32 %v692, %v1483
    %v1485 = vand.u32 %v1484, 4294901760
    %v1486 = vsub.f32 %v1484, %v1485
    %v1487 = vand.u32 %v1486, 4294901760
    %1488 = vmatprep.subr.mxu0 %v1487
    %v1489 = vand.u32 %v691, 4294901760
    %v1490 = vsub.f32 %v691, %v1489
    %v1491 = vand.u32 %v1490, 4294901760
    %v1492 = vsub.f32 %v1490, %v1491
    %v1493 = vand.u32 %v1492, 4294901760
    %1494 = vmatpush1.msra.mxu0 %v1493
    %v1495 = vand.u32 %v708, 4294901760
    %v1496 = vsub.f32 %v708, %v1495
    %v1497 = vand.u32 %v1496, 4294901760
    %v1498 = vsub.f32 %v1496, %v1497
    %v1499 = vand.u32 %v1498, 4294901760
    %1500 = vmatprep.subr.mxu0 %v1499
    %v1501 = vand.u32 %v707, 4294901760
    %v1502 = vsub.f32 %v707, %v1501
    %v1503 = vand.u32 %v1502, 4294901760
    %v1504 = vsub.f32 %v1502, %v1503
    %v1505 = vand.u32 %v1504, 4294901760
    %1506 = vmatpush1.msra.mxu0 %v1505
    %v1507 = vand.u32 %v724, 4294901760
    %v1508 = vsub.f32 %v724, %v1507
    %v1509 = vand.u32 %v1508, 4294901760
    %v1510 = vsub.f32 %v1508, %v1509
    %v1511 = vand.u32 %v1510, 4294901760
    %1512 = vmatprep.subr.mxu0 %v1511
    %v1513 = vand.u32 %v723, 4294901760
    %v1514 = vsub.f32 %v723, %v1513
    %v1515 = vand.u32 %v1514, 4294901760
    %v1516 = vsub.f32 %v1514, %v1515
    %v1517 = vand.u32 %v1516, 4294901760
    %1518 = vmatpush1.msra.mxu0 %v1517
    %v1519 = vand.u32 %v740, 4294901760
    %v1520 = vsub.f32 %v740, %v1519
    %v1521 = vand.u32 %v1520, 4294901760
    %v1522 = vsub.f32 %v1520, %v1521
    %v1523 = vand.u32 %v1522, 4294901760
    %1524 = vmatprep.subr.mxu0 %v1523
    %v1525 = vand.u32 %v739, 4294901760
    %v1526 = vsub.f32 %v739, %v1525
    %v1527 = vand.u32 %v1526, 4294901760
    %v1528 = vsub.f32 %v1526, %v1527
    %v1529 = vand.u32 %v1528, 4294901760
    %1530 = vmatpush1.msra.mxu0 %v1529
    %v1531 = vand.u32 %v756, 4294901760
    %v1532 = vsub.f32 %v756, %v1531
    %v1533 = vand.u32 %v1532, 4294901760
    %v1534 = vsub.f32 %v1532, %v1533
    %v1535 = vand.u32 %v1534, 4294901760
    %1536 = vmatprep.subr.mxu0 %v1535
    %v1537 = vand.u32 %v755, 4294901760
    %v1538 = vsub.f32 %v755, %v1537
    %v1539 = vand.u32 %v1538, 4294901760
    %v1540 = vsub.f32 %v1538, %v1539
    %v1541 = vand.u32 %v1540, 4294901760
    %1542 = vmatpush1.msra.mxu0 %v1541
    %v1543 = vand.u32 %v772, 4294901760
    %v1544 = vsub.f32 %v772, %v1543
    %v1545 = vand.u32 %v1544, 4294901760
    %v1546 = vsub.f32 %v1544, %v1545
    %v1547 = vand.u32 %v1546, 4294901760
    %1548 = vmatprep.subr.mxu0 %v1547
    %v1549 = vand.u32 %v771, 4294901760
    %v1550 = vsub.f32 %v771, %v1549
    %v1551 = vand.u32 %v1550, 4294901760
    %v1552 = vsub.f32 %v1550, %v1551
    %v1553 = vand.u32 %v1552, 4294901760
    %1554 = vmatpush1.msra.mxu0 %v1553
    %v1555 = vand.u32 %v788, 4294901760
    %v1556 = vsub.f32 %v788, %v1555
    %v1557 = vand.u32 %v1556, 4294901760
    %v1558 = vsub.f32 %v1556, %v1557
    %v1559 = vand.u32 %v1558, 4294901760
    %1560 = vmatprep.subr.mxu0 %v1559
    %v1561 = vand.u32 %v787, 4294901760
    %v1562 = vsub.f32 %v787, %v1561
    %v1563 = vand.u32 %v1562, 4294901760
    %v1564 = vsub.f32 %v1562, %v1563
    %v1565 = vand.u32 %v1564, 4294901760
    %1566 = vmatpush1.msra.mxu0 %v1565
    %v1567 = vand.u32 %v804, 4294901760
    %v1568 = vsub.f32 %v804, %v1567
    %v1569 = vand.u32 %v1568, 4294901760
    %v1570 = vsub.f32 %v1568, %v1569
    %v1571 = vand.u32 %v1570, 4294901760
    %1572 = vmatprep.subr.mxu0 %v1571
    %v1573 = vand.u32 %v803, 4294901760
    %v1574 = vsub.f32 %v803, %v1573
    %v1575 = vand.u32 %v1574, 4294901760
    %v1576 = vsub.f32 %v1574, %v1575
    %v1577 = vand.u32 %v1576, 4294901760
    %1578 = vmatpush1.msra.mxu0 %v1577
    %v1579 = vand.u32 %v1204, 4294901760
    %v1580 = vsub.f32 %v1204, %v1579
    %v1581 = vand.u32 %v1580, 4294901760
    %v1582 = vsub.f32 %v1580, %v1581
    %v1583 = vand.u32 %v1582, 4294901760
    %1584 = vmatprep.subr.mxu0 %v1583
    %v1585 = vand.u32 %v1203, 4294901760
    %v1586 = vsub.f32 %v1203, %v1585
    %v1587 = vand.u32 %v1586, 4294901760
    %v1588 = vsub.f32 %v1586, %v1587
    %v1589 = vand.u32 %v1588, 4294901760
    %1590 = vmatpush1.msra.mxu0 %v1589
    %v1591 = vand.u32 %v1220, 4294901760
    %v1592 = vsub.f32 %v1220, %v1591
    %v1593 = vand.u32 %v1592, 4294901760
    %v1594 = vsub.f32 %v1592, %v1593
    %v1595 = vand.u32 %v1594, 4294901760
    %1596 = vmatprep.subr.mxu0 %v1595
    %v1597 = vand.u32 %v1219, 4294901760
    %v1598 = vsub.f32 %v1219, %v1597
    %v1599 = vand.u32 %v1598, 4294901760
    %v1600 = vsub.f32 %v1598, %v1599
    %v1601 = vand.u32 %v1600, 4294901760
    %1602 = vmatpush1.msra.mxu0 %v1601
    %v1603 = vand.u32 %v1236, 4294901760
    %v1604 = vsub.f32 %v1236, %v1603
    %v1605 = vand.u32 %v1604, 4294901760
    %v1606 = vsub.f32 %v1604, %v1605
    %v1607 = vand.u32 %v1606, 4294901760
    %1608 = vmatprep.subr.mxu0 %v1607
    %v1609 = vand.u32 %v1235, 4294901760
    %v1610 = vsub.f32 %v1235, %v1609
    %v1611 = vand.u32 %v1610, 4294901760
    %v1612 = vsub.f32 %v1610, %v1611
    %v1613 = vand.u32 %v1612, 4294901760
    %1614 = vmatpush1.msra.mxu0 %v1613
    %v1615 = vand.u32 %v1252, 4294901760
    %v1616 = vsub.f32 %v1252, %v1615
    %v1617 = vand.u32 %v1616, 4294901760
    %v1618 = vsub.f32 %v1616, %v1617
    %v1619 = vand.u32 %v1618, 4294901760
    %1620 = vmatprep.subr.mxu0 %v1619
    %v1621 = vand.u32 %v1251, 4294901760
    %v1622 = vsub.f32 %v1251, %v1621
    %v1623 = vand.u32 %v1622, 4294901760
    %v1624 = vsub.f32 %v1622, %v1623
    %v1625 = vand.u32 %v1624, 4294901760
    %1626 = vmatpush1.msra.mxu0 %v1625
    %v1627 = vand.u32 %v1268, 4294901760
    %v1628 = vsub.f32 %v1268, %v1627
    %v1629 = vand.u32 %v1628, 4294901760
    %v1630 = vsub.f32 %v1628, %v1629
    %v1631 = vand.u32 %v1630, 4294901760
    %1632 = vmatprep.subr.mxu0 %v1631
    %v1633 = vand.u32 %v1267, 4294901760
    %v1634 = vsub.f32 %v1267, %v1633
    %v1635 = vand.u32 %v1634, 4294901760
    %v1636 = vsub.f32 %v1634, %v1635
    %v1637 = vand.u32 %v1636, 4294901760
    %1638 = vmatpush1.msra.mxu0 %v1637
    %v1639 = vand.u32 %v1284, 4294901760
    %v1640 = vsub.f32 %v1284, %v1639
    %v1641 = vand.u32 %v1640, 4294901760
    %v1642 = vsub.f32 %v1640, %v1641
    %v1643 = vand.u32 %v1642, 4294901760
    %1644 = vmatprep.subr.mxu0 %v1643
    %v1645 = vand.u32 %v1283, 4294901760
    %v1646 = vsub.f32 %v1283, %v1645
    %v1647 = vand.u32 %v1646, 4294901760
    %v1648 = vsub.f32 %v1646, %v1647
    %v1649 = vand.u32 %v1648, 4294901760
    %1650 = vmatpush1.msra.mxu0 %v1649
    %v1651 = vand.u32 %v1300, 4294901760
    %v1652 = vsub.f32 %v1300, %v1651
    %v1653 = vand.u32 %v1652, 4294901760
    %v1654 = vsub.f32 %v1652, %v1653
    %v1655 = vand.u32 %v1654, 4294901760
    %1656 = vmatprep.subr.mxu0 %v1655
    %v1657 = vand.u32 %v1299, 4294901760
    %v1658 = vsub.f32 %v1299, %v1657
    %v1659 = vand.u32 %v1658, 4294901760
    %v1660 = vsub.f32 %v1658, %v1659
    %v1661 = vand.u32 %v1660, 4294901760
    %1662 = vmatpush1.msra.mxu0 %v1661
    %v1663 = vand.u32 %v1316, 4294901760
    %v1664 = vsub.f32 %v1316, %v1663
    %v1665 = vand.u32 %v1664, 4294901760
    %v1666 = vsub.f32 %v1664, %v1665
    %v1667 = vand.u32 %v1666, 4294901760
    %1668 = vmatprep.subr.mxu0 %v1667
    %v1669 = vand.u32 %v1315, 4294901760
    %v1670 = vsub.f32 %v1315, %v1669
    %v1671 = vand.u32 %v1670, 4294901760
    %v1672 = vsub.f32 %v1670, %v1671
    %v1673 = vand.u32 %v1672, 4294901760
    %1674 = vmatpush1.msra.mxu0 %v1673
    %1675 = vmatprep.subr.mxu0 0.0
    %1676 = vmatpush1.msra.mxu0 0.0
    %1677 = vmatprep.subr.mxu0 0.0
    %1678 = vmatpush1.msra.mxu0 0.0
    %1679 = vmatprep.subr.mxu0 0.0
    %1680 = vmatpush1.msra.mxu0 0.0
    %1681 = vmatprep.subr.mxu0 0.0
    %1682 = vmatpush1.msra.mxu0 0.0
    %1683 = vmatprep.subr.mxu0 0.0
    %1684 = vmatpush1.msra.mxu0 0.0
    %1685 = vmatprep.subr.mxu0 0.0
    %1686 = vmatpush1.msra.mxu0 0.0
    %1687 = vmatprep.subr.mxu0 0.0
    %1688 = vmatpush1.msra.mxu0 0.0
    %1689 = vmatprep.subr.mxu0 0.0
    %1690 = vmatpush1.msra.mxu0 0.0
    %1691 = vmatprep.subr.mxu0 0.0
    %1692 = vmatpush1.msra.mxu0 0.0
    %1693 = vmatprep.subr.mxu0 0.0
    %1694 = vmatpush1.msra.mxu0 0.0
    %1695 = vmatprep.subr.mxu0 0.0
    %1696 = vmatpush1.msra.mxu0 0.0
    %1697 = vmatprep.subr.mxu0 0.0
    %1698 = vmatpush1.msra.mxu0 0.0
    %1699 = vmatprep.subr.mxu0 0.0
    %1700 = vmatpush1.msra.mxu0 0.0
    %1701 = vmatprep.subr.mxu0 0.0
    %1702 = vmatpush1.msra.mxu0 0.0
    %1703 = vmatprep.subr.mxu0 0.0
    %1704 = vmatpush1.msra.mxu0 0.0
    %1705 = vmatprep.subr.mxu0 0.0
    %1706 = vmatpush1.msra.mxu0 0.0
    %1707 = vmatprep.mubr.f32.mxu0 0.0
    %v1708 = vand.u32 %v293, 4294901760
    %1709 = vmatmul.mubr.f32.gmra.mrb[0].mxu0 %v1708
    %v1710 = vpop.f32.mrb[0].mxu0
    %v1711 = vadd.f32 %v1435, %v1710
    %v1712 = vpop.f32.mrb[0].mxu0
    %v1713 = vadd.f32 %v1437, %v1712
    %1714 = vmatprep.mubr.f32.mxu0 0.0
    %v1715 = vand.u32 %v294, 4294901760
    %1716 = vmatmul.mubr.f32.gmra.mrb[0].mxu0 %v1715
    %v1717 = vpop.f32.mrb[0].mxu0
    %v1718 = vadd.f32 %v1446, %v1717
    %v1719 = vpop.f32.mrb[0].mxu0
    %v1720 = vadd.f32 %v1448, %v1719
    %1721 = vmatprep.mubr.f32.mxu0 0.0
    %v1722 = vand.u32 %v295, 4294901760
    %1723 = vmatmul.mubr.f32.gmra.mrb[0].mxu0 %v1722
    %v1724 = vpop.f32.mrb[0].mxu0
    %v1725 = vadd.f32 %v1457, %v1724
    %v1726 = vpop.f32.mrb[0].mxu0
    %v1727 = vadd.f32 %v1459, %v1726
    %1728 = vmatprep.mubr.f32.mxu0 0.0
    %v1729 = vand.u32 %v296, 4294901760
    %1730 = vmatmul.mubr.f32.gmra.mrb[0].mxu0 %v1729
    %v1731 = vpop.f32.mrb[0].mxu0
    %v1732 = vadd.f32 %v1468, %v1731
    %v1733 = vpop.f32.mrb[0].mxu0
    %v1734 = vadd.f32 %v1470, %v1733
    %1735 = vmatprep.mubr.f32.mxu0 0.0
    %v1736 = vand.u32 %v297, 4294901760
    %1737 = vmatmul.mubr.f32.gmra.mrb[0].mxu0 %v1736
    %v1738 = vpop.f32.mrb[0].mxu0
    %v1739 = vadd.f32 %v1479, %v1738
    %v1740 = vpop.f32.mrb[0].mxu0
    %v1741 = vadd.f32 %v1481, %v1740
    %1742 = vdwg.mxu0
    %v1743 = vand.u32 %v692, 4294901760
    %v1744 = vsub.f32 %v692, %v1743
    %1745 = vmatprep.subr.mxu0 %v1744
    %v1746 = vand.u32 %v691, 4294901760
    %v1747 = vsub.f32 %v691, %v1746
    %1748 = vmatpush1.msra.mxu0 %v1747
    %v1749 = vand.u32 %v708, 4294901760
    %v1750 = vsub.f32 %v708, %v1749
    %1751 = vmatprep.subr.mxu0 %v1750
    %v1752 = vand.u32 %v707, 4294901760
    %v1753 = vsub.f32 %v707, %v1752
    %1754 = vmatpush1.msra.mxu0 %v1753
    %v1755 = vand.u32 %v724, 4294901760
    %v1756 = vsub.f32 %v724, %v1755
    %1757 = vmatprep.subr.mxu0 %v1756
    %v1758 = vand.u32 %v723, 4294901760
    %v1759 = vsub.f32 %v723, %v1758
    %1760 = vmatpush1.msra.mxu0 %v1759
    %v1761 = vand.u32 %v740, 4294901760
    %v1762 = vsub.f32 %v740, %v1761
    %1763 = vmatprep.subr.mxu0 %v1762
    %v1764 = vand.u32 %v739, 4294901760
    %v1765 = vsub.f32 %v739, %v1764
    %1766 = vmatpush1.msra.mxu0 %v1765
    %v1767 = vand.u32 %v756, 4294901760
    %v1768 = vsub.f32 %v756, %v1767
    %1769 = vmatprep.subr.mxu0 %v1768
    %v1770 = vand.u32 %v755, 4294901760
    %v1771 = vsub.f32 %v755, %v1770
    %1772 = vmatpush1.msra.mxu0 %v1771
    %v1773 = vand.u32 %v772, 4294901760
    %v1774 = vsub.f32 %v772, %v1773
    %1775 = vmatprep.subr.mxu0 %v1774
    %v1776 = vand.u32 %v771, 4294901760
    %v1777 = vsub.f32 %v771, %v1776
    %1778 = vmatpush1.msra.mxu0 %v1777
    %v1779 = vand.u32 %v788, 4294901760
    %v1780 = vsub.f32 %v788, %v1779
    %1781 = vmatprep.subr.mxu0 %v1780
    %v1782 = vand.u32 %v787, 4294901760
    %v1783 = vsub.f32 %v787, %v1782
    %1784 = vmatpush1.msra.mxu0 %v1783
    %v1785 = vand.u32 %v804, 4294901760
    %v1786 = vsub.f32 %v804, %v1785
    %1787 = vmatprep.subr.mxu0 %v1786
    %v1788 = vand.u32 %v803, 4294901760
    %v1789 = vsub.f32 %v803, %v1788
    %1790 = vmatpush1.msra.mxu0 %v1789
    %v1791 = vand.u32 %v1204, 4294901760
    %v1792 = vsub.f32 %v1204, %v1791
    %1793 = vmatprep.subr.mxu0 %v1792
    %v1794 = vand.u32 %v1203, 4294901760
    %v1795 = vsub.f32 %v1203, %v1794
    %1796 = vmatpush1.msra.mxu0 %v1795
    %v1797 = vand.u32 %v1220, 4294901760
    %v1798 = vsub.f32 %v1220, %v1797
    %1799 = vmatprep.subr.mxu0 %v1798
    %v1800 = vand.u32 %v1219, 4294901760
    %v1801 = vsub.f32 %v1219, %v1800
    %1802 = vmatpush1.msra.mxu0 %v1801
    %v1803 = vand.u32 %v1236, 4294901760
    %v1804 = vsub.f32 %v1236, %v1803
    %1805 = vmatprep.subr.mxu0 %v1804
    %v1806 = vand.u32 %v1235, 4294901760
    %v1807 = vsub.f32 %v1235, %v1806
    %1808 = vmatpush1.msra.mxu0 %v1807
    %v1809 = vand.u32 %v1252, 4294901760
    %v1810 = vsub.f32 %v1252, %v1809
    %1811 = vmatprep.subr.mxu0 %v1810
    %v1812 = vand.u32 %v1251, 4294901760
    %v1813 = vsub.f32 %v1251, %v1812
    %1814 = vmatpush1.msra.mxu0 %v1813
    %v1815 = vand.u32 %v1268, 4294901760
    %v1816 = vsub.f32 %v1268, %v1815
    %1817 = vmatprep.subr.mxu0 %v1816
    %v1818 = vand.u32 %v1267, 4294901760
    %v1819 = vsub.f32 %v1267, %v1818
    %1820 = vmatpush1.msra.mxu0 %v1819
    %v1821 = vand.u32 %v1284, 4294901760
    %v1822 = vsub.f32 %v1284, %v1821
    %1823 = vmatprep.subr.mxu0 %v1822
    %v1824 = vand.u32 %v1283, 4294901760
    %v1825 = vsub.f32 %v1283, %v1824
    %1826 = vmatpush1.msra.mxu0 %v1825
    %v1827 = vand.u32 %v1300, 4294901760
    %v1828 = vsub.f32 %v1300, %v1827
    %1829 = vmatprep.subr.mxu0 %v1828
    %v1830 = vand.u32 %v1299, 4294901760
    %v1831 = vsub.f32 %v1299, %v1830
    %1832 = vmatpush1.msra.mxu0 %v1831
    %v1833 = vand.u32 %v1316, 4294901760
    %v1834 = vsub.f32 %v1316, %v1833
    %1835 = vmatprep.subr.mxu0 %v1834
    %v1836 = vand.u32 %v1315, 4294901760
    %v1837 = vsub.f32 %v1315, %v1836
    %1838 = vmatpush1.msra.mxu0 %v1837
    %1839 = vmatprep.subr.mxu0 0.0
    %1840 = vmatpush1.msra.mxu0 0.0
    %1841 = vmatprep.subr.mxu0 0.0
    %1842 = vmatpush1.msra.mxu0 0.0
    %1843 = vmatprep.subr.mxu0 0.0
    %1844 = vmatpush1.msra.mxu0 0.0
    %1845 = vmatprep.subr.mxu0 0.0
    %1846 = vmatpush1.msra.mxu0 0.0
    %1847 = vmatprep.subr.mxu0 0.0
    %1848 = vmatpush1.msra.mxu0 0.0
    %1849 = vmatprep.subr.mxu0 0.0
    %1850 = vmatpush1.msra.mxu0 0.0
    %1851 = vmatprep.subr.mxu0 0.0
    %1852 = vmatpush1.msra.mxu0 0.0
    %1853 = vmatprep.subr.mxu0 0.0
    %1854 = vmatpush1.msra.mxu0 0.0
    %1855 = vmatprep.subr.mxu0 0.0
    %1856 = vmatpush1.msra.mxu0 0.0
    %1857 = vmatprep.subr.mxu0 0.0
    %1858 = vmatpush1.msra.mxu0 0.0
    %1859 = vmatprep.subr.mxu0 0.0
    %1860 = vmatpush1.msra.mxu0 0.0
    %1861 = vmatprep.subr.mxu0 0.0
    %1862 = vmatpush1.msra.mxu0 0.0
    %1863 = vmatprep.subr.mxu0 0.0
    %1864 = vmatpush1.msra.mxu0 0.0
    %1865 = vmatprep.subr.mxu0 0.0
    %1866 = vmatpush1.msra.mxu0 0.0
    %1867 = vmatprep.subr.mxu0 0.0
    %1868 = vmatpush1.msra.mxu0 0.0
    %1869 = vmatprep.subr.mxu0 0.0
    %1870 = vmatpush1.msra.mxu0 0.0
    %1871 = vmatprep.mubr.f32.mxu0 0.0
    %v1872 = vand.u32 %v293, 4294901760
    %v1873 = vsub.f32 %v293, %v1872
    %1874 = vmatmul.mubr.f32.gmra.mrb[0].mxu0 %v1873
    %v1875 = vpop.f32.mrb[0].mxu0
    %v1876 = vadd.f32 %v1711, %v1875
    %v1877 = vpop.f32.mrb[0].mxu0
    %v1878 = vadd.f32 %v1713, %v1877
    %1879 = vmatprep.mubr.f32.mxu0 0.0
    %v1880 = vand.u32 %v294, 4294901760
    %v1881 = vsub.f32 %v294, %v1880
    %1882 = vmatmul.mubr.f32.gmra.mrb[0].mxu0 %v1881
    %v1883 = vpop.f32.mrb[0].mxu0
    %v1884 = vadd.f32 %v1718, %v1883
    %v1885 = vpop.f32.mrb[0].mxu0
    %v1886 = vadd.f32 %v1720, %v1885
    %1887 = vmatprep.mubr.f32.mxu0 0.0
    %v1888 = vand.u32 %v295, 4294901760
    %v1889 = vsub.f32 %v295, %v1888
    %1890 = vmatmul.mubr.f32.gmra.mrb[0].mxu0 %v1889
    %v1891 = vpop.f32.mrb[0].mxu0
    %v1892 = vadd.f32 %v1725, %v1891
    %v1893 = vpop.f32.mrb[0].mxu0
    %v1894 = vadd.f32 %v1727, %v1893
    %1895 = vmatprep.mubr.f32.mxu0 0.0
    %v1896 = vand.u32 %v296, 4294901760
    %v1897 = vsub.f32 %v296, %v1896
    %1898 = vmatmul.mubr.f32.gmra.mrb[0].mxu0 %v1897
    %v1899 = vpop.f32.mrb[0].mxu0
    %v1900 = vadd.f32 %v1732, %v1899
    %v1901 = vpop.f32.mrb[0].mxu0
    %v1902 = vadd.f32 %v1734, %v1901
    %1903 = vmatprep.mubr.f32.mxu0 0.0
    %v1904 = vand.u32 %v297, 4294901760
    %v1905 = vsub.f32 %v297, %v1904
    %1906 = vmatmul.mubr.f32.gmra.mrb[0].mxu0 %v1905
    %v1907 = vpop.f32.mrb[0].mxu0
    %v1908 = vadd.f32 %v1739, %v1907
    %v1909 = vpop.f32.mrb[0].mxu0
    %v1910 = vadd.f32 %v1741, %v1909
    %1911 = vdwg.mxu0
    %v1912 = vand.u32 %v692, 4294901760
    %1913 = vmatprep.subr.mxu0 %v1912
    %v1914 = vand.u32 %v691, 4294901760
    %1915 = vmatpush1.msra.mxu0 %v1914
    %v1916 = vand.u32 %v708, 4294901760
    %1917 = vmatprep.subr.mxu0 %v1916
    %v1918 = vand.u32 %v707, 4294901760
    %1919 = vmatpush1.msra.mxu0 %v1918
    %v1920 = vand.u32 %v724, 4294901760
    %1921 = vmatprep.subr.mxu0 %v1920
    %v1922 = vand.u32 %v723, 4294901760
    %1923 = vmatpush1.msra.mxu0 %v1922
    %v1924 = vand.u32 %v740, 4294901760
    %1925 = vmatprep.subr.mxu0 %v1924
    %v1926 = vand.u32 %v739, 4294901760
    %1927 = vmatpush1.msra.mxu0 %v1926
    %v1928 = vand.u32 %v756, 4294901760
    %1929 = vmatprep.subr.mxu0 %v1928
    %v1930 = vand.u32 %v755, 4294901760
    %1931 = vmatpush1.msra.mxu0 %v1930
    %v1932 = vand.u32 %v772, 4294901760
    %1933 = vmatprep.subr.mxu0 %v1932
    %v1934 = vand.u32 %v771, 4294901760
    %1935 = vmatpush1.msra.mxu0 %v1934
    %v1936 = vand.u32 %v788, 4294901760
    %1937 = vmatprep.subr.mxu0 %v1936
    %v1938 = vand.u32 %v787, 4294901760
    %1939 = vmatpush1.msra.mxu0 %v1938
    %v1940 = vand.u32 %v804, 4294901760
    %1941 = vmatprep.subr.mxu0 %v1940
    %v1942 = vand.u32 %v803, 4294901760
    %1943 = vmatpush1.msra.mxu0 %v1942
    %v1944 = vand.u32 %v1204, 4294901760
    %1945 = vmatprep.subr.mxu0 %v1944
    %v1946 = vand.u32 %v1203, 4294901760
    %1947 = vmatpush1.msra.mxu0 %v1946
    %v1948 = vand.u32 %v1220, 4294901760
    %1949 = vmatprep.subr.mxu0 %v1948
    %v1950 = vand.u32 %v1219, 4294901760
    %1951 = vmatpush1.msra.mxu0 %v1950
    %v1952 = vand.u32 %v1236, 4294901760
    %1953 = vmatprep.subr.mxu0 %v1952
    %v1954 = vand.u32 %v1235, 4294901760
    %1955 = vmatpush1.msra.mxu0 %v1954
    %v1956 = vand.u32 %v1252, 4294901760
    %1957 = vmatprep.subr.mxu0 %v1956
    %v1958 = vand.u32 %v1251, 4294901760
    %1959 = vmatpush1.msra.mxu0 %v1958
    %v1960 = vand.u32 %v1268, 4294901760
    %1961 = vmatprep.subr.mxu0 %v1960
    %v1962 = vand.u32 %v1267, 4294901760
    %1963 = vmatpush1.msra.mxu0 %v1962
    %v1964 = vand.u32 %v1284, 4294901760
    %1965 = vmatprep.subr.mxu0 %v1964
    %v1966 = vand.u32 %v1283, 4294901760
    %1967 = vmatpush1.msra.mxu0 %v1966
    %v1968 = vand.u32 %v1300, 4294901760
    %1969 = vmatprep.subr.mxu0 %v1968
    %v1970 = vand.u32 %v1299, 4294901760
    %1971 = vmatpush1.msra.mxu0 %v1970
    %v1972 = vand.u32 %v1316, 4294901760
    %1973 = vmatprep.subr.mxu0 %v1972
    %v1974 = vand.u32 %v1315, 4294901760
    %1975 = vmatpush1.msra.mxu0 %v1974
    %1976 = vmatprep.subr.mxu0 0.0
    %1977 = vmatpush1.msra.mxu0 0.0
    %1978 = vmatprep.subr.mxu0 0.0
    %1979 = vmatpush1.msra.mxu0 0.0
    %1980 = vmatprep.subr.mxu0 0.0
    %1981 = vmatpush1.msra.mxu0 0.0
    %1982 = vmatprep.subr.mxu0 0.0
    %1983 = vmatpush1.msra.mxu0 0.0
    %1984 = vmatprep.subr.mxu0 0.0
    %1985 = vmatpush1.msra.mxu0 0.0
    %1986 = vmatprep.subr.mxu0 0.0
    %1987 = vmatpush1.msra.mxu0 0.0
    %1988 = vmatprep.subr.mxu0 0.0
    %1989 = vmatpush1.msra.mxu0 0.0
    %1990 = vmatprep.subr.mxu0 0.0
    %1991 = vmatpush1.msra.mxu0 0.0
    %1992 = vmatprep.subr.mxu0 0.0
    %1993 = vmatpush1.msra.mxu0 0.0
    %1994 = vmatprep.subr.mxu0 0.0
    %1995 = vmatpush1.msra.mxu0 0.0
    %1996 = vmatprep.subr.mxu0 0.0
    %1997 = vmatpush1.msra.mxu0 0.0
    %1998 = vmatprep.subr.mxu0 0.0
    %1999 = vmatpush1.msra.mxu0 0.0
    %2000 = vmatprep.subr.mxu0 0.0
    %2001 = vmatpush1.msra.mxu0 0.0
    %2002 = vmatprep.subr.mxu0 0.0
    %2003 = vmatpush1.msra.mxu0 0.0
    %2004 = vmatprep.subr.mxu0 0.0
    %2005 = vmatpush1.msra.mxu0 0.0
    %2006 = vmatprep.subr.mxu0 0.0
    %2007 = vmatpush1.msra.mxu0 0.0
    %2008 = vmatprep.mubr.f32.mxu0 0.0
    %v2009 = vand.u32 %v293, 4294901760
    %v2010 = vsub.f32 %v293, %v2009
    %v2011 = vand.u32 %v2010, 4294901760
    %2012 = vmatmul.mubr.f32.gmra.mrb[0].mxu0 %v2011
    %v2013 = vpop.f32.mrb[0].mxu0
    %v2014 = vadd.f32 %v1876, %v2013
    %v2015 = vpop.f32.mrb[0].mxu0
    %v2016 = vadd.f32 %v1878, %v2015
    %2017 = vmatprep.mubr.f32.mxu0 0.0
    %v2018 = vand.u32 %v294, 4294901760
    %v2019 = vsub.f32 %v294, %v2018
    %v2020 = vand.u32 %v2019, 4294901760
    %2021 = vmatmul.mubr.f32.gmra.mrb[0].mxu0 %v2020
    %v2022 = vpop.f32.mrb[0].mxu0
    %v2023 = vadd.f32 %v1884, %v2022
    %v2024 = vpop.f32.mrb[0].mxu0
    %v2025 = vadd.f32 %v1886, %v2024
    %2026 = vmatprep.mubr.f32.mxu0 0.0
    %v2027 = vand.u32 %v295, 4294901760
    %v2028 = vsub.f32 %v295, %v2027
    %v2029 = vand.u32 %v2028, 4294901760
    %2030 = vmatmul.mubr.f32.gmra.mrb[0].mxu0 %v2029
    %v2031 = vpop.f32.mrb[0].mxu0
    %v2032 = vadd.f32 %v1892, %v2031
    %v2033 = vpop.f32.mrb[0].mxu0
    %v2034 = vadd.f32 %v1894, %v2033
    %2035 = vmatprep.mubr.f32.mxu0 0.0
    %v2036 = vand.u32 %v296, 4294901760
    %v2037 = vsub.f32 %v296, %v2036
    %v2038 = vand.u32 %v2037, 4294901760
    %2039 = vmatmul.mubr.f32.gmra.mrb[0].mxu0 %v2038
    %v2040 = vpop.f32.mrb[0].mxu0
    %v2041 = vadd.f32 %v1900, %v2040
    %v2042 = vpop.f32.mrb[0].mxu0
    %v2043 = vadd.f32 %v1902, %v2042
    %2044 = vmatprep.mubr.f32.mxu0 0.0
    %v2045 = vand.u32 %v297, 4294901760
    %v2046 = vsub.f32 %v297, %v2045
    %v2047 = vand.u32 %v2046, 4294901760
    %2048 = vmatmul.mubr.f32.gmra.mrb[0].mxu0 %v2047
    %v2049 = vpop.f32.mrb[0].mxu0
    %v2050 = vadd.f32 %v1908, %v2049
    %v2051 = vpop.f32.mrb[0].mxu0
    %v2052 = vadd.f32 %v1910, %v2051
    %2053 = vdwg.mxu0
    %v2054 = vand.u32 %v692, 4294901760
    %v2055 = vsub.f32 %v692, %v2054
    %v2056 = vand.u32 %v2055, 4294901760
    %2057 = vmatprep.subr.mxu0 %v2056
    %v2058 = vand.u32 %v691, 4294901760
    %v2059 = vsub.f32 %v691, %v2058
    %v2060 = vand.u32 %v2059, 4294901760
    %2061 = vmatpush1.msra.mxu0 %v2060
    %v2062 = vand.u32 %v708, 4294901760
    %v2063 = vsub.f32 %v708, %v2062
    %v2064 = vand.u32 %v2063, 4294901760
    %2065 = vmatprep.subr.mxu0 %v2064
    %v2066 = vand.u32 %v707, 4294901760
    %v2067 = vsub.f32 %v707, %v2066
    %v2068 = vand.u32 %v2067, 4294901760
    %2069 = vmatpush1.msra.mxu0 %v2068
    %v2070 = vand.u32 %v724, 4294901760
    %v2071 = vsub.f32 %v724, %v2070
    %v2072 = vand.u32 %v2071, 4294901760
    %2073 = vmatprep.subr.mxu0 %v2072
    %v2074 = vand.u32 %v723, 4294901760
    %v2075 = vsub.f32 %v723, %v2074
    %v2076 = vand.u32 %v2075, 4294901760
    %2077 = vmatpush1.msra.mxu0 %v2076
    %v2078 = vand.u32 %v740, 4294901760
    %v2079 = vsub.f32 %v740, %v2078
    %v2080 = vand.u32 %v2079, 4294901760
    %2081 = vmatprep.subr.mxu0 %v2080
    %v2082 = vand.u32 %v739, 4294901760
    %v2083 = vsub.f32 %v739, %v2082
    %v2084 = vand.u32 %v2083, 4294901760
    %2085 = vmatpush1.msra.mxu0 %v2084
    %v2086 = vand.u32 %v756, 4294901760
    %v2087 = vsub.f32 %v756, %v2086
    %v2088 = vand.u32 %v2087, 4294901760
    %2089 = vmatprep.subr.mxu0 %v2088
    %v2090 = vand.u32 %v755, 4294901760
    %v2091 = vsub.f32 %v755, %v2090
    %v2092 = vand.u32 %v2091, 4294901760
    %2093 = vmatpush1.msra.mxu0 %v2092
    %v2094 = vand.u32 %v772, 4294901760
    %v2095 = vsub.f32 %v772, %v2094
    %v2096 = vand.u32 %v2095, 4294901760
    %2097 = vmatprep.subr.mxu0 %v2096
    %v2098 = vand.u32 %v771, 4294901760
    %v2099 = vsub.f32 %v771, %v2098
    %v2100 = vand.u32 %v2099, 4294901760
    %2101 = vmatpush1.msra.mxu0 %v2100
    %v2102 = vand.u32 %v788, 4294901760
    %v2103 = vsub.f32 %v788, %v2102
    %v2104 = vand.u32 %v2103, 4294901760
    %2105 = vmatprep.subr.mxu0 %v2104
    %v2106 = vand.u32 %v787, 4294901760
    %v2107 = vsub.f32 %v787, %v2106
    %v2108 = vand.u32 %v2107, 4294901760
    %2109 = vmatpush1.msra.mxu0 %v2108
    %v2110 = vand.u32 %v804, 4294901760
    %v2111 = vsub.f32 %v804, %v2110
    %v2112 = vand.u32 %v2111, 4294901760
    %2113 = vmatprep.subr.mxu0 %v2112
    %v2114 = vand.u32 %v803, 4294901760
    %v2115 = vsub.f32 %v803, %v2114
    %v2116 = vand.u32 %v2115, 4294901760
    %2117 = vmatpush1.msra.mxu0 %v2116
    %v2118 = vand.u32 %v1204, 4294901760
    %v2119 = vsub.f32 %v1204, %v2118
    %v2120 = vand.u32 %v2119, 4294901760
    %2121 = vmatprep.subr.mxu0 %v2120
    %v2122 = vand.u32 %v1203, 4294901760
    %v2123 = vsub.f32 %v1203, %v2122
    %v2124 = vand.u32 %v2123, 4294901760
    %2125 = vmatpush1.msra.mxu0 %v2124
    %v2126 = vand.u32 %v1220, 4294901760
    %v2127 = vsub.f32 %v1220, %v2126
    %v2128 = vand.u32 %v2127, 4294901760
    %2129 = vmatprep.subr.mxu0 %v2128
    %v2130 = vand.u32 %v1219, 4294901760
    %v2131 = vsub.f32 %v1219, %v2130
    %v2132 = vand.u32 %v2131, 4294901760
    %2133 = vmatpush1.msra.mxu0 %v2132
    %v2134 = vand.u32 %v1236, 4294901760
    %v2135 = vsub.f32 %v1236, %v2134
    %v2136 = vand.u32 %v2135, 4294901760
    %2137 = vmatprep.subr.mxu0 %v2136
    %v2138 = vand.u32 %v1235, 4294901760
    %v2139 = vsub.f32 %v1235, %v2138
    %v2140 = vand.u32 %v2139, 4294901760
    %2141 = vmatpush1.msra.mxu0 %v2140
    %v2142 = vand.u32 %v1252, 4294901760
    %v2143 = vsub.f32 %v1252, %v2142
    %v2144 = vand.u32 %v2143, 4294901760
    %2145 = vmatprep.subr.mxu0 %v2144
    %v2146 = vand.u32 %v1251, 4294901760
    %v2147 = vsub.f32 %v1251, %v2146
    %v2148 = vand.u32 %v2147, 4294901760
    %2149 = vmatpush1.msra.mxu0 %v2148
    %v2150 = vand.u32 %v1268, 4294901760
    %v2151 = vsub.f32 %v1268, %v2150
    %v2152 = vand.u32 %v2151, 4294901760
    %2153 = vmatprep.subr.mxu0 %v2152
    %v2154 = vand.u32 %v1267, 4294901760
    %v2155 = vsub.f32 %v1267, %v2154
    %v2156 = vand.u32 %v2155, 4294901760
    %2157 = vmatpush1.msra.mxu0 %v2156
    %v2158 = vand.u32 %v1284, 4294901760
    %v2159 = vsub.f32 %v1284, %v2158
    %v2160 = vand.u32 %v2159, 4294901760
    %2161 = vmatprep.subr.mxu0 %v2160
    %v2162 = vand.u32 %v1283, 4294901760
    %v2163 = vsub.f32 %v1283, %v2162
    %v2164 = vand.u32 %v2163, 4294901760
    %2165 = vmatpush1.msra.mxu0 %v2164
    %v2166 = vand.u32 %v1300, 4294901760
    %v2167 = vsub.f32 %v1300, %v2166
    %v2168 = vand.u32 %v2167, 4294901760
    %2169 = vmatprep.subr.mxu0 %v2168
    %v2170 = vand.u32 %v1299, 4294901760
    %v2171 = vsub.f32 %v1299, %v2170
    %v2172 = vand.u32 %v2171, 4294901760
    %2173 = vmatpush1.msra.mxu0 %v2172
    %v2174 = vand.u32 %v1316, 4294901760
    %v2175 = vsub.f32 %v1316, %v2174
    %v2176 = vand.u32 %v2175, 4294901760
    %2177 = vmatprep.subr.mxu0 %v2176
    %v2178 = vand.u32 %v1315, 4294901760
    %v2179 = vsub.f32 %v1315, %v2178
    %v2180 = vand.u32 %v2179, 4294901760
    %2181 = vmatpush1.msra.mxu0 %v2180
    %2182 = vmatprep.subr.mxu0 0.0
    %2183 = vmatpush1.msra.mxu0 0.0
    %2184 = vmatprep.subr.mxu0 0.0
    %2185 = vmatpush1.msra.mxu0 0.0
    %2186 = vmatprep.subr.mxu0 0.0
    %2187 = vmatpush1.msra.mxu0 0.0
    %2188 = vmatprep.subr.mxu0 0.0
    %2189 = vmatpush1.msra.mxu0 0.0
    %2190 = vmatprep.subr.mxu0 0.0
    %2191 = vmatpush1.msra.mxu0 0.0
    %2192 = vmatprep.subr.mxu0 0.0
    %2193 = vmatpush1.msra.mxu0 0.0
    %2194 = vmatprep.subr.mxu0 0.0
    %2195 = vmatpush1.msra.mxu0 0.0
    %2196 = vmatprep.subr.mxu0 0.0
    %2197 = vmatpush1.msra.mxu0 0.0
    %2198 = vmatprep.subr.mxu0 0.0
    %2199 = vmatpush1.msra.mxu0 0.0
    %2200 = vmatprep.subr.mxu0 0.0
    %2201 = vmatpush1.msra.mxu0 0.0
    %2202 = vmatprep.subr.mxu0 0.0
    %2203 = vmatpush1.msra.mxu0 0.0
    %2204 = vmatprep.subr.mxu0 0.0
    %2205 = vmatpush1.msra.mxu0 0.0
    %2206 = vmatprep.subr.mxu0 0.0
    %2207 = vmatpush1.msra.mxu0 0.0
    %2208 = vmatprep.subr.mxu0 0.0
    %2209 = vmatpush1.msra.mxu0 0.0
    %2210 = vmatprep.subr.mxu0 0.0
    %2211 = vmatpush1.msra.mxu0 0.0
    %2212 = vmatprep.subr.mxu0 0.0
    %2213 = vmatpush1.msra.mxu0 0.0
    %2214 = vmatprep.mubr.f32.mxu0 0.0
    %v2215 = vand.u32 %v293, 4294901760
    %2216 = vmatmul.mubr.f32.gmra.mrb[0].mxu0 %v2215
    %v2217 = vpop.f32.mrb[0].mxu0
    %v2218 = vadd.f32 %v2014, %v2217
    %v2219 = vpop.f32.mrb[0].mxu0
    %v2220 = vadd.f32 %v2016, %v2219
    %2221 = vmatprep.mubr.f32.mxu0 0.0
    %v2222 = vand.u32 %v294, 4294901760
    %2223 = vmatmul.mubr.f32.gmra.mrb[0].mxu0 %v2222
    %v2224 = vpop.f32.mrb[0].mxu0
    %v2225 = vadd.f32 %v2023, %v2224
    %v2226 = vpop.f32.mrb[0].mxu0
    %v2227 = vadd.f32 %v2025, %v2226
    %2228 = vmatprep.mubr.f32.mxu0 0.0
    %v2229 = vand.u32 %v295, 4294901760
    %2230 = vmatmul.mubr.f32.gmra.mrb[0].mxu0 %v2229
    %v2231 = vpop.f32.mrb[0].mxu0
    %v2232 = vadd.f32 %v2032, %v2231
    %v2233 = vpop.f32.mrb[0].mxu0
    %v2234 = vadd.f32 %v2034, %v2233
    %2235 = vmatprep.mubr.f32.mxu0 0.0
    %v2236 = vand.u32 %v296, 4294901760
    %2237 = vmatmul.mubr.f32.gmra.mrb[0].mxu0 %v2236
    %v2238 = vpop.f32.mrb[0].mxu0
    %v2239 = vadd.f32 %v2041, %v2238
    %v2240 = vpop.f32.mrb[0].mxu0
    %v2241 = vadd.f32 %v2043, %v2240
    %2242 = vmatprep.mubr.f32.mxu0 0.0
    %v2243 = vand.u32 %v297, 4294901760
    %2244 = vmatmul.mubr.f32.gmra.mrb[0].mxu0 %v2243
    %v2245 = vpop.f32.mrb[0].mxu0
    %v2246 = vadd.f32 %v2050, %v2245
    %v2247 = vpop.f32.mrb[0].mxu0
    %v2248 = vadd.f32 %v2052, %v2247
    %2249 = vdwg.mxu0
    %v2250 = vand.u32 %v692, 4294901760
    %2251 = vmatprep.subr.mxu0 %v2250
    %v2252 = vand.u32 %v691, 4294901760
    %2253 = vmatpush1.msra.mxu0 %v2252
    %v2254 = vand.u32 %v708, 4294901760
    %2255 = vmatprep.subr.mxu0 %v2254
    %v2256 = vand.u32 %v707, 4294901760
    %2257 = vmatpush1.msra.mxu0 %v2256
    %v2258 = vand.u32 %v724, 4294901760
    %2259 = vmatprep.subr.mxu0 %v2258
    %v2260 = vand.u32 %v723, 4294901760
    %2261 = vmatpush1.msra.mxu0 %v2260
    %v2262 = vand.u32 %v740, 4294901760
    %2263 = vmatprep.subr.mxu0 %v2262
    %v2264 = vand.u32 %v739, 4294901760
    %2265 = vmatpush1.msra.mxu0 %v2264
    %v2266 = vand.u32 %v756, 4294901760
    %2267 = vmatprep.subr.mxu0 %v2266
    %v2268 = vand.u32 %v755, 4294901760
    %2269 = vmatpush1.msra.mxu0 %v2268
    %v2270 = vand.u32 %v772, 4294901760
    %2271 = vmatprep.subr.mxu0 %v2270
    %v2272 = vand.u32 %v771, 4294901760
    %2273 = vmatpush1.msra.mxu0 %v2272
    %v2274 = vand.u32 %v788, 4294901760
    %2275 = vmatprep.subr.mxu0 %v2274
    %v2276 = vand.u32 %v787, 4294901760
    %2277 = vmatpush1.msra.mxu0 %v2276
    %v2278 = vand.u32 %v804, 4294901760
    %2279 = vmatprep.subr.mxu0 %v2278
    %v2280 = vand.u32 %v803, 4294901760
    %2281 = vmatpush1.msra.mxu0 %v2280
    %v2282 = vand.u32 %v1204, 4294901760
    %2283 = vmatprep.subr.mxu0 %v2282
    %v2284 = vand.u32 %v1203, 4294901760
    %2285 = vmatpush1.msra.mxu0 %v2284
    %v2286 = vand.u32 %v1220, 4294901760
    %2287 = vmatprep.subr.mxu0 %v2286
    %v2288 = vand.u32 %v1219, 4294901760
    %2289 = vmatpush1.msra.mxu0 %v2288
    %v2290 = vand.u32 %v1236, 4294901760
    %2291 = vmatprep.subr.mxu0 %v2290
    %v2292 = vand.u32 %v1235, 4294901760
    %2293 = vmatpush1.msra.mxu0 %v2292
    %v2294 = vand.u32 %v1252, 4294901760
    %2295 = vmatprep.subr.mxu0 %v2294
    %v2296 = vand.u32 %v1251, 4294901760
    %2297 = vmatpush1.msra.mxu0 %v2296
    %v2298 = vand.u32 %v1268, 4294901760
    %2299 = vmatprep.subr.mxu0 %v2298
    %v2300 = vand.u32 %v1267, 4294901760
    %2301 = vmatpush1.msra.mxu0 %v2300
    %v2302 = vand.u32 %v1284, 4294901760
    %2303 = vmatprep.subr.mxu0 %v2302
    %v2304 = vand.u32 %v1283, 4294901760
    %2305 = vmatpush1.msra.mxu0 %v2304
    %v2306 = vand.u32 %v1300, 4294901760
    %2307 = vmatprep.subr.mxu0 %v2306
    %v2308 = vand.u32 %v1299, 4294901760
    %2309 = vmatpush1.msra.mxu0 %v2308
    %v2310 = vand.u32 %v1316, 4294901760
    %2311 = vmatprep.subr.mxu0 %v2310
    %v2312 = vand.u32 %v1315, 4294901760
    %2313 = vmatpush1.msra.mxu0 %v2312
    %2314 = vmatprep.subr.mxu0 0.0
    %2315 = vmatpush1.msra.mxu0 0.0
    %2316 = vmatprep.subr.mxu0 0.0
    %2317 = vmatpush1.msra.mxu0 0.0
    %2318 = vmatprep.subr.mxu0 0.0
    %2319 = vmatpush1.msra.mxu0 0.0
    %2320 = vmatprep.subr.mxu0 0.0
    %2321 = vmatpush1.msra.mxu0 0.0
    %2322 = vmatprep.subr.mxu0 0.0
    %2323 = vmatpush1.msra.mxu0 0.0
    %2324 = vmatprep.subr.mxu0 0.0
    %2325 = vmatpush1.msra.mxu0 0.0
    %2326 = vmatprep.subr.mxu0 0.0
    %2327 = vmatpush1.msra.mxu0 0.0
    %2328 = vmatprep.subr.mxu0 0.0
    %2329 = vmatpush1.msra.mxu0 0.0
    %2330 = vmatprep.subr.mxu0 0.0
    %2331 = vmatpush1.msra.mxu0 0.0
    %2332 = vmatprep.subr.mxu0 0.0
    %2333 = vmatpush1.msra.mxu0 0.0
    %2334 = vmatprep.subr.mxu0 0.0
    %2335 = vmatpush1.msra.mxu0 0.0
    %2336 = vmatprep.subr.mxu0 0.0
    %2337 = vmatpush1.msra.mxu0 0.0
    %2338 = vmatprep.subr.mxu0 0.0
    %2339 = vmatpush1.msra.mxu0 0.0
    %2340 = vmatprep.subr.mxu0 0.0
    %2341 = vmatpush1.msra.mxu0 0.0
    %2342 = vmatprep.subr.mxu0 0.0
    %2343 = vmatpush1.msra.mxu0 0.0
    %2344 = vmatprep.subr.mxu0 0.0
    %2345 = vmatpush1.msra.mxu0 0.0
    %2346 = vmatprep.mubr.f32.mxu0 0.0
    %v2347 = vand.u32 %v293, 4294901760
    %2348 = vmatmul.mubr.f32.gmra.mrb[0].mxu0 %v2347
    %v2349 = vpop.f32.mrb[0].mxu0
    %v2350 = vadd.f32 %v2218, %v2349
    %v2351 = vpop.f32.mrb[0].mxu0
    %v2352 = vadd.f32 %v2220, %v2351
    %2353 = vmatprep.mubr.f32.mxu0 0.0
    %v2354 = vand.u32 %v294, 4294901760
    %2355 = vmatmul.mubr.f32.gmra.mrb[0].mxu0 %v2354
    %v2356 = vpop.f32.mrb[0].mxu0
    %v2357 = vadd.f32 %v2225, %v2356
    %v2358 = vpop.f32.mrb[0].mxu0
    %v2359 = vadd.f32 %v2227, %v2358
    %2360 = vmatprep.mubr.f32.mxu0 0.0
    %v2361 = vand.u32 %v295, 4294901760
    %2362 = vmatmul.mubr.f32.gmra.mrb[0].mxu0 %v2361
    %v2363 = vpop.f32.mrb[0].mxu0
    %v2364 = vadd.f32 %v2232, %v2363
    %v2365 = vpop.f32.mrb[0].mxu0
    %v2366 = vadd.f32 %v2234, %v2365
    %2367 = vmatprep.mubr.f32.mxu0 0.0
    %v2368 = vand.u32 %v296, 4294901760
    %2369 = vmatmul.mubr.f32.gmra.mrb[0].mxu0 %v2368
    %v2370 = vpop.f32.mrb[0].mxu0
    %v2371 = vadd.f32 %v2239, %v2370
    %v2372 = vpop.f32.mrb[0].mxu0
    %v2373 = vadd.f32 %v2241, %v2372
    %2374 = vmatprep.mubr.f32.mxu0 0.0
    %v2375 = vand.u32 %v297, 4294901760
    %2376 = vmatmul.mubr.f32.gmra.mrb[0].mxu0 %v2375
    %v2377 = vpop.f32.mrb[0].mxu0
    %v2378 = vadd.f32 %v2246, %v2377
    %v2379 = vpop.f32.mrb[0].mxu0
    %v2380 = vadd.f32 %v2248, %v2379
    %2381 = vdwg.mxu0
    %v2382 = vand.u32 %v694, 4294901760
    %2383 = vmatprep.subr.mxu0 %v2382
    %v2384 = vand.u32 %v693, 4294901760
    %2385 = vmatpush1.msra.mxu0 %v2384
    %v2386 = vand.u32 %v710, 4294901760
    %2387 = vmatprep.subr.mxu0 %v2386
    %v2388 = vand.u32 %v709, 4294901760
    %2389 = vmatpush1.msra.mxu0 %v2388
    %v2390 = vand.u32 %v726, 4294901760
    %2391 = vmatprep.subr.mxu0 %v2390
    %v2392 = vand.u32 %v725, 4294901760
    %2393 = vmatpush1.msra.mxu0 %v2392
    %v2394 = vand.u32 %v742, 4294901760
    %2395 = vmatprep.subr.mxu0 %v2394
    %v2396 = vand.u32 %v741, 4294901760
    %2397 = vmatpush1.msra.mxu0 %v2396
    %v2398 = vand.u32 %v758, 4294901760
    %2399 = vmatprep.subr.mxu0 %v2398
    %v2400 = vand.u32 %v757, 4294901760
    %2401 = vmatpush1.msra.mxu0 %v2400
    %v2402 = vand.u32 %v774, 4294901760
    %2403 = vmatprep.subr.mxu0 %v2402
    %v2404 = vand.u32 %v773, 4294901760
    %2405 = vmatpush1.msra.mxu0 %v2404
    %v2406 = vand.u32 %v790, 4294901760
    %2407 = vmatprep.subr.mxu0 %v2406
    %v2408 = vand.u32 %v789, 4294901760
    %2409 = vmatpush1.msra.mxu0 %v2408
    %v2410 = vand.u32 %v806, 4294901760
    %2411 = vmatprep.subr.mxu0 %v2410
    %v2412 = vand.u32 %v805, 4294901760
    %2413 = vmatpush1.msra.mxu0 %v2412
    %v2414 = vand.u32 %v1206, 4294901760
    %2415 = vmatprep.subr.mxu0 %v2414
    %v2416 = vand.u32 %v1205, 4294901760
    %2417 = vmatpush1.msra.mxu0 %v2416
    %v2418 = vand.u32 %v1222, 4294901760
    %2419 = vmatprep.subr.mxu0 %v2418
    %v2420 = vand.u32 %v1221, 4294901760
    %2421 = vmatpush1.msra.mxu0 %v2420
    %v2422 = vand.u32 %v1238, 4294901760
    %2423 = vmatprep.subr.mxu0 %v2422
    %v2424 = vand.u32 %v1237, 4294901760
    %2425 = vmatpush1.msra.mxu0 %v2424
    %v2426 = vand.u32 %v1254, 4294901760
    %2427 = vmatprep.subr.mxu0 %v2426
    %v2428 = vand.u32 %v1253, 4294901760
    %2429 = vmatpush1.msra.mxu0 %v2428
    %v2430 = vand.u32 %v1270, 4294901760
    %2431 = vmatprep.subr.mxu0 %v2430
    %v2432 = vand.u32 %v1269, 4294901760
    %2433 = vmatpush1.msra.mxu0 %v2432
    %v2434 = vand.u32 %v1286, 4294901760
    %2435 = vmatprep.subr.mxu0 %v2434
    %v2436 = vand.u32 %v1285, 4294901760
    %2437 = vmatpush1.msra.mxu0 %v2436
    %v2438 = vand.u32 %v1302, 4294901760
    %2439 = vmatprep.subr.mxu0 %v2438
    %v2440 = vand.u32 %v1301, 4294901760
    %2441 = vmatpush1.msra.mxu0 %v2440
    %v2442 = vand.u32 %v1318, 4294901760
    %2443 = vmatprep.subr.mxu0 %v2442
    %v2444 = vand.u32 %v1317, 4294901760
    %2445 = vmatpush1.msra.mxu0 %v2444
    %2446 = vmatprep.subr.mxu0 0.0
    %2447 = vmatpush1.msra.mxu0 0.0
    %2448 = vmatprep.subr.mxu0 0.0
    %2449 = vmatpush1.msra.mxu0 0.0
    %2450 = vmatprep.subr.mxu0 0.0
    %2451 = vmatpush1.msra.mxu0 0.0
    %2452 = vmatprep.subr.mxu0 0.0
    %2453 = vmatpush1.msra.mxu0 0.0
    %2454 = vmatprep.subr.mxu0 0.0
    %2455 = vmatpush1.msra.mxu0 0.0
    %2456 = vmatprep.subr.mxu0 0.0
    %2457 = vmatpush1.msra.mxu0 0.0
    %2458 = vmatprep.subr.mxu0 0.0
    %2459 = vmatpush1.msra.mxu0 0.0
    %2460 = vmatprep.subr.mxu0 0.0
    %2461 = vmatpush1.msra.mxu0 0.0
    %2462 = vmatprep.subr.mxu0 0.0
    %2463 = vmatpush1.msra.mxu0 0.0
    %2464 = vmatprep.subr.mxu0 0.0
    %2465 = vmatpush1.msra.mxu0 0.0
    %2466 = vmatprep.subr.mxu0 0.0
    %2467 = vmatpush1.msra.mxu0 0.0
    %2468 = vmatprep.subr.mxu0 0.0
    %2469 = vmatpush1.msra.mxu0 0.0
    %2470 = vmatprep.subr.mxu0 0.0
    %2471 = vmatpush1.msra.mxu0 0.0
    %2472 = vmatprep.subr.mxu0 0.0
    %2473 = vmatpush1.msra.mxu0 0.0
    %2474 = vmatprep.subr.mxu0 0.0
    %2475 = vmatpush1.msra.mxu0 0.0
    %2476 = vmatprep.subr.mxu0 0.0
    %2477 = vmatpush1.msra.mxu0 0.0
    %2478 = vmatprep.mubr.f32.mxu0 0.0
    %v2479 = vand.u32 %v293, 4294901760
    %v2480 = vsub.f32 %v293, %v2479
    %v2481 = vand.u32 %v2480, 4294901760
    %v2482 = vsub.f32 %v2480, %v2481
    %v2483 = vand.u32 %v2482, 4294901760
    %2484 = vmatmul.mubr.f32.gmra.mrb[0].mxu0 %v2483
    %v2485 = vpop.f32.mrb[0].mxu0
    %v2486 = vadd.f32 0.0, %v2485
    %v2487 = vpop.f32.mrb[0].mxu0
    %v2488 = vadd.f32 0.0, %v2487
    %2489 = vmatprep.mubr.f32.mxu0 0.0
    %v2490 = vand.u32 %v294, 4294901760
    %v2491 = vsub.f32 %v294, %v2490
    %v2492 = vand.u32 %v2491, 4294901760
    %v2493 = vsub.f32 %v2491, %v2492
    %v2494 = vand.u32 %v2493, 4294901760
    %2495 = vmatmul.mubr.f32.gmra.mrb[0].mxu0 %v2494
    %v2496 = vpop.f32.mrb[0].mxu0
    %v2497 = vadd.f32 0.0, %v2496
    %v2498 = vpop.f32.mrb[0].mxu0
    %v2499 = vadd.f32 0.0, %v2498
    %2500 = vmatprep.mubr.f32.mxu0 0.0
    %v2501 = vand.u32 %v295, 4294901760
    %v2502 = vsub.f32 %v295, %v2501
    %v2503 = vand.u32 %v2502, 4294901760
    %v2504 = vsub.f32 %v2502, %v2503
    %v2505 = vand.u32 %v2504, 4294901760
    %2506 = vmatmul.mubr.f32.gmra.mrb[0].mxu0 %v2505
    %v2507 = vpop.f32.mrb[0].mxu0
    %v2508 = vadd.f32 0.0, %v2507
    %v2509 = vpop.f32.mrb[0].mxu0
    %v2510 = vadd.f32 0.0, %v2509
    %2511 = vmatprep.mubr.f32.mxu0 0.0
    %v2512 = vand.u32 %v296, 4294901760
    %v2513 = vsub.f32 %v296, %v2512
    %v2514 = vand.u32 %v2513, 4294901760
    %v2515 = vsub.f32 %v2513, %v2514
    %v2516 = vand.u32 %v2515, 4294901760
    %2517 = vmatmul.mubr.f32.gmra.mrb[0].mxu0 %v2516
    %v2518 = vpop.f32.mrb[0].mxu0
    %v2519 = vadd.f32 0.0, %v2518
    %v2520 = vpop.f32.mrb[0].mxu0
    %v2521 = vadd.f32 0.0, %v2520
    %2522 = vmatprep.mubr.f32.mxu0 0.0
    %v2523 = vand.u32 %v297, 4294901760
    %v2524 = vsub.f32 %v297, %v2523
    %v2525 = vand.u32 %v2524, 4294901760
    %v2526 = vsub.f32 %v2524, %v2525
    %v2527 = vand.u32 %v2526, 4294901760
    %2528 = vmatmul.mubr.f32.gmra.mrb[0].mxu0 %v2527
    %v2529 = vpop.f32.mrb[0].mxu0
    %v2530 = vadd.f32 0.0, %v2529
    %v2531 = vpop.f32.mrb[0].mxu0
    %v2532 = vadd.f32 0.0, %v2531
    %2533 = vdwg.mxu0
    %v2534 = vand.u32 %v694, 4294901760
    %v2535 = vsub.f32 %v694, %v2534
    %v2536 = vand.u32 %v2535, 4294901760
    %v2537 = vsub.f32 %v2535, %v2536
    %v2538 = vand.u32 %v2537, 4294901760
    %2539 = vmatprep.subr.mxu0 %v2538
    %v2540 = vand.u32 %v693, 4294901760
    %v2541 = vsub.f32 %v693, %v2540
    %v2542 = vand.u32 %v2541, 4294901760
    %v2543 = vsub.f32 %v2541, %v2542
    %v2544 = vand.u32 %v2543, 4294901760
    %2545 = vmatpush1.msra.mxu0 %v2544
    %v2546 = vand.u32 %v710, 4294901760
    %v2547 = vsub.f32 %v710, %v2546
    %v2548 = vand.u32 %v2547, 4294901760
    %v2549 = vsub.f32 %v2547, %v2548
    %v2550 = vand.u32 %v2549, 4294901760
    %2551 = vmatprep.subr.mxu0 %v2550
    %v2552 = vand.u32 %v709, 4294901760
    %v2553 = vsub.f32 %v709, %v2552
    %v2554 = vand.u32 %v2553, 4294901760
    %v2555 = vsub.f32 %v2553, %v2554
    %v2556 = vand.u32 %v2555, 4294901760
    %2557 = vmatpush1.msra.mxu0 %v2556
    %v2558 = vand.u32 %v726, 4294901760
    %v2559 = vsub.f32 %v726, %v2558
    %v2560 = vand.u32 %v2559, 4294901760
    %v2561 = vsub.f32 %v2559, %v2560
    %v2562 = vand.u32 %v2561, 4294901760
    %2563 = vmatprep.subr.mxu0 %v2562
    %v2564 = vand.u32 %v725, 4294901760
    %v2565 = vsub.f32 %v725, %v2564
    %v2566 = vand.u32 %v2565, 4294901760
    %v2567 = vsub.f32 %v2565, %v2566
    %v2568 = vand.u32 %v2567, 4294901760
    %2569 = vmatpush1.msra.mxu0 %v2568
    %v2570 = vand.u32 %v742, 4294901760
    %v2571 = vsub.f32 %v742, %v2570
    %v2572 = vand.u32 %v2571, 4294901760
    %v2573 = vsub.f32 %v2571, %v2572
    %v2574 = vand.u32 %v2573, 4294901760
    %2575 = vmatprep.subr.mxu0 %v2574
    %v2576 = vand.u32 %v741, 4294901760
    %v2577 = vsub.f32 %v741, %v2576
    %v2578 = vand.u32 %v2577, 4294901760
    %v2579 = vsub.f32 %v2577, %v2578
    %v2580 = vand.u32 %v2579, 4294901760
    %2581 = vmatpush1.msra.mxu0 %v2580
    %v2582 = vand.u32 %v758, 4294901760
    %v2583 = vsub.f32 %v758, %v2582
    %v2584 = vand.u32 %v2583, 4294901760
    %v2585 = vsub.f32 %v2583, %v2584
    %v2586 = vand.u32 %v2585, 4294901760
    %2587 = vmatprep.subr.mxu0 %v2586
    %v2588 = vand.u32 %v757, 4294901760
    %v2589 = vsub.f32 %v757, %v2588
    %v2590 = vand.u32 %v2589, 4294901760
    %v2591 = vsub.f32 %v2589, %v2590
    %v2592 = vand.u32 %v2591, 4294901760
    %2593 = vmatpush1.msra.mxu0 %v2592
    %v2594 = vand.u32 %v774, 4294901760
    %v2595 = vsub.f32 %v774, %v2594
    %v2596 = vand.u32 %v2595, 4294901760
    %v2597 = vsub.f32 %v2595, %v2596
    %v2598 = vand.u32 %v2597, 4294901760
    %2599 = vmatprep.subr.mxu0 %v2598
    %v2600 = vand.u32 %v773, 4294901760
    %v2601 = vsub.f32 %v773, %v2600
    %v2602 = vand.u32 %v2601, 4294901760
    %v2603 = vsub.f32 %v2601, %v2602
    %v2604 = vand.u32 %v2603, 4294901760
    %2605 = vmatpush1.msra.mxu0 %v2604
    %v2606 = vand.u32 %v790, 4294901760
    %v2607 = vsub.f32 %v790, %v2606
    %v2608 = vand.u32 %v2607, 4294901760
    %v2609 = vsub.f32 %v2607, %v2608
    %v2610 = vand.u32 %v2609, 4294901760
    %2611 = vmatprep.subr.mxu0 %v2610
    %v2612 = vand.u32 %v789, 4294901760
    %v2613 = vsub.f32 %v789, %v2612
    %v2614 = vand.u32 %v2613, 4294901760
    %v2615 = vsub.f32 %v2613, %v2614
    %v2616 = vand.u32 %v2615, 4294901760
    %2617 = vmatpush1.msra.mxu0 %v2616
    %v2618 = vand.u32 %v806, 4294901760
    %v2619 = vsub.f32 %v806, %v2618
    %v2620 = vand.u32 %v2619, 4294901760
    %v2621 = vsub.f32 %v2619, %v2620
    %v2622 = vand.u32 %v2621, 4294901760
    %2623 = vmatprep.subr.mxu0 %v2622
    %v2624 = vand.u32 %v805, 4294901760
    %v2625 = vsub.f32 %v805, %v2624
    %v2626 = vand.u32 %v2625, 4294901760
    %v2627 = vsub.f32 %v2625, %v2626
    %v2628 = vand.u32 %v2627, 4294901760
    %2629 = vmatpush1.msra.mxu0 %v2628
    %v2630 = vand.u32 %v1206, 4294901760
    %v2631 = vsub.f32 %v1206, %v2630
    %v2632 = vand.u32 %v2631, 4294901760
    %v2633 = vsub.f32 %v2631, %v2632
    %v2634 = vand.u32 %v2633, 4294901760
    %2635 = vmatprep.subr.mxu0 %v2634
    %v2636 = vand.u32 %v1205, 4294901760
    %v2637 = vsub.f32 %v1205, %v2636
    %v2638 = vand.u32 %v2637, 4294901760
    %v2639 = vsub.f32 %v2637, %v2638
    %v2640 = vand.u32 %v2639, 4294901760
    %2641 = vmatpush1.msra.mxu0 %v2640
    %v2642 = vand.u32 %v1222, 4294901760
    %v2643 = vsub.f32 %v1222, %v2642
    %v2644 = vand.u32 %v2643, 4294901760
    %v2645 = vsub.f32 %v2643, %v2644
    %v2646 = vand.u32 %v2645, 4294901760
    %2647 = vmatprep.subr.mxu0 %v2646
    %v2648 = vand.u32 %v1221, 4294901760
    %v2649 = vsub.f32 %v1221, %v2648
    %v2650 = vand.u32 %v2649, 4294901760
    %v2651 = vsub.f32 %v2649, %v2650
    %v2652 = vand.u32 %v2651, 4294901760
    %2653 = vmatpush1.msra.mxu0 %v2652
    %v2654 = vand.u32 %v1238, 4294901760
    %v2655 = vsub.f32 %v1238, %v2654
    %v2656 = vand.u32 %v2655, 4294901760
    %v2657 = vsub.f32 %v2655, %v2656
    %v2658 = vand.u32 %v2657, 4294901760
    %2659 = vmatprep.subr.mxu0 %v2658
    %v2660 = vand.u32 %v1237, 4294901760
    %v2661 = vsub.f32 %v1237, %v2660
    %v2662 = vand.u32 %v2661, 4294901760
    %v2663 = vsub.f32 %v2661, %v2662
    %v2664 = vand.u32 %v2663, 4294901760
    %2665 = vmatpush1.msra.mxu0 %v2664
    %v2666 = vand.u32 %v1254, 4294901760
    %v2667 = vsub.f32 %v1254, %v2666
    %v2668 = vand.u32 %v2667, 4294901760
    %v2669 = vsub.f32 %v2667, %v2668
    %v2670 = vand.u32 %v2669, 4294901760
    %2671 = vmatprep.subr.mxu0 %v2670
    %v2672 = vand.u32 %v1253, 4294901760
    %v2673 = vsub.f32 %v1253, %v2672
    %v2674 = vand.u32 %v2673, 4294901760
    %v2675 = vsub.f32 %v2673, %v2674
    %v2676 = vand.u32 %v2675, 4294901760
    %2677 = vmatpush1.msra.mxu0 %v2676
    %v2678 = vand.u32 %v1270, 4294901760
    %v2679 = vsub.f32 %v1270, %v2678
    %v2680 = vand.u32 %v2679, 4294901760
    %v2681 = vsub.f32 %v2679, %v2680
    %v2682 = vand.u32 %v2681, 4294901760
    %2683 = vmatprep.subr.mxu0 %v2682
    %v2684 = vand.u32 %v1269, 4294901760
    %v2685 = vsub.f32 %v1269, %v2684
    %v2686 = vand.u32 %v2685, 4294901760
    %v2687 = vsub.f32 %v2685, %v2686
    %v2688 = vand.u32 %v2687, 4294901760
    %2689 = vmatpush1.msra.mxu0 %v2688
    %v2690 = vand.u32 %v1286, 4294901760
    %v2691 = vsub.f32 %v1286, %v2690
    %v2692 = vand.u32 %v2691, 4294901760
    %v2693 = vsub.f32 %v2691, %v2692
    %v2694 = vand.u32 %v2693, 4294901760
    %2695 = vmatprep.subr.mxu0 %v2694
    %v2696 = vand.u32 %v1285, 4294901760
    %v2697 = vsub.f32 %v1285, %v2696
    %v2698 = vand.u32 %v2697, 4294901760
    %v2699 = vsub.f32 %v2697, %v2698
    %v2700 = vand.u32 %v2699, 4294901760
    %2701 = vmatpush1.msra.mxu0 %v2700
    %v2702 = vand.u32 %v1302, 4294901760
    %v2703 = vsub.f32 %v1302, %v2702
    %v2704 = vand.u32 %v2703, 4294901760
    %v2705 = vsub.f32 %v2703, %v2704
    %v2706 = vand.u32 %v2705, 4294901760
    %2707 = vmatprep.subr.mxu0 %v2706
    %v2708 = vand.u32 %v1301, 4294901760
    %v2709 = vsub.f32 %v1301, %v2708
    %v2710 = vand.u32 %v2709, 4294901760
    %v2711 = vsub.f32 %v2709, %v2710
    %v2712 = vand.u32 %v2711, 4294901760
    %2713 = vmatpush1.msra.mxu0 %v2712
    %v2714 = vand.u32 %v1318, 4294901760
    %v2715 = vsub.f32 %v1318, %v2714
    %v2716 = vand.u32 %v2715, 4294901760
    %v2717 = vsub.f32 %v2715, %v2716
    %v2718 = vand.u32 %v2717, 4294901760
    %2719 = vmatprep.subr.mxu0 %v2718
    %v2720 = vand.u32 %v1317, 4294901760
    %v2721 = vsub.f32 %v1317, %v2720
    %v2722 = vand.u32 %v2721, 4294901760
    %v2723 = vsub.f32 %v2721, %v2722
    %v2724 = vand.u32 %v2723, 4294901760
    %2725 = vmatpush1.msra.mxu0 %v2724
    %2726 = vmatprep.subr.mxu0 0.0
    %2727 = vmatpush1.msra.mxu0 0.0
    %2728 = vmatprep.subr.mxu0 0.0
    %2729 = vmatpush1.msra.mxu0 0.0
    %2730 = vmatprep.subr.mxu0 0.0
    %2731 = vmatpush1.msra.mxu0 0.0
    %2732 = vmatprep.subr.mxu0 0.0
    %2733 = vmatpush1.msra.mxu0 0.0
    %2734 = vmatprep.subr.mxu0 0.0
    %2735 = vmatpush1.msra.mxu0 0.0
    %2736 = vmatprep.subr.mxu0 0.0
    %2737 = vmatpush1.msra.mxu0 0.0
    %2738 = vmatprep.subr.mxu0 0.0
    %2739 = vmatpush1.msra.mxu0 0.0
    %2740 = vmatprep.subr.mxu0 0.0
    %2741 = vmatpush1.msra.mxu0 0.0
    %2742 = vmatprep.subr.mxu0 0.0
    %2743 = vmatpush1.msra.mxu0 0.0
    %2744 = vmatprep.subr.mxu0 0.0
    %2745 = vmatpush1.msra.mxu0 0.0
    %2746 = vmatprep.subr.mxu0 0.0
    %2747 = vmatpush1.msra.mxu0 0.0
    %2748 = vmatprep.subr.mxu0 0.0
    %2749 = vmatpush1.msra.mxu0 0.0
    %2750 = vmatprep.subr.mxu0 0.0
    %2751 = vmatpush1.msra.mxu0 0.0
    %2752 = vmatprep.subr.mxu0 0.0
    %2753 = vmatpush1.msra.mxu0 0.0
    %2754 = vmatprep.subr.mxu0 0.0
    %2755 = vmatpush1.msra.mxu0 0.0
    %2756 = vmatprep.subr.mxu0 0.0
    %2757 = vmatpush1.msra.mxu0 0.0
    %2758 = vmatprep.mubr.f32.mxu0 0.0
    %v2759 = vand.u32 %v293, 4294901760
    %2760 = vmatmul.mubr.f32.gmra.mrb[0].mxu0 %v2759
    %v2761 = vpop.f32.mrb[0].mxu0
    %v2762 = vadd.f32 %v2486, %v2761
    %v2763 = vpop.f32.mrb[0].mxu0
    %v2764 = vadd.f32 %v2488, %v2763
    %2765 = vmatprep.mubr.f32.mxu0 0.0
    %v2766 = vand.u32 %v294, 4294901760
    %2767 = vmatmul.mubr.f32.gmra.mrb[0].mxu0 %v2766
    %v2768 = vpop.f32.mrb[0].mxu0
    %v2769 = vadd.f32 %v2497, %v2768
    %v2770 = vpop.f32.mrb[0].mxu0
    %v2771 = vadd.f32 %v2499, %v2770
    %2772 = vmatprep.mubr.f32.mxu0 0.0
    %v2773 = vand.u32 %v295, 4294901760
    %2774 = vmatmul.mubr.f32.gmra.mrb[0].mxu0 %v2773
    %v2775 = vpop.f32.mrb[0].mxu0
    %v2776 = vadd.f32 %v2508, %v2775
    %v2777 = vpop.f32.mrb[0].mxu0
    %v2778 = vadd.f32 %v2510, %v2777
    %2779 = vmatprep.mubr.f32.mxu0 0.0
    %v2780 = vand.u32 %v296, 4294901760
    %2781 = vmatmul.mubr.f32.gmra.mrb[0].mxu0 %v2780
    %v2782 = vpop.f32.mrb[0].mxu0
    %v2783 = vadd.f32 %v2519, %v2782
    %v2784 = vpop.f32.mrb[0].mxu0
    %v2785 = vadd.f32 %v2521, %v2784
    %2786 = vmatprep.mubr.f32.mxu0 0.0
    %v2787 = vand.u32 %v297, 4294901760
    %2788 = vmatmul.mubr.f32.gmra.mrb[0].mxu0 %v2787
    %v2789 = vpop.f32.mrb[0].mxu0
    %v2790 = vadd.f32 %v2530, %v2789
    %v2791 = vpop.f32.mrb[0].mxu0
    %v2792 = vadd.f32 %v2532, %v2791
    %2793 = vdwg.mxu0
    %v2794 = vand.u32 %v694, 4294901760
    %v2795 = vsub.f32 %v694, %v2794
    %2796 = vmatprep.subr.mxu0 %v2795
    %v2797 = vand.u32 %v693, 4294901760
    %v2798 = vsub.f32 %v693, %v2797
    %2799 = vmatpush1.msra.mxu0 %v2798
    %v2800 = vand.u32 %v710, 4294901760
    %v2801 = vsub.f32 %v710, %v2800
    %2802 = vmatprep.subr.mxu0 %v2801
    %v2803 = vand.u32 %v709, 4294901760
    %v2804 = vsub.f32 %v709, %v2803
    %2805 = vmatpush1.msra.mxu0 %v2804
    %v2806 = vand.u32 %v726, 4294901760
    %v2807 = vsub.f32 %v726, %v2806
    %2808 = vmatprep.subr.mxu0 %v2807
    %v2809 = vand.u32 %v725, 4294901760
    %v2810 = vsub.f32 %v725, %v2809
    %2811 = vmatpush1.msra.mxu0 %v2810
    %v2812 = vand.u32 %v742, 4294901760
    %v2813 = vsub.f32 %v742, %v2812
    %2814 = vmatprep.subr.mxu0 %v2813
    %v2815 = vand.u32 %v741, 4294901760
    %v2816 = vsub.f32 %v741, %v2815
    %2817 = vmatpush1.msra.mxu0 %v2816
    %v2818 = vand.u32 %v758, 4294901760
    %v2819 = vsub.f32 %v758, %v2818
    %2820 = vmatprep.subr.mxu0 %v2819
    %v2821 = vand.u32 %v757, 4294901760
    %v2822 = vsub.f32 %v757, %v2821
    %2823 = vmatpush1.msra.mxu0 %v2822
    %v2824 = vand.u32 %v774, 4294901760
    %v2825 = vsub.f32 %v774, %v2824
    %2826 = vmatprep.subr.mxu0 %v2825
    %v2827 = vand.u32 %v773, 4294901760
    %v2828 = vsub.f32 %v773, %v2827
    %2829 = vmatpush1.msra.mxu0 %v2828
    %v2830 = vand.u32 %v790, 4294901760
    %v2831 = vsub.f32 %v790, %v2830
    %2832 = vmatprep.subr.mxu0 %v2831
    %v2833 = vand.u32 %v789, 4294901760
    %v2834 = vsub.f32 %v789, %v2833
    %2835 = vmatpush1.msra.mxu0 %v2834
    %v2836 = vand.u32 %v806, 4294901760
    %v2837 = vsub.f32 %v806, %v2836
    %2838 = vmatprep.subr.mxu0 %v2837
    %v2839 = vand.u32 %v805, 4294901760
    %v2840 = vsub.f32 %v805, %v2839
    %2841 = vmatpush1.msra.mxu0 %v2840
    %v2842 = vand.u32 %v1206, 4294901760
    %v2843 = vsub.f32 %v1206, %v2842
    %2844 = vmatprep.subr.mxu0 %v2843
    %v2845 = vand.u32 %v1205, 4294901760
    %v2846 = vsub.f32 %v1205, %v2845
    %2847 = vmatpush1.msra.mxu0 %v2846
    %v2848 = vand.u32 %v1222, 4294901760
    %v2849 = vsub.f32 %v1222, %v2848
    %2850 = vmatprep.subr.mxu0 %v2849
    %v2851 = vand.u32 %v1221, 4294901760
    %v2852 = vsub.f32 %v1221, %v2851
    %2853 = vmatpush1.msra.mxu0 %v2852
    %v2854 = vand.u32 %v1238, 4294901760
    %v2855 = vsub.f32 %v1238, %v2854
    %2856 = vmatprep.subr.mxu0 %v2855
    %v2857 = vand.u32 %v1237, 4294901760
    %v2858 = vsub.f32 %v1237, %v2857
    %2859 = vmatpush1.msra.mxu0 %v2858
    %v2860 = vand.u32 %v1254, 4294901760
    %v2861 = vsub.f32 %v1254, %v2860
    %2862 = vmatprep.subr.mxu0 %v2861
    %v2863 = vand.u32 %v1253, 4294901760
    %v2864 = vsub.f32 %v1253, %v2863
    %2865 = vmatpush1.msra.mxu0 %v2864
    %v2866 = vand.u32 %v1270, 4294901760
    %v2867 = vsub.f32 %v1270, %v2866
    %2868 = vmatprep.subr.mxu0 %v2867
    %v2869 = vand.u32 %v1269, 4294901760
    %v2870 = vsub.f32 %v1269, %v2869
    %2871 = vmatpush1.msra.mxu0 %v2870
    %v2872 = vand.u32 %v1286, 4294901760
    %v2873 = vsub.f32 %v1286, %v2872
    %2874 = vmatprep.subr.mxu0 %v2873
    %v2875 = vand.u32 %v1285, 4294901760
    %v2876 = vsub.f32 %v1285, %v2875
    %2877 = vmatpush1.msra.mxu0 %v2876
    %v2878 = vand.u32 %v1302, 4294901760
    %v2879 = vsub.f32 %v1302, %v2878
    %2880 = vmatprep.subr.mxu0 %v2879
    %v2881 = vand.u32 %v1301, 4294901760
    %v2882 = vsub.f32 %v1301, %v2881
    %2883 = vmatpush1.msra.mxu0 %v2882
    %v2884 = vand.u32 %v1318, 4294901760
    %v2885 = vsub.f32 %v1318, %v2884
    %2886 = vmatprep.subr.mxu0 %v2885
    %v2887 = vand.u32 %v1317, 4294901760
    %v2888 = vsub.f32 %v1317, %v2887
    %2889 = vmatpush1.msra.mxu0 %v2888
    %2890 = vmatprep.subr.mxu0 0.0
    %2891 = vmatpush1.msra.mxu0 0.0
    %2892 = vmatprep.subr.mxu0 0.0
    %2893 = vmatpush1.msra.mxu0 0.0
    %2894 = vmatprep.subr.mxu0 0.0
    %2895 = vmatpush1.msra.mxu0 0.0
    %2896 = vmatprep.subr.mxu0 0.0
    %2897 = vmatpush1.msra.mxu0 0.0
    %2898 = vmatprep.subr.mxu0 0.0
    %2899 = vmatpush1.msra.mxu0 0.0
    %2900 = vmatprep.subr.mxu0 0.0
    %2901 = vmatpush1.msra.mxu0 0.0
    %2902 = vmatprep.subr.mxu0 0.0
    %2903 = vmatpush1.msra.mxu0 0.0
    %2904 = vmatprep.subr.mxu0 0.0
    %2905 = vmatpush1.msra.mxu0 0.0
    %2906 = vmatprep.subr.mxu0 0.0
    %2907 = vmatpush1.msra.mxu0 0.0
    %2908 = vmatprep.subr.mxu0 0.0
    %2909 = vmatpush1.msra.mxu0 0.0
    %2910 = vmatprep.subr.mxu0 0.0
    %2911 = vmatpush1.msra.mxu0 0.0
    %2912 = vmatprep.subr.mxu0 0.0
    %2913 = vmatpush1.msra.mxu0 0.0
    %2914 = vmatprep.subr.mxu0 0.0
    %2915 = vmatpush1.msra.mxu0 0.0
    %2916 = vmatprep.subr.mxu0 0.0
    %2917 = vmatpush1.msra.mxu0 0.0
    %2918 = vmatprep.subr.mxu0 0.0
    %2919 = vmatpush1.msra.mxu0 0.0
    %2920 = vmatprep.subr.mxu0 0.0
    %2921 = vmatpush1.msra.mxu0 0.0
    %2922 = vmatprep.mubr.f32.mxu0 0.0
    %v2923 = vand.u32 %v293, 4294901760
    %v2924 = vsub.f32 %v293, %v2923
    %2925 = vmatmul.mubr.f32.gmra.mrb[0].mxu0 %v2924
    %v2926 = vpop.f32.mrb[0].mxu0
    %v2927 = vadd.f32 %v2762, %v2926
    %v2928 = vpop.f32.mrb[0].mxu0
    %v2929 = vadd.f32 %v2764, %v2928
    %2930 = vmatprep.mubr.f32.mxu0 0.0
    %v2931 = vand.u32 %v294, 4294901760
    %v2932 = vsub.f32 %v294, %v2931
    %2933 = vmatmul.mubr.f32.gmra.mrb[0].mxu0 %v2932
    %v2934 = vpop.f32.mrb[0].mxu0
    %v2935 = vadd.f32 %v2769, %v2934
    %v2936 = vpop.f32.mrb[0].mxu0
    %v2937 = vadd.f32 %v2771, %v2936
    %2938 = vmatprep.mubr.f32.mxu0 0.0
    %v2939 = vand.u32 %v295, 4294901760
    %v2940 = vsub.f32 %v295, %v2939
    %2941 = vmatmul.mubr.f32.gmra.mrb[0].mxu0 %v2940
    %v2942 = vpop.f32.mrb[0].mxu0
    %v2943 = vadd.f32 %v2776, %v2942
    %v2944 = vpop.f32.mrb[0].mxu0
    %v2945 = vadd.f32 %v2778, %v2944
    %2946 = vmatprep.mubr.f32.mxu0 0.0
    %v2947 = vand.u32 %v296, 4294901760
    %v2948 = vsub.f32 %v296, %v2947
    %2949 = vmatmul.mubr.f32.gmra.mrb[0].mxu0 %v2948
    %v2950 = vpop.f32.mrb[0].mxu0
    %v2951 = vadd.f32 %v2783, %v2950
    %v2952 = vpop.f32.mrb[0].mxu0
    %v2953 = vadd.f32 %v2785, %v2952
    %2954 = vmatprep.mubr.f32.mxu0 0.0
    %v2955 = vand.u32 %v297, 4294901760
    %v2956 = vsub.f32 %v297, %v2955
    %2957 = vmatmul.mubr.f32.gmra.mrb[0].mxu0 %v2956
    %v2958 = vpop.f32.mrb[0].mxu0
    %v2959 = vadd.f32 %v2790, %v2958
    %v2960 = vpop.f32.mrb[0].mxu0
    %v2961 = vadd.f32 %v2792, %v2960
    %2962 = vdwg.mxu0
    %v2963 = vand.u32 %v694, 4294901760
    %2964 = vmatprep.subr.mxu0 %v2963
    %v2965 = vand.u32 %v693, 4294901760
    %2966 = vmatpush1.msra.mxu0 %v2965
    %v2967 = vand.u32 %v710, 4294901760
    %2968 = vmatprep.subr.mxu0 %v2967
    %v2969 = vand.u32 %v709, 4294901760
    %2970 = vmatpush1.msra.mxu0 %v2969
    %v2971 = vand.u32 %v726, 4294901760
    %2972 = vmatprep.subr.mxu0 %v2971
    %v2973 = vand.u32 %v725, 4294901760
    %2974 = vmatpush1.msra.mxu0 %v2973
    %v2975 = vand.u32 %v742, 4294901760
    %2976 = vmatprep.subr.mxu0 %v2975
    %v2977 = vand.u32 %v741, 4294901760
    %2978 = vmatpush1.msra.mxu0 %v2977
    %v2979 = vand.u32 %v758, 4294901760
    %2980 = vmatprep.subr.mxu0 %v2979
    %v2981 = vand.u32 %v757, 4294901760
    %2982 = vmatpush1.msra.mxu0 %v2981
    %v2983 = vand.u32 %v774, 4294901760
    %2984 = vmatprep.subr.mxu0 %v2983
    %v2985 = vand.u32 %v773, 4294901760
    %2986 = vmatpush1.msra.mxu0 %v2985
    %v2987 = vand.u32 %v790, 4294901760
    %2988 = vmatprep.subr.mxu0 %v2987
    %v2989 = vand.u32 %v789, 4294901760
    %2990 = vmatpush1.msra.mxu0 %v2989
    %v2991 = vand.u32 %v806, 4294901760
    %2992 = vmatprep.subr.mxu0 %v2991
    %v2993 = vand.u32 %v805, 4294901760
    %2994 = vmatpush1.msra.mxu0 %v2993
    %v2995 = vand.u32 %v1206, 4294901760
    %2996 = vmatprep.subr.mxu0 %v2995
    %v2997 = vand.u32 %v1205, 4294901760
    %2998 = vmatpush1.msra.mxu0 %v2997
    %v2999 = vand.u32 %v1222, 4294901760
    %3000 = vmatprep.subr.mxu0 %v2999
    %v3001 = vand.u32 %v1221, 4294901760
    %3002 = vmatpush1.msra.mxu0 %v3001
    %v3003 = vand.u32 %v1238, 4294901760
    %3004 = vmatprep.subr.mxu0 %v3003
    %v3005 = vand.u32 %v1237, 4294901760
    %3006 = vmatpush1.msra.mxu0 %v3005
    %v3007 = vand.u32 %v1254, 4294901760
    %3008 = vmatprep.subr.mxu0 %v3007
    %v3009 = vand.u32 %v1253, 4294901760
    %3010 = vmatpush1.msra.mxu0 %v3009
    %v3011 = vand.u32 %v1270, 4294901760
    %3012 = vmatprep.subr.mxu0 %v3011
    %v3013 = vand.u32 %v1269, 4294901760
    %3014 = vmatpush1.msra.mxu0 %v3013
    %v3015 = vand.u32 %v1286, 4294901760
    %3016 = vmatprep.subr.mxu0 %v3015
    %v3017 = vand.u32 %v1285, 4294901760
    %3018 = vmatpush1.msra.mxu0 %v3017
    %v3019 = vand.u32 %v1302, 4294901760
    %3020 = vmatprep.subr.mxu0 %v3019
    %v3021 = vand.u32 %v1301, 4294901760
    %3022 = vmatpush1.msra.mxu0 %v3021
    %v3023 = vand.u32 %v1318, 4294901760
    %3024 = vmatprep.subr.mxu0 %v3023
    %v3025 = vand.u32 %v1317, 4294901760
    %3026 = vmatpush1.msra.mxu0 %v3025
    %3027 = vmatprep.subr.mxu0 0.0
    %3028 = vmatpush1.msra.mxu0 0.0
    %3029 = vmatprep.subr.mxu0 0.0
    %3030 = vmatpush1.msra.mxu0 0.0
    %3031 = vmatprep.subr.mxu0 0.0
    %3032 = vmatpush1.msra.mxu0 0.0
    %3033 = vmatprep.subr.mxu0 0.0
    %3034 = vmatpush1.msra.mxu0 0.0
    %3035 = vmatprep.subr.mxu0 0.0
    %3036 = vmatpush1.msra.mxu0 0.0
    %3037 = vmatprep.subr.mxu0 0.0
    %3038 = vmatpush1.msra.mxu0 0.0
    %3039 = vmatprep.subr.mxu0 0.0
    %3040 = vmatpush1.msra.mxu0 0.0
    %3041 = vmatprep.subr.mxu0 0.0
    %3042 = vmatpush1.msra.mxu0 0.0
    %3043 = vmatprep.subr.mxu0 0.0
    %3044 = vmatpush1.msra.mxu0 0.0
    %3045 = vmatprep.subr.mxu0 0.0
    %3046 = vmatpush1.msra.mxu0 0.0
    %3047 = vmatprep.subr.mxu0 0.0
    %3048 = vmatpush1.msra.mxu0 0.0
    %3049 = vmatprep.subr.mxu0 0.0
    %3050 = vmatpush1.msra.mxu0 0.0
    %3051 = vmatprep.subr.mxu0 0.0
    %3052 = vmatpush1.msra.mxu0 0.0
    %3053 = vmatprep.subr.mxu0 0.0
    %3054 = vmatpush1.msra.mxu0 0.0
    %3055 = vmatprep.subr.mxu0 0.0
    %3056 = vmatpush1.msra.mxu0 0.0
    %3057 = vmatprep.subr.mxu0 0.0
    %3058 = vmatpush1.msra.mxu0 0.0
    %3059 = vmatprep.mubr.f32.mxu0 0.0
    %v3060 = vand.u32 %v293, 4294901760
    %v3061 = vsub.f32 %v293, %v3060
    %v3062 = vand.u32 %v3061, 4294901760
    %3063 = vmatmul.mubr.f32.gmra.mrb[0].mxu0 %v3062
    %v3064 = vpop.f32.mrb[0].mxu0
    %v3065 = vadd.f32 %v2927, %v3064
    %v3066 = vpop.f32.mrb[0].mxu0
    %v3067 = vadd.f32 %v2929, %v3066
    %3068 = vmatprep.mubr.f32.mxu0 0.0
    %v3069 = vand.u32 %v294, 4294901760
    %v3070 = vsub.f32 %v294, %v3069
    %v3071 = vand.u32 %v3070, 4294901760
    %3072 = vmatmul.mubr.f32.gmra.mrb[0].mxu0 %v3071
    %v3073 = vpop.f32.mrb[0].mxu0
    %v3074 = vadd.f32 %v2935, %v3073
    %v3075 = vpop.f32.mrb[0].mxu0
    %v3076 = vadd.f32 %v2937, %v3075
    %3077 = vmatprep.mubr.f32.mxu0 0.0
    %v3078 = vand.u32 %v295, 4294901760
    %v3079 = vsub.f32 %v295, %v3078
    %v3080 = vand.u32 %v3079, 4294901760
    %3081 = vmatmul.mubr.f32.gmra.mrb[0].mxu0 %v3080
    %v3082 = vpop.f32.mrb[0].mxu0
    %v3083 = vadd.f32 %v2943, %v3082
    %v3084 = vpop.f32.mrb[0].mxu0
    %v3085 = vadd.f32 %v2945, %v3084
    %3086 = vmatprep.mubr.f32.mxu0 0.0
    %v3087 = vand.u32 %v296, 4294901760
    %v3088 = vsub.f32 %v296, %v3087
    %v3089 = vand.u32 %v3088, 4294901760
    %3090 = vmatmul.mubr.f32.gmra.mrb[0].mxu0 %v3089
    %v3091 = vpop.f32.mrb[0].mxu0
    %v3092 = vadd.f32 %v2951, %v3091
    %v3093 = vpop.f32.mrb[0].mxu0
    %v3094 = vadd.f32 %v2953, %v3093
    %3095 = vmatprep.mubr.f32.mxu0 0.0
    %v3096 = vand.u32 %v297, 4294901760
    %v3097 = vsub.f32 %v297, %v3096
    %v3098 = vand.u32 %v3097, 4294901760
    %3099 = vmatmul.mubr.f32.gmra.mrb[0].mxu0 %v3098
    %v3100 = vpop.f32.mrb[0].mxu0
    %v3101 = vadd.f32 %v2959, %v3100
    %v3102 = vpop.f32.mrb[0].mxu0
    %v3103 = vadd.f32 %v2961, %v3102
    %3104 = vdwg.mxu0
    %v3105 = vand.u32 %v694, 4294901760
    %v3106 = vsub.f32 %v694, %v3105
    %v3107 = vand.u32 %v3106, 4294901760
    %3108 = vmatprep.subr.mxu0 %v3107
    %v3109 = vand.u32 %v693, 4294901760
    %v3110 = vsub.f32 %v693, %v3109
    %v3111 = vand.u32 %v3110, 4294901760
    %3112 = vmatpush1.msra.mxu0 %v3111
    %v3113 = vand.u32 %v710, 4294901760
    %v3114 = vsub.f32 %v710, %v3113
    %v3115 = vand.u32 %v3114, 4294901760
    %3116 = vmatprep.subr.mxu0 %v3115
    %v3117 = vand.u32 %v709, 4294901760
    %v3118 = vsub.f32 %v709, %v3117
    %v3119 = vand.u32 %v3118, 4294901760
    %3120 = vmatpush1.msra.mxu0 %v3119
    %v3121 = vand.u32 %v726, 4294901760
    %v3122 = vsub.f32 %v726, %v3121
    %v3123 = vand.u32 %v3122, 4294901760
    %3124 = vmatprep.subr.mxu0 %v3123
    %v3125 = vand.u32 %v725, 4294901760
    %v3126 = vsub.f32 %v725, %v3125
    %v3127 = vand.u32 %v3126, 4294901760
    %3128 = vmatpush1.msra.mxu0 %v3127
    %v3129 = vand.u32 %v742, 4294901760
    %v3130 = vsub.f32 %v742, %v3129
    %v3131 = vand.u32 %v3130, 4294901760
    %3132 = vmatprep.subr.mxu0 %v3131
    %v3133 = vand.u32 %v741, 4294901760
    %v3134 = vsub.f32 %v741, %v3133
    %v3135 = vand.u32 %v3134, 4294901760
    %3136 = vmatpush1.msra.mxu0 %v3135
    %v3137 = vand.u32 %v758, 4294901760
    %v3138 = vsub.f32 %v758, %v3137
    %v3139 = vand.u32 %v3138, 4294901760
    %3140 = vmatprep.subr.mxu0 %v3139
    %v3141 = vand.u32 %v757, 4294901760
    %v3142 = vsub.f32 %v757, %v3141
    %v3143 = vand.u32 %v3142, 4294901760
    %3144 = vmatpush1.msra.mxu0 %v3143
    %v3145 = vand.u32 %v774, 4294901760
    %v3146 = vsub.f32 %v774, %v3145
    %v3147 = vand.u32 %v3146, 4294901760
    %3148 = vmatprep.subr.mxu0 %v3147
    %v3149 = vand.u32 %v773, 4294901760
    %v3150 = vsub.f32 %v773, %v3149
    %v3151 = vand.u32 %v3150, 4294901760
    %3152 = vmatpush1.msra.mxu0 %v3151
    %v3153 = vand.u32 %v790, 4294901760
    %v3154 = vsub.f32 %v790, %v3153
    %v3155 = vand.u32 %v3154, 4294901760
    %3156 = vmatprep.subr.mxu0 %v3155
    %v3157 = vand.u32 %v789, 4294901760
    %v3158 = vsub.f32 %v789, %v3157
    %v3159 = vand.u32 %v3158, 4294901760
    %3160 = vmatpush1.msra.mxu0 %v3159
    %v3161 = vand.u32 %v806, 4294901760
    %v3162 = vsub.f32 %v806, %v3161
    %v3163 = vand.u32 %v3162, 4294901760
    %3164 = vmatprep.subr.mxu0 %v3163
    %v3165 = vand.u32 %v805, 4294901760
    %v3166 = vsub.f32 %v805, %v3165
    %v3167 = vand.u32 %v3166, 4294901760
    %3168 = vmatpush1.msra.mxu0 %v3167
    %v3169 = vand.u32 %v1206, 4294901760
    %v3170 = vsub.f32 %v1206, %v3169
    %v3171 = vand.u32 %v3170, 4294901760
    %3172 = vmatprep.subr.mxu0 %v3171
    %v3173 = vand.u32 %v1205, 4294901760
    %v3174 = vsub.f32 %v1205, %v3173
    %v3175 = vand.u32 %v3174, 4294901760
    %3176 = vmatpush1.msra.mxu0 %v3175
    %v3177 = vand.u32 %v1222, 4294901760
    %v3178 = vsub.f32 %v1222, %v3177
    %v3179 = vand.u32 %v3178, 4294901760
    %3180 = vmatprep.subr.mxu0 %v3179
    %v3181 = vand.u32 %v1221, 4294901760
    %v3182 = vsub.f32 %v1221, %v3181
    %v3183 = vand.u32 %v3182, 4294901760
    %3184 = vmatpush1.msra.mxu0 %v3183
    %v3185 = vand.u32 %v1238, 4294901760
    %v3186 = vsub.f32 %v1238, %v3185
    %v3187 = vand.u32 %v3186, 4294901760
    %3188 = vmatprep.subr.mxu0 %v3187
    %v3189 = vand.u32 %v1237, 4294901760
    %v3190 = vsub.f32 %v1237, %v3189
    %v3191 = vand.u32 %v3190, 4294901760
    %3192 = vmatpush1.msra.mxu0 %v3191
    %v3193 = vand.u32 %v1254, 4294901760
    %v3194 = vsub.f32 %v1254, %v3193
    %v3195 = vand.u32 %v3194, 4294901760
    %3196 = vmatprep.subr.mxu0 %v3195
    %v3197 = vand.u32 %v1253, 4294901760
    %v3198 = vsub.f32 %v1253, %v3197
    %v3199 = vand.u32 %v3198, 4294901760
    %3200 = vmatpush1.msra.mxu0 %v3199
    %v3201 = vand.u32 %v1270, 4294901760
    %v3202 = vsub.f32 %v1270, %v3201
    %v3203 = vand.u32 %v3202, 4294901760
    %3204 = vmatprep.subr.mxu0 %v3203
    %v3205 = vand.u32 %v1269, 4294901760
    %v3206 = vsub.f32 %v1269, %v3205
    %v3207 = vand.u32 %v3206, 4294901760
    %3208 = vmatpush1.msra.mxu0 %v3207
    %v3209 = vand.u32 %v1286, 4294901760
    %v3210 = vsub.f32 %v1286, %v3209
    %v3211 = vand.u32 %v3210, 4294901760
    %3212 = vmatprep.subr.mxu0 %v3211
    %v3213 = vand.u32 %v1285, 4294901760
    %v3214 = vsub.f32 %v1285, %v3213
    %v3215 = vand.u32 %v3214, 4294901760
    %3216 = vmatpush1.msra.mxu0 %v3215
    %v3217 = vand.u32 %v1302, 4294901760
    %v3218 = vsub.f32 %v1302, %v3217
    %v3219 = vand.u32 %v3218, 4294901760
    %3220 = vmatprep.subr.mxu0 %v3219
    %v3221 = vand.u32 %v1301, 4294901760
    %v3222 = vsub.f32 %v1301, %v3221
    %v3223 = vand.u32 %v3222, 4294901760
    %3224 = vmatpush1.msra.mxu0 %v3223
    %v3225 = vand.u32 %v1318, 4294901760
    %v3226 = vsub.f32 %v1318, %v3225
    %v3227 = vand.u32 %v3226, 4294901760
    %3228 = vmatprep.subr.mxu0 %v3227
    %v3229 = vand.u32 %v1317, 4294901760
    %v3230 = vsub.f32 %v1317, %v3229
    %v3231 = vand.u32 %v3230, 4294901760
    %3232 = vmatpush1.msra.mxu0 %v3231
    %3233 = vmatprep.subr.mxu0 0.0
    %3234 = vmatpush1.msra.mxu0 0.0
    %3235 = vmatprep.subr.mxu0 0.0
    %3236 = vmatpush1.msra.mxu0 0.0
    %3237 = vmatprep.subr.mxu0 0.0
    %3238 = vmatpush1.msra.mxu0 0.0
    %3239 = vmatprep.subr.mxu0 0.0
    %3240 = vmatpush1.msra.mxu0 0.0
    %3241 = vmatprep.subr.mxu0 0.0
    %3242 = vmatpush1.msra.mxu0 0.0
    %3243 = vmatprep.subr.mxu0 0.0
    %3244 = vmatpush1.msra.mxu0 0.0
    %3245 = vmatprep.subr.mxu0 0.0
    %3246 = vmatpush1.msra.mxu0 0.0
    %3247 = vmatprep.subr.mxu0 0.0
    %3248 = vmatpush1.msra.mxu0 0.0
    %3249 = vmatprep.subr.mxu0 0.0
    %3250 = vmatpush1.msra.mxu0 0.0
    %3251 = vmatprep.subr.mxu0 0.0
    %3252 = vmatpush1.msra.mxu0 0.0
    %3253 = vmatprep.subr.mxu0 0.0
    %3254 = vmatpush1.msra.mxu0 0.0
    %3255 = vmatprep.subr.mxu0 0.0
    %3256 = vmatpush1.msra.mxu0 0.0
    %3257 = vmatprep.subr.mxu0 0.0
    %3258 = vmatpush1.msra.mxu0 0.0
    %3259 = vmatprep.subr.mxu0 0.0
    %3260 = vmatpush1.msra.mxu0 0.0
    %3261 = vmatprep.subr.mxu0 0.0
    %3262 = vmatpush1.msra.mxu0 0.0
    %3263 = vmatprep.subr.mxu0 0.0
    %3264 = vmatpush1.msra.mxu0 0.0
    %3265 = vmatprep.mubr.f32.mxu0 0.0
    %v3266 = vand.u32 %v293, 4294901760
    %3267 = vmatmul.mubr.f32.gmra.mrb[0].mxu0 %v3266
    %v3268 = vpop.f32.mrb[0].mxu0
    %v3269 = vadd.f32 %v3065, %v3268
    %v3270 = vpop.f32.mrb[0].mxu0
    %v3271 = vadd.f32 %v3067, %v3270
    %3272 = vmatprep.mubr.f32.mxu0 0.0
    %v3273 = vand.u32 %v294, 4294901760
    %3274 = vmatmul.mubr.f32.gmra.mrb[0].mxu0 %v3273
    %v3275 = vpop.f32.mrb[0].mxu0
    %v3276 = vadd.f32 %v3074, %v3275
    %v3277 = vpop.f32.mrb[0].mxu0
    %v3278 = vadd.f32 %v3076, %v3277
    %3279 = vmatprep.mubr.f32.mxu0 0.0
    %v3280 = vand.u32 %v295, 4294901760
    %3281 = vmatmul.mubr.f32.gmra.mrb[0].mxu0 %v3280
    %v3282 = vpop.f32.mrb[0].mxu0
    %v3283 = vadd.f32 %v3083, %v3282
    %v3284 = vpop.f32.mrb[0].mxu0
    %v3285 = vadd.f32 %v3085, %v3284
    %3286 = vmatprep.mubr.f32.mxu0 0.0
    %v3287 = vand.u32 %v296, 4294901760
    %3288 = vmatmul.mubr.f32.gmra.mrb[0].mxu0 %v3287
    %v3289 = vpop.f32.mrb[0].mxu0
    %v3290 = vadd.f32 %v3092, %v3289
    %v3291 = vpop.f32.mrb[0].mxu0
    %v3292 = vadd.f32 %v3094, %v3291
    %3293 = vmatprep.mubr.f32.mxu0 0.0
    %v3294 = vand.u32 %v297, 4294901760
    %3295 = vmatmul.mubr.f32.gmra.mrb[0].mxu0 %v3294
    %v3296 = vpop.f32.mrb[0].mxu0
    %v3297 = vadd.f32 %v3101, %v3296
    %v3298 = vpop.f32.mrb[0].mxu0
    %v3299 = vadd.f32 %v3103, %v3298
    %3300 = vdwg.mxu0
    %v3301 = vand.u32 %v694, 4294901760
    %3302 = vmatprep.subr.mxu0 %v3301
    %v3303 = vand.u32 %v693, 4294901760
    %3304 = vmatpush1.msra.mxu0 %v3303
    %v3305 = vand.u32 %v710, 4294901760
    %3306 = vmatprep.subr.mxu0 %v3305
    %v3307 = vand.u32 %v709, 4294901760
    %3308 = vmatpush1.msra.mxu0 %v3307
    %v3309 = vand.u32 %v726, 4294901760
    %3310 = vmatprep.subr.mxu0 %v3309
    %v3311 = vand.u32 %v725, 4294901760
    %3312 = vmatpush1.msra.mxu0 %v3311
    %v3313 = vand.u32 %v742, 4294901760
    %3314 = vmatprep.subr.mxu0 %v3313
    %v3315 = vand.u32 %v741, 4294901760
    %3316 = vmatpush1.msra.mxu0 %v3315
    %v3317 = vand.u32 %v758, 4294901760
    %3318 = vmatprep.subr.mxu0 %v3317
    %v3319 = vand.u32 %v757, 4294901760
    %3320 = vmatpush1.msra.mxu0 %v3319
    %v3321 = vand.u32 %v774, 4294901760
    %3322 = vmatprep.subr.mxu0 %v3321
    %v3323 = vand.u32 %v773, 4294901760
    %3324 = vmatpush1.msra.mxu0 %v3323
    %v3325 = vand.u32 %v790, 4294901760
    %3326 = vmatprep.subr.mxu0 %v3325
    %v3327 = vand.u32 %v789, 4294901760
    %3328 = vmatpush1.msra.mxu0 %v3327
    %v3329 = vand.u32 %v806, 4294901760
    %3330 = vmatprep.subr.mxu0 %v3329
    %v3331 = vand.u32 %v805, 4294901760
    %3332 = vmatpush1.msra.mxu0 %v3331
    %v3333 = vand.u32 %v1206, 4294901760
    %3334 = vmatprep.subr.mxu0 %v3333
    %v3335 = vand.u32 %v1205, 4294901760
    %3336 = vmatpush1.msra.mxu0 %v3335
    %v3337 = vand.u32 %v1222, 4294901760
    %3338 = vmatprep.subr.mxu0 %v3337
    %v3339 = vand.u32 %v1221, 4294901760
    %3340 = vmatpush1.msra.mxu0 %v3339
    %v3341 = vand.u32 %v1238, 4294901760
    %3342 = vmatprep.subr.mxu0 %v3341
    %v3343 = vand.u32 %v1237, 4294901760
    %3344 = vmatpush1.msra.mxu0 %v3343
    %v3345 = vand.u32 %v1254, 4294901760
    %3346 = vmatprep.subr.mxu0 %v3345
    %v3347 = vand.u32 %v1253, 4294901760
    %3348 = vmatpush1.msra.mxu0 %v3347
    %v3349 = vand.u32 %v1270, 4294901760
    %3350 = vmatprep.subr.mxu0 %v3349
    %v3351 = vand.u32 %v1269, 4294901760
    %3352 = vmatpush1.msra.mxu0 %v3351
    %v3353 = vand.u32 %v1286, 4294901760
    %3354 = vmatprep.subr.mxu0 %v3353
    %v3355 = vand.u32 %v1285, 4294901760
    %3356 = vmatpush1.msra.mxu0 %v3355
    %v3357 = vand.u32 %v1302, 4294901760
    %3358 = vmatprep.subr.mxu0 %v3357
    %v3359 = vand.u32 %v1301, 4294901760
    %3360 = vmatpush1.msra.mxu0 %v3359
    %v3361 = vand.u32 %v1318, 4294901760
    %3362 = vmatprep.subr.mxu0 %v3361
    %v3363 = vand.u32 %v1317, 4294901760
    %3364 = vmatpush1.msra.mxu0 %v3363
    %3365 = vmatprep.subr.mxu0 0.0
    %3366 = vmatpush1.msra.mxu0 0.0
    %3367 = vmatprep.subr.mxu0 0.0
    %3368 = vmatpush1.msra.mxu0 0.0
    %3369 = vmatprep.subr.mxu0 0.0
    %3370 = vmatpush1.msra.mxu0 0.0
    %3371 = vmatprep.subr.mxu0 0.0
    %3372 = vmatpush1.msra.mxu0 0.0
    %3373 = vmatprep.subr.mxu0 0.0
    %3374 = vmatpush1.msra.mxu0 0.0
    %3375 = vmatprep.subr.mxu0 0.0
    %3376 = vmatpush1.msra.mxu0 0.0
    %3377 = vmatprep.subr.mxu0 0.0
    %3378 = vmatpush1.msra.mxu0 0.0
    %3379 = vmatprep.subr.mxu0 0.0
    %3380 = vmatpush1.msra.mxu0 0.0
    %3381 = vmatprep.subr.mxu0 0.0
    %3382 = vmatpush1.msra.mxu0 0.0
    %3383 = vmatprep.subr.mxu0 0.0
    %3384 = vmatpush1.msra.mxu0 0.0
    %3385 = vmatprep.subr.mxu0 0.0
    %3386 = vmatpush1.msra.mxu0 0.0
    %3387 = vmatprep.subr.mxu0 0.0
    %3388 = vmatpush1.msra.mxu0 0.0
    %3389 = vmatprep.subr.mxu0 0.0
    %3390 = vmatpush1.msra.mxu0 0.0
    %3391 = vmatprep.subr.mxu0 0.0
    %3392 = vmatpush1.msra.mxu0 0.0
    %3393 = vmatprep.subr.mxu0 0.0
    %3394 = vmatpush1.msra.mxu0 0.0
    %3395 = vmatprep.subr.mxu0 0.0
    %3396 = vmatpush1.msra.mxu0 0.0
    %3397 = vmatprep.mubr.f32.mxu0 0.0
    %v3398 = vand.u32 %v293, 4294901760
    %3399 = vmatmul.mubr.f32.gmra.mrb[0].mxu0 %v3398
    %v3400 = vpop.f32.mrb[0].mxu0
    %v3401 = vadd.f32 %v3269, %v3400
    %v3402 = vpop.f32.mrb[0].mxu0
    %v3403 = vadd.f32 %v3271, %v3402
    %3404 = vmatprep.mubr.f32.mxu0 0.0
    %v3405 = vand.u32 %v294, 4294901760
    %3406 = vmatmul.mubr.f32.gmra.mrb[0].mxu0 %v3405
    %v3407 = vpop.f32.mrb[0].mxu0
    %v3408 = vadd.f32 %v3276, %v3407
    %v3409 = vpop.f32.mrb[0].mxu0
    %v3410 = vadd.f32 %v3278, %v3409
    %3411 = vmatprep.mubr.f32.mxu0 0.0
    %v3412 = vand.u32 %v295, 4294901760
    %3413 = vmatmul.mubr.f32.gmra.mrb[0].mxu0 %v3412
    %v3414 = vpop.f32.mrb[0].mxu0
    %v3415 = vadd.f32 %v3283, %v3414
    %v3416 = vpop.f32.mrb[0].mxu0
    %v3417 = vadd.f32 %v3285, %v3416
    %3418 = vmatprep.mubr.f32.mxu0 0.0
    %v3419 = vand.u32 %v296, 4294901760
    %3420 = vmatmul.mubr.f32.gmra.mrb[0].mxu0 %v3419
    %v3421 = vpop.f32.mrb[0].mxu0
    %v3422 = vadd.f32 %v3290, %v3421
    %v3423 = vpop.f32.mrb[0].mxu0
    %v3424 = vadd.f32 %v3292, %v3423
    %3425 = vmatprep.mubr.f32.mxu0 0.0
    %v3426 = vand.u32 %v297, 4294901760
    %3427 = vmatmul.mubr.f32.gmra.mrb[0].mxu0 %v3426
    %v3428 = vpop.f32.mrb[0].mxu0
    %v3429 = vadd.f32 %v3297, %v3428
    %v3430 = vpop.f32.mrb[0].mxu0
    %v3431 = vadd.f32 %v3299, %v3430
    %3432 = vdwg.mxu0
    %v3433 = vand.u32 %v696, 4294901760
    %3434 = vmatprep.subr.mxu0 %v3433
    %v3435 = vand.u32 %v695, 4294901760
    %3436 = vmatpush1.msra.mxu0 %v3435
    %v3437 = vand.u32 %v712, 4294901760
    %3438 = vmatprep.subr.mxu0 %v3437
    %v3439 = vand.u32 %v711, 4294901760
    %3440 = vmatpush1.msra.mxu0 %v3439
    %v3441 = vand.u32 %v728, 4294901760
    %3442 = vmatprep.subr.mxu0 %v3441
    %v3443 = vand.u32 %v727, 4294901760
    %3444 = vmatpush1.msra.mxu0 %v3443
    %v3445 = vand.u32 %v744, 4294901760
    %3446 = vmatprep.subr.mxu0 %v3445
    %v3447 = vand.u32 %v743, 4294901760
    %3448 = vmatpush1.msra.mxu0 %v3447
    %v3449 = vand.u32 %v760, 4294901760
    %3450 = vmatprep.subr.mxu0 %v3449
    %v3451 = vand.u32 %v759, 4294901760
    %3452 = vmatpush1.msra.mxu0 %v3451
    %v3453 = vand.u32 %v776, 4294901760
    %3454 = vmatprep.subr.mxu0 %v3453
    %v3455 = vand.u32 %v775, 4294901760
    %3456 = vmatpush1.msra.mxu0 %v3455
    %v3457 = vand.u32 %v792, 4294901760
    %3458 = vmatprep.subr.mxu0 %v3457
    %v3459 = vand.u32 %v791, 4294901760
    %3460 = vmatpush1.msra.mxu0 %v3459
    %v3461 = vand.u32 %v808, 4294901760
    %3462 = vmatprep.subr.mxu0 %v3461
    %v3463 = vand.u32 %v807, 4294901760
    %3464 = vmatpush1.msra.mxu0 %v3463
    %v3465 = vand.u32 %v1208, 4294901760
    %3466 = vmatprep.subr.mxu0 %v3465
    %v3467 = vand.u32 %v1207, 4294901760
    %3468 = vmatpush1.msra.mxu0 %v3467
    %v3469 = vand.u32 %v1224, 4294901760
    %3470 = vmatprep.subr.mxu0 %v3469
    %v3471 = vand.u32 %v1223, 4294901760
    %3472 = vmatpush1.msra.mxu0 %v3471
    %v3473 = vand.u32 %v1240, 4294901760
    %3474 = vmatprep.subr.mxu0 %v3473
    %v3475 = vand.u32 %v1239, 4294901760
    %3476 = vmatpush1.msra.mxu0 %v3475
    %v3477 = vand.u32 %v1256, 4294901760
    %3478 = vmatprep.subr.mxu0 %v3477
    %v3479 = vand.u32 %v1255, 4294901760
    %3480 = vmatpush1.msra.mxu0 %v3479
    %v3481 = vand.u32 %v1272, 4294901760
    %3482 = vmatprep.subr.mxu0 %v3481
    %v3483 = vand.u32 %v1271, 4294901760
    %3484 = vmatpush1.msra.mxu0 %v3483
    %v3485 = vand.u32 %v1288, 4294901760
    %3486 = vmatprep.subr.mxu0 %v3485
    %v3487 = vand.u32 %v1287, 4294901760
    %3488 = vmatpush1.msra.mxu0 %v3487
    %v3489 = vand.u32 %v1304, 4294901760
    %3490 = vmatprep.subr.mxu0 %v3489
    %v3491 = vand.u32 %v1303, 4294901760
    %3492 = vmatpush1.msra.mxu0 %v3491
    %v3493 = vand.u32 %v1320, 4294901760
    %3494 = vmatprep.subr.mxu0 %v3493
    %v3495 = vand.u32 %v1319, 4294901760
    %3496 = vmatpush1.msra.mxu0 %v3495
    %3497 = vmatprep.subr.mxu0 0.0
    %3498 = vmatpush1.msra.mxu0 0.0
    %3499 = vmatprep.subr.mxu0 0.0
    %3500 = vmatpush1.msra.mxu0 0.0
    %3501 = vmatprep.subr.mxu0 0.0
    %3502 = vmatpush1.msra.mxu0 0.0
    %3503 = vmatprep.subr.mxu0 0.0
    %3504 = vmatpush1.msra.mxu0 0.0
    %3505 = vmatprep.subr.mxu0 0.0
    %3506 = vmatpush1.msra.mxu0 0.0
    %3507 = vmatprep.subr.mxu0 0.0
    %3508 = vmatpush1.msra.mxu0 0.0
    %3509 = vmatprep.subr.mxu0 0.0
    %3510 = vmatpush1.msra.mxu0 0.0
    %3511 = vmatprep.subr.mxu0 0.0
    %3512 = vmatpush1.msra.mxu0 0.0
    %3513 = vmatprep.subr.mxu0 0.0
    %3514 = vmatpush1.msra.mxu0 0.0
    %3515 = vmatprep.subr.mxu0 0.0
    %3516 = vmatpush1.msra.mxu0 0.0
    %3517 = vmatprep.subr.mxu0 0.0
    %3518 = vmatpush1.msra.mxu0 0.0
    %3519 = vmatprep.subr.mxu0 0.0
    %3520 = vmatpush1.msra.mxu0 0.0
    %3521 = vmatprep.subr.mxu0 0.0
    %3522 = vmatpush1.msra.mxu0 0.0
    %3523 = vmatprep.subr.mxu0 0.0
    %3524 = vmatpush1.msra.mxu0 0.0
    %3525 = vmatprep.subr.mxu0 0.0
    %3526 = vmatpush1.msra.mxu0 0.0
    %3527 = vmatprep.subr.mxu0 0.0
    %3528 = vmatpush1.msra.mxu0 0.0
    %3529 = vmatprep.mubr.f32.mxu0 0.0
    %v3530 = vand.u32 %v293, 4294901760
    %v3531 = vsub.f32 %v293, %v3530
    %v3532 = vand.u32 %v3531, 4294901760
    %v3533 = vsub.f32 %v3531, %v3532
    %v3534 = vand.u32 %v3533, 4294901760
    %3535 = vmatmul.mubr.f32.gmra.mrb[0].mxu0 %v3534
    %v3536 = vpop.f32.mrb[0].mxu0
    %v3537 = vadd.f32 0.0, %v3536
    %v3538 = vpop.f32.mrb[0].mxu0
    %v3539 = vadd.f32 0.0, %v3538
    %3540 = vmatprep.mubr.f32.mxu0 0.0
    %v3541 = vand.u32 %v294, 4294901760
    %v3542 = vsub.f32 %v294, %v3541
    %v3543 = vand.u32 %v3542, 4294901760
    %v3544 = vsub.f32 %v3542, %v3543
    %v3545 = vand.u32 %v3544, 4294901760
    %3546 = vmatmul.mubr.f32.gmra.mrb[0].mxu0 %v3545
    %v3547 = vpop.f32.mrb[0].mxu0
    %v3548 = vadd.f32 0.0, %v3547
    %v3549 = vpop.f32.mrb[0].mxu0
    %v3550 = vadd.f32 0.0, %v3549
    %3551 = vmatprep.mubr.f32.mxu0 0.0
    %v3552 = vand.u32 %v295, 4294901760
    %v3553 = vsub.f32 %v295, %v3552
    %v3554 = vand.u32 %v3553, 4294901760
    %v3555 = vsub.f32 %v3553, %v3554
    %v3556 = vand.u32 %v3555, 4294901760
    %3557 = vmatmul.mubr.f32.gmra.mrb[0].mxu0 %v3556
    %v3558 = vpop.f32.mrb[0].mxu0
    %v3559 = vadd.f32 0.0, %v3558
    %v3560 = vpop.f32.mrb[0].mxu0
    %v3561 = vadd.f32 0.0, %v3560
    %3562 = vmatprep.mubr.f32.mxu0 0.0
    %v3563 = vand.u32 %v296, 4294901760
    %v3564 = vsub.f32 %v296, %v3563
    %v3565 = vand.u32 %v3564, 4294901760
    %v3566 = vsub.f32 %v3564, %v3565
    %v3567 = vand.u32 %v3566, 4294901760
    %3568 = vmatmul.mubr.f32.gmra.mrb[0].mxu0 %v3567
    %v3569 = vpop.f32.mrb[0].mxu0
    %v3570 = vadd.f32 0.0, %v3569
    %v3571 = vpop.f32.mrb[0].mxu0
    %v3572 = vadd.f32 0.0, %v3571
    %3573 = vmatprep.mubr.f32.mxu0 0.0
    %v3574 = vand.u32 %v297, 4294901760
    %v3575 = vsub.f32 %v297, %v3574
    %v3576 = vand.u32 %v3575, 4294901760
    %v3577 = vsub.f32 %v3575, %v3576
    %v3578 = vand.u32 %v3577, 4294901760
    %3579 = vmatmul.mubr.f32.gmra.mrb[0].mxu0 %v3578
    %v3580 = vpop.f32.mrb[0].mxu0
    %v3581 = vadd.f32 0.0, %v3580
    %v3582 = vpop.f32.mrb[0].mxu0
    %v3583 = vadd.f32 0.0, %v3582
    %3584 = vdwg.mxu0
    %v3585 = vand.u32 %v696, 4294901760
    %v3586 = vsub.f32 %v696, %v3585
    %v3587 = vand.u32 %v3586, 4294901760
    %v3588 = vsub.f32 %v3586, %v3587
    %v3589 = vand.u32 %v3588, 4294901760
    %3590 = vmatprep.subr.mxu0 %v3589
    %v3591 = vand.u32 %v695, 4294901760
    %v3592 = vsub.f32 %v695, %v3591
    %v3593 = vand.u32 %v3592, 4294901760
    %v3594 = vsub.f32 %v3592, %v3593
    %v3595 = vand.u32 %v3594, 4294901760
    %3596 = vmatpush1.msra.mxu0 %v3595
    %v3597 = vand.u32 %v712, 4294901760
    %v3598 = vsub.f32 %v712, %v3597
    %v3599 = vand.u32 %v3598, 4294901760
    %v3600 = vsub.f32 %v3598, %v3599
    %v3601 = vand.u32 %v3600, 4294901760
    %3602 = vmatprep.subr.mxu0 %v3601
    %v3603 = vand.u32 %v711, 4294901760
    %v3604 = vsub.f32 %v711, %v3603
    %v3605 = vand.u32 %v3604, 4294901760
    %v3606 = vsub.f32 %v3604, %v3605
    %v3607 = vand.u32 %v3606, 4294901760
    %3608 = vmatpush1.msra.mxu0 %v3607
    %v3609 = vand.u32 %v728, 4294901760
    %v3610 = vsub.f32 %v728, %v3609
    %v3611 = vand.u32 %v3610, 4294901760
    %v3612 = vsub.f32 %v3610, %v3611
    %v3613 = vand.u32 %v3612, 4294901760
    %3614 = vmatprep.subr.mxu0 %v3613
    %v3615 = vand.u32 %v727, 4294901760
    %v3616 = vsub.f32 %v727, %v3615
    %v3617 = vand.u32 %v3616, 4294901760
    %v3618 = vsub.f32 %v3616, %v3617
    %v3619 = vand.u32 %v3618, 4294901760
    %3620 = vmatpush1.msra.mxu0 %v3619
    %v3621 = vand.u32 %v744, 4294901760
    %v3622 = vsub.f32 %v744, %v3621
    %v3623 = vand.u32 %v3622, 4294901760
    %v3624 = vsub.f32 %v3622, %v3623
    %v3625 = vand.u32 %v3624, 4294901760
    %3626 = vmatprep.subr.mxu0 %v3625
    %v3627 = vand.u32 %v743, 4294901760
    %v3628 = vsub.f32 %v743, %v3627
    %v3629 = vand.u32 %v3628, 4294901760
    %v3630 = vsub.f32 %v3628, %v3629
    %v3631 = vand.u32 %v3630, 4294901760
    %3632 = vmatpush1.msra.mxu0 %v3631
    %v3633 = vand.u32 %v760, 4294901760
    %v3634 = vsub.f32 %v760, %v3633
    %v3635 = vand.u32 %v3634, 4294901760
    %v3636 = vsub.f32 %v3634, %v3635
    %v3637 = vand.u32 %v3636, 4294901760
    %3638 = vmatprep.subr.mxu0 %v3637
    %v3639 = vand.u32 %v759, 4294901760
    %v3640 = vsub.f32 %v759, %v3639
    %v3641 = vand.u32 %v3640, 4294901760
    %v3642 = vsub.f32 %v3640, %v3641
    %v3643 = vand.u32 %v3642, 4294901760
    %3644 = vmatpush1.msra.mxu0 %v3643
    %v3645 = vand.u32 %v776, 4294901760
    %v3646 = vsub.f32 %v776, %v3645
    %v3647 = vand.u32 %v3646, 4294901760
    %v3648 = vsub.f32 %v3646, %v3647
    %v3649 = vand.u32 %v3648, 4294901760
    %3650 = vmatprep.subr.mxu0 %v3649
    %v3651 = vand.u32 %v775, 4294901760
    %v3652 = vsub.f32 %v775, %v3651
    %v3653 = vand.u32 %v3652, 4294901760
    %v3654 = vsub.f32 %v3652, %v3653
    %v3655 = vand.u32 %v3654, 4294901760
    %3656 = vmatpush1.msra.mxu0 %v3655
    %v3657 = vand.u32 %v792, 4294901760
    %v3658 = vsub.f32 %v792, %v3657
    %v3659 = vand.u32 %v3658, 4294901760
    %v3660 = vsub.f32 %v3658, %v3659
    %v3661 = vand.u32 %v3660, 4294901760
    %3662 = vmatprep.subr.mxu0 %v3661
    %v3663 = vand.u32 %v791, 4294901760
    %v3664 = vsub.f32 %v791, %v3663
    %v3665 = vand.u32 %v3664, 4294901760
    %v3666 = vsub.f32 %v3664, %v3665
    %v3667 = vand.u32 %v3666, 4294901760
    %3668 = vmatpush1.msra.mxu0 %v3667
    %v3669 = vand.u32 %v808, 4294901760
    %v3670 = vsub.f32 %v808, %v3669
    %v3671 = vand.u32 %v3670, 4294901760
    %v3672 = vsub.f32 %v3670, %v3671
    %v3673 = vand.u32 %v3672, 4294901760
    %3674 = vmatprep.subr.mxu0 %v3673
    %v3675 = vand.u32 %v807, 4294901760
    %v3676 = vsub.f32 %v807, %v3675
    %v3677 = vand.u32 %v3676, 4294901760
    %v3678 = vsub.f32 %v3676, %v3677
    %v3679 = vand.u32 %v3678, 4294901760
    %3680 = vmatpush1.msra.mxu0 %v3679
    %v3681 = vand.u32 %v1208, 4294901760
    %v3682 = vsub.f32 %v1208, %v3681
    %v3683 = vand.u32 %v3682, 4294901760
    %v3684 = vsub.f32 %v3682, %v3683
    %v3685 = vand.u32 %v3684, 4294901760
    %3686 = vmatprep.subr.mxu0 %v3685
    %v3687 = vand.u32 %v1207, 4294901760
    %v3688 = vsub.f32 %v1207, %v3687
    %v3689 = vand.u32 %v3688, 4294901760
    %v3690 = vsub.f32 %v3688, %v3689
    %v3691 = vand.u32 %v3690, 4294901760
    %3692 = vmatpush1.msra.mxu0 %v3691
    %v3693 = vand.u32 %v1224, 4294901760
    %v3694 = vsub.f32 %v1224, %v3693
    %v3695 = vand.u32 %v3694, 4294901760
    %v3696 = vsub.f32 %v3694, %v3695
    %v3697 = vand.u32 %v3696, 4294901760
    %3698 = vmatprep.subr.mxu0 %v3697
    %v3699 = vand.u32 %v1223, 4294901760
    %v3700 = vsub.f32 %v1223, %v3699
    %v3701 = vand.u32 %v3700, 4294901760
    %v3702 = vsub.f32 %v3700, %v3701
    %v3703 = vand.u32 %v3702, 4294901760
    %3704 = vmatpush1.msra.mxu0 %v3703
    %v3705 = vand.u32 %v1240, 4294901760
    %v3706 = vsub.f32 %v1240, %v3705
    %v3707 = vand.u32 %v3706, 4294901760
    %v3708 = vsub.f32 %v3706, %v3707
    %v3709 = vand.u32 %v3708, 4294901760
    %3710 = vmatprep.subr.mxu0 %v3709
    %v3711 = vand.u32 %v1239, 4294901760
    %v3712 = vsub.f32 %v1239, %v3711
    %v3713 = vand.u32 %v3712, 4294901760
    %v3714 = vsub.f32 %v3712, %v3713
    %v3715 = vand.u32 %v3714, 4294901760
    %3716 = vmatpush1.msra.mxu0 %v3715
    %v3717 = vand.u32 %v1256, 4294901760
    %v3718 = vsub.f32 %v1256, %v3717
    %v3719 = vand.u32 %v3718, 4294901760
    %v3720 = vsub.f32 %v3718, %v3719
    %v3721 = vand.u32 %v3720, 4294901760
    %3722 = vmatprep.subr.mxu0 %v3721
    %v3723 = vand.u32 %v1255, 4294901760
    %v3724 = vsub.f32 %v1255, %v3723
    %v3725 = vand.u32 %v3724, 4294901760
    %v3726 = vsub.f32 %v3724, %v3725
    %v3727 = vand.u32 %v3726, 4294901760
    %3728 = vmatpush1.msra.mxu0 %v3727
    %v3729 = vand.u32 %v1272, 4294901760
    %v3730 = vsub.f32 %v1272, %v3729
    %v3731 = vand.u32 %v3730, 4294901760
    %v3732 = vsub.f32 %v3730, %v3731
    %v3733 = vand.u32 %v3732, 4294901760
    %3734 = vmatprep.subr.mxu0 %v3733
    %v3735 = vand.u32 %v1271, 4294901760
    %v3736 = vsub.f32 %v1271, %v3735
    %v3737 = vand.u32 %v3736, 4294901760
    %v3738 = vsub.f32 %v3736, %v3737
    %v3739 = vand.u32 %v3738, 4294901760
    %3740 = vmatpush1.msra.mxu0 %v3739
    %v3741 = vand.u32 %v1288, 4294901760
    %v3742 = vsub.f32 %v1288, %v3741
    %v3743 = vand.u32 %v3742, 4294901760
    %v3744 = vsub.f32 %v3742, %v3743
    %v3745 = vand.u32 %v3744, 4294901760
    %3746 = vmatprep.subr.mxu0 %v3745
    %v3747 = vand.u32 %v1287, 4294901760
    %v3748 = vsub.f32 %v1287, %v3747
    %v3749 = vand.u32 %v3748, 4294901760
    %v3750 = vsub.f32 %v3748, %v3749
    %v3751 = vand.u32 %v3750, 4294901760
    %3752 = vmatpush1.msra.mxu0 %v3751
    %v3753 = vand.u32 %v1304, 4294901760
    %v3754 = vsub.f32 %v1304, %v3753
    %v3755 = vand.u32 %v3754, 4294901760
    %v3756 = vsub.f32 %v3754, %v3755
    %v3757 = vand.u32 %v3756, 4294901760
    %3758 = vmatprep.subr.mxu0 %v3757
    %v3759 = vand.u32 %v1303, 4294901760
    %v3760 = vsub.f32 %v1303, %v3759
    %v3761 = vand.u32 %v3760, 4294901760
    %v3762 = vsub.f32 %v3760, %v3761
    %v3763 = vand.u32 %v3762, 4294901760
    %3764 = vmatpush1.msra.mxu0 %v3763
    %v3765 = vand.u32 %v1320, 4294901760
    %v3766 = vsub.f32 %v1320, %v3765
    %v3767 = vand.u32 %v3766, 4294901760
    %v3768 = vsub.f32 %v3766, %v3767
    %v3769 = vand.u32 %v3768, 4294901760
    %3770 = vmatprep.subr.mxu0 %v3769
    %v3771 = vand.u32 %v1319, 4294901760
    %v3772 = vsub.f32 %v1319, %v3771
    %v3773 = vand.u32 %v3772, 4294901760
    %v3774 = vsub.f32 %v3772, %v3773
    %v3775 = vand.u32 %v3774, 4294901760
    %3776 = vmatpush1.msra.mxu0 %v3775
    %3777 = vmatprep.subr.mxu0 0.0
    %3778 = vmatpush1.msra.mxu0 0.0
    %3779 = vmatprep.subr.mxu0 0.0
    %3780 = vmatpush1.msra.mxu0 0.0
    %3781 = vmatprep.subr.mxu0 0.0
    %3782 = vmatpush1.msra.mxu0 0.0
    %3783 = vmatprep.subr.mxu0 0.0
    %3784 = vmatpush1.msra.mxu0 0.0
    %3785 = vmatprep.subr.mxu0 0.0
    %3786 = vmatpush1.msra.mxu0 0.0
    %3787 = vmatprep.subr.mxu0 0.0
    %3788 = vmatpush1.msra.mxu0 0.0
    %3789 = vmatprep.subr.mxu0 0.0
    %3790 = vmatpush1.msra.mxu0 0.0
    %3791 = vmatprep.subr.mxu0 0.0
    %3792 = vmatpush1.msra.mxu0 0.0
    %3793 = vmatprep.subr.mxu0 0.0
    %3794 = vmatpush1.msra.mxu0 0.0
    %3795 = vmatprep.subr.mxu0 0.0
    %3796 = vmatpush1.msra.mxu0 0.0
    %3797 = vmatprep.subr.mxu0 0.0
    %3798 = vmatpush1.msra.mxu0 0.0
    %3799 = vmatprep.subr.mxu0 0.0
    %3800 = vmatpush1.msra.mxu0 0.0
    %3801 = vmatprep.subr.mxu0 0.0
    %3802 = vmatpush1.msra.mxu0 0.0
    %3803 = vmatprep.subr.mxu0 0.0
    %3804 = vmatpush1.msra.mxu0 0.0
    %3805 = vmatprep.subr.mxu0 0.0
    %3806 = vmatpush1.msra.mxu0 0.0
    %3807 = vmatprep.subr.mxu0 0.0
    %3808 = vmatpush1.msra.mxu0 0.0
    %3809 = vmatprep.mubr.f32.mxu0 0.0
    %v3810 = vand.u32 %v293, 4294901760
    %3811 = vmatmul.mubr.f32.gmra.mrb[0].mxu0 %v3810
    %v3812 = vpop.f32.mrb[0].mxu0
    %v3813 = vadd.f32 %v3537, %v3812
    %v3814 = vpop.f32.mrb[0].mxu0
    %v3815 = vadd.f32 %v3539, %v3814
    %3816 = vmatprep.mubr.f32.mxu0 0.0
    %v3817 = vand.u32 %v294, 4294901760
    %3818 = vmatmul.mubr.f32.gmra.mrb[0].mxu0 %v3817
    %v3819 = vpop.f32.mrb[0].mxu0
    %v3820 = vadd.f32 %v3548, %v3819
    %v3821 = vpop.f32.mrb[0].mxu0
    %v3822 = vadd.f32 %v3550, %v3821
    %3823 = vmatprep.mubr.f32.mxu0 0.0
    %v3824 = vand.u32 %v295, 4294901760
    %3825 = vmatmul.mubr.f32.gmra.mrb[0].mxu0 %v3824
    %v3826 = vpop.f32.mrb[0].mxu0
    %v3827 = vadd.f32 %v3559, %v3826
    %v3828 = vpop.f32.mrb[0].mxu0
    %v3829 = vadd.f32 %v3561, %v3828
    %3830 = vmatprep.mubr.f32.mxu0 0.0
    %v3831 = vand.u32 %v296, 4294901760
    %3832 = vmatmul.mubr.f32.gmra.mrb[0].mxu0 %v3831
    %v3833 = vpop.f32.mrb[0].mxu0
    %v3834 = vadd.f32 %v3570, %v3833
    %v3835 = vpop.f32.mrb[0].mxu0
    %v3836 = vadd.f32 %v3572, %v3835
    %3837 = vmatprep.mubr.f32.mxu0 0.0
    %v3838 = vand.u32 %v297, 4294901760
    %3839 = vmatmul.mubr.f32.gmra.mrb[0].mxu0 %v3838
    %v3840 = vpop.f32.mrb[0].mxu0
    %v3841 = vadd.f32 %v3581, %v3840
    %v3842 = vpop.f32.mrb[0].mxu0
    %v3843 = vadd.f32 %v3583, %v3842
    %3844 = vdwg.mxu0
    %v3845 = vand.u32 %v696, 4294901760
    %v3846 = vsub.f32 %v696, %v3845
    %3847 = vmatprep.subr.mxu0 %v3846
    %v3848 = vand.u32 %v695, 4294901760
    %v3849 = vsub.f32 %v695, %v3848
    %3850 = vmatpush1.msra.mxu0 %v3849
    %v3851 = vand.u32 %v712, 4294901760
    %v3852 = vsub.f32 %v712, %v3851
    %3853 = vmatprep.subr.mxu0 %v3852
    %v3854 = vand.u32 %v711, 4294901760
    %v3855 = vsub.f32 %v711, %v3854
    %3856 = vmatpush1.msra.mxu0 %v3855
    %v3857 = vand.u32 %v728, 4294901760
    %v3858 = vsub.f32 %v728, %v3857
    %3859 = vmatprep.subr.mxu0 %v3858
    %v3860 = vand.u32 %v727, 4294901760
    %v3861 = vsub.f32 %v727, %v3860
    %3862 = vmatpush1.msra.mxu0 %v3861
    %v3863 = vand.u32 %v744, 4294901760
    %v3864 = vsub.f32 %v744, %v3863
    %3865 = vmatprep.subr.mxu0 %v3864
    %v3866 = vand.u32 %v743, 4294901760
    %v3867 = vsub.f32 %v743, %v3866
    %3868 = vmatpush1.msra.mxu0 %v3867
    %v3869 = vand.u32 %v760, 4294901760
    %v3870 = vsub.f32 %v760, %v3869
    %3871 = vmatprep.subr.mxu0 %v3870
    %v3872 = vand.u32 %v759, 4294901760
    %v3873 = vsub.f32 %v759, %v3872
    %3874 = vmatpush1.msra.mxu0 %v3873
    %v3875 = vand.u32 %v776, 4294901760
    %v3876 = vsub.f32 %v776, %v3875
    %3877 = vmatprep.subr.mxu0 %v3876
    %v3878 = vand.u32 %v775, 4294901760
    %v3879 = vsub.f32 %v775, %v3878
    %3880 = vmatpush1.msra.mxu0 %v3879
    %v3881 = vand.u32 %v792, 4294901760
    %v3882 = vsub.f32 %v792, %v3881
    %3883 = vmatprep.subr.mxu0 %v3882
    %v3884 = vand.u32 %v791, 4294901760
    %v3885 = vsub.f32 %v791, %v3884
    %3886 = vmatpush1.msra.mxu0 %v3885
    %v3887 = vand.u32 %v808, 4294901760
    %v3888 = vsub.f32 %v808, %v3887
    %3889 = vmatprep.subr.mxu0 %v3888
    %v3890 = vand.u32 %v807, 4294901760
    %v3891 = vsub.f32 %v807, %v3890
    %3892 = vmatpush1.msra.mxu0 %v3891
    %v3893 = vand.u32 %v1208, 4294901760
    %v3894 = vsub.f32 %v1208, %v3893
    %3895 = vmatprep.subr.mxu0 %v3894
    %v3896 = vand.u32 %v1207, 4294901760
    %v3897 = vsub.f32 %v1207, %v3896
    %3898 = vmatpush1.msra.mxu0 %v3897
    %v3899 = vand.u32 %v1224, 4294901760
    %v3900 = vsub.f32 %v1224, %v3899
    %3901 = vmatprep.subr.mxu0 %v3900
    %v3902 = vand.u32 %v1223, 4294901760
    %v3903 = vsub.f32 %v1223, %v3902
    %3904 = vmatpush1.msra.mxu0 %v3903
    %v3905 = vand.u32 %v1240, 4294901760
    %v3906 = vsub.f32 %v1240, %v3905
    %3907 = vmatprep.subr.mxu0 %v3906
    %v3908 = vand.u32 %v1239, 4294901760
    %v3909 = vsub.f32 %v1239, %v3908
    %3910 = vmatpush1.msra.mxu0 %v3909
    %v3911 = vand.u32 %v1256, 4294901760
    %v3912 = vsub.f32 %v1256, %v3911
    %3913 = vmatprep.subr.mxu0 %v3912
    %v3914 = vand.u32 %v1255, 4294901760
    %v3915 = vsub.f32 %v1255, %v3914
    %3916 = vmatpush1.msra.mxu0 %v3915
    %v3917 = vand.u32 %v1272, 4294901760
    %v3918 = vsub.f32 %v1272, %v3917
    %3919 = vmatprep.subr.mxu0 %v3918
    %v3920 = vand.u32 %v1271, 4294901760
    %v3921 = vsub.f32 %v1271, %v3920
    %3922 = vmatpush1.msra.mxu0 %v3921
    %v3923 = vand.u32 %v1288, 4294901760
    %v3924 = vsub.f32 %v1288, %v3923
    %3925 = vmatprep.subr.mxu0 %v3924
    %v3926 = vand.u32 %v1287, 4294901760
    %v3927 = vsub.f32 %v1287, %v3926
    %3928 = vmatpush1.msra.mxu0 %v3927
    %v3929 = vand.u32 %v1304, 4294901760
    %v3930 = vsub.f32 %v1304, %v3929
    %3931 = vmatprep.subr.mxu0 %v3930
    %v3932 = vand.u32 %v1303, 4294901760
    %v3933 = vsub.f32 %v1303, %v3932
    %3934 = vmatpush1.msra.mxu0 %v3933
    %v3935 = vand.u32 %v1320, 4294901760
    %v3936 = vsub.f32 %v1320, %v3935
    %3937 = vmatprep.subr.mxu0 %v3936
    %v3938 = vand.u32 %v1319, 4294901760
    %v3939 = vsub.f32 %v1319, %v3938
    %3940 = vmatpush1.msra.mxu0 %v3939
    %3941 = vmatprep.subr.mxu0 0.0
    %3942 = vmatpush1.msra.mxu0 0.0
    %3943 = vmatprep.subr.mxu0 0.0
    %3944 = vmatpush1.msra.mxu0 0.0
    %3945 = vmatprep.subr.mxu0 0.0
    %3946 = vmatpush1.msra.mxu0 0.0
    %3947 = vmatprep.subr.mxu0 0.0
    %3948 = vmatpush1.msra.mxu0 0.0
    %3949 = vmatprep.subr.mxu0 0.0
    %3950 = vmatpush1.msra.mxu0 0.0
    %3951 = vmatprep.subr.mxu0 0.0
    %3952 = vmatpush1.msra.mxu0 0.0
    %3953 = vmatprep.subr.mxu0 0.0
    %3954 = vmatpush1.msra.mxu0 0.0
    %3955 = vmatprep.subr.mxu0 0.0
    %3956 = vmatpush1.msra.mxu0 0.0
    %3957 = vmatprep.subr.mxu0 0.0
    %3958 = vmatpush1.msra.mxu0 0.0
    %3959 = vmatprep.subr.mxu0 0.0
    %3960 = vmatpush1.msra.mxu0 0.0
    %3961 = vmatprep.subr.mxu0 0.0
    %3962 = vmatpush1.msra.mxu0 0.0
    %3963 = vmatprep.subr.mxu0 0.0
    %3964 = vmatpush1.msra.mxu0 0.0
    %3965 = vmatprep.subr.mxu0 0.0
    %3966 = vmatpush1.msra.mxu0 0.0
    %3967 = vmatprep.subr.mxu0 0.0
    %3968 = vmatpush1.msra.mxu0 0.0
    %3969 = vmatprep.subr.mxu0 0.0
    %3970 = vmatpush1.msra.mxu0 0.0
    %3971 = vmatprep.subr.mxu0 0.0
    %3972 = vmatpush1.msra.mxu0 0.0
    %3973 = vmatprep.mubr.f32.mxu0 0.0
    %v3974 = vand.u32 %v293, 4294901760
    %v3975 = vsub.f32 %v293, %v3974
    %3976 = vmatmul.mubr.f32.gmra.mrb[0].mxu0 %v3975
    %v3977 = vpop.f32.mrb[0].mxu0
    %v3978 = vadd.f32 %v3813, %v3977
    %v3979 = vpop.f32.mrb[0].mxu0
    %v3980 = vadd.f32 %v3815, %v3979
    %3981 = vmatprep.mubr.f32.mxu0 0.0
    %v3982 = vand.u32 %v294, 4294901760
    %v3983 = vsub.f32 %v294, %v3982
    %3984 = vmatmul.mubr.f32.gmra.mrb[0].mxu0 %v3983
    %v3985 = vpop.f32.mrb[0].mxu0
    %v3986 = vadd.f32 %v3820, %v3985
    %v3987 = vpop.f32.mrb[0].mxu0
    %v3988 = vadd.f32 %v3822, %v3987
    %3989 = vmatprep.mubr.f32.mxu0 0.0
    %v3990 = vand.u32 %v295, 4294901760
    %v3991 = vsub.f32 %v295, %v3990
    %3992 = vmatmul.mubr.f32.gmra.mrb[0].mxu0 %v3991
    %v3993 = vpop.f32.mrb[0].mxu0
    %v3994 = vadd.f32 %v3827, %v3993
    %v3995 = vpop.f32.mrb[0].mxu0
    %v3996 = vadd.f32 %v3829, %v3995
    %3997 = vmatprep.mubr.f32.mxu0 0.0
    %v3998 = vand.u32 %v296, 4294901760
    %v3999 = vsub.f32 %v296, %v3998
    %4000 = vmatmul.mubr.f32.gmra.mrb[0].mxu0 %v3999
    %v4001 = vpop.f32.mrb[0].mxu0
    %v4002 = vadd.f32 %v3834, %v4001
    %v4003 = vpop.f32.mrb[0].mxu0
    %v4004 = vadd.f32 %v3836, %v4003
    %4005 = vmatprep.mubr.f32.mxu0 0.0
    %v4006 = vand.u32 %v297, 4294901760
    %v4007 = vsub.f32 %v297, %v4006
    %4008 = vmatmul.mubr.f32.gmra.mrb[0].mxu0 %v4007
    %v4009 = vpop.f32.mrb[0].mxu0
    %v4010 = vadd.f32 %v3841, %v4009
    %v4011 = vpop.f32.mrb[0].mxu0
    %v4012 = vadd.f32 %v3843, %v4011
    %4013 = vdwg.mxu0
    %v4014 = vand.u32 %v696, 4294901760
    %4015 = vmatprep.subr.mxu0 %v4014
    %v4016 = vand.u32 %v695, 4294901760
    %4017 = vmatpush1.msra.mxu0 %v4016
    %v4018 = vand.u32 %v712, 4294901760
    %4019 = vmatprep.subr.mxu0 %v4018
    %v4020 = vand.u32 %v711, 4294901760
    %4021 = vmatpush1.msra.mxu0 %v4020
    %v4022 = vand.u32 %v728, 4294901760
    %4023 = vmatprep.subr.mxu0 %v4022
    %v4024 = vand.u32 %v727, 4294901760
    %4025 = vmatpush1.msra.mxu0 %v4024
    %v4026 = vand.u32 %v744, 4294901760
    %4027 = vmatprep.subr.mxu0 %v4026
    %v4028 = vand.u32 %v743, 4294901760
    %4029 = vmatpush1.msra.mxu0 %v4028
    %v4030 = vand.u32 %v760, 4294901760
    %4031 = vmatprep.subr.mxu0 %v4030
    %v4032 = vand.u32 %v759, 4294901760
    %4033 = vmatpush1.msra.mxu0 %v4032
    %v4034 = vand.u32 %v776, 4294901760
    %4035 = vmatprep.subr.mxu0 %v4034
    %v4036 = vand.u32 %v775, 4294901760
    %4037 = vmatpush1.msra.mxu0 %v4036
    %v4038 = vand.u32 %v792, 4294901760
    %4039 = vmatprep.subr.mxu0 %v4038
    %v4040 = vand.u32 %v791, 4294901760
    %4041 = vmatpush1.msra.mxu0 %v4040
    %v4042 = vand.u32 %v808, 4294901760
    %4043 = vmatprep.subr.mxu0 %v4042
    %v4044 = vand.u32 %v807, 4294901760
    %4045 = vmatpush1.msra.mxu0 %v4044
    %v4046 = vand.u32 %v1208, 4294901760
    %4047 = vmatprep.subr.mxu0 %v4046
    %v4048 = vand.u32 %v1207, 4294901760
    %4049 = vmatpush1.msra.mxu0 %v4048
    %v4050 = vand.u32 %v1224, 4294901760
    %4051 = vmatprep.subr.mxu0 %v4050
    %v4052 = vand.u32 %v1223, 4294901760
    %4053 = vmatpush1.msra.mxu0 %v4052
    %v4054 = vand.u32 %v1240, 4294901760
    %4055 = vmatprep.subr.mxu0 %v4054
    %v4056 = vand.u32 %v1239, 4294901760
    %4057 = vmatpush1.msra.mxu0 %v4056
    %v4058 = vand.u32 %v1256, 4294901760
    %4059 = vmatprep.subr.mxu0 %v4058
    %v4060 = vand.u32 %v1255, 4294901760
    %4061 = vmatpush1.msra.mxu0 %v4060
    %v4062 = vand.u32 %v1272, 4294901760
    %4063 = vmatprep.subr.mxu0 %v4062
    %v4064 = vand.u32 %v1271, 4294901760
    %4065 = vmatpush1.msra.mxu0 %v4064
    %v4066 = vand.u32 %v1288, 4294901760
    %4067 = vmatprep.subr.mxu0 %v4066
    %v4068 = vand.u32 %v1287, 4294901760
    %4069 = vmatpush1.msra.mxu0 %v4068
    %v4070 = vand.u32 %v1304, 4294901760
    %4071 = vmatprep.subr.mxu0 %v4070
    %v4072 = vand.u32 %v1303, 4294901760
    %4073 = vmatpush1.msra.mxu0 %v4072
    %v4074 = vand.u32 %v1320, 4294901760
    %4075 = vmatprep.subr.mxu0 %v4074
    %v4076 = vand.u32 %v1319, 4294901760
    %4077 = vmatpush1.msra.mxu0 %v4076
    %4078 = vmatprep.subr.mxu0 0.0
    %4079 = vmatpush1.msra.mxu0 0.0
    %4080 = vmatprep.subr.mxu0 0.0
    %4081 = vmatpush1.msra.mxu0 0.0
    %4082 = vmatprep.subr.mxu0 0.0
    %4083 = vmatpush1.msra.mxu0 0.0
    %4084 = vmatprep.subr.mxu0 0.0
    %4085 = vmatpush1.msra.mxu0 0.0
    %4086 = vmatprep.subr.mxu0 0.0
    %4087 = vmatpush1.msra.mxu0 0.0
    %4088 = vmatprep.subr.mxu0 0.0
    %4089 = vmatpush1.msra.mxu0 0.0
    %4090 = vmatprep.subr.mxu0 0.0
    %4091 = vmatpush1.msra.mxu0 0.0
    %4092 = vmatprep.subr.mxu0 0.0
    %4093 = vmatpush1.msra.mxu0 0.0
    %4094 = vmatprep.subr.mxu0 0.0
    %4095 = vmatpush1.msra.mxu0 0.0
    %4096 = vmatprep.subr.mxu0 0.0
    %4097 = vmatpush1.msra.mxu0 0.0
    %4098 = vmatprep.subr.mxu0 0.0
    %4099 = vmatpush1.msra.mxu0 0.0
    %4100 = vmatprep.subr.mxu0 0.0
    %4101 = vmatpush1.msra.mxu0 0.0
    %4102 = vmatprep.subr.mxu0 0.0
    %4103 = vmatpush1.msra.mxu0 0.0
    %4104 = vmatprep.subr.mxu0 0.0
    %4105 = vmatpush1.msra.mxu0 0.0
    %4106 = vmatprep.subr.mxu0 0.0
    %4107 = vmatpush1.msra.mxu0 0.0
    %4108 = vmatprep.subr.mxu0 0.0
    %4109 = vmatpush1.msra.mxu0 0.0
    %4110 = vmatprep.mubr.f32.mxu0 0.0
    %v4111 = vand.u32 %v293, 4294901760
    %v4112 = vsub.f32 %v293, %v4111
    %v4113 = vand.u32 %v4112, 4294901760
    %4114 = vmatmul.mubr.f32.gmra.mrb[0].mxu0 %v4113
    %v4115 = vpop.f32.mrb[0].mxu0
    %v4116 = vadd.f32 %v3978, %v4115
    %v4117 = vpop.f32.mrb[0].mxu0
    %v4118 = vadd.f32 %v3980, %v4117
    %4119 = vmatprep.mubr.f32.mxu0 0.0
    %v4120 = vand.u32 %v294, 4294901760
    %v4121 = vsub.f32 %v294, %v4120
    %v4122 = vand.u32 %v4121, 4294901760
    %4123 = vmatmul.mubr.f32.gmra.mrb[0].mxu0 %v4122
    %v4124 = vpop.f32.mrb[0].mxu0
    %v4125 = vadd.f32 %v3986, %v4124
    %v4126 = vpop.f32.mrb[0].mxu0
    %v4127 = vadd.f32 %v3988, %v4126
    %4128 = vmatprep.mubr.f32.mxu0 0.0
    %v4129 = vand.u32 %v295, 4294901760
    %v4130 = vsub.f32 %v295, %v4129
    %v4131 = vand.u32 %v4130, 4294901760
    %4132 = vmatmul.mubr.f32.gmra.mrb[0].mxu0 %v4131
    %v4133 = vpop.f32.mrb[0].mxu0
    %v4134 = vadd.f32 %v3994, %v4133
    %v4135 = vpop.f32.mrb[0].mxu0
    %v4136 = vadd.f32 %v3996, %v4135
    %4137 = vmatprep.mubr.f32.mxu0 0.0
    %v4138 = vand.u32 %v296, 4294901760
    %v4139 = vsub.f32 %v296, %v4138
    %v4140 = vand.u32 %v4139, 4294901760
    %4141 = vmatmul.mubr.f32.gmra.mrb[0].mxu0 %v4140
    %v4142 = vpop.f32.mrb[0].mxu0
    %v4143 = vadd.f32 %v4002, %v4142
    %v4144 = vpop.f32.mrb[0].mxu0
    %v4145 = vadd.f32 %v4004, %v4144
    %4146 = vmatprep.mubr.f32.mxu0 0.0
    %v4147 = vand.u32 %v297, 4294901760
    %v4148 = vsub.f32 %v297, %v4147
    %v4149 = vand.u32 %v4148, 4294901760
    %4150 = vmatmul.mubr.f32.gmra.mrb[0].mxu0 %v4149
    %v4151 = vpop.f32.mrb[0].mxu0
    %v4152 = vadd.f32 %v4010, %v4151
    %v4153 = vpop.f32.mrb[0].mxu0
    %v4154 = vadd.f32 %v4012, %v4153
    %4155 = vdwg.mxu0
    %v4156 = vand.u32 %v696, 4294901760
    %v4157 = vsub.f32 %v696, %v4156
    %v4158 = vand.u32 %v4157, 4294901760
    %4159 = vmatprep.subr.mxu0 %v4158
    %v4160 = vand.u32 %v695, 4294901760
    %v4161 = vsub.f32 %v695, %v4160
    %v4162 = vand.u32 %v4161, 4294901760
    %4163 = vmatpush1.msra.mxu0 %v4162
    %v4164 = vand.u32 %v712, 4294901760
    %v4165 = vsub.f32 %v712, %v4164
    %v4166 = vand.u32 %v4165, 4294901760
    %4167 = vmatprep.subr.mxu0 %v4166
    %v4168 = vand.u32 %v711, 4294901760
    %v4169 = vsub.f32 %v711, %v4168
    %v4170 = vand.u32 %v4169, 4294901760
    %4171 = vmatpush1.msra.mxu0 %v4170
    %v4172 = vand.u32 %v728, 4294901760
    %v4173 = vsub.f32 %v728, %v4172
    %v4174 = vand.u32 %v4173, 4294901760
    %4175 = vmatprep.subr.mxu0 %v4174
    %v4176 = vand.u32 %v727, 4294901760
    %v4177 = vsub.f32 %v727, %v4176
    %v4178 = vand.u32 %v4177, 4294901760
    %4179 = vmatpush1.msra.mxu0 %v4178
    %v4180 = vand.u32 %v744, 4294901760
    %v4181 = vsub.f32 %v744, %v4180
    %v4182 = vand.u32 %v4181, 4294901760
    %4183 = vmatprep.subr.mxu0 %v4182
    %v4184 = vand.u32 %v743, 4294901760
    %v4185 = vsub.f32 %v743, %v4184
    %v4186 = vand.u32 %v4185, 4294901760
    %4187 = vmatpush1.msra.mxu0 %v4186
    %v4188 = vand.u32 %v760, 4294901760
    %v4189 = vsub.f32 %v760, %v4188
    %v4190 = vand.u32 %v4189, 4294901760
    %4191 = vmatprep.subr.mxu0 %v4190
    %v4192 = vand.u32 %v759, 4294901760
    %v4193 = vsub.f32 %v759, %v4192
    %v4194 = vand.u32 %v4193, 4294901760
    %4195 = vmatpush1.msra.mxu0 %v4194
    %v4196 = vand.u32 %v776, 4294901760
    %v4197 = vsub.f32 %v776, %v4196
    %v4198 = vand.u32 %v4197, 4294901760
    %4199 = vmatprep.subr.mxu0 %v4198
    %v4200 = vand.u32 %v775, 4294901760
    %v4201 = vsub.f32 %v775, %v4200
    %v4202 = vand.u32 %v4201, 4294901760
    %4203 = vmatpush1.msra.mxu0 %v4202
    %v4204 = vand.u32 %v792, 4294901760
    %v4205 = vsub.f32 %v792, %v4204
    %v4206 = vand.u32 %v4205, 4294901760
    %4207 = vmatprep.subr.mxu0 %v4206
    %v4208 = vand.u32 %v791, 4294901760
    %v4209 = vsub.f32 %v791, %v4208
    %v4210 = vand.u32 %v4209, 4294901760
    %4211 = vmatpush1.msra.mxu0 %v4210
    %v4212 = vand.u32 %v808, 4294901760
    %v4213 = vsub.f32 %v808, %v4212
    %v4214 = vand.u32 %v4213, 4294901760
    %4215 = vmatprep.subr.mxu0 %v4214
    %v4216 = vand.u32 %v807, 4294901760
    %v4217 = vsub.f32 %v807, %v4216
    %v4218 = vand.u32 %v4217, 4294901760
    %4219 = vmatpush1.msra.mxu0 %v4218
    %v4220 = vand.u32 %v1208, 4294901760
    %v4221 = vsub.f32 %v1208, %v4220
    %v4222 = vand.u32 %v4221, 4294901760
    %4223 = vmatprep.subr.mxu0 %v4222
    %v4224 = vand.u32 %v1207, 4294901760
    %v4225 = vsub.f32 %v1207, %v4224
    %v4226 = vand.u32 %v4225, 4294901760
    %4227 = vmatpush1.msra.mxu0 %v4226
    %v4228 = vand.u32 %v1224, 4294901760
    %v4229 = vsub.f32 %v1224, %v4228
    %v4230 = vand.u32 %v4229, 4294901760
    %4231 = vmatprep.subr.mxu0 %v4230
    %v4232 = vand.u32 %v1223, 4294901760
    %v4233 = vsub.f32 %v1223, %v4232
    %v4234 = vand.u32 %v4233, 4294901760
    %4235 = vmatpush1.msra.mxu0 %v4234
    %v4236 = vand.u32 %v1240, 4294901760
    %v4237 = vsub.f32 %v1240, %v4236
    %v4238 = vand.u32 %v4237, 4294901760
    %4239 = vmatprep.subr.mxu0 %v4238
    %v4240 = vand.u32 %v1239, 4294901760
    %v4241 = vsub.f32 %v1239, %v4240
    %v4242 = vand.u32 %v4241, 4294901760
    %4243 = vmatpush1.msra.mxu0 %v4242
    %v4244 = vand.u32 %v1256, 4294901760
    %v4245 = vsub.f32 %v1256, %v4244
    %v4246 = vand.u32 %v4245, 4294901760
    %4247 = vmatprep.subr.mxu0 %v4246
    %v4248 = vand.u32 %v1255, 4294901760
    %v4249 = vsub.f32 %v1255, %v4248
    %v4250 = vand.u32 %v4249, 4294901760
    %4251 = vmatpush1.msra.mxu0 %v4250
    %v4252 = vand.u32 %v1272, 4294901760
    %v4253 = vsub.f32 %v1272, %v4252
    %v4254 = vand.u32 %v4253, 4294901760
    %4255 = vmatprep.subr.mxu0 %v4254
    %v4256 = vand.u32 %v1271, 4294901760
    %v4257 = vsub.f32 %v1271, %v4256
    %v4258 = vand.u32 %v4257, 4294901760
    %4259 = vmatpush1.msra.mxu0 %v4258
    %v4260 = vand.u32 %v1288, 4294901760
    %v4261 = vsub.f32 %v1288, %v4260
    %v4262 = vand.u32 %v4261, 4294901760
    %4263 = vmatprep.subr.mxu0 %v4262
    %v4264 = vand.u32 %v1287, 4294901760
    %v4265 = vsub.f32 %v1287, %v4264
    %v4266 = vand.u32 %v4265, 4294901760
    %4267 = vmatpush1.msra.mxu0 %v4266
    %v4268 = vand.u32 %v1304, 4294901760
    %v4269 = vsub.f32 %v1304, %v4268
    %v4270 = vand.u32 %v4269, 4294901760
    %4271 = vmatprep.subr.mxu0 %v4270
    %v4272 = vand.u32 %v1303, 4294901760
    %v4273 = vsub.f32 %v1303, %v4272
    %v4274 = vand.u32 %v4273, 4294901760
    %4275 = vmatpush1.msra.mxu0 %v4274
    %v4276 = vand.u32 %v1320, 4294901760
    %v4277 = vsub.f32 %v1320, %v4276
    %v4278 = vand.u32 %v4277, 4294901760
    %4279 = vmatprep.subr.mxu0 %v4278
    %v4280 = vand.u32 %v1319, 4294901760
    %v4281 = vsub.f32 %v1319, %v4280
    %v4282 = vand.u32 %v4281, 4294901760
    %4283 = vmatpush1.msra.mxu0 %v4282
    %4284 = vmatprep.subr.mxu0 0.0
    %4285 = vmatpush1.msra.mxu0 0.0
    %4286 = vmatprep.subr.mxu0 0.0
    %4287 = vmatpush1.msra.mxu0 0.0
    %4288 = vmatprep.subr.mxu0 0.0
    %4289 = vmatpush1.msra.mxu0 0.0
    %4290 = vmatprep.subr.mxu0 0.0
    %4291 = vmatpush1.msra.mxu0 0.0
    %4292 = vmatprep.subr.mxu0 0.0
    %4293 = vmatpush1.msra.mxu0 0.0
    %4294 = vmatprep.subr.mxu0 0.0
    %4295 = vmatpush1.msra.mxu0 0.0
    %4296 = vmatprep.subr.mxu0 0.0
    %4297 = vmatpush1.msra.mxu0 0.0
    %4298 = vmatprep.subr.mxu0 0.0
    %4299 = vmatpush1.msra.mxu0 0.0
    %4300 = vmatprep.subr.mxu0 0.0
    %4301 = vmatpush1.msra.mxu0 0.0
    %4302 = vmatprep.subr.mxu0 0.0
    %4303 = vmatpush1.msra.mxu0 0.0
    %4304 = vmatprep.subr.mxu0 0.0
    %4305 = vmatpush1.msra.mxu0 0.0
    %4306 = vmatprep.subr.mxu0 0.0
    %4307 = vmatpush1.msra.mxu0 0.0
    %4308 = vmatprep.subr.mxu0 0.0
    %4309 = vmatpush1.msra.mxu0 0.0
    %4310 = vmatprep.subr.mxu0 0.0
    %4311 = vmatpush1.msra.mxu0 0.0
    %4312 = vmatprep.subr.mxu0 0.0
    %4313 = vmatpush1.msra.mxu0 0.0
    %4314 = vmatprep.subr.mxu0 0.0
    %4315 = vmatpush1.msra.mxu0 0.0
    %4316 = vmatprep.mubr.f32.mxu0 0.0
    %v4317 = vand.u32 %v293, 4294901760
    %4318 = vmatmul.mubr.f32.gmra.mrb[0].mxu0 %v4317
    %v4319 = vpop.f32.mrb[0].mxu0
    %v4320 = vadd.f32 %v4116, %v4319
    %v4321 = vpop.f32.mrb[0].mxu0
    %v4322 = vadd.f32 %v4118, %v4321
    %4323 = vmatprep.mubr.f32.mxu0 0.0
    %v4324 = vand.u32 %v294, 4294901760
    %4325 = vmatmul.mubr.f32.gmra.mrb[0].mxu0 %v4324
    %v4326 = vpop.f32.mrb[0].mxu0
    %v4327 = vadd.f32 %v4125, %v4326
    %v4328 = vpop.f32.mrb[0].mxu0
    %v4329 = vadd.f32 %v4127, %v4328
    %4330 = vmatprep.mubr.f32.mxu0 0.0
    %v4331 = vand.u32 %v295, 4294901760
    %4332 = vmatmul.mubr.f32.gmra.mrb[0].mxu0 %v4331
    %v4333 = vpop.f32.mrb[0].mxu0
    %v4334 = vadd.f32 %v4134, %v4333
    %v4335 = vpop.f32.mrb[0].mxu0
    %v4336 = vadd.f32 %v4136, %v4335
    %4337 = vmatprep.mubr.f32.mxu0 0.0
    %v4338 = vand.u32 %v296, 4294901760
    %4339 = vmatmul.mubr.f32.gmra.mrb[0].mxu0 %v4338
    %v4340 = vpop.f32.mrb[0].mxu0
    %v4341 = vadd.f32 %v4143, %v4340
    %v4342 = vpop.f32.mrb[0].mxu0
    %v4343 = vadd.f32 %v4145, %v4342
    %4344 = vmatprep.mubr.f32.mxu0 0.0
    %v4345 = vand.u32 %v297, 4294901760
    %4346 = vmatmul.mubr.f32.gmra.mrb[0].mxu0 %v4345
    %v4347 = vpop.f32.mrb[0].mxu0
    %v4348 = vadd.f32 %v4152, %v4347
    %v4349 = vpop.f32.mrb[0].mxu0
    %v4350 = vadd.f32 %v4154, %v4349
    %4351 = vdwg.mxu0
    %v4352 = vand.u32 %v696, 4294901760
    %4353 = vmatprep.subr.mxu0 %v4352
    %v4354 = vand.u32 %v695, 4294901760
    %4355 = vmatpush1.msra.mxu0 %v4354
    %v4356 = vand.u32 %v712, 4294901760
    %4357 = vmatprep.subr.mxu0 %v4356
    %v4358 = vand.u32 %v711, 4294901760
    %4359 = vmatpush1.msra.mxu0 %v4358
    %v4360 = vand.u32 %v728, 4294901760
    %4361 = vmatprep.subr.mxu0 %v4360
    %v4362 = vand.u32 %v727, 4294901760
    %4363 = vmatpush1.msra.mxu0 %v4362
    %v4364 = vand.u32 %v744, 4294901760
    %4365 = vmatprep.subr.mxu0 %v4364
    %v4366 = vand.u32 %v743, 4294901760
    %4367 = vmatpush1.msra.mxu0 %v4366
    %v4368 = vand.u32 %v760, 4294901760
    %4369 = vmatprep.subr.mxu0 %v4368
    %v4370 = vand.u32 %v759, 4294901760
    %4371 = vmatpush1.msra.mxu0 %v4370
    %v4372 = vand.u32 %v776, 4294901760
    %4373 = vmatprep.subr.mxu0 %v4372
    %v4374 = vand.u32 %v775, 4294901760
    %4375 = vmatpush1.msra.mxu0 %v4374
    %v4376 = vand.u32 %v792, 4294901760
    %4377 = vmatprep.subr.mxu0 %v4376
    %v4378 = vand.u32 %v791, 4294901760
    %4379 = vmatpush1.msra.mxu0 %v4378
    %v4380 = vand.u32 %v808, 4294901760
    %4381 = vmatprep.subr.mxu0 %v4380
    %v4382 = vand.u32 %v807, 4294901760
    %4383 = vmatpush1.msra.mxu0 %v4382
    %v4384 = vand.u32 %v1208, 4294901760
    %4385 = vmatprep.subr.mxu0 %v4384
    %v4386 = vand.u32 %v1207, 4294901760
    %4387 = vmatpush1.msra.mxu0 %v4386
    %v4388 = vand.u32 %v1224, 4294901760
    %4389 = vmatprep.subr.mxu0 %v4388
    %v4390 = vand.u32 %v1223, 4294901760
    %4391 = vmatpush1.msra.mxu0 %v4390
    %v4392 = vand.u32 %v1240, 4294901760
    %4393 = vmatprep.subr.mxu0 %v4392
    %v4394 = vand.u32 %v1239, 4294901760
    %4395 = vmatpush1.msra.mxu0 %v4394
    %v4396 = vand.u32 %v1256, 4294901760
    %4397 = vmatprep.subr.mxu0 %v4396
    %v4398 = vand.u32 %v1255, 4294901760
    %4399 = vmatpush1.msra.mxu0 %v4398
    %v4400 = vand.u32 %v1272, 4294901760
    %4401 = vmatprep.subr.mxu0 %v4400
    %v4402 = vand.u32 %v1271, 4294901760
    %4403 = vmatpush1.msra.mxu0 %v4402
    %v4404 = vand.u32 %v1288, 4294901760
    %4405 = vmatprep.subr.mxu0 %v4404
    %v4406 = vand.u32 %v1287, 4294901760
    %4407 = vmatpush1.msra.mxu0 %v4406
    %v4408 = vand.u32 %v1304, 4294901760
    %4409 = vmatprep.subr.mxu0 %v4408
    %v4410 = vand.u32 %v1303, 4294901760
    %4411 = vmatpush1.msra.mxu0 %v4410
    %v4412 = vand.u32 %v1320, 4294901760
    %4413 = vmatprep.subr.mxu0 %v4412
    %v4414 = vand.u32 %v1319, 4294901760
    %4415 = vmatpush1.msra.mxu0 %v4414
    %4416 = vmatprep.subr.mxu0 0.0
    %4417 = vmatpush1.msra.mxu0 0.0
    %4418 = vmatprep.subr.mxu0 0.0
    %4419 = vmatpush1.msra.mxu0 0.0
    %4420 = vmatprep.subr.mxu0 0.0
    %4421 = vmatpush1.msra.mxu0 0.0
    %4422 = vmatprep.subr.mxu0 0.0
    %4423 = vmatpush1.msra.mxu0 0.0
    %4424 = vmatprep.subr.mxu0 0.0
    %4425 = vmatpush1.msra.mxu0 0.0
    %4426 = vmatprep.subr.mxu0 0.0
    %4427 = vmatpush1.msra.mxu0 0.0
    %4428 = vmatprep.subr.mxu0 0.0
    %4429 = vmatpush1.msra.mxu0 0.0
    %4430 = vmatprep.subr.mxu0 0.0
    %4431 = vmatpush1.msra.mxu0 0.0
    %4432 = vmatprep.subr.mxu0 0.0
    %4433 = vmatpush1.msra.mxu0 0.0
    %4434 = vmatprep.subr.mxu0 0.0
    %4435 = vmatpush1.msra.mxu0 0.0
    %4436 = vmatprep.subr.mxu0 0.0
    %4437 = vmatpush1.msra.mxu0 0.0
    %4438 = vmatprep.subr.mxu0 0.0
    %4439 = vmatpush1.msra.mxu0 0.0
    %4440 = vmatprep.subr.mxu0 0.0
    %4441 = vmatpush1.msra.mxu0 0.0
    %4442 = vmatprep.subr.mxu0 0.0
    %4443 = vmatpush1.msra.mxu0 0.0
    %4444 = vmatprep.subr.mxu0 0.0
    %4445 = vmatpush1.msra.mxu0 0.0
    %4446 = vmatprep.subr.mxu0 0.0
    %4447 = vmatpush1.msra.mxu0 0.0
    %4448 = vmatprep.mubr.f32.mxu0 0.0
    %v4449 = vand.u32 %v293, 4294901760
    %4450 = vmatmul.mubr.f32.gmra.mrb[0].mxu0 %v4449
    %v4451 = vpop.f32.mrb[0].mxu0
    %v4452 = vadd.f32 %v4320, %v4451
    %v4453 = vpop.f32.mrb[0].mxu0
    %v4454 = vadd.f32 %v4322, %v4453
    %4455 = vmatprep.mubr.f32.mxu0 0.0
    %v4456 = vand.u32 %v294, 4294901760
    %4457 = vmatmul.mubr.f32.gmra.mrb[0].mxu0 %v4456
    %v4458 = vpop.f32.mrb[0].mxu0
    %v4459 = vadd.f32 %v4327, %v4458
    %v4460 = vpop.f32.mrb[0].mxu0
    %v4461 = vadd.f32 %v4329, %v4460
    %4462 = vmatprep.mubr.f32.mxu0 0.0
    %v4463 = vand.u32 %v295, 4294901760
    %4464 = vmatmul.mubr.f32.gmra.mrb[0].mxu0 %v4463
    %v4465 = vpop.f32.mrb[0].mxu0
    %v4466 = vadd.f32 %v4334, %v4465
    %v4467 = vpop.f32.mrb[0].mxu0
    %v4468 = vadd.f32 %v4336, %v4467
    %4469 = vmatprep.mubr.f32.mxu0 0.0
    %v4470 = vand.u32 %v296, 4294901760
    %4471 = vmatmul.mubr.f32.gmra.mrb[0].mxu0 %v4470
    %v4472 = vpop.f32.mrb[0].mxu0
    %v4473 = vadd.f32 %v4341, %v4472
    %v4474 = vpop.f32.mrb[0].mxu0
    %v4475 = vadd.f32 %v4343, %v4474
    %4476 = vmatprep.mubr.f32.mxu0 0.0
    %v4477 = vand.u32 %v297, 4294901760
    %4478 = vmatmul.mubr.f32.gmra.mrb[0].mxu0 %v4477
    %v4479 = vpop.f32.mrb[0].mxu0
    %v4480 = vadd.f32 %v4348, %v4479
    %v4481 = vpop.f32.mrb[0].mxu0
    %v4482 = vadd.f32 %v4350, %v4481
    %4483 = vdwg.mxu0
    %v4484 = vand.u32 %v698, 4294901760
    %4485 = vmatprep.subr.mxu0 %v4484
    %v4486 = vand.u32 %v697, 4294901760
    %4487 = vmatpush1.msra.mxu0 %v4486
    %v4488 = vand.u32 %v714, 4294901760
    %4489 = vmatprep.subr.mxu0 %v4488
    %v4490 = vand.u32 %v713, 4294901760
    %4491 = vmatpush1.msra.mxu0 %v4490
    %v4492 = vand.u32 %v730, 4294901760
    %4493 = vmatprep.subr.mxu0 %v4492
    %v4494 = vand.u32 %v729, 4294901760
    %4495 = vmatpush1.msra.mxu0 %v4494
    %v4496 = vand.u32 %v746, 4294901760
    %4497 = vmatprep.subr.mxu0 %v4496
    %v4498 = vand.u32 %v745, 4294901760
    %4499 = vmatpush1.msra.mxu0 %v4498
    %v4500 = vand.u32 %v762, 4294901760
    %4501 = vmatprep.subr.mxu0 %v4500
    %v4502 = vand.u32 %v761, 4294901760
    %4503 = vmatpush1.msra.mxu0 %v4502
    %v4504 = vand.u32 %v778, 4294901760
    %4505 = vmatprep.subr.mxu0 %v4504
    %v4506 = vand.u32 %v777, 4294901760
    %4507 = vmatpush1.msra.mxu0 %v4506
    %v4508 = vand.u32 %v794, 4294901760
    %4509 = vmatprep.subr.mxu0 %v4508
    %v4510 = vand.u32 %v793, 4294901760
    %4511 = vmatpush1.msra.mxu0 %v4510
    %v4512 = vand.u32 %v810, 4294901760
    %4513 = vmatprep.subr.mxu0 %v4512
    %v4514 = vand.u32 %v809, 4294901760
    %4515 = vmatpush1.msra.mxu0 %v4514
    %v4516 = vand.u32 %v1210, 4294901760
    %4517 = vmatprep.subr.mxu0 %v4516
    %v4518 = vand.u32 %v1209, 4294901760
    %4519 = vmatpush1.msra.mxu0 %v4518
    %v4520 = vand.u32 %v1226, 4294901760
    %4521 = vmatprep.subr.mxu0 %v4520
    %v4522 = vand.u32 %v1225, 4294901760
    %4523 = vmatpush1.msra.mxu0 %v4522
    %v4524 = vand.u32 %v1242, 4294901760
    %4525 = vmatprep.subr.mxu0 %v4524
    %v4526 = vand.u32 %v1241, 4294901760
    %4527 = vmatpush1.msra.mxu0 %v4526
    %v4528 = vand.u32 %v1258, 4294901760
    %4529 = vmatprep.subr.mxu0 %v4528
    %v4530 = vand.u32 %v1257, 4294901760
    %4531 = vmatpush1.msra.mxu0 %v4530
    %v4532 = vand.u32 %v1274, 4294901760
    %4533 = vmatprep.subr.mxu0 %v4532
    %v4534 = vand.u32 %v1273, 4294901760
    %4535 = vmatpush1.msra.mxu0 %v4534
    %v4536 = vand.u32 %v1290, 4294901760
    %4537 = vmatprep.subr.mxu0 %v4536
    %v4538 = vand.u32 %v1289, 4294901760
    %4539 = vmatpush1.msra.mxu0 %v4538
    %v4540 = vand.u32 %v1306, 4294901760
    %4541 = vmatprep.subr.mxu0 %v4540
    %v4542 = vand.u32 %v1305, 4294901760
    %4543 = vmatpush1.msra.mxu0 %v4542
    %v4544 = vand.u32 %v1322, 4294901760
    %4545 = vmatprep.subr.mxu0 %v4544
    %v4546 = vand.u32 %v1321, 4294901760
    %4547 = vmatpush1.msra.mxu0 %v4546
    %4548 = vmatprep.subr.mxu0 0.0
    %4549 = vmatpush1.msra.mxu0 0.0
    %4550 = vmatprep.subr.mxu0 0.0
    %4551 = vmatpush1.msra.mxu0 0.0
    %4552 = vmatprep.subr.mxu0 0.0
    %4553 = vmatpush1.msra.mxu0 0.0
    %4554 = vmatprep.subr.mxu0 0.0
    %4555 = vmatpush1.msra.mxu0 0.0
    %4556 = vmatprep.subr.mxu0 0.0
    %4557 = vmatpush1.msra.mxu0 0.0
    %4558 = vmatprep.subr.mxu0 0.0
    %4559 = vmatpush1.msra.mxu0 0.0
    %4560 = vmatprep.subr.mxu0 0.0
    %4561 = vmatpush1.msra.mxu0 0.0
    %4562 = vmatprep.subr.mxu0 0.0
    %4563 = vmatpush1.msra.mxu0 0.0
    %4564 = vmatprep.subr.mxu0 0.0
    %4565 = vmatpush1.msra.mxu0 0.0
    %4566 = vmatprep.subr.mxu0 0.0
    %4567 = vmatpush1.msra.mxu0 0.0
    %4568 = vmatprep.subr.mxu0 0.0
    %4569 = vmatpush1.msra.mxu0 0.0
    %4570 = vmatprep.subr.mxu0 0.0
    %4571 = vmatpush1.msra.mxu0 0.0
    %4572 = vmatprep.subr.mxu0 0.0
    %4573 = vmatpush1.msra.mxu0 0.0
    %4574 = vmatprep.subr.mxu0 0.0
    %4575 = vmatpush1.msra.mxu0 0.0
    %4576 = vmatprep.subr.mxu0 0.0
    %4577 = vmatpush1.msra.mxu0 0.0
    %4578 = vmatprep.subr.mxu0 0.0
    %4579 = vmatpush1.msra.mxu0 0.0
    %4580 = vmatprep.mubr.f32.mxu0 0.0
    %v4581 = vand.u32 %v293, 4294901760
    %v4582 = vsub.f32 %v293, %v4581
    %v4583 = vand.u32 %v4582, 4294901760
    %v4584 = vsub.f32 %v4582, %v4583
    %v4585 = vand.u32 %v4584, 4294901760
    %4586 = vmatmul.mubr.f32.gmra.mrb[0].mxu0 %v4585
    %v4587 = vpop.f32.mrb[0].mxu0
    %v4588 = vadd.f32 0.0, %v4587
    %v4589 = vpop.f32.mrb[0].mxu0
    %v4590 = vadd.f32 0.0, %v4589
    %4591 = vmatprep.mubr.f32.mxu0 0.0
    %v4592 = vand.u32 %v294, 4294901760
    %v4593 = vsub.f32 %v294, %v4592
    %v4594 = vand.u32 %v4593, 4294901760
    %v4595 = vsub.f32 %v4593, %v4594
    %v4596 = vand.u32 %v4595, 4294901760
    %4597 = vmatmul.mubr.f32.gmra.mrb[0].mxu0 %v4596
    %v4598 = vpop.f32.mrb[0].mxu0
    %v4599 = vadd.f32 0.0, %v4598
    %v4600 = vpop.f32.mrb[0].mxu0
    %v4601 = vadd.f32 0.0, %v4600
    %4602 = vmatprep.mubr.f32.mxu0 0.0
    %v4603 = vand.u32 %v295, 4294901760
    %v4604 = vsub.f32 %v295, %v4603
    %v4605 = vand.u32 %v4604, 4294901760
    %v4606 = vsub.f32 %v4604, %v4605
    %v4607 = vand.u32 %v4606, 4294901760
    %4608 = vmatmul.mubr.f32.gmra.mrb[0].mxu0 %v4607
    %v4609 = vpop.f32.mrb[0].mxu0
    %v4610 = vadd.f32 0.0, %v4609
    %v4611 = vpop.f32.mrb[0].mxu0
    %v4612 = vadd.f32 0.0, %v4611
    %4613 = vmatprep.mubr.f32.mxu0 0.0
    %v4614 = vand.u32 %v296, 4294901760
    %v4615 = vsub.f32 %v296, %v4614
    %v4616 = vand.u32 %v4615, 4294901760
    %v4617 = vsub.f32 %v4615, %v4616
    %v4618 = vand.u32 %v4617, 4294901760
    %4619 = vmatmul.mubr.f32.gmra.mrb[0].mxu0 %v4618
    %v4620 = vpop.f32.mrb[0].mxu0
    %v4621 = vadd.f32 0.0, %v4620
    %v4622 = vpop.f32.mrb[0].mxu0
    %v4623 = vadd.f32 0.0, %v4622
    %4624 = vmatprep.mubr.f32.mxu0 0.0
    %v4625 = vand.u32 %v297, 4294901760
    %v4626 = vsub.f32 %v297, %v4625
    %v4627 = vand.u32 %v4626, 4294901760
    %v4628 = vsub.f32 %v4626, %v4627
    %v4629 = vand.u32 %v4628, 4294901760
    %4630 = vmatmul.mubr.f32.gmra.mrb[0].mxu0 %v4629
    %v4631 = vpop.f32.mrb[0].mxu0
    %v4632 = vadd.f32 0.0, %v4631
    %v4633 = vpop.f32.mrb[0].mxu0
    %v4634 = vadd.f32 0.0, %v4633
    %4635 = vdwg.mxu0
    %v4636 = vand.u32 %v698, 4294901760
    %v4637 = vsub.f32 %v698, %v4636
    %v4638 = vand.u32 %v4637, 4294901760
    %v4639 = vsub.f32 %v4637, %v4638
    %v4640 = vand.u32 %v4639, 4294901760
    %4641 = vmatprep.subr.mxu0 %v4640
    %v4642 = vand.u32 %v697, 4294901760
    %v4643 = vsub.f32 %v697, %v4642
    %v4644 = vand.u32 %v4643, 4294901760
    %v4645 = vsub.f32 %v4643, %v4644
    %v4646 = vand.u32 %v4645, 4294901760
    %4647 = vmatpush1.msra.mxu0 %v4646
    %v4648 = vand.u32 %v714, 4294901760
    %v4649 = vsub.f32 %v714, %v4648
    %v4650 = vand.u32 %v4649, 4294901760
    %v4651 = vsub.f32 %v4649, %v4650
    %v4652 = vand.u32 %v4651, 4294901760
    %4653 = vmatprep.subr.mxu0 %v4652
    %v4654 = vand.u32 %v713, 4294901760
    %v4655 = vsub.f32 %v713, %v4654
    %v4656 = vand.u32 %v4655, 4294901760
    %v4657 = vsub.f32 %v4655, %v4656
    %v4658 = vand.u32 %v4657, 4294901760
    %4659 = vmatpush1.msra.mxu0 %v4658
    %v4660 = vand.u32 %v730, 4294901760
    %v4661 = vsub.f32 %v730, %v4660
    %v4662 = vand.u32 %v4661, 4294901760
    %v4663 = vsub.f32 %v4661, %v4662
    %v4664 = vand.u32 %v4663, 4294901760
    %4665 = vmatprep.subr.mxu0 %v4664
    %v4666 = vand.u32 %v729, 4294901760
    %v4667 = vsub.f32 %v729, %v4666
    %v4668 = vand.u32 %v4667, 4294901760
    %v4669 = vsub.f32 %v4667, %v4668
    %v4670 = vand.u32 %v4669, 4294901760
    %4671 = vmatpush1.msra.mxu0 %v4670
    %v4672 = vand.u32 %v746, 4294901760
    %v4673 = vsub.f32 %v746, %v4672
    %v4674 = vand.u32 %v4673, 4294901760
    %v4675 = vsub.f32 %v4673, %v4674
    %v4676 = vand.u32 %v4675, 4294901760
    %4677 = vmatprep.subr.mxu0 %v4676
    %v4678 = vand.u32 %v745, 4294901760
    %v4679 = vsub.f32 %v745, %v4678
    %v4680 = vand.u32 %v4679, 4294901760
    %v4681 = vsub.f32 %v4679, %v4680
    %v4682 = vand.u32 %v4681, 4294901760
    %4683 = vmatpush1.msra.mxu0 %v4682
    %v4684 = vand.u32 %v762, 4294901760
    %v4685 = vsub.f32 %v762, %v4684
    %v4686 = vand.u32 %v4685, 4294901760
    %v4687 = vsub.f32 %v4685, %v4686
    %v4688 = vand.u32 %v4687, 4294901760
    %4689 = vmatprep.subr.mxu0 %v4688
    %v4690 = vand.u32 %v761, 4294901760
    %v4691 = vsub.f32 %v761, %v4690
    %v4692 = vand.u32 %v4691, 4294901760
    %v4693 = vsub.f32 %v4691, %v4692
    %v4694 = vand.u32 %v4693, 4294901760
    %4695 = vmatpush1.msra.mxu0 %v4694
    %v4696 = vand.u32 %v778, 4294901760
    %v4697 = vsub.f32 %v778, %v4696
    %v4698 = vand.u32 %v4697, 4294901760
    %v4699 = vsub.f32 %v4697, %v4698
    %v4700 = vand.u32 %v4699, 4294901760
    %4701 = vmatprep.subr.mxu0 %v4700
    %v4702 = vand.u32 %v777, 4294901760
    %v4703 = vsub.f32 %v777, %v4702
    %v4704 = vand.u32 %v4703, 4294901760
    %v4705 = vsub.f32 %v4703, %v4704
    %v4706 = vand.u32 %v4705, 4294901760
    %4707 = vmatpush1.msra.mxu0 %v4706
    %v4708 = vand.u32 %v794, 4294901760
    %v4709 = vsub.f32 %v794, %v4708
    %v4710 = vand.u32 %v4709, 4294901760
    %v4711 = vsub.f32 %v4709, %v4710
    %v4712 = vand.u32 %v4711, 4294901760
    %4713 = vmatprep.subr.mxu0 %v4712
    %v4714 = vand.u32 %v793, 4294901760
    %v4715 = vsub.f32 %v793, %v4714
    %v4716 = vand.u32 %v4715, 4294901760
    %v4717 = vsub.f32 %v4715, %v4716
    %v4718 = vand.u32 %v4717, 4294901760
    %4719 = vmatpush1.msra.mxu0 %v4718
    %v4720 = vand.u32 %v810, 4294901760
    %v4721 = vsub.f32 %v810, %v4720
    %v4722 = vand.u32 %v4721, 4294901760
    %v4723 = vsub.f32 %v4721, %v4722
    %v4724 = vand.u32 %v4723, 4294901760
    %4725 = vmatprep.subr.mxu0 %v4724
    %v4726 = vand.u32 %v809, 4294901760
    %v4727 = vsub.f32 %v809, %v4726
    %v4728 = vand.u32 %v4727, 4294901760
    %v4729 = vsub.f32 %v4727, %v4728
    %v4730 = vand.u32 %v4729, 4294901760
    %4731 = vmatpush1.msra.mxu0 %v4730
    %v4732 = vand.u32 %v1210, 4294901760
    %v4733 = vsub.f32 %v1210, %v4732
    %v4734 = vand.u32 %v4733, 4294901760
    %v4735 = vsub.f32 %v4733, %v4734
    %v4736 = vand.u32 %v4735, 4294901760
    %4737 = vmatprep.subr.mxu0 %v4736
    %v4738 = vand.u32 %v1209, 4294901760
    %v4739 = vsub.f32 %v1209, %v4738
    %v4740 = vand.u32 %v4739, 4294901760
    %v4741 = vsub.f32 %v4739, %v4740
    %v4742 = vand.u32 %v4741, 4294901760
    %4743 = vmatpush1.msra.mxu0 %v4742
    %v4744 = vand.u32 %v1226, 4294901760
    %v4745 = vsub.f32 %v1226, %v4744
    %v4746 = vand.u32 %v4745, 4294901760
    %v4747 = vsub.f32 %v4745, %v4746
    %v4748 = vand.u32 %v4747, 4294901760
    %4749 = vmatprep.subr.mxu0 %v4748
    %v4750 = vand.u32 %v1225, 4294901760
    %v4751 = vsub.f32 %v1225, %v4750
    %v4752 = vand.u32 %v4751, 4294901760
    %v4753 = vsub.f32 %v4751, %v4752
    %v4754 = vand.u32 %v4753, 4294901760
    %4755 = vmatpush1.msra.mxu0 %v4754
    %v4756 = vand.u32 %v1242, 4294901760
    %v4757 = vsub.f32 %v1242, %v4756
    %v4758 = vand.u32 %v4757, 4294901760
    %v4759 = vsub.f32 %v4757, %v4758
    %v4760 = vand.u32 %v4759, 4294901760
    %4761 = vmatprep.subr.mxu0 %v4760
    %v4762 = vand.u32 %v1241, 4294901760
    %v4763 = vsub.f32 %v1241, %v4762
    %v4764 = vand.u32 %v4763, 4294901760
    %v4765 = vsub.f32 %v4763, %v4764
    %v4766 = vand.u32 %v4765, 4294901760
    %4767 = vmatpush1.msra.mxu0 %v4766
    %v4768 = vand.u32 %v1258, 4294901760
    %v4769 = vsub.f32 %v1258, %v4768
    %v4770 = vand.u32 %v4769, 4294901760
    %v4771 = vsub.f32 %v4769, %v4770
    %v4772 = vand.u32 %v4771, 4294901760
    %4773 = vmatprep.subr.mxu0 %v4772
    %v4774 = vand.u32 %v1257, 4294901760
    %v4775 = vsub.f32 %v1257, %v4774
    %v4776 = vand.u32 %v4775, 4294901760
    %v4777 = vsub.f32 %v4775, %v4776
    %v4778 = vand.u32 %v4777, 4294901760
    %4779 = vmatpush1.msra.mxu0 %v4778
    %v4780 = vand.u32 %v1274, 4294901760
    %v4781 = vsub.f32 %v1274, %v4780
    %v4782 = vand.u32 %v4781, 4294901760
    %v4783 = vsub.f32 %v4781, %v4782
    %v4784 = vand.u32 %v4783, 4294901760
    %4785 = vmatprep.subr.mxu0 %v4784
    %v4786 = vand.u32 %v1273, 4294901760
    %v4787 = vsub.f32 %v1273, %v4786
    %v4788 = vand.u32 %v4787, 4294901760
    %v4789 = vsub.f32 %v4787, %v4788
    %v4790 = vand.u32 %v4789, 4294901760
    %4791 = vmatpush1.msra.mxu0 %v4790
    %v4792 = vand.u32 %v1290, 4294901760
    %v4793 = vsub.f32 %v1290, %v4792
    %v4794 = vand.u32 %v4793, 4294901760
    %v4795 = vsub.f32 %v4793, %v4794
    %v4796 = vand.u32 %v4795, 4294901760
    %4797 = vmatprep.subr.mxu0 %v4796
    %v4798 = vand.u32 %v1289, 4294901760
    %v4799 = vsub.f32 %v1289, %v4798
    %v4800 = vand.u32 %v4799, 4294901760
    %v4801 = vsub.f32 %v4799, %v4800
    %v4802 = vand.u32 %v4801, 4294901760
    %4803 = vmatpush1.msra.mxu0 %v4802
    %v4804 = vand.u32 %v1306, 4294901760
    %v4805 = vsub.f32 %v1306, %v4804
    %v4806 = vand.u32 %v4805, 4294901760
    %v4807 = vsub.f32 %v4805, %v4806
    %v4808 = vand.u32 %v4807, 4294901760
    %4809 = vmatprep.subr.mxu0 %v4808
    %v4810 = vand.u32 %v1305, 4294901760
    %v4811 = vsub.f32 %v1305, %v4810
    %v4812 = vand.u32 %v4811, 4294901760
    %v4813 = vsub.f32 %v4811, %v4812
    %v4814 = vand.u32 %v4813, 4294901760
    %4815 = vmatpush1.msra.mxu0 %v4814
    %v4816 = vand.u32 %v1322, 4294901760
    %v4817 = vsub.f32 %v1322, %v4816
    %v4818 = vand.u32 %v4817, 4294901760
    %v4819 = vsub.f32 %v4817, %v4818
    %v4820 = vand.u32 %v4819, 4294901760
    %4821 = vmatprep.subr.mxu0 %v4820
    %v4822 = vand.u32 %v1321, 4294901760
    %v4823 = vsub.f32 %v1321, %v4822
    %v4824 = vand.u32 %v4823, 4294901760
    %v4825 = vsub.f32 %v4823, %v4824
    %v4826 = vand.u32 %v4825, 4294901760
    %4827 = vmatpush1.msra.mxu0 %v4826
    %4828 = vmatprep.subr.mxu0 0.0
    %4829 = vmatpush1.msra.mxu0 0.0
    %4830 = vmatprep.subr.mxu0 0.0
    %4831 = vmatpush1.msra.mxu0 0.0
    %4832 = vmatprep.subr.mxu0 0.0
    %4833 = vmatpush1.msra.mxu0 0.0
    %4834 = vmatprep.subr.mxu0 0.0
    %4835 = vmatpush1.msra.mxu0 0.0
    %4836 = vmatprep.subr.mxu0 0.0
    %4837 = vmatpush1.msra.mxu0 0.0
    %4838 = vmatprep.subr.mxu0 0.0
    %4839 = vmatpush1.msra.mxu0 0.0
    %4840 = vmatprep.subr.mxu0 0.0
    %4841 = vmatpush1.msra.mxu0 0.0
    %4842 = vmatprep.subr.mxu0 0.0
    %4843 = vmatpush1.msra.mxu0 0.0
    %4844 = vmatprep.subr.mxu0 0.0
    %4845 = vmatpush1.msra.mxu0 0.0
    %4846 = vmatprep.subr.mxu0 0.0
    %4847 = vmatpush1.msra.mxu0 0.0
    %4848 = vmatprep.subr.mxu0 0.0
    %4849 = vmatpush1.msra.mxu0 0.0
    %4850 = vmatprep.subr.mxu0 0.0
    %4851 = vmatpush1.msra.mxu0 0.0
    %4852 = vmatprep.subr.mxu0 0.0
    %4853 = vmatpush1.msra.mxu0 0.0
    %4854 = vmatprep.subr.mxu0 0.0
    %4855 = vmatpush1.msra.mxu0 0.0
    %4856 = vmatprep.subr.mxu0 0.0
    %4857 = vmatpush1.msra.mxu0 0.0
    %4858 = vmatprep.subr.mxu0 0.0
    %4859 = vmatpush1.msra.mxu0 0.0
    %4860 = vmatprep.mubr.f32.mxu0 0.0
    %v4861 = vand.u32 %v293, 4294901760
    %4862 = vmatmul.mubr.f32.gmra.mrb[0].mxu0 %v4861
    %v4863 = vpop.f32.mrb[0].mxu0
    %v4864 = vadd.f32 %v4588, %v4863
    %v4865 = vpop.f32.mrb[0].mxu0
    %v4866 = vadd.f32 %v4590, %v4865
    %4867 = vmatprep.mubr.f32.mxu0 0.0
    %v4868 = vand.u32 %v294, 4294901760
    %4869 = vmatmul.mubr.f32.gmra.mrb[0].mxu0 %v4868
    %v4870 = vpop.f32.mrb[0].mxu0
    %v4871 = vadd.f32 %v4599, %v4870
    %v4872 = vpop.f32.mrb[0].mxu0
    %v4873 = vadd.f32 %v4601, %v4872
    %4874 = vmatprep.mubr.f32.mxu0 0.0
    %v4875 = vand.u32 %v295, 4294901760
    %4876 = vmatmul.mubr.f32.gmra.mrb[0].mxu0 %v4875
    %v4877 = vpop.f32.mrb[0].mxu0
    %v4878 = vadd.f32 %v4610, %v4877
    %v4879 = vpop.f32.mrb[0].mxu0
    %v4880 = vadd.f32 %v4612, %v4879
    %4881 = vmatprep.mubr.f32.mxu0 0.0
    %v4882 = vand.u32 %v296, 4294901760
    %4883 = vmatmul.mubr.f32.gmra.mrb[0].mxu0 %v4882
    %v4884 = vpop.f32.mrb[0].mxu0
    %v4885 = vadd.f32 %v4621, %v4884
    %v4886 = vpop.f32.mrb[0].mxu0
    %v4887 = vadd.f32 %v4623, %v4886
    %4888 = vmatprep.mubr.f32.mxu0 0.0
    %v4889 = vand.u32 %v297, 4294901760
    %4890 = vmatmul.mubr.f32.gmra.mrb[0].mxu0 %v4889
    %v4891 = vpop.f32.mrb[0].mxu0
    %v4892 = vadd.f32 %v4632, %v4891
    %v4893 = vpop.f32.mrb[0].mxu0
    %v4894 = vadd.f32 %v4634, %v4893
    %4895 = vdwg.mxu0
    %v4896 = vand.u32 %v698, 4294901760
    %v4897 = vsub.f32 %v698, %v4896
    %4898 = vmatprep.subr.mxu0 %v4897
    %v4899 = vand.u32 %v697, 4294901760
    %v4900 = vsub.f32 %v697, %v4899
    %4901 = vmatpush1.msra.mxu0 %v4900
    %v4902 = vand.u32 %v714, 4294901760
    %v4903 = vsub.f32 %v714, %v4902
    %4904 = vmatprep.subr.mxu0 %v4903
    %v4905 = vand.u32 %v713, 4294901760
    %v4906 = vsub.f32 %v713, %v4905
    %4907 = vmatpush1.msra.mxu0 %v4906
    %v4908 = vand.u32 %v730, 4294901760
    %v4909 = vsub.f32 %v730, %v4908
    %4910 = vmatprep.subr.mxu0 %v4909
    %v4911 = vand.u32 %v729, 4294901760
    %v4912 = vsub.f32 %v729, %v4911
    %4913 = vmatpush1.msra.mxu0 %v4912
    %v4914 = vand.u32 %v746, 4294901760
    %v4915 = vsub.f32 %v746, %v4914
    %4916 = vmatprep.subr.mxu0 %v4915
    %v4917 = vand.u32 %v745, 4294901760
    %v4918 = vsub.f32 %v745, %v4917
    %4919 = vmatpush1.msra.mxu0 %v4918
    %v4920 = vand.u32 %v762, 4294901760
    %v4921 = vsub.f32 %v762, %v4920
    %4922 = vmatprep.subr.mxu0 %v4921
    %v4923 = vand.u32 %v761, 4294901760
    %v4924 = vsub.f32 %v761, %v4923
    %4925 = vmatpush1.msra.mxu0 %v4924
    %v4926 = vand.u32 %v778, 4294901760
    %v4927 = vsub.f32 %v778, %v4926
    %4928 = vmatprep.subr.mxu0 %v4927
    %v4929 = vand.u32 %v777, 4294901760
    %v4930 = vsub.f32 %v777, %v4929
    %4931 = vmatpush1.msra.mxu0 %v4930
    %v4932 = vand.u32 %v794, 4294901760
    %v4933 = vsub.f32 %v794, %v4932
    %4934 = vmatprep.subr.mxu0 %v4933
    %v4935 = vand.u32 %v793, 4294901760
    %v4936 = vsub.f32 %v793, %v4935
    %4937 = vmatpush1.msra.mxu0 %v4936
    %v4938 = vand.u32 %v810, 4294901760
    %v4939 = vsub.f32 %v810, %v4938
    %4940 = vmatprep.subr.mxu0 %v4939
    %v4941 = vand.u32 %v809, 4294901760
    %v4942 = vsub.f32 %v809, %v4941
    %4943 = vmatpush1.msra.mxu0 %v4942
    %v4944 = vand.u32 %v1210, 4294901760
    %v4945 = vsub.f32 %v1210, %v4944
    %4946 = vmatprep.subr.mxu0 %v4945
    %v4947 = vand.u32 %v1209, 4294901760
    %v4948 = vsub.f32 %v1209, %v4947
    %4949 = vmatpush1.msra.mxu0 %v4948
    %v4950 = vand.u32 %v1226, 4294901760
    %v4951 = vsub.f32 %v1226, %v4950
    %4952 = vmatprep.subr.mxu0 %v4951
    %v4953 = vand.u32 %v1225, 4294901760
    %v4954 = vsub.f32 %v1225, %v4953
    %4955 = vmatpush1.msra.mxu0 %v4954
    %v4956 = vand.u32 %v1242, 4294901760
    %v4957 = vsub.f32 %v1242, %v4956
    %4958 = vmatprep.subr.mxu0 %v4957
    %v4959 = vand.u32 %v1241, 4294901760
    %v4960 = vsub.f32 %v1241, %v4959
    %4961 = vmatpush1.msra.mxu0 %v4960
    %v4962 = vand.u32 %v1258, 4294901760
    %v4963 = vsub.f32 %v1258, %v4962
    %4964 = vmatprep.subr.mxu0 %v4963
    %v4965 = vand.u32 %v1257, 4294901760
    %v4966 = vsub.f32 %v1257, %v4965
    %4967 = vmatpush1.msra.mxu0 %v4966
    %v4968 = vand.u32 %v1274, 4294901760
    %v4969 = vsub.f32 %v1274, %v4968
    %4970 = vmatprep.subr.mxu0 %v4969
    %v4971 = vand.u32 %v1273, 4294901760
    %v4972 = vsub.f32 %v1273, %v4971
    %4973 = vmatpush1.msra.mxu0 %v4972
    %v4974 = vand.u32 %v1290, 4294901760
    %v4975 = vsub.f32 %v1290, %v4974
    %4976 = vmatprep.subr.mxu0 %v4975
    %v4977 = vand.u32 %v1289, 4294901760
    %v4978 = vsub.f32 %v1289, %v4977
    %4979 = vmatpush1.msra.mxu0 %v4978
    %v4980 = vand.u32 %v1306, 4294901760
    %v4981 = vsub.f32 %v1306, %v4980
    %4982 = vmatprep.subr.mxu0 %v4981
    %v4983 = vand.u32 %v1305, 4294901760
    %v4984 = vsub.f32 %v1305, %v4983
    %4985 = vmatpush1.msra.mxu0 %v4984
    %v4986 = vand.u32 %v1322, 4294901760
    %v4987 = vsub.f32 %v1322, %v4986
    %4988 = vmatprep.subr.mxu0 %v4987
    %v4989 = vand.u32 %v1321, 4294901760
    %v4990 = vsub.f32 %v1321, %v4989
    %4991 = vmatpush1.msra.mxu0 %v4990
    %4992 = vmatprep.subr.mxu0 0.0
    %4993 = vmatpush1.msra.mxu0 0.0
    %4994 = vmatprep.subr.mxu0 0.0
    %4995 = vmatpush1.msra.mxu0 0.0
    %4996 = vmatprep.subr.mxu0 0.0
    %4997 = vmatpush1.msra.mxu0 0.0
    %4998 = vmatprep.subr.mxu0 0.0
    %4999 = vmatpush1.msra.mxu0 0.0
    %5000 = vmatprep.subr.mxu0 0.0
    %5001 = vmatpush1.msra.mxu0 0.0
    %5002 = vmatprep.subr.mxu0 0.0
    %5003 = vmatpush1.msra.mxu0 0.0
    %5004 = vmatprep.subr.mxu0 0.0
    %5005 = vmatpush1.msra.mxu0 0.0
    %5006 = vmatprep.subr.mxu0 0.0
    %5007 = vmatpush1.msra.mxu0 0.0
    %5008 = vmatprep.subr.mxu0 0.0
    %5009 = vmatpush1.msra.mxu0 0.0
    %5010 = vmatprep.subr.mxu0 0.0
    %5011 = vmatpush1.msra.mxu0 0.0
    %5012 = vmatprep.subr.mxu0 0.0
    %5013 = vmatpush1.msra.mxu0 0.0
    %5014 = vmatprep.subr.mxu0 0.0
    %5015 = vmatpush1.msra.mxu0 0.0
    %5016 = vmatprep.subr.mxu0 0.0
    %5017 = vmatpush1.msra.mxu0 0.0
    %5018 = vmatprep.subr.mxu0 0.0
    %5019 = vmatpush1.msra.mxu0 0.0
    %5020 = vmatprep.subr.mxu0 0.0
    %5021 = vmatpush1.msra.mxu0 0.0
    %5022 = vmatprep.subr.mxu0 0.0
    %5023 = vmatpush1.msra.mxu0 0.0
    %5024 = vmatprep.mubr.f32.mxu0 0.0
    %v5025 = vand.u32 %v293, 4294901760
    %v5026 = vsub.f32 %v293, %v5025
    %5027 = vmatmul.mubr.f32.gmra.mrb[0].mxu0 %v5026
    %v5028 = vpop.f32.mrb[0].mxu0
    %v5029 = vadd.f32 %v4864, %v5028
    %v5030 = vpop.f32.mrb[0].mxu0
    %v5031 = vadd.f32 %v4866, %v5030
    %5032 = vmatprep.mubr.f32.mxu0 0.0
    %v5033 = vand.u32 %v294, 4294901760
    %v5034 = vsub.f32 %v294, %v5033
    %5035 = vmatmul.mubr.f32.gmra.mrb[0].mxu0 %v5034
    %v5036 = vpop.f32.mrb[0].mxu0
    %v5037 = vadd.f32 %v4871, %v5036
    %v5038 = vpop.f32.mrb[0].mxu0
    %v5039 = vadd.f32 %v4873, %v5038
    %5040 = vmatprep.mubr.f32.mxu0 0.0
    %v5041 = vand.u32 %v295, 4294901760
    %v5042 = vsub.f32 %v295, %v5041
    %5043 = vmatmul.mubr.f32.gmra.mrb[0].mxu0 %v5042
    %v5044 = vpop.f32.mrb[0].mxu0
    %v5045 = vadd.f32 %v4878, %v5044
    %v5046 = vpop.f32.mrb[0].mxu0
    %v5047 = vadd.f32 %v4880, %v5046
    %5048 = vmatprep.mubr.f32.mxu0 0.0
    %v5049 = vand.u32 %v296, 4294901760
    %v5050 = vsub.f32 %v296, %v5049
    %5051 = vmatmul.mubr.f32.gmra.mrb[0].mxu0 %v5050
    %v5052 = vpop.f32.mrb[0].mxu0
    %v5053 = vadd.f32 %v4885, %v5052
    %v5054 = vpop.f32.mrb[0].mxu0
    %v5055 = vadd.f32 %v4887, %v5054
    %5056 = vmatprep.mubr.f32.mxu0 0.0
    %v5057 = vand.u32 %v297, 4294901760
    %v5058 = vsub.f32 %v297, %v5057
    %5059 = vmatmul.mubr.f32.gmra.mrb[0].mxu0 %v5058
    %v5060 = vpop.f32.mrb[0].mxu0
    %v5061 = vadd.f32 %v4892, %v5060
    %v5062 = vpop.f32.mrb[0].mxu0
    %v5063 = vadd.f32 %v4894, %v5062
    %5064 = vdwg.mxu0
    %v5065 = vand.u32 %v698, 4294901760
    %5066 = vmatprep.subr.mxu0 %v5065
    %v5067 = vand.u32 %v697, 4294901760
    %5068 = vmatpush1.msra.mxu0 %v5067
    %v5069 = vand.u32 %v714, 4294901760
    %5070 = vmatprep.subr.mxu0 %v5069
    %v5071 = vand.u32 %v713, 4294901760
    %5072 = vmatpush1.msra.mxu0 %v5071
    %v5073 = vand.u32 %v730, 4294901760
    %5074 = vmatprep.subr.mxu0 %v5073
    %v5075 = vand.u32 %v729, 4294901760
    %5076 = vmatpush1.msra.mxu0 %v5075
    %v5077 = vand.u32 %v746, 4294901760
    %5078 = vmatprep.subr.mxu0 %v5077
    %v5079 = vand.u32 %v745, 4294901760
    %5080 = vmatpush1.msra.mxu0 %v5079
    %v5081 = vand.u32 %v762, 4294901760
    %5082 = vmatprep.subr.mxu0 %v5081
    %v5083 = vand.u32 %v761, 4294901760
    %5084 = vmatpush1.msra.mxu0 %v5083
    %v5085 = vand.u32 %v778, 4294901760
    %5086 = vmatprep.subr.mxu0 %v5085
    %v5087 = vand.u32 %v777, 4294901760
    %5088 = vmatpush1.msra.mxu0 %v5087
    %v5089 = vand.u32 %v794, 4294901760
    %5090 = vmatprep.subr.mxu0 %v5089
    %v5091 = vand.u32 %v793, 4294901760
    %5092 = vmatpush1.msra.mxu0 %v5091
    %v5093 = vand.u32 %v810, 4294901760
    %5094 = vmatprep.subr.mxu0 %v5093
    %v5095 = vand.u32 %v809, 4294901760
    %5096 = vmatpush1.msra.mxu0 %v5095
    %v5097 = vand.u32 %v1210, 4294901760
    %5098 = vmatprep.subr.mxu0 %v5097
    %v5099 = vand.u32 %v1209, 4294901760
    %5100 = vmatpush1.msra.mxu0 %v5099
    %v5101 = vand.u32 %v1226, 4294901760
    %5102 = vmatprep.subr.mxu0 %v5101
    %v5103 = vand.u32 %v1225, 4294901760
    %5104 = vmatpush1.msra.mxu0 %v5103
    %v5105 = vand.u32 %v1242, 4294901760
    %5106 = vmatprep.subr.mxu0 %v5105
    %v5107 = vand.u32 %v1241, 4294901760
    %5108 = vmatpush1.msra.mxu0 %v5107
    %v5109 = vand.u32 %v1258, 4294901760
    %5110 = vmatprep.subr.mxu0 %v5109
    %v5111 = vand.u32 %v1257, 4294901760
    %5112 = vmatpush1.msra.mxu0 %v5111
    %v5113 = vand.u32 %v1274, 4294901760
    %5114 = vmatprep.subr.mxu0 %v5113
    %v5115 = vand.u32 %v1273, 4294901760
    %5116 = vmatpush1.msra.mxu0 %v5115
    %v5117 = vand.u32 %v1290, 4294901760
    %5118 = vmatprep.subr.mxu0 %v5117
    %v5119 = vand.u32 %v1289, 4294901760
    %5120 = vmatpush1.msra.mxu0 %v5119
    %v5121 = vand.u32 %v1306, 4294901760
    %5122 = vmatprep.subr.mxu0 %v5121
    %v5123 = vand.u32 %v1305, 4294901760
    %5124 = vmatpush1.msra.mxu0 %v5123
    %v5125 = vand.u32 %v1322, 4294901760
    %5126 = vmatprep.subr.mxu0 %v5125
    %v5127 = vand.u32 %v1321, 4294901760
    %5128 = vmatpush1.msra.mxu0 %v5127
    %5129 = vmatprep.subr.mxu0 0.0
    %5130 = vmatpush1.msra.mxu0 0.0
    %5131 = vmatprep.subr.mxu0 0.0
    %5132 = vmatpush1.msra.mxu0 0.0
    %5133 = vmatprep.subr.mxu0 0.0
    %5134 = vmatpush1.msra.mxu0 0.0
    %5135 = vmatprep.subr.mxu0 0.0
    %5136 = vmatpush1.msra.mxu0 0.0
    %5137 = vmatprep.subr.mxu0 0.0
    %5138 = vmatpush1.msra.mxu0 0.0
    %5139 = vmatprep.subr.mxu0 0.0
    %5140 = vmatpush1.msra.mxu0 0.0
    %5141 = vmatprep.subr.mxu0 0.0
    %5142 = vmatpush1.msra.mxu0 0.0
    %5143 = vmatprep.subr.mxu0 0.0
    %5144 = vmatpush1.msra.mxu0 0.0
    %5145 = vmatprep.subr.mxu0 0.0
    %5146 = vmatpush1.msra.mxu0 0.0
    %5147 = vmatprep.subr.mxu0 0.0
    %5148 = vmatpush1.msra.mxu0 0.0
    %5149 = vmatprep.subr.mxu0 0.0
    %5150 = vmatpush1.msra.mxu0 0.0
    %5151 = vmatprep.subr.mxu0 0.0
    %5152 = vmatpush1.msra.mxu0 0.0
    %5153 = vmatprep.subr.mxu0 0.0
    %5154 = vmatpush1.msra.mxu0 0.0
    %5155 = vmatprep.subr.mxu0 0.0
    %5156 = vmatpush1.msra.mxu0 0.0
    %5157 = vmatprep.subr.mxu0 0.0
    %5158 = vmatpush1.msra.mxu0 0.0
    %5159 = vmatprep.subr.mxu0 0.0
    %5160 = vmatpush1.msra.mxu0 0.0
    %5161 = vmatprep.mubr.f32.mxu0 0.0
    %v5162 = vand.u32 %v293, 4294901760
    %v5163 = vsub.f32 %v293, %v5162
    %v5164 = vand.u32 %v5163, 4294901760
    %5165 = vmatmul.mubr.f32.gmra.mrb[0].mxu0 %v5164
    %v5166 = vpop.f32.mrb[0].mxu0
    %v5167 = vadd.f32 %v5029, %v5166
    %v5168 = vpop.f32.mrb[0].mxu0
    %v5169 = vadd.f32 %v5031, %v5168
    %5170 = vmatprep.mubr.f32.mxu0 0.0
    %v5171 = vand.u32 %v294, 4294901760
    %v5172 = vsub.f32 %v294, %v5171
    %v5173 = vand.u32 %v5172, 4294901760
    %5174 = vmatmul.mubr.f32.gmra.mrb[0].mxu0 %v5173
    %v5175 = vpop.f32.mrb[0].mxu0
    %v5176 = vadd.f32 %v5037, %v5175
    %v5177 = vpop.f32.mrb[0].mxu0
    %v5178 = vadd.f32 %v5039, %v5177
    %5179 = vmatprep.mubr.f32.mxu0 0.0
    %v5180 = vand.u32 %v295, 4294901760
    %v5181 = vsub.f32 %v295, %v5180
    %v5182 = vand.u32 %v5181, 4294901760
    %5183 = vmatmul.mubr.f32.gmra.mrb[0].mxu0 %v5182
    %v5184 = vpop.f32.mrb[0].mxu0
    %v5185 = vadd.f32 %v5045, %v5184
    %v5186 = vpop.f32.mrb[0].mxu0
    %v5187 = vadd.f32 %v5047, %v5186
    %5188 = vmatprep.mubr.f32.mxu0 0.0
    %v5189 = vand.u32 %v296, 4294901760
    %v5190 = vsub.f32 %v296, %v5189
    %v5191 = vand.u32 %v5190, 4294901760
    %5192 = vmatmul.mubr.f32.gmra.mrb[0].mxu0 %v5191
    %v5193 = vpop.f32.mrb[0].mxu0
    %v5194 = vadd.f32 %v5053, %v5193
    %v5195 = vpop.f32.mrb[0].mxu0
    %v5196 = vadd.f32 %v5055, %v5195
    %5197 = vmatprep.mubr.f32.mxu0 0.0
    %v5198 = vand.u32 %v297, 4294901760
    %v5199 = vsub.f32 %v297, %v5198
    %v5200 = vand.u32 %v5199, 4294901760
    %5201 = vmatmul.mubr.f32.gmra.mrb[0].mxu0 %v5200
    %v5202 = vpop.f32.mrb[0].mxu0
    %v5203 = vadd.f32 %v5061, %v5202
    %v5204 = vpop.f32.mrb[0].mxu0
    %v5205 = vadd.f32 %v5063, %v5204
    %5206 = vdwg.mxu0
    %v5207 = vand.u32 %v698, 4294901760
    %v5208 = vsub.f32 %v698, %v5207
    %v5209 = vand.u32 %v5208, 4294901760
    %5210 = vmatprep.subr.mxu0 %v5209
    %v5211 = vand.u32 %v697, 4294901760
    %v5212 = vsub.f32 %v697, %v5211
    %v5213 = vand.u32 %v5212, 4294901760
    %5214 = vmatpush1.msra.mxu0 %v5213
    %v5215 = vand.u32 %v714, 4294901760
    %v5216 = vsub.f32 %v714, %v5215
    %v5217 = vand.u32 %v5216, 4294901760
    %5218 = vmatprep.subr.mxu0 %v5217
    %v5219 = vand.u32 %v713, 4294901760
    %v5220 = vsub.f32 %v713, %v5219
    %v5221 = vand.u32 %v5220, 4294901760
    %5222 = vmatpush1.msra.mxu0 %v5221
    %v5223 = vand.u32 %v730, 4294901760
    %v5224 = vsub.f32 %v730, %v5223
    %v5225 = vand.u32 %v5224, 4294901760
    %5226 = vmatprep.subr.mxu0 %v5225
    %v5227 = vand.u32 %v729, 4294901760
    %v5228 = vsub.f32 %v729, %v5227
    %v5229 = vand.u32 %v5228, 4294901760
    %5230 = vmatpush1.msra.mxu0 %v5229
    %v5231 = vand.u32 %v746, 4294901760
    %v5232 = vsub.f32 %v746, %v5231
    %v5233 = vand.u32 %v5232, 4294901760
    %5234 = vmatprep.subr.mxu0 %v5233
    %v5235 = vand.u32 %v745, 4294901760
    %v5236 = vsub.f32 %v745, %v5235
    %v5237 = vand.u32 %v5236, 4294901760
    %5238 = vmatpush1.msra.mxu0 %v5237
    %v5239 = vand.u32 %v762, 4294901760
    %v5240 = vsub.f32 %v762, %v5239
    %v5241 = vand.u32 %v5240, 4294901760
    %5242 = vmatprep.subr.mxu0 %v5241
    %v5243 = vand.u32 %v761, 4294901760
    %v5244 = vsub.f32 %v761, %v5243
    %v5245 = vand.u32 %v5244, 4294901760
    %5246 = vmatpush1.msra.mxu0 %v5245
    %v5247 = vand.u32 %v778, 4294901760
    %v5248 = vsub.f32 %v778, %v5247
    %v5249 = vand.u32 %v5248, 4294901760
    %5250 = vmatprep.subr.mxu0 %v5249
    %v5251 = vand.u32 %v777, 4294901760
    %v5252 = vsub.f32 %v777, %v5251
    %v5253 = vand.u32 %v5252, 4294901760
    %5254 = vmatpush1.msra.mxu0 %v5253
    %v5255 = vand.u32 %v794, 4294901760
    %v5256 = vsub.f32 %v794, %v5255
    %v5257 = vand.u32 %v5256, 4294901760
    %5258 = vmatprep.subr.mxu0 %v5257
    %v5259 = vand.u32 %v793, 4294901760
    %v5260 = vsub.f32 %v793, %v5259
    %v5261 = vand.u32 %v5260, 4294901760
    %5262 = vmatpush1.msra.mxu0 %v5261
    %v5263 = vand.u32 %v810, 4294901760
    %v5264 = vsub.f32 %v810, %v5263
    %v5265 = vand.u32 %v5264, 4294901760
    %5266 = vmatprep.subr.mxu0 %v5265
    %v5267 = vand.u32 %v809, 4294901760
    %v5268 = vsub.f32 %v809, %v5267
    %v5269 = vand.u32 %v5268, 4294901760
    %5270 = vmatpush1.msra.mxu0 %v5269
    %v5271 = vand.u32 %v1210, 4294901760
    %v5272 = vsub.f32 %v1210, %v5271
    %v5273 = vand.u32 %v5272, 4294901760
    %5274 = vmatprep.subr.mxu0 %v5273
    %v5275 = vand.u32 %v1209, 4294901760
    %v5276 = vsub.f32 %v1209, %v5275
    %v5277 = vand.u32 %v5276, 4294901760
    %5278 = vmatpush1.msra.mxu0 %v5277
    %v5279 = vand.u32 %v1226, 4294901760
    %v5280 = vsub.f32 %v1226, %v5279
    %v5281 = vand.u32 %v5280, 4294901760
    %5282 = vmatprep.subr.mxu0 %v5281
    %v5283 = vand.u32 %v1225, 4294901760
    %v5284 = vsub.f32 %v1225, %v5283
    %v5285 = vand.u32 %v5284, 4294901760
    %5286 = vmatpush1.msra.mxu0 %v5285
    %v5287 = vand.u32 %v1242, 4294901760
    %v5288 = vsub.f32 %v1242, %v5287
    %v5289 = vand.u32 %v5288, 4294901760
    %5290 = vmatprep.subr.mxu0 %v5289
    %v5291 = vand.u32 %v1241, 4294901760
    %v5292 = vsub.f32 %v1241, %v5291
    %v5293 = vand.u32 %v5292, 4294901760
    %5294 = vmatpush1.msra.mxu0 %v5293
    %v5295 = vand.u32 %v1258, 4294901760
    %v5296 = vsub.f32 %v1258, %v5295
    %v5297 = vand.u32 %v5296, 4294901760
    %5298 = vmatprep.subr.mxu0 %v5297
    %v5299 = vand.u32 %v1257, 4294901760
    %v5300 = vsub.f32 %v1257, %v5299
    %v5301 = vand.u32 %v5300, 4294901760
    %5302 = vmatpush1.msra.mxu0 %v5301
    %v5303 = vand.u32 %v1274, 4294901760
    %v5304 = vsub.f32 %v1274, %v5303
    %v5305 = vand.u32 %v5304, 4294901760
    %5306 = vmatprep.subr.mxu0 %v5305
    %v5307 = vand.u32 %v1273, 4294901760
    %v5308 = vsub.f32 %v1273, %v5307
    %v5309 = vand.u32 %v5308, 4294901760
    %5310 = vmatpush1.msra.mxu0 %v5309
    %v5311 = vand.u32 %v1290, 4294901760
    %v5312 = vsub.f32 %v1290, %v5311
    %v5313 = vand.u32 %v5312, 4294901760
    %5314 = vmatprep.subr.mxu0 %v5313
    %v5315 = vand.u32 %v1289, 4294901760
    %v5316 = vsub.f32 %v1289, %v5315
    %v5317 = vand.u32 %v5316, 4294901760
    %5318 = vmatpush1.msra.mxu0 %v5317
    %v5319 = vand.u32 %v1306, 4294901760
    %v5320 = vsub.f32 %v1306, %v5319
    %v5321 = vand.u32 %v5320, 4294901760
    %5322 = vmatprep.subr.mxu0 %v5321
    %v5323 = vand.u32 %v1305, 4294901760
    %v5324 = vsub.f32 %v1305, %v5323
    %v5325 = vand.u32 %v5324, 4294901760
    %5326 = vmatpush1.msra.mxu0 %v5325
    %v5327 = vand.u32 %v1322, 4294901760
    %v5328 = vsub.f32 %v1322, %v5327
    %v5329 = vand.u32 %v5328, 4294901760
    %5330 = vmatprep.subr.mxu0 %v5329
    %v5331 = vand.u32 %v1321, 4294901760
    %v5332 = vsub.f32 %v1321, %v5331
    %v5333 = vand.u32 %v5332, 4294901760
    %5334 = vmatpush1.msra.mxu0 %v5333
    %5335 = vmatprep.subr.mxu0 0.0
    %5336 = vmatpush1.msra.mxu0 0.0
    %5337 = vmatprep.subr.mxu0 0.0
    %5338 = vmatpush1.msra.mxu0 0.0
    %5339 = vmatprep.subr.mxu0 0.0
    %5340 = vmatpush1.msra.mxu0 0.0
    %5341 = vmatprep.subr.mxu0 0.0
    %5342 = vmatpush1.msra.mxu0 0.0
    %5343 = vmatprep.subr.mxu0 0.0
    %5344 = vmatpush1.msra.mxu0 0.0
    %5345 = vmatprep.subr.mxu0 0.0
    %5346 = vmatpush1.msra.mxu0 0.0
    %5347 = vmatprep.subr.mxu0 0.0
    %5348 = vmatpush1.msra.mxu0 0.0
    %5349 = vmatprep.subr.mxu0 0.0
    %5350 = vmatpush1.msra.mxu0 0.0
    %5351 = vmatprep.subr.mxu0 0.0
    %5352 = vmatpush1.msra.mxu0 0.0
    %5353 = vmatprep.subr.mxu0 0.0
    %5354 = vmatpush1.msra.mxu0 0.0
    %5355 = vmatprep.subr.mxu0 0.0
    %5356 = vmatpush1.msra.mxu0 0.0
    %5357 = vmatprep.subr.mxu0 0.0
    %5358 = vmatpush1.msra.mxu0 0.0
    %5359 = vmatprep.subr.mxu0 0.0
    %5360 = vmatpush1.msra.mxu0 0.0
    %5361 = vmatprep.subr.mxu0 0.0
    %5362 = vmatpush1.msra.mxu0 0.0
    %5363 = vmatprep.subr.mxu0 0.0
    %5364 = vmatpush1.msra.mxu0 0.0
    %5365 = vmatprep.subr.mxu0 0.0
    %5366 = vmatpush1.msra.mxu0 0.0
    %5367 = vmatprep.mubr.f32.mxu0 0.0
    %v5368 = vand.u32 %v293, 4294901760
    %5369 = vmatmul.mubr.f32.gmra.mrb[0].mxu0 %v5368
    %v5370 = vpop.f32.mrb[0].mxu0
    %v5371 = vadd.f32 %v5167, %v5370
    %v5372 = vpop.f32.mrb[0].mxu0
    %v5373 = vadd.f32 %v5169, %v5372
    %5374 = vmatprep.mubr.f32.mxu0 0.0
    %v5375 = vand.u32 %v294, 4294901760
    %5376 = vmatmul.mubr.f32.gmra.mrb[0].mxu0 %v5375
    %v5377 = vpop.f32.mrb[0].mxu0
    %v5378 = vadd.f32 %v5176, %v5377
    %v5379 = vpop.f32.mrb[0].mxu0
    %v5380 = vadd.f32 %v5178, %v5379
    %5381 = vmatprep.mubr.f32.mxu0 0.0
    %v5382 = vand.u32 %v295, 4294901760
    %5383 = vmatmul.mubr.f32.gmra.mrb[0].mxu0 %v5382
    %v5384 = vpop.f32.mrb[0].mxu0
    %v5385 = vadd.f32 %v5185, %v5384
    %v5386 = vpop.f32.mrb[0].mxu0
    %v5387 = vadd.f32 %v5187, %v5386
    %5388 = vmatprep.mubr.f32.mxu0 0.0
    %v5389 = vand.u32 %v296, 4294901760
    %5390 = vmatmul.mubr.f32.gmra.mrb[0].mxu0 %v5389
    %v5391 = vpop.f32.mrb[0].mxu0
    %v5392 = vadd.f32 %v5194, %v5391
    %v5393 = vpop.f32.mrb[0].mxu0
    %v5394 = vadd.f32 %v5196, %v5393
    %5395 = vmatprep.mubr.f32.mxu0 0.0
    %v5396 = vand.u32 %v297, 4294901760
    %5397 = vmatmul.mubr.f32.gmra.mrb[0].mxu0 %v5396
    %v5398 = vpop.f32.mrb[0].mxu0
    %v5399 = vadd.f32 %v5203, %v5398
    %v5400 = vpop.f32.mrb[0].mxu0
    %v5401 = vadd.f32 %v5205, %v5400
    %5402 = vdwg.mxu0
    %v5403 = vand.u32 %v698, 4294901760
    %5404 = vmatprep.subr.mxu0 %v5403
    %v5405 = vand.u32 %v697, 4294901760
    %5406 = vmatpush1.msra.mxu0 %v5405
    %v5407 = vand.u32 %v714, 4294901760
    %5408 = vmatprep.subr.mxu0 %v5407
    %v5409 = vand.u32 %v713, 4294901760
    %5410 = vmatpush1.msra.mxu0 %v5409
    %v5411 = vand.u32 %v730, 4294901760
    %5412 = vmatprep.subr.mxu0 %v5411
    %v5413 = vand.u32 %v729, 4294901760
    %5414 = vmatpush1.msra.mxu0 %v5413
    %v5415 = vand.u32 %v746, 4294901760
    %5416 = vmatprep.subr.mxu0 %v5415
    %v5417 = vand.u32 %v745, 4294901760
    %5418 = vmatpush1.msra.mxu0 %v5417
    %v5419 = vand.u32 %v762, 4294901760
    %5420 = vmatprep.subr.mxu0 %v5419
    %v5421 = vand.u32 %v761, 4294901760
    %5422 = vmatpush1.msra.mxu0 %v5421
    %v5423 = vand.u32 %v778, 4294901760
    %5424 = vmatprep.subr.mxu0 %v5423
    %v5425 = vand.u32 %v777, 4294901760
    %5426 = vmatpush1.msra.mxu0 %v5425
    %v5427 = vand.u32 %v794, 4294901760
    %5428 = vmatprep.subr.mxu0 %v5427
    %v5429 = vand.u32 %v793, 4294901760
    %5430 = vmatpush1.msra.mxu0 %v5429
    %v5431 = vand.u32 %v810, 4294901760
    %5432 = vmatprep.subr.mxu0 %v5431
    %v5433 = vand.u32 %v809, 4294901760
    %5434 = vmatpush1.msra.mxu0 %v5433
    %v5435 = vand.u32 %v1210, 4294901760
    %5436 = vmatprep.subr.mxu0 %v5435
    %v5437 = vand.u32 %v1209, 4294901760
    %5438 = vmatpush1.msra.mxu0 %v5437
    %v5439 = vand.u32 %v1226, 4294901760
    %5440 = vmatprep.subr.mxu0 %v5439
    %v5441 = vand.u32 %v1225, 4294901760
    %5442 = vmatpush1.msra.mxu0 %v5441
    %v5443 = vand.u32 %v1242, 4294901760
    %5444 = vmatprep.subr.mxu0 %v5443
    %v5445 = vand.u32 %v1241, 4294901760
    %5446 = vmatpush1.msra.mxu0 %v5445
    %v5447 = vand.u32 %v1258, 4294901760
    %5448 = vmatprep.subr.mxu0 %v5447
    %v5449 = vand.u32 %v1257, 4294901760
    %5450 = vmatpush1.msra.mxu0 %v5449
    %v5451 = vand.u32 %v1274, 4294901760
    %5452 = vmatprep.subr.mxu0 %v5451
    %v5453 = vand.u32 %v1273, 4294901760
    %5454 = vmatpush1.msra.mxu0 %v5453
    %v5455 = vand.u32 %v1290, 4294901760
    %5456 = vmatprep.subr.mxu0 %v5455
    %v5457 = vand.u32 %v1289, 4294901760
    %5458 = vmatpush1.msra.mxu0 %v5457
    %v5459 = vand.u32 %v1306, 4294901760
    %5460 = vmatprep.subr.mxu0 %v5459
    %v5461 = vand.u32 %v1305, 4294901760
    %5462 = vmatpush1.msra.mxu0 %v5461
    %v5463 = vand.u32 %v1322, 4294901760
    %5464 = vmatprep.subr.mxu0 %v5463
    %v5465 = vand.u32 %v1321, 4294901760
    %5466 = vmatpush1.msra.mxu0 %v5465
    %5467 = vmatprep.subr.mxu0 0.0
    %5468 = vmatpush1.msra.mxu0 0.0
    %5469 = vmatprep.subr.mxu0 0.0
    %5470 = vmatpush1.msra.mxu0 0.0
    %5471 = vmatprep.subr.mxu0 0.0
    %5472 = vmatpush1.msra.mxu0 0.0
    %5473 = vmatprep.subr.mxu0 0.0
    %5474 = vmatpush1.msra.mxu0 0.0
    %5475 = vmatprep.subr.mxu0 0.0
    %5476 = vmatpush1.msra.mxu0 0.0
    %5477 = vmatprep.subr.mxu0 0.0
    %5478 = vmatpush1.msra.mxu0 0.0
    %5479 = vmatprep.subr.mxu0 0.0
    %5480 = vmatpush1.msra.mxu0 0.0
    %5481 = vmatprep.subr.mxu0 0.0
    %5482 = vmatpush1.msra.mxu0 0.0
    %5483 = vmatprep.subr.mxu0 0.0
    %5484 = vmatpush1.msra.mxu0 0.0
    %5485 = vmatprep.subr.mxu0 0.0
    %5486 = vmatpush1.msra.mxu0 0.0
    %5487 = vmatprep.subr.mxu0 0.0
    %5488 = vmatpush1.msra.mxu0 0.0
    %5489 = vmatprep.subr.mxu0 0.0
    %5490 = vmatpush1.msra.mxu0 0.0
    %5491 = vmatprep.subr.mxu0 0.0
    %5492 = vmatpush1.msra.mxu0 0.0
    %5493 = vmatprep.subr.mxu0 0.0
    %5494 = vmatpush1.msra.mxu0 0.0
    %5495 = vmatprep.subr.mxu0 0.0
    %5496 = vmatpush1.msra.mxu0 0.0
    %5497 = vmatprep.subr.mxu0 0.0
    %5498 = vmatpush1.msra.mxu0 0.0
    %5499 = vmatprep.mubr.f32.mxu0 0.0
    %v5500 = vand.u32 %v293, 4294901760
    %5501 = vmatmul.mubr.f32.gmra.mrb[0].mxu0 %v5500
    %v5502 = vpop.f32.mrb[0].mxu0
    %v5503 = vadd.f32 %v5371, %v5502
    %v5504 = vpop.f32.mrb[0].mxu0
    %v5505 = vadd.f32 %v5373, %v5504
    %5506 = vmatprep.mubr.f32.mxu0 0.0
    %v5507 = vand.u32 %v294, 4294901760
    %5508 = vmatmul.mubr.f32.gmra.mrb[0].mxu0 %v5507
    %v5509 = vpop.f32.mrb[0].mxu0
    %v5510 = vadd.f32 %v5378, %v5509
    %v5511 = vpop.f32.mrb[0].mxu0
    %v5512 = vadd.f32 %v5380, %v5511
    %5513 = vmatprep.mubr.f32.mxu0 0.0
    %v5514 = vand.u32 %v295, 4294901760
    %5515 = vmatmul.mubr.f32.gmra.mrb[0].mxu0 %v5514
    %v5516 = vpop.f32.mrb[0].mxu0
    %v5517 = vadd.f32 %v5385, %v5516
    %v5518 = vpop.f32.mrb[0].mxu0
    %v5519 = vadd.f32 %v5387, %v5518
    %5520 = vmatprep.mubr.f32.mxu0 0.0
    %v5521 = vand.u32 %v296, 4294901760
    %5522 = vmatmul.mubr.f32.gmra.mrb[0].mxu0 %v5521
    %v5523 = vpop.f32.mrb[0].mxu0
    %v5524 = vadd.f32 %v5392, %v5523
    %v5525 = vpop.f32.mrb[0].mxu0
    %v5526 = vadd.f32 %v5394, %v5525
    %5527 = vmatprep.mubr.f32.mxu0 0.0
    %v5528 = vand.u32 %v297, 4294901760
    %5529 = vmatmul.mubr.f32.gmra.mrb[0].mxu0 %v5528
    %v5530 = vpop.f32.mrb[0].mxu0
    %v5531 = vadd.f32 %v5399, %v5530
    %v5532 = vpop.f32.mrb[0].mxu0
    %v5533 = vadd.f32 %v5401, %v5532
    %5534 = vdwg.mxu0
    %v5535 = vand.u32 %v700, 4294901760
    %5536 = vmatprep.subr.mxu0 %v5535
    %v5537 = vand.u32 %v699, 4294901760
    %5538 = vmatpush1.msra.mxu0 %v5537
    %v5539 = vand.u32 %v716, 4294901760
    %5540 = vmatprep.subr.mxu0 %v5539
    %v5541 = vand.u32 %v715, 4294901760
    %5542 = vmatpush1.msra.mxu0 %v5541
    %v5543 = vand.u32 %v732, 4294901760
    %5544 = vmatprep.subr.mxu0 %v5543
    %v5545 = vand.u32 %v731, 4294901760
    %5546 = vmatpush1.msra.mxu0 %v5545
    %v5547 = vand.u32 %v748, 4294901760
    %5548 = vmatprep.subr.mxu0 %v5547
    %v5549 = vand.u32 %v747, 4294901760
    %5550 = vmatpush1.msra.mxu0 %v5549
    %v5551 = vand.u32 %v764, 4294901760
    %5552 = vmatprep.subr.mxu0 %v5551
    %v5553 = vand.u32 %v763, 4294901760
    %5554 = vmatpush1.msra.mxu0 %v5553
    %v5555 = vand.u32 %v780, 4294901760
    %5556 = vmatprep.subr.mxu0 %v5555
    %v5557 = vand.u32 %v779, 4294901760
    %5558 = vmatpush1.msra.mxu0 %v5557
    %v5559 = vand.u32 %v796, 4294901760
    %5560 = vmatprep.subr.mxu0 %v5559
    %v5561 = vand.u32 %v795, 4294901760
    %5562 = vmatpush1.msra.mxu0 %v5561
    %v5563 = vand.u32 %v812, 4294901760
    %5564 = vmatprep.subr.mxu0 %v5563
    %v5565 = vand.u32 %v811, 4294901760
    %5566 = vmatpush1.msra.mxu0 %v5565
    %v5567 = vand.u32 %v1212, 4294901760
    %5568 = vmatprep.subr.mxu0 %v5567
    %v5569 = vand.u32 %v1211, 4294901760
    %5570 = vmatpush1.msra.mxu0 %v5569
    %v5571 = vand.u32 %v1228, 4294901760
    %5572 = vmatprep.subr.mxu0 %v5571
    %v5573 = vand.u32 %v1227, 4294901760
    %5574 = vmatpush1.msra.mxu0 %v5573
    %v5575 = vand.u32 %v1244, 4294901760
    %5576 = vmatprep.subr.mxu0 %v5575
    %v5577 = vand.u32 %v1243, 4294901760
    %5578 = vmatpush1.msra.mxu0 %v5577
    %v5579 = vand.u32 %v1260, 4294901760
    %5580 = vmatprep.subr.mxu0 %v5579
    %v5581 = vand.u32 %v1259, 4294901760
    %5582 = vmatpush1.msra.mxu0 %v5581
    %v5583 = vand.u32 %v1276, 4294901760
    %5584 = vmatprep.subr.mxu0 %v5583
    %v5585 = vand.u32 %v1275, 4294901760
    %5586 = vmatpush1.msra.mxu0 %v5585
    %v5587 = vand.u32 %v1292, 4294901760
    %5588 = vmatprep.subr.mxu0 %v5587
    %v5589 = vand.u32 %v1291, 4294901760
    %5590 = vmatpush1.msra.mxu0 %v5589
    %v5591 = vand.u32 %v1308, 4294901760
    %5592 = vmatprep.subr.mxu0 %v5591
    %v5593 = vand.u32 %v1307, 4294901760
    %5594 = vmatpush1.msra.mxu0 %v5593
    %v5595 = vand.u32 %v1324, 4294901760
    %5596 = vmatprep.subr.mxu0 %v5595
    %v5597 = vand.u32 %v1323, 4294901760
    %5598 = vmatpush1.msra.mxu0 %v5597
    %5599 = vmatprep.subr.mxu0 0.0
    %5600 = vmatpush1.msra.mxu0 0.0
    %5601 = vmatprep.subr.mxu0 0.0
    %5602 = vmatpush1.msra.mxu0 0.0
    %5603 = vmatprep.subr.mxu0 0.0
    %5604 = vmatpush1.msra.mxu0 0.0
    %5605 = vmatprep.subr.mxu0 0.0
    %5606 = vmatpush1.msra.mxu0 0.0
    %5607 = vmatprep.subr.mxu0 0.0
    %5608 = vmatpush1.msra.mxu0 0.0
    %5609 = vmatprep.subr.mxu0 0.0
    %5610 = vmatpush1.msra.mxu0 0.0
    %5611 = vmatprep.subr.mxu0 0.0
    %5612 = vmatpush1.msra.mxu0 0.0
    %5613 = vmatprep.subr.mxu0 0.0
    %5614 = vmatpush1.msra.mxu0 0.0
    %5615 = vmatprep.subr.mxu0 0.0
    %5616 = vmatpush1.msra.mxu0 0.0
    %5617 = vmatprep.subr.mxu0 0.0
    %5618 = vmatpush1.msra.mxu0 0.0
    %5619 = vmatprep.subr.mxu0 0.0
    %5620 = vmatpush1.msra.mxu0 0.0
    %5621 = vmatprep.subr.mxu0 0.0
    %5622 = vmatpush1.msra.mxu0 0.0
    %5623 = vmatprep.subr.mxu0 0.0
    %5624 = vmatpush1.msra.mxu0 0.0
    %5625 = vmatprep.subr.mxu0 0.0
    %5626 = vmatpush1.msra.mxu0 0.0
    %5627 = vmatprep.subr.mxu0 0.0
    %5628 = vmatpush1.msra.mxu0 0.0
    %5629 = vmatprep.subr.mxu0 0.0
    %5630 = vmatpush1.msra.mxu0 0.0
    %5631 = vmatprep.mubr.f32.mxu0 0.0
    %v5632 = vand.u32 %v293, 4294901760
    %v5633 = vsub.f32 %v293, %v5632
    %v5634 = vand.u32 %v5633, 4294901760
    %v5635 = vsub.f32 %v5633, %v5634
    %v5636 = vand.u32 %v5635, 4294901760
    %5637 = vmatmul.mubr.f32.gmra.mrb[0].mxu0 %v5636
    %v5638 = vpop.f32.mrb[0].mxu0
    %v5639 = vadd.f32 0.0, %v5638
    %v5640 = vpop.f32.mrb[0].mxu0
    %v5641 = vadd.f32 0.0, %v5640
    %5642 = vmatprep.mubr.f32.mxu0 0.0
    %v5643 = vand.u32 %v294, 4294901760
    %v5644 = vsub.f32 %v294, %v5643
    %v5645 = vand.u32 %v5644, 4294901760
    %v5646 = vsub.f32 %v5644, %v5645
    %v5647 = vand.u32 %v5646, 4294901760
    %5648 = vmatmul.mubr.f32.gmra.mrb[0].mxu0 %v5647
    %v5649 = vpop.f32.mrb[0].mxu0
    %v5650 = vadd.f32 0.0, %v5649
    %v5651 = vpop.f32.mrb[0].mxu0
    %v5652 = vadd.f32 0.0, %v5651
    %5653 = vmatprep.mubr.f32.mxu0 0.0
    %v5654 = vand.u32 %v295, 4294901760
    %v5655 = vsub.f32 %v295, %v5654
    %v5656 = vand.u32 %v5655, 4294901760
    %v5657 = vsub.f32 %v5655, %v5656
    %v5658 = vand.u32 %v5657, 4294901760
    %5659 = vmatmul.mubr.f32.gmra.mrb[0].mxu0 %v5658
    %v5660 = vpop.f32.mrb[0].mxu0
    %v5661 = vadd.f32 0.0, %v5660
    %v5662 = vpop.f32.mrb[0].mxu0
    %v5663 = vadd.f32 0.0, %v5662
    %5664 = vmatprep.mubr.f32.mxu0 0.0
    %v5665 = vand.u32 %v296, 4294901760
    %v5666 = vsub.f32 %v296, %v5665
    %v5667 = vand.u32 %v5666, 4294901760
    %v5668 = vsub.f32 %v5666, %v5667
    %v5669 = vand.u32 %v5668, 4294901760
    %5670 = vmatmul.mubr.f32.gmra.mrb[0].mxu0 %v5669
    %v5671 = vpop.f32.mrb[0].mxu0
    %v5672 = vadd.f32 0.0, %v5671
    %v5673 = vpop.f32.mrb[0].mxu0
    %v5674 = vadd.f32 0.0, %v5673
    %5675 = vmatprep.mubr.f32.mxu0 0.0
    %v5676 = vand.u32 %v297, 4294901760
    %v5677 = vsub.f32 %v297, %v5676
    %v5678 = vand.u32 %v5677, 4294901760
    %v5679 = vsub.f32 %v5677, %v5678
    %v5680 = vand.u32 %v5679, 4294901760
    %5681 = vmatmul.mubr.f32.gmra.mrb[0].mxu0 %v5680
    %v5682 = vpop.f32.mrb[0].mxu0
    %v5683 = vadd.f32 0.0, %v5682
    %v5684 = vpop.f32.mrb[0].mxu0
    %v5685 = vadd.f32 0.0, %v5684
    %5686 = vdwg.mxu0
    %v5687 = vand.u32 %v700, 4294901760
    %v5688 = vsub.f32 %v700, %v5687
    %v5689 = vand.u32 %v5688, 4294901760
    %v5690 = vsub.f32 %v5688, %v5689
    %v5691 = vand.u32 %v5690, 4294901760
    %5692 = vmatprep.subr.mxu0 %v5691
    %v5693 = vand.u32 %v699, 4294901760
    %v5694 = vsub.f32 %v699, %v5693
    %v5695 = vand.u32 %v5694, 4294901760
    %v5696 = vsub.f32 %v5694, %v5695
    %v5697 = vand.u32 %v5696, 4294901760
    %5698 = vmatpush1.msra.mxu0 %v5697
    %v5699 = vand.u32 %v716, 4294901760
    %v5700 = vsub.f32 %v716, %v5699
    %v5701 = vand.u32 %v5700, 4294901760
    %v5702 = vsub.f32 %v5700, %v5701
    %v5703 = vand.u32 %v5702, 4294901760
    %5704 = vmatprep.subr.mxu0 %v5703
    %v5705 = vand.u32 %v715, 4294901760
    %v5706 = vsub.f32 %v715, %v5705
    %v5707 = vand.u32 %v5706, 4294901760
    %v5708 = vsub.f32 %v5706, %v5707
    %v5709 = vand.u32 %v5708, 4294901760
    %5710 = vmatpush1.msra.mxu0 %v5709
    %v5711 = vand.u32 %v732, 4294901760
    %v5712 = vsub.f32 %v732, %v5711
    %v5713 = vand.u32 %v5712, 4294901760
    %v5714 = vsub.f32 %v5712, %v5713
    %v5715 = vand.u32 %v5714, 4294901760
    %5716 = vmatprep.subr.mxu0 %v5715
    %v5717 = vand.u32 %v731, 4294901760
    %v5718 = vsub.f32 %v731, %v5717
    %v5719 = vand.u32 %v5718, 4294901760
    %v5720 = vsub.f32 %v5718, %v5719
    %v5721 = vand.u32 %v5720, 4294901760
    %5722 = vmatpush1.msra.mxu0 %v5721
    %v5723 = vand.u32 %v748, 4294901760
    %v5724 = vsub.f32 %v748, %v5723
    %v5725 = vand.u32 %v5724, 4294901760
    %v5726 = vsub.f32 %v5724, %v5725
    %v5727 = vand.u32 %v5726, 4294901760
    %5728 = vmatprep.subr.mxu0 %v5727
    %v5729 = vand.u32 %v747, 4294901760
    %v5730 = vsub.f32 %v747, %v5729
    %v5731 = vand.u32 %v5730, 4294901760
    %v5732 = vsub.f32 %v5730, %v5731
    %v5733 = vand.u32 %v5732, 4294901760
    %5734 = vmatpush1.msra.mxu0 %v5733
    %v5735 = vand.u32 %v764, 4294901760
    %v5736 = vsub.f32 %v764, %v5735
    %v5737 = vand.u32 %v5736, 4294901760
    %v5738 = vsub.f32 %v5736, %v5737
    %v5739 = vand.u32 %v5738, 4294901760
    %5740 = vmatprep.subr.mxu0 %v5739
    %v5741 = vand.u32 %v763, 4294901760
    %v5742 = vsub.f32 %v763, %v5741
    %v5743 = vand.u32 %v5742, 4294901760
    %v5744 = vsub.f32 %v5742, %v5743
    %v5745 = vand.u32 %v5744, 4294901760
    %5746 = vmatpush1.msra.mxu0 %v5745
    %v5747 = vand.u32 %v780, 4294901760
    %v5748 = vsub.f32 %v780, %v5747
    %v5749 = vand.u32 %v5748, 4294901760
    %v5750 = vsub.f32 %v5748, %v5749
    %v5751 = vand.u32 %v5750, 4294901760
    %5752 = vmatprep.subr.mxu0 %v5751
    %v5753 = vand.u32 %v779, 4294901760
    %v5754 = vsub.f32 %v779, %v5753
    %v5755 = vand.u32 %v5754, 4294901760
    %v5756 = vsub.f32 %v5754, %v5755
    %v5757 = vand.u32 %v5756, 4294901760
    %5758 = vmatpush1.msra.mxu0 %v5757
    %v5759 = vand.u32 %v796, 4294901760
    %v5760 = vsub.f32 %v796, %v5759
    %v5761 = vand.u32 %v5760, 4294901760
    %v5762 = vsub.f32 %v5760, %v5761
    %v5763 = vand.u32 %v5762, 4294901760
    %5764 = vmatprep.subr.mxu0 %v5763
    %v5765 = vand.u32 %v795, 4294901760
    %v5766 = vsub.f32 %v795, %v5765
    %v5767 = vand.u32 %v5766, 4294901760
    %v5768 = vsub.f32 %v5766, %v5767
    %v5769 = vand.u32 %v5768, 4294901760
    %5770 = vmatpush1.msra.mxu0 %v5769
    %v5771 = vand.u32 %v812, 4294901760
    %v5772 = vsub.f32 %v812, %v5771
    %v5773 = vand.u32 %v5772, 4294901760
    %v5774 = vsub.f32 %v5772, %v5773
    %v5775 = vand.u32 %v5774, 4294901760
    %5776 = vmatprep.subr.mxu0 %v5775
    %v5777 = vand.u32 %v811, 4294901760
    %v5778 = vsub.f32 %v811, %v5777
    %v5779 = vand.u32 %v5778, 4294901760
    %v5780 = vsub.f32 %v5778, %v5779
    %v5781 = vand.u32 %v5780, 4294901760
    %5782 = vmatpush1.msra.mxu0 %v5781
    %v5783 = vand.u32 %v1212, 4294901760
    %v5784 = vsub.f32 %v1212, %v5783
    %v5785 = vand.u32 %v5784, 4294901760
    %v5786 = vsub.f32 %v5784, %v5785
    %v5787 = vand.u32 %v5786, 4294901760
    %5788 = vmatprep.subr.mxu0 %v5787
    %v5789 = vand.u32 %v1211, 4294901760
    %v5790 = vsub.f32 %v1211, %v5789
    %v5791 = vand.u32 %v5790, 4294901760
    %v5792 = vsub.f32 %v5790, %v5791
    %v5793 = vand.u32 %v5792, 4294901760
    %5794 = vmatpush1.msra.mxu0 %v5793
    %v5795 = vand.u32 %v1228, 4294901760
    %v5796 = vsub.f32 %v1228, %v5795
    %v5797 = vand.u32 %v5796, 4294901760
    %v5798 = vsub.f32 %v5796, %v5797
    %v5799 = vand.u32 %v5798, 4294901760
    %5800 = vmatprep.subr.mxu0 %v5799
    %v5801 = vand.u32 %v1227, 4294901760
    %v5802 = vsub.f32 %v1227, %v5801
    %v5803 = vand.u32 %v5802, 4294901760
    %v5804 = vsub.f32 %v5802, %v5803
    %v5805 = vand.u32 %v5804, 4294901760
    %5806 = vmatpush1.msra.mxu0 %v5805
    %v5807 = vand.u32 %v1244, 4294901760
    %v5808 = vsub.f32 %v1244, %v5807
    %v5809 = vand.u32 %v5808, 4294901760
    %v5810 = vsub.f32 %v5808, %v5809
    %v5811 = vand.u32 %v5810, 4294901760
    %5812 = vmatprep.subr.mxu0 %v5811
    %v5813 = vand.u32 %v1243, 4294901760
    %v5814 = vsub.f32 %v1243, %v5813
    %v5815 = vand.u32 %v5814, 4294901760
    %v5816 = vsub.f32 %v5814, %v5815
    %v5817 = vand.u32 %v5816, 4294901760
    %5818 = vmatpush1.msra.mxu0 %v5817
    %v5819 = vand.u32 %v1260, 4294901760
    %v5820 = vsub.f32 %v1260, %v5819
    %v5821 = vand.u32 %v5820, 4294901760
    %v5822 = vsub.f32 %v5820, %v5821
    %v5823 = vand.u32 %v5822, 4294901760
    %5824 = vmatprep.subr.mxu0 %v5823
    %v5825 = vand.u32 %v1259, 4294901760
    %v5826 = vsub.f32 %v1259, %v5825
    %v5827 = vand.u32 %v5826, 4294901760
    %v5828 = vsub.f32 %v5826, %v5827
    %v5829 = vand.u32 %v5828, 4294901760
    %5830 = vmatpush1.msra.mxu0 %v5829
    %v5831 = vand.u32 %v1276, 4294901760
    %v5832 = vsub.f32 %v1276, %v5831
    %v5833 = vand.u32 %v5832, 4294901760
    %v5834 = vsub.f32 %v5832, %v5833
    %v5835 = vand.u32 %v5834, 4294901760
    %5836 = vmatprep.subr.mxu0 %v5835
    %v5837 = vand.u32 %v1275, 4294901760
    %v5838 = vsub.f32 %v1275, %v5837
    %v5839 = vand.u32 %v5838, 4294901760
    %v5840 = vsub.f32 %v5838, %v5839
    %v5841 = vand.u32 %v5840, 4294901760
    %5842 = vmatpush1.msra.mxu0 %v5841
    %v5843 = vand.u32 %v1292, 4294901760
    %v5844 = vsub.f32 %v1292, %v5843
    %v5845 = vand.u32 %v5844, 4294901760
    %v5846 = vsub.f32 %v5844, %v5845
    %v5847 = vand.u32 %v5846, 4294901760
    %5848 = vmatprep.subr.mxu0 %v5847
    %v5849 = vand.u32 %v1291, 4294901760
    %v5850 = vsub.f32 %v1291, %v5849
    %v5851 = vand.u32 %v5850, 4294901760
    %v5852 = vsub.f32 %v5850, %v5851
    %v5853 = vand.u32 %v5852, 4294901760
    %5854 = vmatpush1.msra.mxu0 %v5853
    %v5855 = vand.u32 %v1308, 4294901760
    %v5856 = vsub.f32 %v1308, %v5855
    %v5857 = vand.u32 %v5856, 4294901760
    %v5858 = vsub.f32 %v5856, %v5857
    %v5859 = vand.u32 %v5858, 4294901760
    %5860 = vmatprep.subr.mxu0 %v5859
    %v5861 = vand.u32 %v1307, 4294901760
    %v5862 = vsub.f32 %v1307, %v5861
    %v5863 = vand.u32 %v5862, 4294901760
    %v5864 = vsub.f32 %v5862, %v5863
    %v5865 = vand.u32 %v5864, 4294901760
    %5866 = vmatpush1.msra.mxu0 %v5865
    %v5867 = vand.u32 %v1324, 4294901760
    %v5868 = vsub.f32 %v1324, %v5867
    %v5869 = vand.u32 %v5868, 4294901760
    %v5870 = vsub.f32 %v5868, %v5869
    %v5871 = vand.u32 %v5870, 4294901760
    %5872 = vmatprep.subr.mxu0 %v5871
    %v5873 = vand.u32 %v1323, 4294901760
    %v5874 = vsub.f32 %v1323, %v5873
    %v5875 = vand.u32 %v5874, 4294901760
    %v5876 = vsub.f32 %v5874, %v5875
    %v5877 = vand.u32 %v5876, 4294901760
    %5878 = vmatpush1.msra.mxu0 %v5877
    %5879 = vmatprep.subr.mxu0 0.0
    %5880 = vmatpush1.msra.mxu0 0.0
    %5881 = vmatprep.subr.mxu0 0.0
    %5882 = vmatpush1.msra.mxu0 0.0
    %5883 = vmatprep.subr.mxu0 0.0
    %5884 = vmatpush1.msra.mxu0 0.0
    %5885 = vmatprep.subr.mxu0 0.0
    %5886 = vmatpush1.msra.mxu0 0.0
    %5887 = vmatprep.subr.mxu0 0.0
    %5888 = vmatpush1.msra.mxu0 0.0
    %5889 = vmatprep.subr.mxu0 0.0
    %5890 = vmatpush1.msra.mxu0 0.0
    %5891 = vmatprep.subr.mxu0 0.0
    %5892 = vmatpush1.msra.mxu0 0.0
    %5893 = vmatprep.subr.mxu0 0.0
    %5894 = vmatpush1.msra.mxu0 0.0
    %5895 = vmatprep.subr.mxu0 0.0
    %5896 = vmatpush1.msra.mxu0 0.0
    %5897 = vmatprep.subr.mxu0 0.0
    %5898 = vmatpush1.msra.mxu0 0.0
    %5899 = vmatprep.subr.mxu0 0.0
    %5900 = vmatpush1.msra.mxu0 0.0
    %5901 = vmatprep.subr.mxu0 0.0
    %5902 = vmatpush1.msra.mxu0 0.0
    %5903 = vmatprep.subr.mxu0 0.0
    %5904 = vmatpush1.msra.mxu0 0.0
    %5905 = vmatprep.subr.mxu0 0.0
    %5906 = vmatpush1.msra.mxu0 0.0
    %5907 = vmatprep.subr.mxu0 0.0
    %5908 = vmatpush1.msra.mxu0 0.0
    %5909 = vmatprep.subr.mxu0 0.0
    %5910 = vmatpush1.msra.mxu0 0.0
    %5911 = vmatprep.mubr.f32.mxu0 0.0
    %v5912 = vand.u32 %v293, 4294901760
    %5913 = vmatmul.mubr.f32.gmra.mrb[0].mxu0 %v5912
    %v5914 = vpop.f32.mrb[0].mxu0
    %v5915 = vadd.f32 %v5639, %v5914
    %v5916 = vpop.f32.mrb[0].mxu0
    %v5917 = vadd.f32 %v5641, %v5916
    %5918 = vmatprep.mubr.f32.mxu0 0.0
    %v5919 = vand.u32 %v294, 4294901760
    %5920 = vmatmul.mubr.f32.gmra.mrb[0].mxu0 %v5919
    %v5921 = vpop.f32.mrb[0].mxu0
    %v5922 = vadd.f32 %v5650, %v5921
    %v5923 = vpop.f32.mrb[0].mxu0
    %v5924 = vadd.f32 %v5652, %v5923
    %5925 = vmatprep.mubr.f32.mxu0 0.0
    %v5926 = vand.u32 %v295, 4294901760
    %5927 = vmatmul.mubr.f32.gmra.mrb[0].mxu0 %v5926
    %v5928 = vpop.f32.mrb[0].mxu0
    %v5929 = vadd.f32 %v5661, %v5928
    %v5930 = vpop.f32.mrb[0].mxu0
    %v5931 = vadd.f32 %v5663, %v5930
    %5932 = vmatprep.mubr.f32.mxu0 0.0
    %v5933 = vand.u32 %v296, 4294901760
    %5934 = vmatmul.mubr.f32.gmra.mrb[0].mxu0 %v5933
    %v5935 = vpop.f32.mrb[0].mxu0
    %v5936 = vadd.f32 %v5672, %v5935
    %v5937 = vpop.f32.mrb[0].mxu0
    %v5938 = vadd.f32 %v5674, %v5937
    %5939 = vmatprep.mubr.f32.mxu0 0.0
    %v5940 = vand.u32 %v297, 4294901760
    %5941 = vmatmul.mubr.f32.gmra.mrb[0].mxu0 %v5940
    %v5942 = vpop.f32.mrb[0].mxu0
    %v5943 = vadd.f32 %v5683, %v5942
    %v5944 = vpop.f32.mrb[0].mxu0
    %v5945 = vadd.f32 %v5685, %v5944
    %5946 = vdwg.mxu0
    %v5947 = vand.u32 %v700, 4294901760
    %v5948 = vsub.f32 %v700, %v5947
    %5949 = vmatprep.subr.mxu0 %v5948
    %v5950 = vand.u32 %v699, 4294901760
    %v5951 = vsub.f32 %v699, %v5950
    %5952 = vmatpush1.msra.mxu0 %v5951
    %v5953 = vand.u32 %v716, 4294901760
    %v5954 = vsub.f32 %v716, %v5953
    %5955 = vmatprep.subr.mxu0 %v5954
    %v5956 = vand.u32 %v715, 4294901760
    %v5957 = vsub.f32 %v715, %v5956
    %5958 = vmatpush1.msra.mxu0 %v5957
    %v5959 = vand.u32 %v732, 4294901760
    %v5960 = vsub.f32 %v732, %v5959
    %5961 = vmatprep.subr.mxu0 %v5960
    %v5962 = vand.u32 %v731, 4294901760
    %v5963 = vsub.f32 %v731, %v5962
    %5964 = vmatpush1.msra.mxu0 %v5963
    %v5965 = vand.u32 %v748, 4294901760
    %v5966 = vsub.f32 %v748, %v5965
    %5967 = vmatprep.subr.mxu0 %v5966
    %v5968 = vand.u32 %v747, 4294901760
    %v5969 = vsub.f32 %v747, %v5968
    %5970 = vmatpush1.msra.mxu0 %v5969
    %v5971 = vand.u32 %v764, 4294901760
    %v5972 = vsub.f32 %v764, %v5971
    %5973 = vmatprep.subr.mxu0 %v5972
    %v5974 = vand.u32 %v763, 4294901760
    %v5975 = vsub.f32 %v763, %v5974
    %5976 = vmatpush1.msra.mxu0 %v5975
    %v5977 = vand.u32 %v780, 4294901760
    %v5978 = vsub.f32 %v780, %v5977
    %5979 = vmatprep.subr.mxu0 %v5978
    %v5980 = vand.u32 %v779, 4294901760
    %v5981 = vsub.f32 %v779, %v5980
    %5982 = vmatpush1.msra.mxu0 %v5981
    %v5983 = vand.u32 %v796, 4294901760
    %v5984 = vsub.f32 %v796, %v5983
    %5985 = vmatprep.subr.mxu0 %v5984
    %v5986 = vand.u32 %v795, 4294901760
    %v5987 = vsub.f32 %v795, %v5986
    %5988 = vmatpush1.msra.mxu0 %v5987
    %v5989 = vand.u32 %v812, 4294901760
    %v5990 = vsub.f32 %v812, %v5989
    %5991 = vmatprep.subr.mxu0 %v5990
    %v5992 = vand.u32 %v811, 4294901760
    %v5993 = vsub.f32 %v811, %v5992
    %5994 = vmatpush1.msra.mxu0 %v5993
    %v5995 = vand.u32 %v1212, 4294901760
    %v5996 = vsub.f32 %v1212, %v5995
    %5997 = vmatprep.subr.mxu0 %v5996
    %v5998 = vand.u32 %v1211, 4294901760
    %v5999 = vsub.f32 %v1211, %v5998
    %6000 = vmatpush1.msra.mxu0 %v5999
    %v6001 = vand.u32 %v1228, 4294901760
    %v6002 = vsub.f32 %v1228, %v6001
    %6003 = vmatprep.subr.mxu0 %v6002
    %v6004 = vand.u32 %v1227, 4294901760
    %v6005 = vsub.f32 %v1227, %v6004
    %6006 = vmatpush1.msra.mxu0 %v6005
    %v6007 = vand.u32 %v1244, 4294901760
    %v6008 = vsub.f32 %v1244, %v6007
    %6009 = vmatprep.subr.mxu0 %v6008
    %v6010 = vand.u32 %v1243, 4294901760
    %v6011 = vsub.f32 %v1243, %v6010
    %6012 = vmatpush1.msra.mxu0 %v6011
    %v6013 = vand.u32 %v1260, 4294901760
    %v6014 = vsub.f32 %v1260, %v6013
    %6015 = vmatprep.subr.mxu0 %v6014
    %v6016 = vand.u32 %v1259, 4294901760
    %v6017 = vsub.f32 %v1259, %v6016
    %6018 = vmatpush1.msra.mxu0 %v6017
    %v6019 = vand.u32 %v1276, 4294901760
    %v6020 = vsub.f32 %v1276, %v6019
    %6021 = vmatprep.subr.mxu0 %v6020
    %v6022 = vand.u32 %v1275, 4294901760
    %v6023 = vsub.f32 %v1275, %v6022
    %6024 = vmatpush1.msra.mxu0 %v6023
    %v6025 = vand.u32 %v1292, 4294901760
    %v6026 = vsub.f32 %v1292, %v6025
    %6027 = vmatprep.subr.mxu0 %v6026
    %v6028 = vand.u32 %v1291, 4294901760
    %v6029 = vsub.f32 %v1291, %v6028
    %6030 = vmatpush1.msra.mxu0 %v6029
    %v6031 = vand.u32 %v1308, 4294901760
    %v6032 = vsub.f32 %v1308, %v6031
    %6033 = vmatprep.subr.mxu0 %v6032
    %v6034 = vand.u32 %v1307, 4294901760
    %v6035 = vsub.f32 %v1307, %v6034
    %6036 = vmatpush1.msra.mxu0 %v6035
    %v6037 = vand.u32 %v1324, 4294901760
    %v6038 = vsub.f32 %v1324, %v6037
    %6039 = vmatprep.subr.mxu0 %v6038
    %v6040 = vand.u32 %v1323, 4294901760
    %v6041 = vsub.f32 %v1323, %v6040
    %6042 = vmatpush1.msra.mxu0 %v6041
    %6043 = vmatprep.subr.mxu0 0.0
    %6044 = vmatpush1.msra.mxu0 0.0
    %6045 = vmatprep.subr.mxu0 0.0
    %6046 = vmatpush1.msra.mxu0 0.0
    %6047 = vmatprep.subr.mxu0 0.0
    %6048 = vmatpush1.msra.mxu0 0.0
    %6049 = vmatprep.subr.mxu0 0.0
    %6050 = vmatpush1.msra.mxu0 0.0
    %6051 = vmatprep.subr.mxu0 0.0
    %6052 = vmatpush1.msra.mxu0 0.0
    %6053 = vmatprep.subr.mxu0 0.0
    %6054 = vmatpush1.msra.mxu0 0.0
    %6055 = vmatprep.subr.mxu0 0.0
    %6056 = vmatpush1.msra.mxu0 0.0
    %6057 = vmatprep.subr.mxu0 0.0
    %6058 = vmatpush1.msra.mxu0 0.0
    %6059 = vmatprep.subr.mxu0 0.0
    %6060 = vmatpush1.msra.mxu0 0.0
    %6061 = vmatprep.subr.mxu0 0.0
    %6062 = vmatpush1.msra.mxu0 0.0
    %6063 = vmatprep.subr.mxu0 0.0
    %6064 = vmatpush1.msra.mxu0 0.0
    %6065 = vmatprep.subr.mxu0 0.0
    %6066 = vmatpush1.msra.mxu0 0.0
    %6067 = vmatprep.subr.mxu0 0.0
    %6068 = vmatpush1.msra.mxu0 0.0
    %6069 = vmatprep.subr.mxu0 0.0
    %6070 = vmatpush1.msra.mxu0 0.0
    %6071 = vmatprep.subr.mxu0 0.0
    %6072 = vmatpush1.msra.mxu0 0.0
    %6073 = vmatprep.subr.mxu0 0.0
    %6074 = vmatpush1.msra.mxu0 0.0
    %6075 = vmatprep.mubr.f32.mxu0 0.0
    %v6076 = vand.u32 %v293, 4294901760
    %v6077 = vsub.f32 %v293, %v6076
    %6078 = vmatmul.mubr.f32.gmra.mrb[0].mxu0 %v6077
    %v6079 = vpop.f32.mrb[0].mxu0
    %v6080 = vadd.f32 %v5915, %v6079
    %v6081 = vpop.f32.mrb[0].mxu0
    %v6082 = vadd.f32 %v5917, %v6081
    %6083 = vmatprep.mubr.f32.mxu0 0.0
    %v6084 = vand.u32 %v294, 4294901760
    %v6085 = vsub.f32 %v294, %v6084
    %6086 = vmatmul.mubr.f32.gmra.mrb[0].mxu0 %v6085
    %v6087 = vpop.f32.mrb[0].mxu0
    %v6088 = vadd.f32 %v5922, %v6087
    %v6089 = vpop.f32.mrb[0].mxu0
    %v6090 = vadd.f32 %v5924, %v6089
    %6091 = vmatprep.mubr.f32.mxu0 0.0
    %v6092 = vand.u32 %v295, 4294901760
    %v6093 = vsub.f32 %v295, %v6092
    %6094 = vmatmul.mubr.f32.gmra.mrb[0].mxu0 %v6093
    %v6095 = vpop.f32.mrb[0].mxu0
    %v6096 = vadd.f32 %v5929, %v6095
    %v6097 = vpop.f32.mrb[0].mxu0
    %v6098 = vadd.f32 %v5931, %v6097
    %6099 = vmatprep.mubr.f32.mxu0 0.0
    %v6100 = vand.u32 %v296, 4294901760
    %v6101 = vsub.f32 %v296, %v6100
    %6102 = vmatmul.mubr.f32.gmra.mrb[0].mxu0 %v6101
    %v6103 = vpop.f32.mrb[0].mxu0
    %v6104 = vadd.f32 %v5936, %v6103
    %v6105 = vpop.f32.mrb[0].mxu0
    %v6106 = vadd.f32 %v5938, %v6105
    %6107 = vmatprep.mubr.f32.mxu0 0.0
    %v6108 = vand.u32 %v297, 4294901760
    %v6109 = vsub.f32 %v297, %v6108
    %6110 = vmatmul.mubr.f32.gmra.mrb[0].mxu0 %v6109
    %v6111 = vpop.f32.mrb[0].mxu0
    %v6112 = vadd.f32 %v5943, %v6111
    %v6113 = vpop.f32.mrb[0].mxu0
    %v6114 = vadd.f32 %v5945, %v6113
    %6115 = vdwg.mxu0
    %v6116 = vand.u32 %v700, 4294901760
    %6117 = vmatprep.subr.mxu0 %v6116
    %v6118 = vand.u32 %v699, 4294901760
    %6119 = vmatpush1.msra.mxu0 %v6118
    %v6120 = vand.u32 %v716, 4294901760
    %6121 = vmatprep.subr.mxu0 %v6120
    %v6122 = vand.u32 %v715, 4294901760
    %6123 = vmatpush1.msra.mxu0 %v6122
    %v6124 = vand.u32 %v732, 4294901760
    %6125 = vmatprep.subr.mxu0 %v6124
    %v6126 = vand.u32 %v731, 4294901760
    %6127 = vmatpush1.msra.mxu0 %v6126
    %v6128 = vand.u32 %v748, 4294901760
    %6129 = vmatprep.subr.mxu0 %v6128
    %v6130 = vand.u32 %v747, 4294901760
    %6131 = vmatpush1.msra.mxu0 %v6130
    %v6132 = vand.u32 %v764, 4294901760
    %6133 = vmatprep.subr.mxu0 %v6132
    %v6134 = vand.u32 %v763, 4294901760
    %6135 = vmatpush1.msra.mxu0 %v6134
    %v6136 = vand.u32 %v780, 4294901760
    %6137 = vmatprep.subr.mxu0 %v6136
    %v6138 = vand.u32 %v779, 4294901760
    %6139 = vmatpush1.msra.mxu0 %v6138
    %v6140 = vand.u32 %v796, 4294901760
    %6141 = vmatprep.subr.mxu0 %v6140
    %v6142 = vand.u32 %v795, 4294901760
    %6143 = vmatpush1.msra.mxu0 %v6142
    %v6144 = vand.u32 %v812, 4294901760
    %6145 = vmatprep.subr.mxu0 %v6144
    %v6146 = vand.u32 %v811, 4294901760
    %6147 = vmatpush1.msra.mxu0 %v6146
    %v6148 = vand.u32 %v1212, 4294901760
    %6149 = vmatprep.subr.mxu0 %v6148
    %v6150 = vand.u32 %v1211, 4294901760
    %6151 = vmatpush1.msra.mxu0 %v6150
    %v6152 = vand.u32 %v1228, 4294901760
    %6153 = vmatprep.subr.mxu0 %v6152
    %v6154 = vand.u32 %v1227, 4294901760
    %6155 = vmatpush1.msra.mxu0 %v6154
    %v6156 = vand.u32 %v1244, 4294901760
    %6157 = vmatprep.subr.mxu0 %v6156
    %v6158 = vand.u32 %v1243, 4294901760
    %6159 = vmatpush1.msra.mxu0 %v6158
    %v6160 = vand.u32 %v1260, 4294901760
    %6161 = vmatprep.subr.mxu0 %v6160
    %v6162 = vand.u32 %v1259, 4294901760
    %6163 = vmatpush1.msra.mxu0 %v6162
    %v6164 = vand.u32 %v1276, 4294901760
    %6165 = vmatprep.subr.mxu0 %v6164
    %v6166 = vand.u32 %v1275, 4294901760
    %6167 = vmatpush1.msra.mxu0 %v6166
    %v6168 = vand.u32 %v1292, 4294901760
    %6169 = vmatprep.subr.mxu0 %v6168
    %v6170 = vand.u32 %v1291, 4294901760
    %6171 = vmatpush1.msra.mxu0 %v6170
    %v6172 = vand.u32 %v1308, 4294901760
    %6173 = vmatprep.subr.mxu0 %v6172
    %v6174 = vand.u32 %v1307, 4294901760
    %6175 = vmatpush1.msra.mxu0 %v6174
    %v6176 = vand.u32 %v1324, 4294901760
    %6177 = vmatprep.subr.mxu0 %v6176
    %v6178 = vand.u32 %v1323, 4294901760
    %6179 = vmatpush1.msra.mxu0 %v6178
    %6180 = vmatprep.subr.mxu0 0.0
    %6181 = vmatpush1.msra.mxu0 0.0
    %6182 = vmatprep.subr.mxu0 0.0
    %6183 = vmatpush1.msra.mxu0 0.0
    %6184 = vmatprep.subr.mxu0 0.0
    %6185 = vmatpush1.msra.mxu0 0.0
    %6186 = vmatprep.subr.mxu0 0.0
    %6187 = vmatpush1.msra.mxu0 0.0
    %6188 = vmatprep.subr.mxu0 0.0
    %6189 = vmatpush1.msra.mxu0 0.0
    %6190 = vmatprep.subr.mxu0 0.0
    %6191 = vmatpush1.msra.mxu0 0.0
    %6192 = vmatprep.subr.mxu0 0.0
    %6193 = vmatpush1.msra.mxu0 0.0
    %6194 = vmatprep.subr.mxu0 0.0
    %6195 = vmatpush1.msra.mxu0 0.0
    %6196 = vmatprep.subr.mxu0 0.0
    %6197 = vmatpush1.msra.mxu0 0.0
    %6198 = vmatprep.subr.mxu0 0.0
    %6199 = vmatpush1.msra.mxu0 0.0
    %6200 = vmatprep.subr.mxu0 0.0
    %6201 = vmatpush1.msra.mxu0 0.0
    %6202 = vmatprep.subr.mxu0 0.0
    %6203 = vmatpush1.msra.mxu0 0.0
    %6204 = vmatprep.subr.mxu0 0.0
    %6205 = vmatpush1.msra.mxu0 0.0
    %6206 = vmatprep.subr.mxu0 0.0
    %6207 = vmatpush1.msra.mxu0 0.0
    %6208 = vmatprep.subr.mxu0 0.0
    %6209 = vmatpush1.msra.mxu0 0.0
    %6210 = vmatprep.subr.mxu0 0.0
    %6211 = vmatpush1.msra.mxu0 0.0
    %6212 = vmatprep.mubr.f32.mxu0 0.0
    %v6213 = vand.u32 %v293, 4294901760
    %v6214 = vsub.f32 %v293, %v6213
    %v6215 = vand.u32 %v6214, 4294901760
    %6216 = vmatmul.mubr.f32.gmra.mrb[0].mxu0 %v6215
    %v6217 = vpop.f32.mrb[0].mxu0
    %v6218 = vadd.f32 %v6080, %v6217
    %v6219 = vpop.f32.mrb[0].mxu0
    %v6220 = vadd.f32 %v6082, %v6219
    %6221 = vmatprep.mubr.f32.mxu0 0.0
    %v6222 = vand.u32 %v294, 4294901760
    %v6223 = vsub.f32 %v294, %v6222
    %v6224 = vand.u32 %v6223, 4294901760
    %6225 = vmatmul.mubr.f32.gmra.mrb[0].mxu0 %v6224
    %v6226 = vpop.f32.mrb[0].mxu0
    %v6227 = vadd.f32 %v6088, %v6226
    %v6228 = vpop.f32.mrb[0].mxu0
    %v6229 = vadd.f32 %v6090, %v6228
    %6230 = vmatprep.mubr.f32.mxu0 0.0
    %v6231 = vand.u32 %v295, 4294901760
    %v6232 = vsub.f32 %v295, %v6231
    %v6233 = vand.u32 %v6232, 4294901760
    %6234 = vmatmul.mubr.f32.gmra.mrb[0].mxu0 %v6233
    %v6235 = vpop.f32.mrb[0].mxu0
    %v6236 = vadd.f32 %v6096, %v6235
    %v6237 = vpop.f32.mrb[0].mxu0
    %v6238 = vadd.f32 %v6098, %v6237
    %6239 = vmatprep.mubr.f32.mxu0 0.0
    %v6240 = vand.u32 %v296, 4294901760
    %v6241 = vsub.f32 %v296, %v6240
    %v6242 = vand.u32 %v6241, 4294901760
    %6243 = vmatmul.mubr.f32.gmra.mrb[0].mxu0 %v6242
    %v6244 = vpop.f32.mrb[0].mxu0
    %v6245 = vadd.f32 %v6104, %v6244
    %v6246 = vpop.f32.mrb[0].mxu0
    %v6247 = vadd.f32 %v6106, %v6246
    %6248 = vmatprep.mubr.f32.mxu0 0.0
    %v6249 = vand.u32 %v297, 4294901760
    %v6250 = vsub.f32 %v297, %v6249
    %v6251 = vand.u32 %v6250, 4294901760
    %6252 = vmatmul.mubr.f32.gmra.mrb[0].mxu0 %v6251
    %v6253 = vpop.f32.mrb[0].mxu0
    %v6254 = vadd.f32 %v6112, %v6253
    %v6255 = vpop.f32.mrb[0].mxu0
    %v6256 = vadd.f32 %v6114, %v6255
    %6257 = vdwg.mxu0
    %v6258 = vand.u32 %v700, 4294901760
    %v6259 = vsub.f32 %v700, %v6258
    %v6260 = vand.u32 %v6259, 4294901760
    %6261 = vmatprep.subr.mxu0 %v6260
    %v6262 = vand.u32 %v699, 4294901760
    %v6263 = vsub.f32 %v699, %v6262
    %v6264 = vand.u32 %v6263, 4294901760
    %6265 = vmatpush1.msra.mxu0 %v6264
    %v6266 = vand.u32 %v716, 4294901760
    %v6267 = vsub.f32 %v716, %v6266
    %v6268 = vand.u32 %v6267, 4294901760
    %6269 = vmatprep.subr.mxu0 %v6268
    %v6270 = vand.u32 %v715, 4294901760
    %v6271 = vsub.f32 %v715, %v6270
    %v6272 = vand.u32 %v6271, 4294901760
    %6273 = vmatpush1.msra.mxu0 %v6272
    %v6274 = vand.u32 %v732, 4294901760
    %v6275 = vsub.f32 %v732, %v6274
    %v6276 = vand.u32 %v6275, 4294901760
    %6277 = vmatprep.subr.mxu0 %v6276
    %v6278 = vand.u32 %v731, 4294901760
    %v6279 = vsub.f32 %v731, %v6278
    %v6280 = vand.u32 %v6279, 4294901760
    %6281 = vmatpush1.msra.mxu0 %v6280
    %v6282 = vand.u32 %v748, 4294901760
    %v6283 = vsub.f32 %v748, %v6282
    %v6284 = vand.u32 %v6283, 4294901760
    %6285 = vmatprep.subr.mxu0 %v6284
    %v6286 = vand.u32 %v747, 4294901760
    %v6287 = vsub.f32 %v747, %v6286
    %v6288 = vand.u32 %v6287, 4294901760
    %6289 = vmatpush1.msra.mxu0 %v6288
    %v6290 = vand.u32 %v764, 4294901760
    %v6291 = vsub.f32 %v764, %v6290
    %v6292 = vand.u32 %v6291, 4294901760
    %6293 = vmatprep.subr.mxu0 %v6292
    %v6294 = vand.u32 %v763, 4294901760
    %v6295 = vsub.f32 %v763, %v6294
    %v6296 = vand.u32 %v6295, 4294901760
    %6297 = vmatpush1.msra.mxu0 %v6296
    %v6298 = vand.u32 %v780, 4294901760
    %v6299 = vsub.f32 %v780, %v6298
    %v6300 = vand.u32 %v6299, 4294901760
    %6301 = vmatprep.subr.mxu0 %v6300
    %v6302 = vand.u32 %v779, 4294901760
    %v6303 = vsub.f32 %v779, %v6302
    %v6304 = vand.u32 %v6303, 4294901760
    %6305 = vmatpush1.msra.mxu0 %v6304
    %v6306 = vand.u32 %v796, 4294901760
    %v6307 = vsub.f32 %v796, %v6306
    %v6308 = vand.u32 %v6307, 4294901760
    %6309 = vmatprep.subr.mxu0 %v6308
    %v6310 = vand.u32 %v795, 4294901760
    %v6311 = vsub.f32 %v795, %v6310
    %v6312 = vand.u32 %v6311, 4294901760
    %6313 = vmatpush1.msra.mxu0 %v6312
    %v6314 = vand.u32 %v812, 4294901760
    %v6315 = vsub.f32 %v812, %v6314
    %v6316 = vand.u32 %v6315, 4294901760
    %6317 = vmatprep.subr.mxu0 %v6316
    %v6318 = vand.u32 %v811, 4294901760
    %v6319 = vsub.f32 %v811, %v6318
    %v6320 = vand.u32 %v6319, 4294901760
    %6321 = vmatpush1.msra.mxu0 %v6320
    %v6322 = vand.u32 %v1212, 4294901760
    %v6323 = vsub.f32 %v1212, %v6322
    %v6324 = vand.u32 %v6323, 4294901760
    %6325 = vmatprep.subr.mxu0 %v6324
    %v6326 = vand.u32 %v1211, 4294901760
    %v6327 = vsub.f32 %v1211, %v6326
    %v6328 = vand.u32 %v6327, 4294901760
    %6329 = vmatpush1.msra.mxu0 %v6328
    %v6330 = vand.u32 %v1228, 4294901760
    %v6331 = vsub.f32 %v1228, %v6330
    %v6332 = vand.u32 %v6331, 4294901760
    %6333 = vmatprep.subr.mxu0 %v6332
    %v6334 = vand.u32 %v1227, 4294901760
    %v6335 = vsub.f32 %v1227, %v6334
    %v6336 = vand.u32 %v6335, 4294901760
    %6337 = vmatpush1.msra.mxu0 %v6336
    %v6338 = vand.u32 %v1244, 4294901760
    %v6339 = vsub.f32 %v1244, %v6338
    %v6340 = vand.u32 %v6339, 4294901760
    %6341 = vmatprep.subr.mxu0 %v6340
    %v6342 = vand.u32 %v1243, 4294901760
    %v6343 = vsub.f32 %v1243, %v6342
    %v6344 = vand.u32 %v6343, 4294901760
    %6345 = vmatpush1.msra.mxu0 %v6344
    %v6346 = vand.u32 %v1260, 4294901760
    %v6347 = vsub.f32 %v1260, %v6346
    %v6348 = vand.u32 %v6347, 4294901760
    %6349 = vmatprep.subr.mxu0 %v6348
    %v6350 = vand.u32 %v1259, 4294901760
    %v6351 = vsub.f32 %v1259, %v6350
    %v6352 = vand.u32 %v6351, 4294901760
    %6353 = vmatpush1.msra.mxu0 %v6352
    %v6354 = vand.u32 %v1276, 4294901760
    %v6355 = vsub.f32 %v1276, %v6354
    %v6356 = vand.u32 %v6355, 4294901760
    %6357 = vmatprep.subr.mxu0 %v6356
    %v6358 = vand.u32 %v1275, 4294901760
    %v6359 = vsub.f32 %v1275, %v6358
    %v6360 = vand.u32 %v6359, 4294901760
    %6361 = vmatpush1.msra.mxu0 %v6360
    %v6362 = vand.u32 %v1292, 4294901760
    %v6363 = vsub.f32 %v1292, %v6362
    %v6364 = vand.u32 %v6363, 4294901760
    %6365 = vmatprep.subr.mxu0 %v6364
    %v6366 = vand.u32 %v1291, 4294901760
    %v6367 = vsub.f32 %v1291, %v6366
    %v6368 = vand.u32 %v6367, 4294901760
    %6369 = vmatpush1.msra.mxu0 %v6368
    %v6370 = vand.u32 %v1308, 4294901760
    %v6371 = vsub.f32 %v1308, %v6370
    %v6372 = vand.u32 %v6371, 4294901760
    %6373 = vmatprep.subr.mxu0 %v6372
    %v6374 = vand.u32 %v1307, 4294901760
    %v6375 = vsub.f32 %v1307, %v6374
    %v6376 = vand.u32 %v6375, 4294901760
    %6377 = vmatpush1.msra.mxu0 %v6376
    %v6378 = vand.u32 %v1324, 4294901760
    %v6379 = vsub.f32 %v1324, %v6378
    %v6380 = vand.u32 %v6379, 4294901760
    %6381 = vmatprep.subr.mxu0 %v6380
    %v6382 = vand.u32 %v1323, 4294901760
    %v6383 = vsub.f32 %v1323, %v6382
    %v6384 = vand.u32 %v6383, 4294901760
    %6385 = vmatpush1.msra.mxu0 %v6384
    %6386 = vmatprep.subr.mxu0 0.0
    %6387 = vmatpush1.msra.mxu0 0.0
    %6388 = vmatprep.subr.mxu0 0.0
    %6389 = vmatpush1.msra.mxu0 0.0
    %6390 = vmatprep.subr.mxu0 0.0
    %6391 = vmatpush1.msra.mxu0 0.0
    %6392 = vmatprep.subr.mxu0 0.0
    %6393 = vmatpush1.msra.mxu0 0.0
    %6394 = vmatprep.subr.mxu0 0.0
    %6395 = vmatpush1.msra.mxu0 0.0
    %6396 = vmatprep.subr.mxu0 0.0
    %6397 = vmatpush1.msra.mxu0 0.0
    %6398 = vmatprep.subr.mxu0 0.0
    %6399 = vmatpush1.msra.mxu0 0.0
    %6400 = vmatprep.subr.mxu0 0.0
    %6401 = vmatpush1.msra.mxu0 0.0
    %6402 = vmatprep.subr.mxu0 0.0
    %6403 = vmatpush1.msra.mxu0 0.0
    %6404 = vmatprep.subr.mxu0 0.0
    %6405 = vmatpush1.msra.mxu0 0.0
    %6406 = vmatprep.subr.mxu0 0.0
    %6407 = vmatpush1.msra.mxu0 0.0
    %6408 = vmatprep.subr.mxu0 0.0
    %6409 = vmatpush1.msra.mxu0 0.0
    %6410 = vmatprep.subr.mxu0 0.0
    %6411 = vmatpush1.msra.mxu0 0.0
    %6412 = vmatprep.subr.mxu0 0.0
    %6413 = vmatpush1.msra.mxu0 0.0
    %6414 = vmatprep.subr.mxu0 0.0
    %6415 = vmatpush1.msra.mxu0 0.0
    %6416 = vmatprep.subr.mxu0 0.0
    %6417 = vmatpush1.msra.mxu0 0.0
    %6418 = vmatprep.mubr.f32.mxu0 0.0
    %v6419 = vand.u32 %v293, 4294901760
    %6420 = vmatmul.mubr.f32.gmra.mrb[0].mxu0 %v6419
    %v6421 = vpop.f32.mrb[0].mxu0
    %v6422 = vadd.f32 %v6218, %v6421
    %v6423 = vpop.f32.mrb[0].mxu0
    %v6424 = vadd.f32 %v6220, %v6423
    %6425 = vmatprep.mubr.f32.mxu0 0.0
    %v6426 = vand.u32 %v294, 4294901760
    %6427 = vmatmul.mubr.f32.gmra.mrb[0].mxu0 %v6426
    %v6428 = vpop.f32.mrb[0].mxu0
    %v6429 = vadd.f32 %v6227, %v6428
    %v6430 = vpop.f32.mrb[0].mxu0
    %v6431 = vadd.f32 %v6229, %v6430
    %6432 = vmatprep.mubr.f32.mxu0 0.0
    %v6433 = vand.u32 %v295, 4294901760
    %6434 = vmatmul.mubr.f32.gmra.mrb[0].mxu0 %v6433
    %v6435 = vpop.f32.mrb[0].mxu0
    %v6436 = vadd.f32 %v6236, %v6435
    %v6437 = vpop.f32.mrb[0].mxu0
    %v6438 = vadd.f32 %v6238, %v6437
    %6439 = vmatprep.mubr.f32.mxu0 0.0
    %v6440 = vand.u32 %v296, 4294901760
    %6441 = vmatmul.mubr.f32.gmra.mrb[0].mxu0 %v6440
    %v6442 = vpop.f32.mrb[0].mxu0
    %v6443 = vadd.f32 %v6245, %v6442
    %v6444 = vpop.f32.mrb[0].mxu0
    %v6445 = vadd.f32 %v6247, %v6444
    %6446 = vmatprep.mubr.f32.mxu0 0.0
    %v6447 = vand.u32 %v297, 4294901760
    %6448 = vmatmul.mubr.f32.gmra.mrb[0].mxu0 %v6447
    %v6449 = vpop.f32.mrb[0].mxu0
    %v6450 = vadd.f32 %v6254, %v6449
    %v6451 = vpop.f32.mrb[0].mxu0
    %v6452 = vadd.f32 %v6256, %v6451
    %6453 = vdwg.mxu0
    %v6454 = vand.u32 %v700, 4294901760
    %6455 = vmatprep.subr.mxu0 %v6454
    %v6456 = vand.u32 %v699, 4294901760
    %6457 = vmatpush1.msra.mxu0 %v6456
    %v6458 = vand.u32 %v716, 4294901760
    %6459 = vmatprep.subr.mxu0 %v6458
    %v6460 = vand.u32 %v715, 4294901760
    %6461 = vmatpush1.msra.mxu0 %v6460
    %v6462 = vand.u32 %v732, 4294901760
    %6463 = vmatprep.subr.mxu0 %v6462
    %v6464 = vand.u32 %v731, 4294901760
    %6465 = vmatpush1.msra.mxu0 %v6464
    %v6466 = vand.u32 %v748, 4294901760
    %6467 = vmatprep.subr.mxu0 %v6466
    %v6468 = vand.u32 %v747, 4294901760
    %6469 = vmatpush1.msra.mxu0 %v6468
    %v6470 = vand.u32 %v764, 4294901760
    %6471 = vmatprep.subr.mxu0 %v6470
    %v6472 = vand.u32 %v763, 4294901760
    %6473 = vmatpush1.msra.mxu0 %v6472
    %v6474 = vand.u32 %v780, 4294901760
    %6475 = vmatprep.subr.mxu0 %v6474
    %v6476 = vand.u32 %v779, 4294901760
    %6477 = vmatpush1.msra.mxu0 %v6476
    %v6478 = vand.u32 %v796, 4294901760
    %6479 = vmatprep.subr.mxu0 %v6478
    %v6480 = vand.u32 %v795, 4294901760
    %6481 = vmatpush1.msra.mxu0 %v6480
    %v6482 = vand.u32 %v812, 4294901760
    %6483 = vmatprep.subr.mxu0 %v6482
    %v6484 = vand.u32 %v811, 4294901760
    %6485 = vmatpush1.msra.mxu0 %v6484
    %v6486 = vand.u32 %v1212, 4294901760
    %6487 = vmatprep.subr.mxu0 %v6486
    %v6488 = vand.u32 %v1211, 4294901760
    %6489 = vmatpush1.msra.mxu0 %v6488
    %v6490 = vand.u32 %v1228, 4294901760
    %6491 = vmatprep.subr.mxu0 %v6490
    %v6492 = vand.u32 %v1227, 4294901760
    %6493 = vmatpush1.msra.mxu0 %v6492
    %v6494 = vand.u32 %v1244, 4294901760
    %6495 = vmatprep.subr.mxu0 %v6494
    %v6496 = vand.u32 %v1243, 4294901760
    %6497 = vmatpush1.msra.mxu0 %v6496
    %v6498 = vand.u32 %v1260, 4294901760
    %6499 = vmatprep.subr.mxu0 %v6498
    %v6500 = vand.u32 %v1259, 4294901760
    %6501 = vmatpush1.msra.mxu0 %v6500
    %v6502 = vand.u32 %v1276, 4294901760
    %6503 = vmatprep.subr.mxu0 %v6502
    %v6504 = vand.u32 %v1275, 4294901760
    %6505 = vmatpush1.msra.mxu0 %v6504
    %v6506 = vand.u32 %v1292, 4294901760
    %6507 = vmatprep.subr.mxu0 %v6506
    %v6508 = vand.u32 %v1291, 4294901760
    %6509 = vmatpush1.msra.mxu0 %v6508
    %v6510 = vand.u32 %v1308, 4294901760
    %6511 = vmatprep.subr.mxu0 %v6510
    %v6512 = vand.u32 %v1307, 4294901760
    %6513 = vmatpush1.msra.mxu0 %v6512
    %v6514 = vand.u32 %v1324, 4294901760
    %6515 = vmatprep.subr.mxu0 %v6514
    %v6516 = vand.u32 %v1323, 4294901760
    %6517 = vmatpush1.msra.mxu0 %v6516
    %6518 = vmatprep.subr.mxu0 0.0
    %6519 = vmatpush1.msra.mxu0 0.0
    %6520 = vmatprep.subr.mxu0 0.0
    %6521 = vmatpush1.msra.mxu0 0.0
    %6522 = vmatprep.subr.mxu0 0.0
    %6523 = vmatpush1.msra.mxu0 0.0
    %6524 = vmatprep.subr.mxu0 0.0
    %6525 = vmatpush1.msra.mxu0 0.0
    %6526 = vmatprep.subr.mxu0 0.0
    %6527 = vmatpush1.msra.mxu0 0.0
    %6528 = vmatprep.subr.mxu0 0.0
    %6529 = vmatpush1.msra.mxu0 0.0
    %6530 = vmatprep.subr.mxu0 0.0
    %6531 = vmatpush1.msra.mxu0 0.0
    %6532 = vmatprep.subr.mxu0 0.0
    %6533 = vmatpush1.msra.mxu0 0.0
    %6534 = vmatprep.subr.mxu0 0.0
    %6535 = vmatpush1.msra.mxu0 0.0
    %6536 = vmatprep.subr.mxu0 0.0
    %6537 = vmatpush1.msra.mxu0 0.0
    %6538 = vmatprep.subr.mxu0 0.0
    %6539 = vmatpush1.msra.mxu0 0.0
    %6540 = vmatprep.subr.mxu0 0.0
    %6541 = vmatpush1.msra.mxu0 0.0
    %6542 = vmatprep.subr.mxu0 0.0
    %6543 = vmatpush1.msra.mxu0 0.0
    %6544 = vmatprep.subr.mxu0 0.0
    %6545 = vmatpush1.msra.mxu0 0.0
    %6546 = vmatprep.subr.mxu0 0.0
    %6547 = vmatpush1.msra.mxu0 0.0
    %6548 = vmatprep.subr.mxu0 0.0
    %6549 = vmatpush1.msra.mxu0 0.0
    %6550 = vmatprep.mubr.f32.mxu0 0.0
    %v6551 = vand.u32 %v293, 4294901760
    %6552 = vmatmul.mubr.f32.gmra.mrb[0].mxu0 %v6551
    %v6553 = vpop.f32.mrb[0].mxu0
    %v6554 = vadd.f32 %v6422, %v6553
    %v6555 = vpop.f32.mrb[0].mxu0
    %v6556 = vadd.f32 %v6424, %v6555
    %6557 = vmatprep.mubr.f32.mxu0 0.0
    %v6558 = vand.u32 %v294, 4294901760
    %6559 = vmatmul.mubr.f32.gmra.mrb[0].mxu0 %v6558
    %v6560 = vpop.f32.mrb[0].mxu0
    %v6561 = vadd.f32 %v6429, %v6560
    %v6562 = vpop.f32.mrb[0].mxu0
    %v6563 = vadd.f32 %v6431, %v6562
    %6564 = vmatprep.mubr.f32.mxu0 0.0
    %v6565 = vand.u32 %v295, 4294901760
    %6566 = vmatmul.mubr.f32.gmra.mrb[0].mxu0 %v6565
    %v6567 = vpop.f32.mrb[0].mxu0
    %v6568 = vadd.f32 %v6436, %v6567
    %v6569 = vpop.f32.mrb[0].mxu0
    %v6570 = vadd.f32 %v6438, %v6569
    %6571 = vmatprep.mubr.f32.mxu0 0.0
    %v6572 = vand.u32 %v296, 4294901760
    %6573 = vmatmul.mubr.f32.gmra.mrb[0].mxu0 %v6572
    %v6574 = vpop.f32.mrb[0].mxu0
    %v6575 = vadd.f32 %v6443, %v6574
    %v6576 = vpop.f32.mrb[0].mxu0
    %v6577 = vadd.f32 %v6445, %v6576
    %6578 = vmatprep.mubr.f32.mxu0 0.0
    %v6579 = vand.u32 %v297, 4294901760
    %6580 = vmatmul.mubr.f32.gmra.mrb[0].mxu0 %v6579
    %v6581 = vpop.f32.mrb[0].mxu0
    %v6582 = vadd.f32 %v6450, %v6581
    %v6583 = vpop.f32.mrb[0].mxu0
    %v6584 = vadd.f32 %v6452, %v6583
    %6585 = vdwg.mxu0
    %v6586 = vand.u32 %v702, 4294901760
    %6587 = vmatprep.subr.mxu0 %v6586
    %v6588 = vand.u32 %v701, 4294901760
    %6589 = vmatpush1.msra.mxu0 %v6588
    %v6590 = vand.u32 %v718, 4294901760
    %6591 = vmatprep.subr.mxu0 %v6590
    %v6592 = vand.u32 %v717, 4294901760
    %6593 = vmatpush1.msra.mxu0 %v6592
    %v6594 = vand.u32 %v734, 4294901760
    %6595 = vmatprep.subr.mxu0 %v6594
    %v6596 = vand.u32 %v733, 4294901760
    %6597 = vmatpush1.msra.mxu0 %v6596
    %v6598 = vand.u32 %v750, 4294901760
    %6599 = vmatprep.subr.mxu0 %v6598
    %v6600 = vand.u32 %v749, 4294901760
    %6601 = vmatpush1.msra.mxu0 %v6600
    %v6602 = vand.u32 %v766, 4294901760
    %6603 = vmatprep.subr.mxu0 %v6602
    %v6604 = vand.u32 %v765, 4294901760
    %6605 = vmatpush1.msra.mxu0 %v6604
    %v6606 = vand.u32 %v782, 4294901760
    %6607 = vmatprep.subr.mxu0 %v6606
    %v6608 = vand.u32 %v781, 4294901760
    %6609 = vmatpush1.msra.mxu0 %v6608
    %v6610 = vand.u32 %v798, 4294901760
    %6611 = vmatprep.subr.mxu0 %v6610
    %v6612 = vand.u32 %v797, 4294901760
    %6613 = vmatpush1.msra.mxu0 %v6612
    %v6614 = vand.u32 %v814, 4294901760
    %6615 = vmatprep.subr.mxu0 %v6614
    %v6616 = vand.u32 %v813, 4294901760
    %6617 = vmatpush1.msra.mxu0 %v6616
    %v6618 = vand.u32 %v1214, 4294901760
    %6619 = vmatprep.subr.mxu0 %v6618
    %v6620 = vand.u32 %v1213, 4294901760
    %6621 = vmatpush1.msra.mxu0 %v6620
    %v6622 = vand.u32 %v1230, 4294901760
    %6623 = vmatprep.subr.mxu0 %v6622
    %v6624 = vand.u32 %v1229, 4294901760
    %6625 = vmatpush1.msra.mxu0 %v6624
    %v6626 = vand.u32 %v1246, 4294901760
    %6627 = vmatprep.subr.mxu0 %v6626
    %v6628 = vand.u32 %v1245, 4294901760
    %6629 = vmatpush1.msra.mxu0 %v6628
    %v6630 = vand.u32 %v1262, 4294901760
    %6631 = vmatprep.subr.mxu0 %v6630
    %v6632 = vand.u32 %v1261, 4294901760
    %6633 = vmatpush1.msra.mxu0 %v6632
    %v6634 = vand.u32 %v1278, 4294901760
    %6635 = vmatprep.subr.mxu0 %v6634
    %v6636 = vand.u32 %v1277, 4294901760
    %6637 = vmatpush1.msra.mxu0 %v6636
    %v6638 = vand.u32 %v1294, 4294901760
    %6639 = vmatprep.subr.mxu0 %v6638
    %v6640 = vand.u32 %v1293, 4294901760
    %6641 = vmatpush1.msra.mxu0 %v6640
    %v6642 = vand.u32 %v1310, 4294901760
    %6643 = vmatprep.subr.mxu0 %v6642
    %v6644 = vand.u32 %v1309, 4294901760
    %6645 = vmatpush1.msra.mxu0 %v6644
    %v6646 = vand.u32 %v1326, 4294901760
    %6647 = vmatprep.subr.mxu0 %v6646
    %v6648 = vand.u32 %v1325, 4294901760
    %6649 = vmatpush1.msra.mxu0 %v6648
    %6650 = vmatprep.subr.mxu0 0.0
    %6651 = vmatpush1.msra.mxu0 0.0
    %6652 = vmatprep.subr.mxu0 0.0
    %6653 = vmatpush1.msra.mxu0 0.0
    %6654 = vmatprep.subr.mxu0 0.0
    %6655 = vmatpush1.msra.mxu0 0.0
    %6656 = vmatprep.subr.mxu0 0.0
    %6657 = vmatpush1.msra.mxu0 0.0
    %6658 = vmatprep.subr.mxu0 0.0
    %6659 = vmatpush1.msra.mxu0 0.0
    %6660 = vmatprep.subr.mxu0 0.0
    %6661 = vmatpush1.msra.mxu0 0.0
    %6662 = vmatprep.subr.mxu0 0.0
    %6663 = vmatpush1.msra.mxu0 0.0
    %6664 = vmatprep.subr.mxu0 0.0
    %6665 = vmatpush1.msra.mxu0 0.0
    %6666 = vmatprep.subr.mxu0 0.0
    %6667 = vmatpush1.msra.mxu0 0.0
    %6668 = vmatprep.subr.mxu0 0.0
    %6669 = vmatpush1.msra.mxu0 0.0
    %6670 = vmatprep.subr.mxu0 0.0
    %6671 = vmatpush1.msra.mxu0 0.0
    %6672 = vmatprep.subr.mxu0 0.0
    %6673 = vmatpush1.msra.mxu0 0.0
    %6674 = vmatprep.subr.mxu0 0.0
    %6675 = vmatpush1.msra.mxu0 0.0
    %6676 = vmatprep.subr.mxu0 0.0
    %6677 = vmatpush1.msra.mxu0 0.0
    %6678 = vmatprep.subr.mxu0 0.0
    %6679 = vmatpush1.msra.mxu0 0.0
    %6680 = vmatprep.subr.mxu0 0.0
    %6681 = vmatpush1.msra.mxu0 0.0
    %6682 = vmatprep.mubr.f32.mxu0 0.0
    %v6683 = vand.u32 %v293, 4294901760
    %v6684 = vsub.f32 %v293, %v6683
    %v6685 = vand.u32 %v6684, 4294901760
    %v6686 = vsub.f32 %v6684, %v6685
    %v6687 = vand.u32 %v6686, 4294901760
    %6688 = vmatmul.mubr.f32.gmra.mrb[0].mxu0 %v6687
    %v6689 = vpop.f32.mrb[0].mxu0
    %v6690 = vadd.f32 0.0, %v6689
    %v6691 = vpop.f32.mrb[0].mxu0
    %v6692 = vadd.f32 0.0, %v6691
    %6693 = vmatprep.mubr.f32.mxu0 0.0
    %v6694 = vand.u32 %v294, 4294901760
    %v6695 = vsub.f32 %v294, %v6694
    %v6696 = vand.u32 %v6695, 4294901760
    %v6697 = vsub.f32 %v6695, %v6696
    %v6698 = vand.u32 %v6697, 4294901760
    %6699 = vmatmul.mubr.f32.gmra.mrb[0].mxu0 %v6698
    %v6700 = vpop.f32.mrb[0].mxu0
    %v6701 = vadd.f32 0.0, %v6700
    %v6702 = vpop.f32.mrb[0].mxu0
    %v6703 = vadd.f32 0.0, %v6702
    %6704 = vmatprep.mubr.f32.mxu0 0.0
    %v6705 = vand.u32 %v295, 4294901760
    %v6706 = vsub.f32 %v295, %v6705
    %v6707 = vand.u32 %v6706, 4294901760
    %v6708 = vsub.f32 %v6706, %v6707
    %v6709 = vand.u32 %v6708, 4294901760
    %6710 = vmatmul.mubr.f32.gmra.mrb[0].mxu0 %v6709
    %v6711 = vpop.f32.mrb[0].mxu0
    %v6712 = vadd.f32 0.0, %v6711
    %v6713 = vpop.f32.mrb[0].mxu0
    %v6714 = vadd.f32 0.0, %v6713
    %6715 = vmatprep.mubr.f32.mxu0 0.0
    %v6716 = vand.u32 %v296, 4294901760
    %v6717 = vsub.f32 %v296, %v6716
    %v6718 = vand.u32 %v6717, 4294901760
    %v6719 = vsub.f32 %v6717, %v6718
    %v6720 = vand.u32 %v6719, 4294901760
    %6721 = vmatmul.mubr.f32.gmra.mrb[0].mxu0 %v6720
    %v6722 = vpop.f32.mrb[0].mxu0
    %v6723 = vadd.f32 0.0, %v6722
    %v6724 = vpop.f32.mrb[0].mxu0
    %v6725 = vadd.f32 0.0, %v6724
    %6726 = vmatprep.mubr.f32.mxu0 0.0
    %v6727 = vand.u32 %v297, 4294901760
    %v6728 = vsub.f32 %v297, %v6727
    %v6729 = vand.u32 %v6728, 4294901760
    %v6730 = vsub.f32 %v6728, %v6729
    %v6731 = vand.u32 %v6730, 4294901760
    %6732 = vmatmul.mubr.f32.gmra.mrb[0].mxu0 %v6731
    %v6733 = vpop.f32.mrb[0].mxu0
    %v6734 = vadd.f32 0.0, %v6733
    %v6735 = vpop.f32.mrb[0].mxu0
    %v6736 = vadd.f32 0.0, %v6735
    %6737 = vdwg.mxu0
    %v6738 = vand.u32 %v702, 4294901760
    %v6739 = vsub.f32 %v702, %v6738
    %v6740 = vand.u32 %v6739, 4294901760
    %v6741 = vsub.f32 %v6739, %v6740
    %v6742 = vand.u32 %v6741, 4294901760
    %6743 = vmatprep.subr.mxu0 %v6742
    %v6744 = vand.u32 %v701, 4294901760
    %v6745 = vsub.f32 %v701, %v6744
    %v6746 = vand.u32 %v6745, 4294901760
    %v6747 = vsub.f32 %v6745, %v6746
    %v6748 = vand.u32 %v6747, 4294901760
    %6749 = vmatpush1.msra.mxu0 %v6748
    %v6750 = vand.u32 %v718, 4294901760
    %v6751 = vsub.f32 %v718, %v6750
    %v6752 = vand.u32 %v6751, 4294901760
    %v6753 = vsub.f32 %v6751, %v6752
    %v6754 = vand.u32 %v6753, 4294901760
    %6755 = vmatprep.subr.mxu0 %v6754
    %v6756 = vand.u32 %v717, 4294901760
    %v6757 = vsub.f32 %v717, %v6756
    %v6758 = vand.u32 %v6757, 4294901760
    %v6759 = vsub.f32 %v6757, %v6758
    %v6760 = vand.u32 %v6759, 4294901760
    %6761 = vmatpush1.msra.mxu0 %v6760
    %v6762 = vand.u32 %v734, 4294901760
    %v6763 = vsub.f32 %v734, %v6762
    %v6764 = vand.u32 %v6763, 4294901760
    %v6765 = vsub.f32 %v6763, %v6764
    %v6766 = vand.u32 %v6765, 4294901760
    %6767 = vmatprep.subr.mxu0 %v6766
    %v6768 = vand.u32 %v733, 4294901760
    %v6769 = vsub.f32 %v733, %v6768
    %v6770 = vand.u32 %v6769, 4294901760
    %v6771 = vsub.f32 %v6769, %v6770
    %v6772 = vand.u32 %v6771, 4294901760
    %6773 = vmatpush1.msra.mxu0 %v6772
    %v6774 = vand.u32 %v750, 4294901760
    %v6775 = vsub.f32 %v750, %v6774
    %v6776 = vand.u32 %v6775, 4294901760
    %v6777 = vsub.f32 %v6775, %v6776
    %v6778 = vand.u32 %v6777, 4294901760
    %6779 = vmatprep.subr.mxu0 %v6778
    %v6780 = vand.u32 %v749, 4294901760
    %v6781 = vsub.f32 %v749, %v6780
    %v6782 = vand.u32 %v6781, 4294901760
    %v6783 = vsub.f32 %v6781, %v6782
    %v6784 = vand.u32 %v6783, 4294901760
    %6785 = vmatpush1.msra.mxu0 %v6784
    %v6786 = vand.u32 %v766, 4294901760
    %v6787 = vsub.f32 %v766, %v6786
    %v6788 = vand.u32 %v6787, 4294901760
    %v6789 = vsub.f32 %v6787, %v6788
    %v6790 = vand.u32 %v6789, 4294901760
    %6791 = vmatprep.subr.mxu0 %v6790
    %v6792 = vand.u32 %v765, 4294901760
    %v6793 = vsub.f32 %v765, %v6792
    %v6794 = vand.u32 %v6793, 4294901760
    %v6795 = vsub.f32 %v6793, %v6794
    %v6796 = vand.u32 %v6795, 4294901760
    %6797 = vmatpush1.msra.mxu0 %v6796
    %v6798 = vand.u32 %v782, 4294901760
    %v6799 = vsub.f32 %v782, %v6798
    %v6800 = vand.u32 %v6799, 4294901760
    %v6801 = vsub.f32 %v6799, %v6800
    %v6802 = vand.u32 %v6801, 4294901760
    %6803 = vmatprep.subr.mxu0 %v6802
    %v6804 = vand.u32 %v781, 4294901760
    %v6805 = vsub.f32 %v781, %v6804
    %v6806 = vand.u32 %v6805, 4294901760
    %v6807 = vsub.f32 %v6805, %v6806
    %v6808 = vand.u32 %v6807, 4294901760
    %6809 = vmatpush1.msra.mxu0 %v6808
    %v6810 = vand.u32 %v798, 4294901760
    %v6811 = vsub.f32 %v798, %v6810
    %v6812 = vand.u32 %v6811, 4294901760
    %v6813 = vsub.f32 %v6811, %v6812
    %v6814 = vand.u32 %v6813, 4294901760
    %6815 = vmatprep.subr.mxu0 %v6814
    %v6816 = vand.u32 %v797, 4294901760
    %v6817 = vsub.f32 %v797, %v6816
    %v6818 = vand.u32 %v6817, 4294901760
    %v6819 = vsub.f32 %v6817, %v6818
    %v6820 = vand.u32 %v6819, 4294901760
    %6821 = vmatpush1.msra.mxu0 %v6820
    %v6822 = vand.u32 %v814, 4294901760
    %v6823 = vsub.f32 %v814, %v6822
    %v6824 = vand.u32 %v6823, 4294901760
    %v6825 = vsub.f32 %v6823, %v6824
    %v6826 = vand.u32 %v6825, 4294901760
    %6827 = vmatprep.subr.mxu0 %v6826
    %v6828 = vand.u32 %v813, 4294901760
    %v6829 = vsub.f32 %v813, %v6828
    %v6830 = vand.u32 %v6829, 4294901760
    %v6831 = vsub.f32 %v6829, %v6830
    %v6832 = vand.u32 %v6831, 4294901760
    %6833 = vmatpush1.msra.mxu0 %v6832
    %v6834 = vand.u32 %v1214, 4294901760
    %v6835 = vsub.f32 %v1214, %v6834
    %v6836 = vand.u32 %v6835, 4294901760
    %v6837 = vsub.f32 %v6835, %v6836
    %v6838 = vand.u32 %v6837, 4294901760
    %6839 = vmatprep.subr.mxu0 %v6838
    %v6840 = vand.u32 %v1213, 4294901760
    %v6841 = vsub.f32 %v1213, %v6840
    %v6842 = vand.u32 %v6841, 4294901760
    %v6843 = vsub.f32 %v6841, %v6842
    %v6844 = vand.u32 %v6843, 4294901760
    %6845 = vmatpush1.msra.mxu0 %v6844
    %v6846 = vand.u32 %v1230, 4294901760
    %v6847 = vsub.f32 %v1230, %v6846
    %v6848 = vand.u32 %v6847, 4294901760
    %v6849 = vsub.f32 %v6847, %v6848
    %v6850 = vand.u32 %v6849, 4294901760
    %6851 = vmatprep.subr.mxu0 %v6850
    %v6852 = vand.u32 %v1229, 4294901760
    %v6853 = vsub.f32 %v1229, %v6852
    %v6854 = vand.u32 %v6853, 4294901760
    %v6855 = vsub.f32 %v6853, %v6854
    %v6856 = vand.u32 %v6855, 4294901760
    %6857 = vmatpush1.msra.mxu0 %v6856
    %v6858 = vand.u32 %v1246, 4294901760
    %v6859 = vsub.f32 %v1246, %v6858
    %v6860 = vand.u32 %v6859, 4294901760
    %v6861 = vsub.f32 %v6859, %v6860
    %v6862 = vand.u32 %v6861, 4294901760
    %6863 = vmatprep.subr.mxu0 %v6862
    %v6864 = vand.u32 %v1245, 4294901760
    %v6865 = vsub.f32 %v1245, %v6864
    %v6866 = vand.u32 %v6865, 4294901760
    %v6867 = vsub.f32 %v6865, %v6866
    %v6868 = vand.u32 %v6867, 4294901760
    %6869 = vmatpush1.msra.mxu0 %v6868
    %v6870 = vand.u32 %v1262, 4294901760
    %v6871 = vsub.f32 %v1262, %v6870
    %v6872 = vand.u32 %v6871, 4294901760
    %v6873 = vsub.f32 %v6871, %v6872
    %v6874 = vand.u32 %v6873, 4294901760
    %6875 = vmatprep.subr.mxu0 %v6874
    %v6876 = vand.u32 %v1261, 4294901760
    %v6877 = vsub.f32 %v1261, %v6876
    %v6878 = vand.u32 %v6877, 4294901760
    %v6879 = vsub.f32 %v6877, %v6878
    %v6880 = vand.u32 %v6879, 4294901760
    %6881 = vmatpush1.msra.mxu0 %v6880
    %v6882 = vand.u32 %v1278, 4294901760
    %v6883 = vsub.f32 %v1278, %v6882
    %v6884 = vand.u32 %v6883, 4294901760
    %v6885 = vsub.f32 %v6883, %v6884
    %v6886 = vand.u32 %v6885, 4294901760
    %6887 = vmatprep.subr.mxu0 %v6886
    %v6888 = vand.u32 %v1277, 4294901760
    %v6889 = vsub.f32 %v1277, %v6888
    %v6890 = vand.u32 %v6889, 4294901760
    %v6891 = vsub.f32 %v6889, %v6890
    %v6892 = vand.u32 %v6891, 4294901760
    %6893 = vmatpush1.msra.mxu0 %v6892
    %v6894 = vand.u32 %v1294, 4294901760
    %v6895 = vsub.f32 %v1294, %v6894
    %v6896 = vand.u32 %v6895, 4294901760
    %v6897 = vsub.f32 %v6895, %v6896
    %v6898 = vand.u32 %v6897, 4294901760
    %6899 = vmatprep.subr.mxu0 %v6898
    %v6900 = vand.u32 %v1293, 4294901760
    %v6901 = vsub.f32 %v1293, %v6900
    %v6902 = vand.u32 %v6901, 4294901760
    %v6903 = vsub.f32 %v6901, %v6902
    %v6904 = vand.u32 %v6903, 4294901760
    %6905 = vmatpush1.msra.mxu0 %v6904
    %v6906 = vand.u32 %v1310, 4294901760
    %v6907 = vsub.f32 %v1310, %v6906
    %v6908 = vand.u32 %v6907, 4294901760
    %v6909 = vsub.f32 %v6907, %v6908
    %v6910 = vand.u32 %v6909, 4294901760
    %6911 = vmatprep.subr.mxu0 %v6910
    %v6912 = vand.u32 %v1309, 4294901760
    %v6913 = vsub.f32 %v1309, %v6912
    %v6914 = vand.u32 %v6913, 4294901760
    %v6915 = vsub.f32 %v6913, %v6914
    %v6916 = vand.u32 %v6915, 4294901760
    %6917 = vmatpush1.msra.mxu0 %v6916
    %v6918 = vand.u32 %v1326, 4294901760
    %v6919 = vsub.f32 %v1326, %v6918
    %v6920 = vand.u32 %v6919, 4294901760
    %v6921 = vsub.f32 %v6919, %v6920
    %v6922 = vand.u32 %v6921, 4294901760
    %6923 = vmatprep.subr.mxu0 %v6922
    %v6924 = vand.u32 %v1325, 4294901760
    %v6925 = vsub.f32 %v1325, %v6924
    %v6926 = vand.u32 %v6925, 4294901760
    %v6927 = vsub.f32 %v6925, %v6926
    %v6928 = vand.u32 %v6927, 4294901760
    %6929 = vmatpush1.msra.mxu0 %v6928
    %6930 = vmatprep.subr.mxu0 0.0
    %6931 = vmatpush1.msra.mxu0 0.0
    %6932 = vmatprep.subr.mxu0 0.0
    %6933 = vmatpush1.msra.mxu0 0.0
    %6934 = vmatprep.subr.mxu0 0.0
    %6935 = vmatpush1.msra.mxu0 0.0
    %6936 = vmatprep.subr.mxu0 0.0
    %6937 = vmatpush1.msra.mxu0 0.0
    %6938 = vmatprep.subr.mxu0 0.0
    %6939 = vmatpush1.msra.mxu0 0.0
    %6940 = vmatprep.subr.mxu0 0.0
    %6941 = vmatpush1.msra.mxu0 0.0
    %6942 = vmatprep.subr.mxu0 0.0
    %6943 = vmatpush1.msra.mxu0 0.0
    %6944 = vmatprep.subr.mxu0 0.0
    %6945 = vmatpush1.msra.mxu0 0.0
    %6946 = vmatprep.subr.mxu0 0.0
    %6947 = vmatpush1.msra.mxu0 0.0
    %6948 = vmatprep.subr.mxu0 0.0
    %6949 = vmatpush1.msra.mxu0 0.0
    %6950 = vmatprep.subr.mxu0 0.0
    %6951 = vmatpush1.msra.mxu0 0.0
    %6952 = vmatprep.subr.mxu0 0.0
    %6953 = vmatpush1.msra.mxu0 0.0
    %6954 = vmatprep.subr.mxu0 0.0
    %6955 = vmatpush1.msra.mxu0 0.0
    %6956 = vmatprep.subr.mxu0 0.0
    %6957 = vmatpush1.msra.mxu0 0.0
    %6958 = vmatprep.subr.mxu0 0.0
    %6959 = vmatpush1.msra.mxu0 0.0
    %6960 = vmatprep.subr.mxu0 0.0
    %6961 = vmatpush1.msra.mxu0 0.0
    %6962 = vmatprep.mubr.f32.mxu0 0.0
    %v6963 = vand.u32 %v293, 4294901760
    %6964 = vmatmul.mubr.f32.gmra.mrb[0].mxu0 %v6963
    %v6965 = vpop.f32.mrb[0].mxu0
    %v6966 = vadd.f32 %v6690, %v6965
    %v6967 = vpop.f32.mrb[0].mxu0
    %v6968 = vadd.f32 %v6692, %v6967
    %6969 = vmatprep.mubr.f32.mxu0 0.0
    %v6970 = vand.u32 %v294, 4294901760
    %6971 = vmatmul.mubr.f32.gmra.mrb[0].mxu0 %v6970
    %v6972 = vpop.f32.mrb[0].mxu0
    %v6973 = vadd.f32 %v6701, %v6972
    %v6974 = vpop.f32.mrb[0].mxu0
    %v6975 = vadd.f32 %v6703, %v6974
    %6976 = vmatprep.mubr.f32.mxu0 0.0
    %v6977 = vand.u32 %v295, 4294901760
    %6978 = vmatmul.mubr.f32.gmra.mrb[0].mxu0 %v6977
    %v6979 = vpop.f32.mrb[0].mxu0
    %v6980 = vadd.f32 %v6712, %v6979
    %v6981 = vpop.f32.mrb[0].mxu0
    %v6982 = vadd.f32 %v6714, %v6981
    %6983 = vmatprep.mubr.f32.mxu0 0.0
    %v6984 = vand.u32 %v296, 4294901760
    %6985 = vmatmul.mubr.f32.gmra.mrb[0].mxu0 %v6984
    %v6986 = vpop.f32.mrb[0].mxu0
    %v6987 = vadd.f32 %v6723, %v6986
    %v6988 = vpop.f32.mrb[0].mxu0
    %v6989 = vadd.f32 %v6725, %v6988
    %6990 = vmatprep.mubr.f32.mxu0 0.0
    %v6991 = vand.u32 %v297, 4294901760
    %6992 = vmatmul.mubr.f32.gmra.mrb[0].mxu0 %v6991
    %v6993 = vpop.f32.mrb[0].mxu0
    %v6994 = vadd.f32 %v6734, %v6993
    %v6995 = vpop.f32.mrb[0].mxu0
    %v6996 = vadd.f32 %v6736, %v6995
    %6997 = vdwg.mxu0
    %v6998 = vand.u32 %v702, 4294901760
    %v6999 = vsub.f32 %v702, %v6998
    %7000 = vmatprep.subr.mxu0 %v6999
    %v7001 = vand.u32 %v701, 4294901760
    %v7002 = vsub.f32 %v701, %v7001
    %7003 = vmatpush1.msra.mxu0 %v7002
    %v7004 = vand.u32 %v718, 4294901760
    %v7005 = vsub.f32 %v718, %v7004
    %7006 = vmatprep.subr.mxu0 %v7005
    %v7007 = vand.u32 %v717, 4294901760
    %v7008 = vsub.f32 %v717, %v7007
    %7009 = vmatpush1.msra.mxu0 %v7008
    %v7010 = vand.u32 %v734, 4294901760
    %v7011 = vsub.f32 %v734, %v7010
    %7012 = vmatprep.subr.mxu0 %v7011
    %v7013 = vand.u32 %v733, 4294901760
    %v7014 = vsub.f32 %v733, %v7013
    %7015 = vmatpush1.msra.mxu0 %v7014
    %v7016 = vand.u32 %v750, 4294901760
    %v7017 = vsub.f32 %v750, %v7016
    %7018 = vmatprep.subr.mxu0 %v7017
    %v7019 = vand.u32 %v749, 4294901760
    %v7020 = vsub.f32 %v749, %v7019
    %7021 = vmatpush1.msra.mxu0 %v7020
    %v7022 = vand.u32 %v766, 4294901760
    %v7023 = vsub.f32 %v766, %v7022
    %7024 = vmatprep.subr.mxu0 %v7023
    %v7025 = vand.u32 %v765, 4294901760
    %v7026 = vsub.f32 %v765, %v7025
    %7027 = vmatpush1.msra.mxu0 %v7026
    %v7028 = vand.u32 %v782, 4294901760
    %v7029 = vsub.f32 %v782, %v7028
    %7030 = vmatprep.subr.mxu0 %v7029
    %v7031 = vand.u32 %v781, 4294901760
    %v7032 = vsub.f32 %v781, %v7031
    %7033 = vmatpush1.msra.mxu0 %v7032
    %v7034 = vand.u32 %v798, 4294901760
    %v7035 = vsub.f32 %v798, %v7034
    %7036 = vmatprep.subr.mxu0 %v7035
    %v7037 = vand.u32 %v797, 4294901760
    %v7038 = vsub.f32 %v797, %v7037
    %7039 = vmatpush1.msra.mxu0 %v7038
    %v7040 = vand.u32 %v814, 4294901760
    %v7041 = vsub.f32 %v814, %v7040
    %7042 = vmatprep.subr.mxu0 %v7041
    %v7043 = vand.u32 %v813, 4294901760
    %v7044 = vsub.f32 %v813, %v7043
    %7045 = vmatpush1.msra.mxu0 %v7044
    %v7046 = vand.u32 %v1214, 4294901760
    %v7047 = vsub.f32 %v1214, %v7046
    %7048 = vmatprep.subr.mxu0 %v7047
    %v7049 = vand.u32 %v1213, 4294901760
    %v7050 = vsub.f32 %v1213, %v7049
    %7051 = vmatpush1.msra.mxu0 %v7050
    %v7052 = vand.u32 %v1230, 4294901760
    %v7053 = vsub.f32 %v1230, %v7052
    %7054 = vmatprep.subr.mxu0 %v7053
    %v7055 = vand.u32 %v1229, 4294901760
    %v7056 = vsub.f32 %v1229, %v7055
    %7057 = vmatpush1.msra.mxu0 %v7056
    %v7058 = vand.u32 %v1246, 4294901760
    %v7059 = vsub.f32 %v1246, %v7058
    %7060 = vmatprep.subr.mxu0 %v7059
    %v7061 = vand.u32 %v1245, 4294901760
    %v7062 = vsub.f32 %v1245, %v7061
    %7063 = vmatpush1.msra.mxu0 %v7062
    %v7064 = vand.u32 %v1262, 4294901760
    %v7065 = vsub.f32 %v1262, %v7064
    %7066 = vmatprep.subr.mxu0 %v7065
    %v7067 = vand.u32 %v1261, 4294901760
    %v7068 = vsub.f32 %v1261, %v7067
    %7069 = vmatpush1.msra.mxu0 %v7068
    %v7070 = vand.u32 %v1278, 4294901760
    %v7071 = vsub.f32 %v1278, %v7070
    %7072 = vmatprep.subr.mxu0 %v7071
    %v7073 = vand.u32 %v1277, 4294901760
    %v7074 = vsub.f32 %v1277, %v7073
    %7075 = vmatpush1.msra.mxu0 %v7074
    %v7076 = vand.u32 %v1294, 4294901760
    %v7077 = vsub.f32 %v1294, %v7076
    %7078 = vmatprep.subr.mxu0 %v7077
    %v7079 = vand.u32 %v1293, 4294901760
    %v7080 = vsub.f32 %v1293, %v7079
    %7081 = vmatpush1.msra.mxu0 %v7080
    %v7082 = vand.u32 %v1310, 4294901760
    %v7083 = vsub.f32 %v1310, %v7082
    %7084 = vmatprep.subr.mxu0 %v7083
    %v7085 = vand.u32 %v1309, 4294901760
    %v7086 = vsub.f32 %v1309, %v7085
    %7087 = vmatpush1.msra.mxu0 %v7086
    %v7088 = vand.u32 %v1326, 4294901760
    %v7089 = vsub.f32 %v1326, %v7088
    %7090 = vmatprep.subr.mxu0 %v7089
    %v7091 = vand.u32 %v1325, 4294901760
    %v7092 = vsub.f32 %v1325, %v7091
    %7093 = vmatpush1.msra.mxu0 %v7092
    %7094 = vmatprep.subr.mxu0 0.0
    %7095 = vmatpush1.msra.mxu0 0.0
    %7096 = vmatprep.subr.mxu0 0.0
    %7097 = vmatpush1.msra.mxu0 0.0
    %7098 = vmatprep.subr.mxu0 0.0
    %7099 = vmatpush1.msra.mxu0 0.0
    %7100 = vmatprep.subr.mxu0 0.0
    %7101 = vmatpush1.msra.mxu0 0.0
    %7102 = vmatprep.subr.mxu0 0.0
    %7103 = vmatpush1.msra.mxu0 0.0
    %7104 = vmatprep.subr.mxu0 0.0
    %7105 = vmatpush1.msra.mxu0 0.0
    %7106 = vmatprep.subr.mxu0 0.0
    %7107 = vmatpush1.msra.mxu0 0.0
    %7108 = vmatprep.subr.mxu0 0.0
    %7109 = vmatpush1.msra.mxu0 0.0
    %7110 = vmatprep.subr.mxu0 0.0
    %7111 = vmatpush1.msra.mxu0 0.0
    %7112 = vmatprep.subr.mxu0 0.0
    %7113 = vmatpush1.msra.mxu0 0.0
    %7114 = vmatprep.subr.mxu0 0.0
    %7115 = vmatpush1.msra.mxu0 0.0
    %7116 = vmatprep.subr.mxu0 0.0
    %7117 = vmatpush1.msra.mxu0 0.0
    %7118 = vmatprep.subr.mxu0 0.0
    %7119 = vmatpush1.msra.mxu0 0.0
    %7120 = vmatprep.subr.mxu0 0.0
    %7121 = vmatpush1.msra.mxu0 0.0
    %7122 = vmatprep.subr.mxu0 0.0
    %7123 = vmatpush1.msra.mxu0 0.0
    %7124 = vmatprep.subr.mxu0 0.0
    %7125 = vmatpush1.msra.mxu0 0.0
    %7126 = vmatprep.mubr.f32.mxu0 0.0
    %v7127 = vand.u32 %v293, 4294901760
    %v7128 = vsub.f32 %v293, %v7127
    %7129 = vmatmul.mubr.f32.gmra.mrb[0].mxu0 %v7128
    %v7130 = vpop.f32.mrb[0].mxu0
    %v7131 = vadd.f32 %v6966, %v7130
    %v7132 = vpop.f32.mrb[0].mxu0
    %v7133 = vadd.f32 %v6968, %v7132
    %7134 = vmatprep.mubr.f32.mxu0 0.0
    %v7135 = vand.u32 %v294, 4294901760
    %v7136 = vsub.f32 %v294, %v7135
    %7137 = vmatmul.mubr.f32.gmra.mrb[0].mxu0 %v7136
    %v7138 = vpop.f32.mrb[0].mxu0
    %v7139 = vadd.f32 %v6973, %v7138
    %v7140 = vpop.f32.mrb[0].mxu0
    %v7141 = vadd.f32 %v6975, %v7140
    %7142 = vmatprep.mubr.f32.mxu0 0.0
    %v7143 = vand.u32 %v295, 4294901760
    %v7144 = vsub.f32 %v295, %v7143
    %7145 = vmatmul.mubr.f32.gmra.mrb[0].mxu0 %v7144
    %v7146 = vpop.f32.mrb[0].mxu0
    %v7147 = vadd.f32 %v6980, %v7146
    %v7148 = vpop.f32.mrb[0].mxu0
    %v7149 = vadd.f32 %v6982, %v7148
    %7150 = vmatprep.mubr.f32.mxu0 0.0
    %v7151 = vand.u32 %v296, 4294901760
    %v7152 = vsub.f32 %v296, %v7151
    %7153 = vmatmul.mubr.f32.gmra.mrb[0].mxu0 %v7152
    %v7154 = vpop.f32.mrb[0].mxu0
    %v7155 = vadd.f32 %v6987, %v7154
    %v7156 = vpop.f32.mrb[0].mxu0
    %v7157 = vadd.f32 %v6989, %v7156
    %7158 = vmatprep.mubr.f32.mxu0 0.0
    %v7159 = vand.u32 %v297, 4294901760
    %v7160 = vsub.f32 %v297, %v7159
    %7161 = vmatmul.mubr.f32.gmra.mrb[0].mxu0 %v7160
    %v7162 = vpop.f32.mrb[0].mxu0
    %v7163 = vadd.f32 %v6994, %v7162
    %v7164 = vpop.f32.mrb[0].mxu0
    %v7165 = vadd.f32 %v6996, %v7164
    %7166 = vdwg.mxu0
    %v7167 = vand.u32 %v702, 4294901760
    %7168 = vmatprep.subr.mxu0 %v7167
    %v7169 = vand.u32 %v701, 4294901760
    %7170 = vmatpush1.msra.mxu0 %v7169
    %v7171 = vand.u32 %v718, 4294901760
    %7172 = vmatprep.subr.mxu0 %v7171
    %v7173 = vand.u32 %v717, 4294901760
    %7174 = vmatpush1.msra.mxu0 %v7173
    %v7175 = vand.u32 %v734, 4294901760
    %7176 = vmatprep.subr.mxu0 %v7175
    %v7177 = vand.u32 %v733, 4294901760
    %7178 = vmatpush1.msra.mxu0 %v7177
    %v7179 = vand.u32 %v750, 4294901760
    %7180 = vmatprep.subr.mxu0 %v7179
    %v7181 = vand.u32 %v749, 4294901760
    %7182 = vmatpush1.msra.mxu0 %v7181
    %v7183 = vand.u32 %v766, 4294901760
    %7184 = vmatprep.subr.mxu0 %v7183
    %v7185 = vand.u32 %v765, 4294901760
    %7186 = vmatpush1.msra.mxu0 %v7185
    %v7187 = vand.u32 %v782, 4294901760
    %7188 = vmatprep.subr.mxu0 %v7187
    %v7189 = vand.u32 %v781, 4294901760
    %7190 = vmatpush1.msra.mxu0 %v7189
    %v7191 = vand.u32 %v798, 4294901760
    %7192 = vmatprep.subr.mxu0 %v7191
    %v7193 = vand.u32 %v797, 4294901760
    %7194 = vmatpush1.msra.mxu0 %v7193
    %v7195 = vand.u32 %v814, 4294901760
    %7196 = vmatprep.subr.mxu0 %v7195
    %v7197 = vand.u32 %v813, 4294901760
    %7198 = vmatpush1.msra.mxu0 %v7197
    %v7199 = vand.u32 %v1214, 4294901760
    %7200 = vmatprep.subr.mxu0 %v7199
    %v7201 = vand.u32 %v1213, 4294901760
    %7202 = vmatpush1.msra.mxu0 %v7201
    %v7203 = vand.u32 %v1230, 4294901760
    %7204 = vmatprep.subr.mxu0 %v7203
    %v7205 = vand.u32 %v1229, 4294901760
    %7206 = vmatpush1.msra.mxu0 %v7205
    %v7207 = vand.u32 %v1246, 4294901760
    %7208 = vmatprep.subr.mxu0 %v7207
    %v7209 = vand.u32 %v1245, 4294901760
    %7210 = vmatpush1.msra.mxu0 %v7209
    %v7211 = vand.u32 %v1262, 4294901760
    %7212 = vmatprep.subr.mxu0 %v7211
    %v7213 = vand.u32 %v1261, 4294901760
    %7214 = vmatpush1.msra.mxu0 %v7213
    %v7215 = vand.u32 %v1278, 4294901760
    %7216 = vmatprep.subr.mxu0 %v7215
    %v7217 = vand.u32 %v1277, 4294901760
    %7218 = vmatpush1.msra.mxu0 %v7217
    %v7219 = vand.u32 %v1294, 4294901760
    %7220 = vmatprep.subr.mxu0 %v7219
    %v7221 = vand.u32 %v1293, 4294901760
    %7222 = vmatpush1.msra.mxu0 %v7221
    %v7223 = vand.u32 %v1310, 4294901760
    %7224 = vmatprep.subr.mxu0 %v7223
    %v7225 = vand.u32 %v1309, 4294901760
    %7226 = vmatpush1.msra.mxu0 %v7225
    %v7227 = vand.u32 %v1326, 4294901760
    %7228 = vmatprep.subr.mxu0 %v7227
    %v7229 = vand.u32 %v1325, 4294901760
    %7230 = vmatpush1.msra.mxu0 %v7229
    %7231 = vmatprep.subr.mxu0 0.0
    %7232 = vmatpush1.msra.mxu0 0.0
    %7233 = vmatprep.subr.mxu0 0.0
    %7234 = vmatpush1.msra.mxu0 0.0
    %7235 = vmatprep.subr.mxu0 0.0
    %7236 = vmatpush1.msra.mxu0 0.0
    %7237 = vmatprep.subr.mxu0 0.0
    %7238 = vmatpush1.msra.mxu0 0.0
    %7239 = vmatprep.subr.mxu0 0.0
    %7240 = vmatpush1.msra.mxu0 0.0
    %7241 = vmatprep.subr.mxu0 0.0
    %7242 = vmatpush1.msra.mxu0 0.0
    %7243 = vmatprep.subr.mxu0 0.0
    %7244 = vmatpush1.msra.mxu0 0.0
    %7245 = vmatprep.subr.mxu0 0.0
    %7246 = vmatpush1.msra.mxu0 0.0
    %7247 = vmatprep.subr.mxu0 0.0
    %7248 = vmatpush1.msra.mxu0 0.0
    %7249 = vmatprep.subr.mxu0 0.0
    %7250 = vmatpush1.msra.mxu0 0.0
    %7251 = vmatprep.subr.mxu0 0.0
    %7252 = vmatpush1.msra.mxu0 0.0
    %7253 = vmatprep.subr.mxu0 0.0
    %7254 = vmatpush1.msra.mxu0 0.0
    %7255 = vmatprep.subr.mxu0 0.0
    %7256 = vmatpush1.msra.mxu0 0.0
    %7257 = vmatprep.subr.mxu0 0.0
    %7258 = vmatpush1.msra.mxu0 0.0
    %7259 = vmatprep.subr.mxu0 0.0
    %7260 = vmatpush1.msra.mxu0 0.0
    %7261 = vmatprep.subr.mxu0 0.0
    %7262 = vmatpush1.msra.mxu0 0.0
    %7263 = vmatprep.mubr.f32.mxu0 0.0
    %v7264 = vand.u32 %v293, 4294901760
    %v7265 = vsub.f32 %v293, %v7264
    %v7266 = vand.u32 %v7265, 4294901760
    %7267 = vmatmul.mubr.f32.gmra.mrb[0].mxu0 %v7266
    %v7268 = vpop.f32.mrb[0].mxu0
    %v7269 = vadd.f32 %v7131, %v7268
    %v7270 = vpop.f32.mrb[0].mxu0
    %v7271 = vadd.f32 %v7133, %v7270
    %7272 = vmatprep.mubr.f32.mxu0 0.0
    %v7273 = vand.u32 %v294, 4294901760
    %v7274 = vsub.f32 %v294, %v7273
    %v7275 = vand.u32 %v7274, 4294901760
    %7276 = vmatmul.mubr.f32.gmra.mrb[0].mxu0 %v7275
    %v7277 = vpop.f32.mrb[0].mxu0
    %v7278 = vadd.f32 %v7139, %v7277
    %v7279 = vpop.f32.mrb[0].mxu0
    %v7280 = vadd.f32 %v7141, %v7279
    %7281 = vmatprep.mubr.f32.mxu0 0.0
    %v7282 = vand.u32 %v295, 4294901760
    %v7283 = vsub.f32 %v295, %v7282
    %v7284 = vand.u32 %v7283, 4294901760
    %7285 = vmatmul.mubr.f32.gmra.mrb[0].mxu0 %v7284
    %v7286 = vpop.f32.mrb[0].mxu0
    %v7287 = vadd.f32 %v7147, %v7286
    %v7288 = vpop.f32.mrb[0].mxu0
    %v7289 = vadd.f32 %v7149, %v7288
    %7290 = vmatprep.mubr.f32.mxu0 0.0
    %v7291 = vand.u32 %v296, 4294901760
    %v7292 = vsub.f32 %v296, %v7291
    %v7293 = vand.u32 %v7292, 4294901760
    %7294 = vmatmul.mubr.f32.gmra.mrb[0].mxu0 %v7293
    %v7295 = vpop.f32.mrb[0].mxu0
    %v7296 = vadd.f32 %v7155, %v7295
    %v7297 = vpop.f32.mrb[0].mxu0
    %v7298 = vadd.f32 %v7157, %v7297
    %7299 = vmatprep.mubr.f32.mxu0 0.0
    %v7300 = vand.u32 %v297, 4294901760
    %v7301 = vsub.f32 %v297, %v7300
    %v7302 = vand.u32 %v7301, 4294901760
    %7303 = vmatmul.mubr.f32.gmra.mrb[0].mxu0 %v7302
    %v7304 = vpop.f32.mrb[0].mxu0
    %v7305 = vadd.f32 %v7163, %v7304
    %v7306 = vpop.f32.mrb[0].mxu0
    %v7307 = vadd.f32 %v7165, %v7306
    %7308 = vdwg.mxu0
    %v7309 = vand.u32 %v702, 4294901760
    %v7310 = vsub.f32 %v702, %v7309
    %v7311 = vand.u32 %v7310, 4294901760
    %7312 = vmatprep.subr.mxu0 %v7311
    %v7313 = vand.u32 %v701, 4294901760
    %v7314 = vsub.f32 %v701, %v7313
    %v7315 = vand.u32 %v7314, 4294901760
    %7316 = vmatpush1.msra.mxu0 %v7315
    %v7317 = vand.u32 %v718, 4294901760
    %v7318 = vsub.f32 %v718, %v7317
    %v7319 = vand.u32 %v7318, 4294901760
    %7320 = vmatprep.subr.mxu0 %v7319
    %v7321 = vand.u32 %v717, 4294901760
    %v7322 = vsub.f32 %v717, %v7321
    %v7323 = vand.u32 %v7322, 4294901760
    %7324 = vmatpush1.msra.mxu0 %v7323
    %v7325 = vand.u32 %v734, 4294901760
    %v7326 = vsub.f32 %v734, %v7325
    %v7327 = vand.u32 %v7326, 4294901760
    %7328 = vmatprep.subr.mxu0 %v7327
    %v7329 = vand.u32 %v733, 4294901760
    %v7330 = vsub.f32 %v733, %v7329
    %v7331 = vand.u32 %v7330, 4294901760
    %7332 = vmatpush1.msra.mxu0 %v7331
    %v7333 = vand.u32 %v750, 4294901760
    %v7334 = vsub.f32 %v750, %v7333
    %v7335 = vand.u32 %v7334, 4294901760
    %7336 = vmatprep.subr.mxu0 %v7335
    %v7337 = vand.u32 %v749, 4294901760
    %v7338 = vsub.f32 %v749, %v7337
    %v7339 = vand.u32 %v7338, 4294901760
    %7340 = vmatpush1.msra.mxu0 %v7339
    %v7341 = vand.u32 %v766, 4294901760
    %v7342 = vsub.f32 %v766, %v7341
    %v7343 = vand.u32 %v7342, 4294901760
    %7344 = vmatprep.subr.mxu0 %v7343
    %v7345 = vand.u32 %v765, 4294901760
    %v7346 = vsub.f32 %v765, %v7345
    %v7347 = vand.u32 %v7346, 4294901760
    %7348 = vmatpush1.msra.mxu0 %v7347
    %v7349 = vand.u32 %v782, 4294901760
    %v7350 = vsub.f32 %v782, %v7349
    %v7351 = vand.u32 %v7350, 4294901760
    %7352 = vmatprep.subr.mxu0 %v7351
    %v7353 = vand.u32 %v781, 4294901760
    %v7354 = vsub.f32 %v781, %v7353
    %v7355 = vand.u32 %v7354, 4294901760
    %7356 = vmatpush1.msra.mxu0 %v7355
    %v7357 = vand.u32 %v798, 4294901760
    %v7358 = vsub.f32 %v798, %v7357
    %v7359 = vand.u32 %v7358, 4294901760
    %7360 = vmatprep.subr.mxu0 %v7359
    %v7361 = vand.u32 %v797, 4294901760
    %v7362 = vsub.f32 %v797, %v7361
    %v7363 = vand.u32 %v7362, 4294901760
    %7364 = vmatpush1.msra.mxu0 %v7363
    %v7365 = vand.u32 %v814, 4294901760
    %v7366 = vsub.f32 %v814, %v7365
    %v7367 = vand.u32 %v7366, 4294901760
    %7368 = vmatprep.subr.mxu0 %v7367
    %v7369 = vand.u32 %v813, 4294901760
    %v7370 = vsub.f32 %v813, %v7369
    %v7371 = vand.u32 %v7370, 4294901760
    %7372 = vmatpush1.msra.mxu0 %v7371
    %v7373 = vand.u32 %v1214, 4294901760
    %v7374 = vsub.f32 %v1214, %v7373
    %v7375 = vand.u32 %v7374, 4294901760
    %7376 = vmatprep.subr.mxu0 %v7375
    %v7377 = vand.u32 %v1213, 4294901760
    %v7378 = vsub.f32 %v1213, %v7377
    %v7379 = vand.u32 %v7378, 4294901760
    %7380 = vmatpush1.msra.mxu0 %v7379
    %v7381 = vand.u32 %v1230, 4294901760
    %v7382 = vsub.f32 %v1230, %v7381
    %v7383 = vand.u32 %v7382, 4294901760
    %7384 = vmatprep.subr.mxu0 %v7383
    %v7385 = vand.u32 %v1229, 4294901760
    %v7386 = vsub.f32 %v1229, %v7385
    %v7387 = vand.u32 %v7386, 4294901760
    %7388 = vmatpush1.msra.mxu0 %v7387
    %v7389 = vand.u32 %v1246, 4294901760
    %v7390 = vsub.f32 %v1246, %v7389
    %v7391 = vand.u32 %v7390, 4294901760
    %7392 = vmatprep.subr.mxu0 %v7391
    %v7393 = vand.u32 %v1245, 4294901760
    %v7394 = vsub.f32 %v1245, %v7393
    %v7395 = vand.u32 %v7394, 4294901760
    %7396 = vmatpush1.msra.mxu0 %v7395
    %v7397 = vand.u32 %v1262, 4294901760
    %v7398 = vsub.f32 %v1262, %v7397
    %v7399 = vand.u32 %v7398, 4294901760
    %7400 = vmatprep.subr.mxu0 %v7399
    %v7401 = vand.u32 %v1261, 4294901760
    %v7402 = vsub.f32 %v1261, %v7401
    %v7403 = vand.u32 %v7402, 4294901760
    %7404 = vmatpush1.msra.mxu0 %v7403
    %v7405 = vand.u32 %v1278, 4294901760
    %v7406 = vsub.f32 %v1278, %v7405
    %v7407 = vand.u32 %v7406, 4294901760
    %7408 = vmatprep.subr.mxu0 %v7407
    %v7409 = vand.u32 %v1277, 4294901760
    %v7410 = vsub.f32 %v1277, %v7409
    %v7411 = vand.u32 %v7410, 4294901760
    %7412 = vmatpush1.msra.mxu0 %v7411
    %v7413 = vand.u32 %v1294, 4294901760
    %v7414 = vsub.f32 %v1294, %v7413
    %v7415 = vand.u32 %v7414, 4294901760
    %7416 = vmatprep.subr.mxu0 %v7415
    %v7417 = vand.u32 %v1293, 4294901760
    %v7418 = vsub.f32 %v1293, %v7417
    %v7419 = vand.u32 %v7418, 4294901760
    %7420 = vmatpush1.msra.mxu0 %v7419
    %v7421 = vand.u32 %v1310, 4294901760
    %v7422 = vsub.f32 %v1310, %v7421
    %v7423 = vand.u32 %v7422, 4294901760
    %7424 = vmatprep.subr.mxu0 %v7423
    %v7425 = vand.u32 %v1309, 4294901760
    %v7426 = vsub.f32 %v1309, %v7425
    %v7427 = vand.u32 %v7426, 4294901760
    %7428 = vmatpush1.msra.mxu0 %v7427
    %v7429 = vand.u32 %v1326, 4294901760
    %v7430 = vsub.f32 %v1326, %v7429
    %v7431 = vand.u32 %v7430, 4294901760
    %7432 = vmatprep.subr.mxu0 %v7431
    %v7433 = vand.u32 %v1325, 4294901760
    %v7434 = vsub.f32 %v1325, %v7433
    %v7435 = vand.u32 %v7434, 4294901760
    %7436 = vmatpush1.msra.mxu0 %v7435
    %7437 = vmatprep.subr.mxu0 0.0
    %7438 = vmatpush1.msra.mxu0 0.0
    %7439 = vmatprep.subr.mxu0 0.0
    %7440 = vmatpush1.msra.mxu0 0.0
    %7441 = vmatprep.subr.mxu0 0.0
    %7442 = vmatpush1.msra.mxu0 0.0
    %7443 = vmatprep.subr.mxu0 0.0
    %7444 = vmatpush1.msra.mxu0 0.0
    %7445 = vmatprep.subr.mxu0 0.0
    %7446 = vmatpush1.msra.mxu0 0.0
    %7447 = vmatprep.subr.mxu0 0.0
    %7448 = vmatpush1.msra.mxu0 0.0
    %7449 = vmatprep.subr.mxu0 0.0
    %7450 = vmatpush1.msra.mxu0 0.0
    %7451 = vmatprep.subr.mxu0 0.0
    %7452 = vmatpush1.msra.mxu0 0.0
    %7453 = vmatprep.subr.mxu0 0.0
    %7454 = vmatpush1.msra.mxu0 0.0
    %7455 = vmatprep.subr.mxu0 0.0
    %7456 = vmatpush1.msra.mxu0 0.0
    %7457 = vmatprep.subr.mxu0 0.0
    %7458 = vmatpush1.msra.mxu0 0.0
    %7459 = vmatprep.subr.mxu0 0.0
    %7460 = vmatpush1.msra.mxu0 0.0
    %7461 = vmatprep.subr.mxu0 0.0
    %7462 = vmatpush1.msra.mxu0 0.0
    %7463 = vmatprep.subr.mxu0 0.0
    %7464 = vmatpush1.msra.mxu0 0.0
    %7465 = vmatprep.subr.mxu0 0.0
    %7466 = vmatpush1.msra.mxu0 0.0
    %7467 = vmatprep.subr.mxu0 0.0
    %7468 = vmatpush1.msra.mxu0 0.0
    %7469 = vmatprep.mubr.f32.mxu0 0.0
    %v7470 = vand.u32 %v293, 4294901760
    %7471 = vmatmul.mubr.f32.gmra.mrb[0].mxu0 %v7470
    %v7472 = vpop.f32.mrb[0].mxu0
    %v7473 = vadd.f32 %v7269, %v7472
    %v7474 = vpop.f32.mrb[0].mxu0
    %v7475 = vadd.f32 %v7271, %v7474
    %7476 = vmatprep.mubr.f32.mxu0 0.0
    %v7477 = vand.u32 %v294, 4294901760
    %7478 = vmatmul.mubr.f32.gmra.mrb[0].mxu0 %v7477
    %v7479 = vpop.f32.mrb[0].mxu0
    %v7480 = vadd.f32 %v7278, %v7479
    %v7481 = vpop.f32.mrb[0].mxu0
    %v7482 = vadd.f32 %v7280, %v7481
    %7483 = vmatprep.mubr.f32.mxu0 0.0
    %v7484 = vand.u32 %v295, 4294901760
    %7485 = vmatmul.mubr.f32.gmra.mrb[0].mxu0 %v7484
    %v7486 = vpop.f32.mrb[0].mxu0
    %v7487 = vadd.f32 %v7287, %v7486
    %v7488 = vpop.f32.mrb[0].mxu0
    %v7489 = vadd.f32 %v7289, %v7488
    %7490 = vmatprep.mubr.f32.mxu0 0.0
    %v7491 = vand.u32 %v296, 4294901760
    %7492 = vmatmul.mubr.f32.gmra.mrb[0].mxu0 %v7491
    %v7493 = vpop.f32.mrb[0].mxu0
    %v7494 = vadd.f32 %v7296, %v7493
    %v7495 = vpop.f32.mrb[0].mxu0
    %v7496 = vadd.f32 %v7298, %v7495
    %7497 = vmatprep.mubr.f32.mxu0 0.0
    %v7498 = vand.u32 %v297, 4294901760
    %7499 = vmatmul.mubr.f32.gmra.mrb[0].mxu0 %v7498
    %v7500 = vpop.f32.mrb[0].mxu0
    %v7501 = vadd.f32 %v7305, %v7500
    %v7502 = vpop.f32.mrb[0].mxu0
    %v7503 = vadd.f32 %v7307, %v7502
    %7504 = vdwg.mxu0
    %v7505 = vand.u32 %v702, 4294901760
    %7506 = vmatprep.subr.mxu0 %v7505
    %v7507 = vand.u32 %v701, 4294901760
    %7508 = vmatpush1.msra.mxu0 %v7507
    %v7509 = vand.u32 %v718, 4294901760
    %7510 = vmatprep.subr.mxu0 %v7509
    %v7511 = vand.u32 %v717, 4294901760
    %7512 = vmatpush1.msra.mxu0 %v7511
    %v7513 = vand.u32 %v734, 4294901760
    %7514 = vmatprep.subr.mxu0 %v7513
    %v7515 = vand.u32 %v733, 4294901760
    %7516 = vmatpush1.msra.mxu0 %v7515
    %v7517 = vand.u32 %v750, 4294901760
    %7518 = vmatprep.subr.mxu0 %v7517
    %v7519 = vand.u32 %v749, 4294901760
    %7520 = vmatpush1.msra.mxu0 %v7519
    %v7521 = vand.u32 %v766, 4294901760
    %7522 = vmatprep.subr.mxu0 %v7521
    %v7523 = vand.u32 %v765, 4294901760
    %7524 = vmatpush1.msra.mxu0 %v7523
    %v7525 = vand.u32 %v782, 4294901760
    %7526 = vmatprep.subr.mxu0 %v7525
    %v7527 = vand.u32 %v781, 4294901760
    %7528 = vmatpush1.msra.mxu0 %v7527
    %v7529 = vand.u32 %v798, 4294901760
    %7530 = vmatprep.subr.mxu0 %v7529
    %v7531 = vand.u32 %v797, 4294901760
    %7532 = vmatpush1.msra.mxu0 %v7531
    %v7533 = vand.u32 %v814, 4294901760
    %7534 = vmatprep.subr.mxu0 %v7533
    %v7535 = vand.u32 %v813, 4294901760
    %7536 = vmatpush1.msra.mxu0 %v7535
    %v7537 = vand.u32 %v1214, 4294901760
    %7538 = vmatprep.subr.mxu0 %v7537
    %v7539 = vand.u32 %v1213, 4294901760
    %7540 = vmatpush1.msra.mxu0 %v7539
    %v7541 = vand.u32 %v1230, 4294901760
    %7542 = vmatprep.subr.mxu0 %v7541
    %v7543 = vand.u32 %v1229, 4294901760
    %7544 = vmatpush1.msra.mxu0 %v7543
    %v7545 = vand.u32 %v1246, 4294901760
    %7546 = vmatprep.subr.mxu0 %v7545
    %v7547 = vand.u32 %v1245, 4294901760
    %7548 = vmatpush1.msra.mxu0 %v7547
    %v7549 = vand.u32 %v1262, 4294901760
    %7550 = vmatprep.subr.mxu0 %v7549
    %v7551 = vand.u32 %v1261, 4294901760
    %7552 = vmatpush1.msra.mxu0 %v7551
    %v7553 = vand.u32 %v1278, 4294901760
    %7554 = vmatprep.subr.mxu0 %v7553
    %v7555 = vand.u32 %v1277, 4294901760
    %7556 = vmatpush1.msra.mxu0 %v7555
    %v7557 = vand.u32 %v1294, 4294901760
    %7558 = vmatprep.subr.mxu0 %v7557
    %v7559 = vand.u32 %v1293, 4294901760
    %7560 = vmatpush1.msra.mxu0 %v7559
    %v7561 = vand.u32 %v1310, 4294901760
    %7562 = vmatprep.subr.mxu0 %v7561
    %v7563 = vand.u32 %v1309, 4294901760
    %7564 = vmatpush1.msra.mxu0 %v7563
    %v7565 = vand.u32 %v1326, 4294901760
    %7566 = vmatprep.subr.mxu0 %v7565
    %v7567 = vand.u32 %v1325, 4294901760
    %7568 = vmatpush1.msra.mxu0 %v7567
    %7569 = vmatprep.subr.mxu0 0.0
    %7570 = vmatpush1.msra.mxu0 0.0
    %7571 = vmatprep.subr.mxu0 0.0
    %7572 = vmatpush1.msra.mxu0 0.0
    %7573 = vmatprep.subr.mxu0 0.0
    %7574 = vmatpush1.msra.mxu0 0.0
    %7575 = vmatprep.subr.mxu0 0.0
    %7576 = vmatpush1.msra.mxu0 0.0
    %7577 = vmatprep.subr.mxu0 0.0
    %7578 = vmatpush1.msra.mxu0 0.0
    %7579 = vmatprep.subr.mxu0 0.0
    %7580 = vmatpush1.msra.mxu0 0.0
    %7581 = vmatprep.subr.mxu0 0.0
    %7582 = vmatpush1.msra.mxu0 0.0
    %7583 = vmatprep.subr.mxu0 0.0
    %7584 = vmatpush1.msra.mxu0 0.0
    %7585 = vmatprep.subr.mxu0 0.0
    %7586 = vmatpush1.msra.mxu0 0.0
    %7587 = vmatprep.subr.mxu0 0.0
    %7588 = vmatpush1.msra.mxu0 0.0
    %7589 = vmatprep.subr.mxu0 0.0
    %7590 = vmatpush1.msra.mxu0 0.0
    %7591 = vmatprep.subr.mxu0 0.0
    %7592 = vmatpush1.msra.mxu0 0.0
    %7593 = vmatprep.subr.mxu0 0.0
    %7594 = vmatpush1.msra.mxu0 0.0
    %7595 = vmatprep.subr.mxu0 0.0
    %7596 = vmatpush1.msra.mxu0 0.0
    %7597 = vmatprep.subr.mxu0 0.0
    %7598 = vmatpush1.msra.mxu0 0.0
    %7599 = vmatprep.subr.mxu0 0.0
    %7600 = vmatpush1.msra.mxu0 0.0
    %7601 = vmatprep.mubr.f32.mxu0 0.0
    %v7602 = vand.u32 %v293, 4294901760
    %7603 = vmatmul.mubr.f32.gmra.mrb[0].mxu0 %v7602
    %v7604 = vpop.f32.mrb[0].mxu0
    %v7605 = vadd.f32 %v7473, %v7604
    %v7606 = vpop.f32.mrb[0].mxu0
    %v7607 = vadd.f32 %v7475, %v7606
    %7608 = vmatprep.mubr.f32.mxu0 0.0
    %v7609 = vand.u32 %v294, 4294901760
    %7610 = vmatmul.mubr.f32.gmra.mrb[0].mxu0 %v7609
    %v7611 = vpop.f32.mrb[0].mxu0
    %v7612 = vadd.f32 %v7480, %v7611
    %v7613 = vpop.f32.mrb[0].mxu0
    %v7614 = vadd.f32 %v7482, %v7613
    %7615 = vmatprep.mubr.f32.mxu0 0.0
    %v7616 = vand.u32 %v295, 4294901760
    %7617 = vmatmul.mubr.f32.gmra.mrb[0].mxu0 %v7616
    %v7618 = vpop.f32.mrb[0].mxu0
    %v7619 = vadd.f32 %v7487, %v7618
    %v7620 = vpop.f32.mrb[0].mxu0
    %v7621 = vadd.f32 %v7489, %v7620
    %7622 = vmatprep.mubr.f32.mxu0 0.0
    %v7623 = vand.u32 %v296, 4294901760
    %7624 = vmatmul.mubr.f32.gmra.mrb[0].mxu0 %v7623
    %v7625 = vpop.f32.mrb[0].mxu0
    %v7626 = vadd.f32 %v7494, %v7625
    %v7627 = vpop.f32.mrb[0].mxu0
    %v7628 = vadd.f32 %v7496, %v7627
    %7629 = vmatprep.mubr.f32.mxu0 0.0
    %v7630 = vand.u32 %v297, 4294901760
    %7631 = vmatmul.mubr.f32.gmra.mrb[0].mxu0 %v7630
    %v7632 = vpop.f32.mrb[0].mxu0
    %v7633 = vadd.f32 %v7501, %v7632
    %v7634 = vpop.f32.mrb[0].mxu0
    %v7635 = vadd.f32 %v7503, %v7634
    %7636 = vdwg.mxu0
    %v7637 = vand.u32 %v704, 4294901760
    %7638 = vmatprep.subr.mxu0 %v7637
    %v7639 = vand.u32 %v703, 4294901760
    %7640 = vmatpush1.msra.mxu0 %v7639
    %v7641 = vand.u32 %v720, 4294901760
    %7642 = vmatprep.subr.mxu0 %v7641
    %v7643 = vand.u32 %v719, 4294901760
    %7644 = vmatpush1.msra.mxu0 %v7643
    %v7645 = vand.u32 %v736, 4294901760
    %7646 = vmatprep.subr.mxu0 %v7645
    %v7647 = vand.u32 %v735, 4294901760
    %7648 = vmatpush1.msra.mxu0 %v7647
    %v7649 = vand.u32 %v752, 4294901760
    %7650 = vmatprep.subr.mxu0 %v7649
    %v7651 = vand.u32 %v751, 4294901760
    %7652 = vmatpush1.msra.mxu0 %v7651
    %v7653 = vand.u32 %v768, 4294901760
    %7654 = vmatprep.subr.mxu0 %v7653
    %v7655 = vand.u32 %v767, 4294901760
    %7656 = vmatpush1.msra.mxu0 %v7655
    %v7657 = vand.u32 %v784, 4294901760
    %7658 = vmatprep.subr.mxu0 %v7657
    %v7659 = vand.u32 %v783, 4294901760
    %7660 = vmatpush1.msra.mxu0 %v7659
    %v7661 = vand.u32 %v800, 4294901760
    %7662 = vmatprep.subr.mxu0 %v7661
    %v7663 = vand.u32 %v799, 4294901760
    %7664 = vmatpush1.msra.mxu0 %v7663
    %v7665 = vand.u32 %v816, 4294901760
    %7666 = vmatprep.subr.mxu0 %v7665
    %v7667 = vand.u32 %v815, 4294901760
    %7668 = vmatpush1.msra.mxu0 %v7667
    %v7669 = vand.u32 %v1216, 4294901760
    %7670 = vmatprep.subr.mxu0 %v7669
    %v7671 = vand.u32 %v1215, 4294901760
    %7672 = vmatpush1.msra.mxu0 %v7671
    %v7673 = vand.u32 %v1232, 4294901760
    %7674 = vmatprep.subr.mxu0 %v7673
    %v7675 = vand.u32 %v1231, 4294901760
    %7676 = vmatpush1.msra.mxu0 %v7675
    %v7677 = vand.u32 %v1248, 4294901760
    %7678 = vmatprep.subr.mxu0 %v7677
    %v7679 = vand.u32 %v1247, 4294901760
    %7680 = vmatpush1.msra.mxu0 %v7679
    %v7681 = vand.u32 %v1264, 4294901760
    %7682 = vmatprep.subr.mxu0 %v7681
    %v7683 = vand.u32 %v1263, 4294901760
    %7684 = vmatpush1.msra.mxu0 %v7683
    %v7685 = vand.u32 %v1280, 4294901760
    %7686 = vmatprep.subr.mxu0 %v7685
    %v7687 = vand.u32 %v1279, 4294901760
    %7688 = vmatpush1.msra.mxu0 %v7687
    %v7689 = vand.u32 %v1296, 4294901760
    %7690 = vmatprep.subr.mxu0 %v7689
    %v7691 = vand.u32 %v1295, 4294901760
    %7692 = vmatpush1.msra.mxu0 %v7691
    %v7693 = vand.u32 %v1312, 4294901760
    %7694 = vmatprep.subr.mxu0 %v7693
    %v7695 = vand.u32 %v1311, 4294901760
    %7696 = vmatpush1.msra.mxu0 %v7695
    %v7697 = vand.u32 %v1328, 4294901760
    %7698 = vmatprep.subr.mxu0 %v7697
    %v7699 = vand.u32 %v1327, 4294901760
    %7700 = vmatpush1.msra.mxu0 %v7699
    %7701 = vmatprep.subr.mxu0 0.0
    %7702 = vmatpush1.msra.mxu0 0.0
    %7703 = vmatprep.subr.mxu0 0.0
    %7704 = vmatpush1.msra.mxu0 0.0
    %7705 = vmatprep.subr.mxu0 0.0
    %7706 = vmatpush1.msra.mxu0 0.0
    %7707 = vmatprep.subr.mxu0 0.0
    %7708 = vmatpush1.msra.mxu0 0.0
    %7709 = vmatprep.subr.mxu0 0.0
    %7710 = vmatpush1.msra.mxu0 0.0
    %7711 = vmatprep.subr.mxu0 0.0
    %7712 = vmatpush1.msra.mxu0 0.0
    %7713 = vmatprep.subr.mxu0 0.0
    %7714 = vmatpush1.msra.mxu0 0.0
    %7715 = vmatprep.subr.mxu0 0.0
    %7716 = vmatpush1.msra.mxu0 0.0
    %7717 = vmatprep.subr.mxu0 0.0
    %7718 = vmatpush1.msra.mxu0 0.0
    %7719 = vmatprep.subr.mxu0 0.0
    %7720 = vmatpush1.msra.mxu0 0.0
    %7721 = vmatprep.subr.mxu0 0.0
    %7722 = vmatpush1.msra.mxu0 0.0
    %7723 = vmatprep.subr.mxu0 0.0
    %7724 = vmatpush1.msra.mxu0 0.0
    %7725 = vmatprep.subr.mxu0 0.0
    %7726 = vmatpush1.msra.mxu0 0.0
    %7727 = vmatprep.subr.mxu0 0.0
    %7728 = vmatpush1.msra.mxu0 0.0
    %7729 = vmatprep.subr.mxu0 0.0
    %7730 = vmatpush1.msra.mxu0 0.0
    %7731 = vmatprep.subr.mxu0 0.0
    %7732 = vmatpush1.msra.mxu0 0.0
    %7733 = vmatprep.mubr.f32.mxu0 0.0
    %v7734 = vand.u32 %v293, 4294901760
    %v7735 = vsub.f32 %v293, %v7734
    %v7736 = vand.u32 %v7735, 4294901760
    %v7737 = vsub.f32 %v7735, %v7736
    %v7738 = vand.u32 %v7737, 4294901760
    %7739 = vmatmul.mubr.f32.gmra.mrb[0].mxu0 %v7738
    %v7740 = vpop.f32.mrb[0].mxu0
    %v7741 = vadd.f32 0.0, %v7740
    %v7742 = vpop.f32.mrb[0].mxu0
    %v7743 = vadd.f32 0.0, %v7742
    %7744 = vmatprep.mubr.f32.mxu0 0.0
    %v7745 = vand.u32 %v294, 4294901760
    %v7746 = vsub.f32 %v294, %v7745
    %v7747 = vand.u32 %v7746, 4294901760
    %v7748 = vsub.f32 %v7746, %v7747
    %v7749 = vand.u32 %v7748, 4294901760
    %7750 = vmatmul.mubr.f32.gmra.mrb[0].mxu0 %v7749
    %v7751 = vpop.f32.mrb[0].mxu0
    %v7752 = vadd.f32 0.0, %v7751
    %v7753 = vpop.f32.mrb[0].mxu0
    %v7754 = vadd.f32 0.0, %v7753
    %7755 = vmatprep.mubr.f32.mxu0 0.0
    %v7756 = vand.u32 %v295, 4294901760
    %v7757 = vsub.f32 %v295, %v7756
    %v7758 = vand.u32 %v7757, 4294901760
    %v7759 = vsub.f32 %v7757, %v7758
    %v7760 = vand.u32 %v7759, 4294901760
    %7761 = vmatmul.mubr.f32.gmra.mrb[0].mxu0 %v7760
    %v7762 = vpop.f32.mrb[0].mxu0
    %v7763 = vadd.f32 0.0, %v7762
    %v7764 = vpop.f32.mrb[0].mxu0
    %v7765 = vadd.f32 0.0, %v7764
    %7766 = vmatprep.mubr.f32.mxu0 0.0
    %v7767 = vand.u32 %v296, 4294901760
    %v7768 = vsub.f32 %v296, %v7767
    %v7769 = vand.u32 %v7768, 4294901760
    %v7770 = vsub.f32 %v7768, %v7769
    %v7771 = vand.u32 %v7770, 4294901760
    %7772 = vmatmul.mubr.f32.gmra.mrb[0].mxu0 %v7771
    %v7773 = vpop.f32.mrb[0].mxu0
    %v7774 = vadd.f32 0.0, %v7773
    %v7775 = vpop.f32.mrb[0].mxu0
    %v7776 = vadd.f32 0.0, %v7775
    %7777 = vmatprep.mubr.f32.mxu0 0.0
    %v7778 = vand.u32 %v297, 4294901760
    %v7779 = vsub.f32 %v297, %v7778
    %v7780 = vand.u32 %v7779, 4294901760
    %v7781 = vsub.f32 %v7779, %v7780
    %v7782 = vand.u32 %v7781, 4294901760
    %7783 = vmatmul.mubr.f32.gmra.mrb[0].mxu0 %v7782
    %v7784 = vpop.f32.mrb[0].mxu0
    %v7785 = vadd.f32 0.0, %v7784
    %v7786 = vpop.f32.mrb[0].mxu0
    %v7787 = vadd.f32 0.0, %v7786
    %7788 = vdwg.mxu0
    %v7789 = vand.u32 %v704, 4294901760
    %v7790 = vsub.f32 %v704, %v7789
    %v7791 = vand.u32 %v7790, 4294901760
    %v7792 = vsub.f32 %v7790, %v7791
    %v7793 = vand.u32 %v7792, 4294901760
    %7794 = vmatprep.subr.mxu0 %v7793
    %v7795 = vand.u32 %v703, 4294901760
    %v7796 = vsub.f32 %v703, %v7795
    %v7797 = vand.u32 %v7796, 4294901760
    %v7798 = vsub.f32 %v7796, %v7797
    %v7799 = vand.u32 %v7798, 4294901760
    %7800 = vmatpush1.msra.mxu0 %v7799
    %v7801 = vand.u32 %v720, 4294901760
    %v7802 = vsub.f32 %v720, %v7801
    %v7803 = vand.u32 %v7802, 4294901760
    %v7804 = vsub.f32 %v7802, %v7803
    %v7805 = vand.u32 %v7804, 4294901760
    %7806 = vmatprep.subr.mxu0 %v7805
    %v7807 = vand.u32 %v719, 4294901760
    %v7808 = vsub.f32 %v719, %v7807
    %v7809 = vand.u32 %v7808, 4294901760
    %v7810 = vsub.f32 %v7808, %v7809
    %v7811 = vand.u32 %v7810, 4294901760
    %7812 = vmatpush1.msra.mxu0 %v7811
    %v7813 = vand.u32 %v736, 4294901760
    %v7814 = vsub.f32 %v736, %v7813
    %v7815 = vand.u32 %v7814, 4294901760
    %v7816 = vsub.f32 %v7814, %v7815
    %v7817 = vand.u32 %v7816, 4294901760
    %7818 = vmatprep.subr.mxu0 %v7817
    %v7819 = vand.u32 %v735, 4294901760
    %v7820 = vsub.f32 %v735, %v7819
    %v7821 = vand.u32 %v7820, 4294901760
    %v7822 = vsub.f32 %v7820, %v7821
    %v7823 = vand.u32 %v7822, 4294901760
    %7824 = vmatpush1.msra.mxu0 %v7823
    %v7825 = vand.u32 %v752, 4294901760
    %v7826 = vsub.f32 %v752, %v7825
    %v7827 = vand.u32 %v7826, 4294901760
    %v7828 = vsub.f32 %v7826, %v7827
    %v7829 = vand.u32 %v7828, 4294901760
    %7830 = vmatprep.subr.mxu0 %v7829
    %v7831 = vand.u32 %v751, 4294901760
    %v7832 = vsub.f32 %v751, %v7831
    %v7833 = vand.u32 %v7832, 4294901760
    %v7834 = vsub.f32 %v7832, %v7833
    %v7835 = vand.u32 %v7834, 4294901760
    %7836 = vmatpush1.msra.mxu0 %v7835
    %v7837 = vand.u32 %v768, 4294901760
    %v7838 = vsub.f32 %v768, %v7837
    %v7839 = vand.u32 %v7838, 4294901760
    %v7840 = vsub.f32 %v7838, %v7839
    %v7841 = vand.u32 %v7840, 4294901760
    %7842 = vmatprep.subr.mxu0 %v7841
    %v7843 = vand.u32 %v767, 4294901760
    %v7844 = vsub.f32 %v767, %v7843
    %v7845 = vand.u32 %v7844, 4294901760
    %v7846 = vsub.f32 %v7844, %v7845
    %v7847 = vand.u32 %v7846, 4294901760
    %7848 = vmatpush1.msra.mxu0 %v7847
    %v7849 = vand.u32 %v784, 4294901760
    %v7850 = vsub.f32 %v784, %v7849
    %v7851 = vand.u32 %v7850, 4294901760
    %v7852 = vsub.f32 %v7850, %v7851
    %v7853 = vand.u32 %v7852, 4294901760
    %7854 = vmatprep.subr.mxu0 %v7853
    %v7855 = vand.u32 %v783, 4294901760
    %v7856 = vsub.f32 %v783, %v7855
    %v7857 = vand.u32 %v7856, 4294901760
    %v7858 = vsub.f32 %v7856, %v7857
    %v7859 = vand.u32 %v7858, 4294901760
    %7860 = vmatpush1.msra.mxu0 %v7859
    %v7861 = vand.u32 %v800, 4294901760
    %v7862 = vsub.f32 %v800, %v7861
    %v7863 = vand.u32 %v7862, 4294901760
    %v7864 = vsub.f32 %v7862, %v7863
    %v7865 = vand.u32 %v7864, 4294901760
    %7866 = vmatprep.subr.mxu0 %v7865
    %v7867 = vand.u32 %v799, 4294901760
    %v7868 = vsub.f32 %v799, %v7867
    %v7869 = vand.u32 %v7868, 4294901760
    %v7870 = vsub.f32 %v7868, %v7869
    %v7871 = vand.u32 %v7870, 4294901760
    %7872 = vmatpush1.msra.mxu0 %v7871
    %v7873 = vand.u32 %v816, 4294901760
    %v7874 = vsub.f32 %v816, %v7873
    %v7875 = vand.u32 %v7874, 4294901760
    %v7876 = vsub.f32 %v7874, %v7875
    %v7877 = vand.u32 %v7876, 4294901760
    %7878 = vmatprep.subr.mxu0 %v7877
    %v7879 = vand.u32 %v815, 4294901760
    %v7880 = vsub.f32 %v815, %v7879
    %v7881 = vand.u32 %v7880, 4294901760
    %v7882 = vsub.f32 %v7880, %v7881
    %v7883 = vand.u32 %v7882, 4294901760
    %7884 = vmatpush1.msra.mxu0 %v7883
    %v7885 = vand.u32 %v1216, 4294901760
    %v7886 = vsub.f32 %v1216, %v7885
    %v7887 = vand.u32 %v7886, 4294901760
    %v7888 = vsub.f32 %v7886, %v7887
    %v7889 = vand.u32 %v7888, 4294901760
    %7890 = vmatprep.subr.mxu0 %v7889
    %v7891 = vand.u32 %v1215, 4294901760
    %v7892 = vsub.f32 %v1215, %v7891
    %v7893 = vand.u32 %v7892, 4294901760
    %v7894 = vsub.f32 %v7892, %v7893
    %v7895 = vand.u32 %v7894, 4294901760
    %7896 = vmatpush1.msra.mxu0 %v7895
    %v7897 = vand.u32 %v1232, 4294901760
    %v7898 = vsub.f32 %v1232, %v7897
    %v7899 = vand.u32 %v7898, 4294901760
    %v7900 = vsub.f32 %v7898, %v7899
    %v7901 = vand.u32 %v7900, 4294901760
    %7902 = vmatprep.subr.mxu0 %v7901
    %v7903 = vand.u32 %v1231, 4294901760
    %v7904 = vsub.f32 %v1231, %v7903
    %v7905 = vand.u32 %v7904, 4294901760
    %v7906 = vsub.f32 %v7904, %v7905
    %v7907 = vand.u32 %v7906, 4294901760
    %7908 = vmatpush1.msra.mxu0 %v7907
    %v7909 = vand.u32 %v1248, 4294901760
    %v7910 = vsub.f32 %v1248, %v7909
    %v7911 = vand.u32 %v7910, 4294901760
    %v7912 = vsub.f32 %v7910, %v7911
    %v7913 = vand.u32 %v7912, 4294901760
    %7914 = vmatprep.subr.mxu0 %v7913
    %v7915 = vand.u32 %v1247, 4294901760
    %v7916 = vsub.f32 %v1247, %v7915
    %v7917 = vand.u32 %v7916, 4294901760
    %v7918 = vsub.f32 %v7916, %v7917
    %v7919 = vand.u32 %v7918, 4294901760
    %7920 = vmatpush1.msra.mxu0 %v7919
    %v7921 = vand.u32 %v1264, 4294901760
    %v7922 = vsub.f32 %v1264, %v7921
    %v7923 = vand.u32 %v7922, 4294901760
    %v7924 = vsub.f32 %v7922, %v7923
    %v7925 = vand.u32 %v7924, 4294901760
    %7926 = vmatprep.subr.mxu0 %v7925
    %v7927 = vand.u32 %v1263, 4294901760
    %v7928 = vsub.f32 %v1263, %v7927
    %v7929 = vand.u32 %v7928, 4294901760
    %v7930 = vsub.f32 %v7928, %v7929
    %v7931 = vand.u32 %v7930, 4294901760
    %7932 = vmatpush1.msra.mxu0 %v7931
    %v7933 = vand.u32 %v1280, 4294901760
    %v7934 = vsub.f32 %v1280, %v7933
    %v7935 = vand.u32 %v7934, 4294901760
    %v7936 = vsub.f32 %v7934, %v7935
    %v7937 = vand.u32 %v7936, 4294901760
    %7938 = vmatprep.subr.mxu0 %v7937
    %v7939 = vand.u32 %v1279, 4294901760
    %v7940 = vsub.f32 %v1279, %v7939
    %v7941 = vand.u32 %v7940, 4294901760
    %v7942 = vsub.f32 %v7940, %v7941
    %v7943 = vand.u32 %v7942, 4294901760
    %7944 = vmatpush1.msra.mxu0 %v7943
    %v7945 = vand.u32 %v1296, 4294901760
    %v7946 = vsub.f32 %v1296, %v7945
    %v7947 = vand.u32 %v7946, 4294901760
    %v7948 = vsub.f32 %v7946, %v7947
    %v7949 = vand.u32 %v7948, 4294901760
    %7950 = vmatprep.subr.mxu0 %v7949
    %v7951 = vand.u32 %v1295, 4294901760
    %v7952 = vsub.f32 %v1295, %v7951
    %v7953 = vand.u32 %v7952, 4294901760
    %v7954 = vsub.f32 %v7952, %v7953
    %v7955 = vand.u32 %v7954, 4294901760
    %7956 = vmatpush1.msra.mxu0 %v7955
    %v7957 = vand.u32 %v1312, 4294901760
    %v7958 = vsub.f32 %v1312, %v7957
    %v7959 = vand.u32 %v7958, 4294901760
    %v7960 = vsub.f32 %v7958, %v7959
    %v7961 = vand.u32 %v7960, 4294901760
    %7962 = vmatprep.subr.mxu0 %v7961
    %v7963 = vand.u32 %v1311, 4294901760
    %v7964 = vsub.f32 %v1311, %v7963
    %v7965 = vand.u32 %v7964, 4294901760
    %v7966 = vsub.f32 %v7964, %v7965
    %v7967 = vand.u32 %v7966, 4294901760
    %7968 = vmatpush1.msra.mxu0 %v7967
    %v7969 = vand.u32 %v1328, 4294901760
    %v7970 = vsub.f32 %v1328, %v7969
    %v7971 = vand.u32 %v7970, 4294901760
    %v7972 = vsub.f32 %v7970, %v7971
    %v7973 = vand.u32 %v7972, 4294901760
    %7974 = vmatprep.subr.mxu0 %v7973
    %v7975 = vand.u32 %v1327, 4294901760
    %v7976 = vsub.f32 %v1327, %v7975
    %v7977 = vand.u32 %v7976, 4294901760
    %v7978 = vsub.f32 %v7976, %v7977
    %v7979 = vand.u32 %v7978, 4294901760
    %7980 = vmatpush1.msra.mxu0 %v7979
    %7981 = vmatprep.subr.mxu0 0.0
    %7982 = vmatpush1.msra.mxu0 0.0
    %7983 = vmatprep.subr.mxu0 0.0
    %7984 = vmatpush1.msra.mxu0 0.0
    %7985 = vmatprep.subr.mxu0 0.0
    %7986 = vmatpush1.msra.mxu0 0.0
    %7987 = vmatprep.subr.mxu0 0.0
    %7988 = vmatpush1.msra.mxu0 0.0
    %7989 = vmatprep.subr.mxu0 0.0
    %7990 = vmatpush1.msra.mxu0 0.0
    %7991 = vmatprep.subr.mxu0 0.0
    %7992 = vmatpush1.msra.mxu0 0.0
    %7993 = vmatprep.subr.mxu0 0.0
    %7994 = vmatpush1.msra.mxu0 0.0
    %7995 = vmatprep.subr.mxu0 0.0
    %7996 = vmatpush1.msra.mxu0 0.0
    %7997 = vmatprep.subr.mxu0 0.0
    %7998 = vmatpush1.msra.mxu0 0.0
    %7999 = vmatprep.subr.mxu0 0.0
    %8000 = vmatpush1.msra.mxu0 0.0
    %8001 = vmatprep.subr.mxu0 0.0
    %8002 = vmatpush1.msra.mxu0 0.0
    %8003 = vmatprep.subr.mxu0 0.0
    %8004 = vmatpush1.msra.mxu0 0.0
    %8005 = vmatprep.subr.mxu0 0.0
    %8006 = vmatpush1.msra.mxu0 0.0
    %8007 = vmatprep.subr.mxu0 0.0
    %8008 = vmatpush1.msra.mxu0 0.0
    %8009 = vmatprep.subr.mxu0 0.0
    %8010 = vmatpush1.msra.mxu0 0.0
    %8011 = vmatprep.subr.mxu0 0.0
    %8012 = vmatpush1.msra.mxu0 0.0
    %8013 = vmatprep.mubr.f32.mxu0 0.0
    %v8014 = vand.u32 %v293, 4294901760
    %8015 = vmatmul.mubr.f32.gmra.mrb[0].mxu0 %v8014
    %v8016 = vpop.f32.mrb[0].mxu0
    %v8017 = vadd.f32 %v7741, %v8016
    %v8018 = vpop.f32.mrb[0].mxu0
    %v8019 = vadd.f32 %v7743, %v8018
    %8020 = vmatprep.mubr.f32.mxu0 0.0
    %v8021 = vand.u32 %v294, 4294901760
    %8022 = vmatmul.mubr.f32.gmra.mrb[0].mxu0 %v8021
    %v8023 = vpop.f32.mrb[0].mxu0
    %v8024 = vadd.f32 %v7752, %v8023
    %v8025 = vpop.f32.mrb[0].mxu0
    %v8026 = vadd.f32 %v7754, %v8025
    %8027 = vmatprep.mubr.f32.mxu0 0.0
    %v8028 = vand.u32 %v295, 4294901760
    %8029 = vmatmul.mubr.f32.gmra.mrb[0].mxu0 %v8028
    %v8030 = vpop.f32.mrb[0].mxu0
    %v8031 = vadd.f32 %v7763, %v8030
    %v8032 = vpop.f32.mrb[0].mxu0
    %v8033 = vadd.f32 %v7765, %v8032
    %8034 = vmatprep.mubr.f32.mxu0 0.0
    %v8035 = vand.u32 %v296, 4294901760
    %8036 = vmatmul.mubr.f32.gmra.mrb[0].mxu0 %v8035
    %v8037 = vpop.f32.mrb[0].mxu0
    %v8038 = vadd.f32 %v7774, %v8037
    %v8039 = vpop.f32.mrb[0].mxu0
    %v8040 = vadd.f32 %v7776, %v8039
    %8041 = vmatprep.mubr.f32.mxu0 0.0
    %v8042 = vand.u32 %v297, 4294901760
    %8043 = vmatmul.mubr.f32.gmra.mrb[0].mxu0 %v8042
    %v8044 = vpop.f32.mrb[0].mxu0
    %v8045 = vadd.f32 %v7785, %v8044
    %v8046 = vpop.f32.mrb[0].mxu0
    %v8047 = vadd.f32 %v7787, %v8046
    %8048 = vdwg.mxu0
    %v8049 = vand.u32 %v704, 4294901760
    %v8050 = vsub.f32 %v704, %v8049
    %8051 = vmatprep.subr.mxu0 %v8050
    %v8052 = vand.u32 %v703, 4294901760
    %v8053 = vsub.f32 %v703, %v8052
    %8054 = vmatpush1.msra.mxu0 %v8053
    %v8055 = vand.u32 %v720, 4294901760
    %v8056 = vsub.f32 %v720, %v8055
    %8057 = vmatprep.subr.mxu0 %v8056
    %v8058 = vand.u32 %v719, 4294901760
    %v8059 = vsub.f32 %v719, %v8058
    %8060 = vmatpush1.msra.mxu0 %v8059
    %v8061 = vand.u32 %v736, 4294901760
    %v8062 = vsub.f32 %v736, %v8061
    %8063 = vmatprep.subr.mxu0 %v8062
    %v8064 = vand.u32 %v735, 4294901760
    %v8065 = vsub.f32 %v735, %v8064
    %8066 = vmatpush1.msra.mxu0 %v8065
    %v8067 = vand.u32 %v752, 4294901760
    %v8068 = vsub.f32 %v752, %v8067
    %8069 = vmatprep.subr.mxu0 %v8068
    %v8070 = vand.u32 %v751, 4294901760
    %v8071 = vsub.f32 %v751, %v8070
    %8072 = vmatpush1.msra.mxu0 %v8071
    %v8073 = vand.u32 %v768, 4294901760
    %v8074 = vsub.f32 %v768, %v8073
    %8075 = vmatprep.subr.mxu0 %v8074
    %v8076 = vand.u32 %v767, 4294901760
    %v8077 = vsub.f32 %v767, %v8076
    %8078 = vmatpush1.msra.mxu0 %v8077
    %v8079 = vand.u32 %v784, 4294901760
    %v8080 = vsub.f32 %v784, %v8079
    %8081 = vmatprep.subr.mxu0 %v8080
    %v8082 = vand.u32 %v783, 4294901760
    %v8083 = vsub.f32 %v783, %v8082
    %8084 = vmatpush1.msra.mxu0 %v8083
    %v8085 = vand.u32 %v800, 4294901760
    %v8086 = vsub.f32 %v800, %v8085
    %8087 = vmatprep.subr.mxu0 %v8086
    %v8088 = vand.u32 %v799, 4294901760
    %v8089 = vsub.f32 %v799, %v8088
    %8090 = vmatpush1.msra.mxu0 %v8089
    %v8091 = vand.u32 %v816, 4294901760
    %v8092 = vsub.f32 %v816, %v8091
    %8093 = vmatprep.subr.mxu0 %v8092
    %v8094 = vand.u32 %v815, 4294901760
    %v8095 = vsub.f32 %v815, %v8094
    %8096 = vmatpush1.msra.mxu0 %v8095
    %v8097 = vand.u32 %v1216, 4294901760
    %v8098 = vsub.f32 %v1216, %v8097
    %8099 = vmatprep.subr.mxu0 %v8098
    %v8100 = vand.u32 %v1215, 4294901760
    %v8101 = vsub.f32 %v1215, %v8100
    %8102 = vmatpush1.msra.mxu0 %v8101
    %v8103 = vand.u32 %v1232, 4294901760
    %v8104 = vsub.f32 %v1232, %v8103
    %8105 = vmatprep.subr.mxu0 %v8104
    %v8106 = vand.u32 %v1231, 4294901760
    %v8107 = vsub.f32 %v1231, %v8106
    %8108 = vmatpush1.msra.mxu0 %v8107
    %v8109 = vand.u32 %v1248, 4294901760
    %v8110 = vsub.f32 %v1248, %v8109
    %8111 = vmatprep.subr.mxu0 %v8110
    %v8112 = vand.u32 %v1247, 4294901760
    %v8113 = vsub.f32 %v1247, %v8112
    %8114 = vmatpush1.msra.mxu0 %v8113
    %v8115 = vand.u32 %v1264, 4294901760
    %v8116 = vsub.f32 %v1264, %v8115
    %8117 = vmatprep.subr.mxu0 %v8116
    %v8118 = vand.u32 %v1263, 4294901760
    %v8119 = vsub.f32 %v1263, %v8118
    %8120 = vmatpush1.msra.mxu0 %v8119
    %v8121 = vand.u32 %v1280, 4294901760
    %v8122 = vsub.f32 %v1280, %v8121
    %8123 = vmatprep.subr.mxu0 %v8122
    %v8124 = vand.u32 %v1279, 4294901760
    %v8125 = vsub.f32 %v1279, %v8124
    %8126 = vmatpush1.msra.mxu0 %v8125
    %v8127 = vand.u32 %v1296, 4294901760
    %v8128 = vsub.f32 %v1296, %v8127
    %8129 = vmatprep.subr.mxu0 %v8128
    %v8130 = vand.u32 %v1295, 4294901760
    %v8131 = vsub.f32 %v1295, %v8130
    %8132 = vmatpush1.msra.mxu0 %v8131
    %v8133 = vand.u32 %v1312, 4294901760
    %v8134 = vsub.f32 %v1312, %v8133
    %8135 = vmatprep.subr.mxu0 %v8134
    %v8136 = vand.u32 %v1311, 4294901760
    %v8137 = vsub.f32 %v1311, %v8136
    %8138 = vmatpush1.msra.mxu0 %v8137
    %v8139 = vand.u32 %v1328, 4294901760
    %v8140 = vsub.f32 %v1328, %v8139
    %8141 = vmatprep.subr.mxu0 %v8140
    %v8142 = vand.u32 %v1327, 4294901760
    %v8143 = vsub.f32 %v1327, %v8142
    %8144 = vmatpush1.msra.mxu0 %v8143
    %8145 = vmatprep.subr.mxu0 0.0
    %8146 = vmatpush1.msra.mxu0 0.0
    %8147 = vmatprep.subr.mxu0 0.0
    %8148 = vmatpush1.msra.mxu0 0.0
    %8149 = vmatprep.subr.mxu0 0.0
    %8150 = vmatpush1.msra.mxu0 0.0
    %8151 = vmatprep.subr.mxu0 0.0
    %8152 = vmatpush1.msra.mxu0 0.0
    %8153 = vmatprep.subr.mxu0 0.0
    %8154 = vmatpush1.msra.mxu0 0.0
    %8155 = vmatprep.subr.mxu0 0.0
    %8156 = vmatpush1.msra.mxu0 0.0
    %8157 = vmatprep.subr.mxu0 0.0
    %8158 = vmatpush1.msra.mxu0 0.0
    %8159 = vmatprep.subr.mxu0 0.0
    %8160 = vmatpush1.msra.mxu0 0.0
    %8161 = vmatprep.subr.mxu0 0.0
    %8162 = vmatpush1.msra.mxu0 0.0
    %8163 = vmatprep.subr.mxu0 0.0
    %8164 = vmatpush1.msra.mxu0 0.0
    %8165 = vmatprep.subr.mxu0 0.0
    %8166 = vmatpush1.msra.mxu0 0.0
    %8167 = vmatprep.subr.mxu0 0.0
    %8168 = vmatpush1.msra.mxu0 0.0
    %8169 = vmatprep.subr.mxu0 0.0
    %8170 = vmatpush1.msra.mxu0 0.0
    %8171 = vmatprep.subr.mxu0 0.0
    %8172 = vmatpush1.msra.mxu0 0.0
    %8173 = vmatprep.subr.mxu0 0.0
    %8174 = vmatpush1.msra.mxu0 0.0
    %8175 = vmatprep.subr.mxu0 0.0
    %8176 = vmatpush1.msra.mxu0 0.0
    %8177 = vmatprep.mubr.f32.mxu0 0.0
    %v8178 = vand.u32 %v293, 4294901760
    %v8179 = vsub.f32 %v293, %v8178
    %8180 = vmatmul.mubr.f32.gmra.mrb[0].mxu0 %v8179
    %v8181 = vpop.f32.mrb[0].mxu0
    %v8182 = vadd.f32 %v8017, %v8181
    %v8183 = vpop.f32.mrb[0].mxu0
    %v8184 = vadd.f32 %v8019, %v8183
    %8185 = vmatprep.mubr.f32.mxu0 0.0
    %v8186 = vand.u32 %v294, 4294901760
    %v8187 = vsub.f32 %v294, %v8186
    %8188 = vmatmul.mubr.f32.gmra.mrb[0].mxu0 %v8187
    %v8189 = vpop.f32.mrb[0].mxu0
    %v8190 = vadd.f32 %v8024, %v8189
    %v8191 = vpop.f32.mrb[0].mxu0
    %v8192 = vadd.f32 %v8026, %v8191
    %8193 = vmatprep.mubr.f32.mxu0 0.0
    %v8194 = vand.u32 %v295, 4294901760
    %v8195 = vsub.f32 %v295, %v8194
    %8196 = vmatmul.mubr.f32.gmra.mrb[0].mxu0 %v8195
    %v8197 = vpop.f32.mrb[0].mxu0
    %v8198 = vadd.f32 %v8031, %v8197
    %v8199 = vpop.f32.mrb[0].mxu0
    %v8200 = vadd.f32 %v8033, %v8199
    %8201 = vmatprep.mubr.f32.mxu0 0.0
    %v8202 = vand.u32 %v296, 4294901760
    %v8203 = vsub.f32 %v296, %v8202
    %8204 = vmatmul.mubr.f32.gmra.mrb[0].mxu0 %v8203
    %v8205 = vpop.f32.mrb[0].mxu0
    %v8206 = vadd.f32 %v8038, %v8205
    %v8207 = vpop.f32.mrb[0].mxu0
    %v8208 = vadd.f32 %v8040, %v8207
    %8209 = vmatprep.mubr.f32.mxu0 0.0
    %v8210 = vand.u32 %v297, 4294901760
    %v8211 = vsub.f32 %v297, %v8210
    %8212 = vmatmul.mubr.f32.gmra.mrb[0].mxu0 %v8211
    %v8213 = vpop.f32.mrb[0].mxu0
    %v8214 = vadd.f32 %v8045, %v8213
    %v8215 = vpop.f32.mrb[0].mxu0
    %v8216 = vadd.f32 %v8047, %v8215
    %8217 = vdwg.mxu0
    %v8218 = vand.u32 %v704, 4294901760
    %8219 = vmatprep.subr.mxu0 %v8218
    %v8220 = vand.u32 %v703, 4294901760
    %8221 = vmatpush1.msra.mxu0 %v8220
    %v8222 = vand.u32 %v720, 4294901760
    %8223 = vmatprep.subr.mxu0 %v8222
    %v8224 = vand.u32 %v719, 4294901760
    %8225 = vmatpush1.msra.mxu0 %v8224
    %v8226 = vand.u32 %v736, 4294901760
    %8227 = vmatprep.subr.mxu0 %v8226
    %v8228 = vand.u32 %v735, 4294901760
    %8229 = vmatpush1.msra.mxu0 %v8228
    %v8230 = vand.u32 %v752, 4294901760
    %8231 = vmatprep.subr.mxu0 %v8230
    %v8232 = vand.u32 %v751, 4294901760
    %8233 = vmatpush1.msra.mxu0 %v8232
    %v8234 = vand.u32 %v768, 4294901760
    %8235 = vmatprep.subr.mxu0 %v8234
    %v8236 = vand.u32 %v767, 4294901760
    %8237 = vmatpush1.msra.mxu0 %v8236
    %v8238 = vand.u32 %v784, 4294901760
    %8239 = vmatprep.subr.mxu0 %v8238
    %v8240 = vand.u32 %v783, 4294901760
    %8241 = vmatpush1.msra.mxu0 %v8240
    %v8242 = vand.u32 %v800, 4294901760
    %8243 = vmatprep.subr.mxu0 %v8242
    %v8244 = vand.u32 %v799, 4294901760
    %8245 = vmatpush1.msra.mxu0 %v8244
    %v8246 = vand.u32 %v816, 4294901760
    %8247 = vmatprep.subr.mxu0 %v8246
    %v8248 = vand.u32 %v815, 4294901760
    %8249 = vmatpush1.msra.mxu0 %v8248
    %v8250 = vand.u32 %v1216, 4294901760
    %8251 = vmatprep.subr.mxu0 %v8250
    %v8252 = vand.u32 %v1215, 4294901760
    %8253 = vmatpush1.msra.mxu0 %v8252
    %v8254 = vand.u32 %v1232, 4294901760
    %8255 = vmatprep.subr.mxu0 %v8254
    %v8256 = vand.u32 %v1231, 4294901760
    %8257 = vmatpush1.msra.mxu0 %v8256
    %v8258 = vand.u32 %v1248, 4294901760
    %8259 = vmatprep.subr.mxu0 %v8258
    %v8260 = vand.u32 %v1247, 4294901760
    %8261 = vmatpush1.msra.mxu0 %v8260
    %v8262 = vand.u32 %v1264, 4294901760
    %8263 = vmatprep.subr.mxu0 %v8262
    %v8264 = vand.u32 %v1263, 4294901760
    %8265 = vmatpush1.msra.mxu0 %v8264
    %v8266 = vand.u32 %v1280, 4294901760
    %8267 = vmatprep.subr.mxu0 %v8266
    %v8268 = vand.u32 %v1279, 4294901760
    %8269 = vmatpush1.msra.mxu0 %v8268
    %v8270 = vand.u32 %v1296, 4294901760
    %8271 = vmatprep.subr.mxu0 %v8270
    %v8272 = vand.u32 %v1295, 4294901760
    %8273 = vmatpush1.msra.mxu0 %v8272
    %v8274 = vand.u32 %v1312, 4294901760
    %8275 = vmatprep.subr.mxu0 %v8274
    %v8276 = vand.u32 %v1311, 4294901760
    %8277 = vmatpush1.msra.mxu0 %v8276
    %v8278 = vand.u32 %v1328, 4294901760
    %8279 = vmatprep.subr.mxu0 %v8278
    %v8280 = vand.u32 %v1327, 4294901760
    %8281 = vmatpush1.msra.mxu0 %v8280
    %8282 = vmatprep.subr.mxu0 0.0
    %8283 = vmatpush1.msra.mxu0 0.0
    %8284 = vmatprep.subr.mxu0 0.0
    %8285 = vmatpush1.msra.mxu0 0.0
    %8286 = vmatprep.subr.mxu0 0.0
    %8287 = vmatpush1.msra.mxu0 0.0
    %8288 = vmatprep.subr.mxu0 0.0
    %8289 = vmatpush1.msra.mxu0 0.0
    %8290 = vmatprep.subr.mxu0 0.0
    %8291 = vmatpush1.msra.mxu0 0.0
    %8292 = vmatprep.subr.mxu0 0.0
    %8293 = vmatpush1.msra.mxu0 0.0
    %8294 = vmatprep.subr.mxu0 0.0
    %8295 = vmatpush1.msra.mxu0 0.0
    %8296 = vmatprep.subr.mxu0 0.0
    %8297 = vmatpush1.msra.mxu0 0.0
    %8298 = vmatprep.subr.mxu0 0.0
    %8299 = vmatpush1.msra.mxu0 0.0
    %8300 = vmatprep.subr.mxu0 0.0
    %8301 = vmatpush1.msra.mxu0 0.0
    %8302 = vmatprep.subr.mxu0 0.0
    %8303 = vmatpush1.msra.mxu0 0.0
    %8304 = vmatprep.subr.mxu0 0.0
    %8305 = vmatpush1.msra.mxu0 0.0
    %8306 = vmatprep.subr.mxu0 0.0
    %8307 = vmatpush1.msra.mxu0 0.0
    %8308 = vmatprep.subr.mxu0 0.0
    %8309 = vmatpush1.msra.mxu0 0.0
    %8310 = vmatprep.subr.mxu0 0.0
    %8311 = vmatpush1.msra.mxu0 0.0
    %8312 = vmatprep.subr.mxu0 0.0
    %8313 = vmatpush1.msra.mxu0 0.0
    %8314 = vmatprep.mubr.f32.mxu0 0.0
    %v8315 = vand.u32 %v293, 4294901760
    %v8316 = vsub.f32 %v293, %v8315
    %v8317 = vand.u32 %v8316, 4294901760
    %8318 = vmatmul.mubr.f32.gmra.mrb[0].mxu0 %v8317
    %v8319 = vpop.f32.mrb[0].mxu0
    %v8320 = vadd.f32 %v8182, %v8319
    %v8321 = vpop.f32.mrb[0].mxu0
    %v8322 = vadd.f32 %v8184, %v8321
    %8323 = vmatprep.mubr.f32.mxu0 0.0
    %v8324 = vand.u32 %v294, 4294901760
    %v8325 = vsub.f32 %v294, %v8324
    %v8326 = vand.u32 %v8325, 4294901760
    %8327 = vmatmul.mubr.f32.gmra.mrb[0].mxu0 %v8326
    %v8328 = vpop.f32.mrb[0].mxu0
    %v8329 = vadd.f32 %v8190, %v8328
    %v8330 = vpop.f32.mrb[0].mxu0
    %v8331 = vadd.f32 %v8192, %v8330
    %8332 = vmatprep.mubr.f32.mxu0 0.0
    %v8333 = vand.u32 %v295, 4294901760
    %v8334 = vsub.f32 %v295, %v8333
    %v8335 = vand.u32 %v8334, 4294901760
    %8336 = vmatmul.mubr.f32.gmra.mrb[0].mxu0 %v8335
    %v8337 = vpop.f32.mrb[0].mxu0
    %v8338 = vadd.f32 %v8198, %v8337
    %v8339 = vpop.f32.mrb[0].mxu0
    %v8340 = vadd.f32 %v8200, %v8339
    %8341 = vmatprep.mubr.f32.mxu0 0.0
    %v8342 = vand.u32 %v296, 4294901760
    %v8343 = vsub.f32 %v296, %v8342
    %v8344 = vand.u32 %v8343, 4294901760
    %8345 = vmatmul.mubr.f32.gmra.mrb[0].mxu0 %v8344
    %v8346 = vpop.f32.mrb[0].mxu0
    %v8347 = vadd.f32 %v8206, %v8346
    %v8348 = vpop.f32.mrb[0].mxu0
    %v8349 = vadd.f32 %v8208, %v8348
    %8350 = vmatprep.mubr.f32.mxu0 0.0
    %v8351 = vand.u32 %v297, 4294901760
    %v8352 = vsub.f32 %v297, %v8351
    %v8353 = vand.u32 %v8352, 4294901760
    %8354 = vmatmul.mubr.f32.gmra.mrb[0].mxu0 %v8353
    %v8355 = vpop.f32.mrb[0].mxu0
    %v8356 = vadd.f32 %v8214, %v8355
    %v8357 = vpop.f32.mrb[0].mxu0
    %v8358 = vadd.f32 %v8216, %v8357
    %8359 = vdwg.mxu0
    %v8360 = vand.u32 %v704, 4294901760
    %v8361 = vsub.f32 %v704, %v8360
    %v8362 = vand.u32 %v8361, 4294901760
    %8363 = vmatprep.subr.mxu0 %v8362
    %v8364 = vand.u32 %v703, 4294901760
    %v8365 = vsub.f32 %v703, %v8364
    %v8366 = vand.u32 %v8365, 4294901760
    %8367 = vmatpush1.msra.mxu0 %v8366
    %v8368 = vand.u32 %v720, 4294901760
    %v8369 = vsub.f32 %v720, %v8368
    %v8370 = vand.u32 %v8369, 4294901760
    %8371 = vmatprep.subr.mxu0 %v8370
    %v8372 = vand.u32 %v719, 4294901760
    %v8373 = vsub.f32 %v719, %v8372
    %v8374 = vand.u32 %v8373, 4294901760
    %8375 = vmatpush1.msra.mxu0 %v8374
    %v8376 = vand.u32 %v736, 4294901760
    %v8377 = vsub.f32 %v736, %v8376
    %v8378 = vand.u32 %v8377, 4294901760
    %8379 = vmatprep.subr.mxu0 %v8378
    %v8380 = vand.u32 %v735, 4294901760
    %v8381 = vsub.f32 %v735, %v8380
    %v8382 = vand.u32 %v8381, 4294901760
    %8383 = vmatpush1.msra.mxu0 %v8382
    %v8384 = vand.u32 %v752, 4294901760
    %v8385 = vsub.f32 %v752, %v8384
    %v8386 = vand.u32 %v8385, 4294901760
    %8387 = vmatprep.subr.mxu0 %v8386
    %v8388 = vand.u32 %v751, 4294901760
    %v8389 = vsub.f32 %v751, %v8388
    %v8390 = vand.u32 %v8389, 4294901760
    %8391 = vmatpush1.msra.mxu0 %v8390
    %v8392 = vand.u32 %v768, 4294901760
    %v8393 = vsub.f32 %v768, %v8392
    %v8394 = vand.u32 %v8393, 4294901760
    %8395 = vmatprep.subr.mxu0 %v8394
    %v8396 = vand.u32 %v767, 4294901760
    %v8397 = vsub.f32 %v767, %v8396
    %v8398 = vand.u32 %v8397, 4294901760
    %8399 = vmatpush1.msra.mxu0 %v8398
    %v8400 = vand.u32 %v784, 4294901760
    %v8401 = vsub.f32 %v784, %v8400
    %v8402 = vand.u32 %v8401, 4294901760
    %8403 = vmatprep.subr.mxu0 %v8402
    %v8404 = vand.u32 %v783, 4294901760
    %v8405 = vsub.f32 %v783, %v8404
    %v8406 = vand.u32 %v8405, 4294901760
    %8407 = vmatpush1.msra.mxu0 %v8406
    %v8408 = vand.u32 %v800, 4294901760
    %v8409 = vsub.f32 %v800, %v8408
    %v8410 = vand.u32 %v8409, 4294901760
    %8411 = vmatprep.subr.mxu0 %v8410
    %v8412 = vand.u32 %v799, 4294901760
    %v8413 = vsub.f32 %v799, %v8412
    %v8414 = vand.u32 %v8413, 4294901760
    %8415 = vmatpush1.msra.mxu0 %v8414
    %v8416 = vand.u32 %v816, 4294901760
    %v8417 = vsub.f32 %v816, %v8416
    %v8418 = vand.u32 %v8417, 4294901760
    %8419 = vmatprep.subr.mxu0 %v8418
    %v8420 = vand.u32 %v815, 4294901760
    %v8421 = vsub.f32 %v815, %v8420
    %v8422 = vand.u32 %v8421, 4294901760
    %8423 = vmatpush1.msra.mxu0 %v8422
    %v8424 = vand.u32 %v1216, 4294901760
    %v8425 = vsub.f32 %v1216, %v8424
    %v8426 = vand.u32 %v8425, 4294901760
    %8427 = vmatprep.subr.mxu0 %v8426
    %v8428 = vand.u32 %v1215, 4294901760
    %v8429 = vsub.f32 %v1215, %v8428
    %v8430 = vand.u32 %v8429, 4294901760
    %8431 = vmatpush1.msra.mxu0 %v8430
    %v8432 = vand.u32 %v1232, 4294901760
    %v8433 = vsub.f32 %v1232, %v8432
    %v8434 = vand.u32 %v8433, 4294901760
    %8435 = vmatprep.subr.mxu0 %v8434
    %v8436 = vand.u32 %v1231, 4294901760
    %v8437 = vsub.f32 %v1231, %v8436
    %v8438 = vand.u32 %v8437, 4294901760
    %8439 = vmatpush1.msra.mxu0 %v8438
    %v8440 = vand.u32 %v1248, 4294901760
    %v8441 = vsub.f32 %v1248, %v8440
    %v8442 = vand.u32 %v8441, 4294901760
    %8443 = vmatprep.subr.mxu0 %v8442
    %v8444 = vand.u32 %v1247, 4294901760
    %v8445 = vsub.f32 %v1247, %v8444
    %v8446 = vand.u32 %v8445, 4294901760
    %8447 = vmatpush1.msra.mxu0 %v8446
    %v8448 = vand.u32 %v1264, 4294901760
    %v8449 = vsub.f32 %v1264, %v8448
    %v8450 = vand.u32 %v8449, 4294901760
    %8451 = vmatprep.subr.mxu0 %v8450
    %v8452 = vand.u32 %v1263, 4294901760
    %v8453 = vsub.f32 %v1263, %v8452
    %v8454 = vand.u32 %v8453, 4294901760
    %8455 = vmatpush1.msra.mxu0 %v8454
    %v8456 = vand.u32 %v1280, 4294901760
    %v8457 = vsub.f32 %v1280, %v8456
    %v8458 = vand.u32 %v8457, 4294901760
    %8459 = vmatprep.subr.mxu0 %v8458
    %v8460 = vand.u32 %v1279, 4294901760
    %v8461 = vsub.f32 %v1279, %v8460
    %v8462 = vand.u32 %v8461, 4294901760
    %8463 = vmatpush1.msra.mxu0 %v8462
    %v8464 = vand.u32 %v1296, 4294901760
    %v8465 = vsub.f32 %v1296, %v8464
    %v8466 = vand.u32 %v8465, 4294901760
    %8467 = vmatprep.subr.mxu0 %v8466
    %v8468 = vand.u32 %v1295, 4294901760
    %v8469 = vsub.f32 %v1295, %v8468
    %v8470 = vand.u32 %v8469, 4294901760
    %8471 = vmatpush1.msra.mxu0 %v8470
    %v8472 = vand.u32 %v1312, 4294901760
    %v8473 = vsub.f32 %v1312, %v8472
    %v8474 = vand.u32 %v8473, 4294901760
    %8475 = vmatprep.subr.mxu0 %v8474
    %v8476 = vand.u32 %v1311, 4294901760
    %v8477 = vsub.f32 %v1311, %v8476
    %v8478 = vand.u32 %v8477, 4294901760
    %8479 = vmatpush1.msra.mxu0 %v8478
    %v8480 = vand.u32 %v1328, 4294901760
    %v8481 = vsub.f32 %v1328, %v8480
    %v8482 = vand.u32 %v8481, 4294901760
    %8483 = vmatprep.subr.mxu0 %v8482
    %v8484 = vand.u32 %v1327, 4294901760
    %v8485 = vsub.f32 %v1327, %v8484
    %v8486 = vand.u32 %v8485, 4294901760
    %8487 = vmatpush1.msra.mxu0 %v8486
    %8488 = vmatprep.subr.mxu0 0.0
    %8489 = vmatpush1.msra.mxu0 0.0
    %8490 = vmatprep.subr.mxu0 0.0
    %8491 = vmatpush1.msra.mxu0 0.0
    %8492 = vmatprep.subr.mxu0 0.0
    %8493 = vmatpush1.msra.mxu0 0.0
    %8494 = vmatprep.subr.mxu0 0.0
    %8495 = vmatpush1.msra.mxu0 0.0
    %8496 = vmatprep.subr.mxu0 0.0
    %8497 = vmatpush1.msra.mxu0 0.0
    %8498 = vmatprep.subr.mxu0 0.0
    %8499 = vmatpush1.msra.mxu0 0.0
    %8500 = vmatprep.subr.mxu0 0.0
    %8501 = vmatpush1.msra.mxu0 0.0
    %8502 = vmatprep.subr.mxu0 0.0
    %8503 = vmatpush1.msra.mxu0 0.0
    %8504 = vmatprep.subr.mxu0 0.0
    %8505 = vmatpush1.msra.mxu0 0.0
    %8506 = vmatprep.subr.mxu0 0.0
    %8507 = vmatpush1.msra.mxu0 0.0
    %8508 = vmatprep.subr.mxu0 0.0
    %8509 = vmatpush1.msra.mxu0 0.0
    %8510 = vmatprep.subr.mxu0 0.0
    %8511 = vmatpush1.msra.mxu0 0.0
    %8512 = vmatprep.subr.mxu0 0.0
    %8513 = vmatpush1.msra.mxu0 0.0
    %8514 = vmatprep.subr.mxu0 0.0
    %8515 = vmatpush1.msra.mxu0 0.0
    %8516 = vmatprep.subr.mxu0 0.0
    %8517 = vmatpush1.msra.mxu0 0.0
    %8518 = vmatprep.subr.mxu0 0.0
    %8519 = vmatpush1.msra.mxu0 0.0
    %8520 = vmatprep.mubr.f32.mxu0 0.0
    %v8521 = vand.u32 %v293, 4294901760
    %8522 = vmatmul.mubr.f32.gmra.mrb[0].mxu0 %v8521
    %v8523 = vpop.f32.mrb[0].mxu0
    %v8524 = vadd.f32 %v8320, %v8523
    %v8525 = vpop.f32.mrb[0].mxu0
    %v8526 = vadd.f32 %v8322, %v8525
    %8527 = vmatprep.mubr.f32.mxu0 0.0
    %v8528 = vand.u32 %v294, 4294901760
    %8529 = vmatmul.mubr.f32.gmra.mrb[0].mxu0 %v8528
    %v8530 = vpop.f32.mrb[0].mxu0
    %v8531 = vadd.f32 %v8329, %v8530
    %v8532 = vpop.f32.mrb[0].mxu0
    %v8533 = vadd.f32 %v8331, %v8532
    %8534 = vmatprep.mubr.f32.mxu0 0.0
    %v8535 = vand.u32 %v295, 4294901760
    %8536 = vmatmul.mubr.f32.gmra.mrb[0].mxu0 %v8535
    %v8537 = vpop.f32.mrb[0].mxu0
    %v8538 = vadd.f32 %v8338, %v8537
    %v8539 = vpop.f32.mrb[0].mxu0
    %v8540 = vadd.f32 %v8340, %v8539
    %8541 = vmatprep.mubr.f32.mxu0 0.0
    %v8542 = vand.u32 %v296, 4294901760
    %8543 = vmatmul.mubr.f32.gmra.mrb[0].mxu0 %v8542
    %v8544 = vpop.f32.mrb[0].mxu0
    %v8545 = vadd.f32 %v8347, %v8544
    %v8546 = vpop.f32.mrb[0].mxu0
    %v8547 = vadd.f32 %v8349, %v8546
    %8548 = vmatprep.mubr.f32.mxu0 0.0
    %v8549 = vand.u32 %v297, 4294901760
    %8550 = vmatmul.mubr.f32.gmra.mrb[0].mxu0 %v8549
    %v8551 = vpop.f32.mrb[0].mxu0
    %v8552 = vadd.f32 %v8356, %v8551
    %v8553 = vpop.f32.mrb[0].mxu0
    %v8554 = vadd.f32 %v8358, %v8553
    %8555 = vdwg.mxu0
    %v8556 = vand.u32 %v704, 4294901760
    %8557 = vmatprep.subr.mxu0 %v8556
    %v8558 = vand.u32 %v703, 4294901760
    %8559 = vmatpush1.msra.mxu0 %v8558
    %v8560 = vand.u32 %v720, 4294901760
    %8561 = vmatprep.subr.mxu0 %v8560
    %v8562 = vand.u32 %v719, 4294901760
    %8563 = vmatpush1.msra.mxu0 %v8562
    %v8564 = vand.u32 %v736, 4294901760
    %8565 = vmatprep.subr.mxu0 %v8564
    %v8566 = vand.u32 %v735, 4294901760
    %8567 = vmatpush1.msra.mxu0 %v8566
    %v8568 = vand.u32 %v752, 4294901760
    %8569 = vmatprep.subr.mxu0 %v8568
    %v8570 = vand.u32 %v751, 4294901760
    %8571 = vmatpush1.msra.mxu0 %v8570
    %v8572 = vand.u32 %v768, 4294901760
    %8573 = vmatprep.subr.mxu0 %v8572
    %v8574 = vand.u32 %v767, 4294901760
    %8575 = vmatpush1.msra.mxu0 %v8574
    %v8576 = vand.u32 %v784, 4294901760
    %8577 = vmatprep.subr.mxu0 %v8576
    %v8578 = vand.u32 %v783, 4294901760
    %8579 = vmatpush1.msra.mxu0 %v8578
    %v8580 = vand.u32 %v800, 4294901760
    %8581 = vmatprep.subr.mxu0 %v8580
    %v8582 = vand.u32 %v799, 4294901760
    %8583 = vmatpush1.msra.mxu0 %v8582
    %v8584 = vand.u32 %v816, 4294901760
    %8585 = vmatprep.subr.mxu0 %v8584
    %v8586 = vand.u32 %v815, 4294901760
    %8587 = vmatpush1.msra.mxu0 %v8586
    %v8588 = vand.u32 %v1216, 4294901760
    %8589 = vmatprep.subr.mxu0 %v8588
    %v8590 = vand.u32 %v1215, 4294901760
    %8591 = vmatpush1.msra.mxu0 %v8590
    %v8592 = vand.u32 %v1232, 4294901760
    %8593 = vmatprep.subr.mxu0 %v8592
    %v8594 = vand.u32 %v1231, 4294901760
    %8595 = vmatpush1.msra.mxu0 %v8594
    %v8596 = vand.u32 %v1248, 4294901760
    %8597 = vmatprep.subr.mxu0 %v8596
    %v8598 = vand.u32 %v1247, 4294901760
    %8599 = vmatpush1.msra.mxu0 %v8598
    %v8600 = vand.u32 %v1264, 4294901760
    %8601 = vmatprep.subr.mxu0 %v8600
    %v8602 = vand.u32 %v1263, 4294901760
    %8603 = vmatpush1.msra.mxu0 %v8602
    %v8604 = vand.u32 %v1280, 4294901760
    %8605 = vmatprep.subr.mxu0 %v8604
    %v8606 = vand.u32 %v1279, 4294901760
    %8607 = vmatpush1.msra.mxu0 %v8606
    %v8608 = vand.u32 %v1296, 4294901760
    %8609 = vmatprep.subr.mxu0 %v8608
    %v8610 = vand.u32 %v1295, 4294901760
    %8611 = vmatpush1.msra.mxu0 %v8610
    %v8612 = vand.u32 %v1312, 4294901760
    %8613 = vmatprep.subr.mxu0 %v8612
    %v8614 = vand.u32 %v1311, 4294901760
    %8615 = vmatpush1.msra.mxu0 %v8614
    %v8616 = vand.u32 %v1328, 4294901760
    %8617 = vmatprep.subr.mxu0 %v8616
    %v8618 = vand.u32 %v1327, 4294901760
    %8619 = vmatpush1.msra.mxu0 %v8618
    %8620 = vmatprep.subr.mxu0 0.0
    %8621 = vmatpush1.msra.mxu0 0.0
    %8622 = vmatprep.subr.mxu0 0.0
    %8623 = vmatpush1.msra.mxu0 0.0
    %8624 = vmatprep.subr.mxu0 0.0
    %8625 = vmatpush1.msra.mxu0 0.0
    %8626 = vmatprep.subr.mxu0 0.0
    %8627 = vmatpush1.msra.mxu0 0.0
    %8628 = vmatprep.subr.mxu0 0.0
    %8629 = vmatpush1.msra.mxu0 0.0
    %8630 = vmatprep.subr.mxu0 0.0
    %8631 = vmatpush1.msra.mxu0 0.0
    %8632 = vmatprep.subr.mxu0 0.0
    %8633 = vmatpush1.msra.mxu0 0.0
    %8634 = vmatprep.subr.mxu0 0.0
    %8635 = vmatpush1.msra.mxu0 0.0
    %8636 = vmatprep.subr.mxu0 0.0
    %8637 = vmatpush1.msra.mxu0 0.0
    %8638 = vmatprep.subr.mxu0 0.0
    %8639 = vmatpush1.msra.mxu0 0.0
    %8640 = vmatprep.subr.mxu0 0.0
    %8641 = vmatpush1.msra.mxu0 0.0
    %8642 = vmatprep.subr.mxu0 0.0
    %8643 = vmatpush1.msra.mxu0 0.0
    %8644 = vmatprep.subr.mxu0 0.0
    %8645 = vmatpush1.msra.mxu0 0.0
    %8646 = vmatprep.subr.mxu0 0.0
    %8647 = vmatpush1.msra.mxu0 0.0
    %8648 = vmatprep.subr.mxu0 0.0
    %8649 = vmatpush1.msra.mxu0 0.0
    %8650 = vmatprep.subr.mxu0 0.0
    %8651 = vmatpush1.msra.mxu0 0.0
    %8652 = vmatprep.mubr.f32.mxu0 0.0
    %v8653 = vand.u32 %v293, 4294901760
    %8654 = vmatmul.mubr.f32.gmra.mrb[0].mxu0 %v8653
    %v8655 = vpop.f32.mrb[0].mxu0
    %v8656 = vadd.f32 %v8524, %v8655
    %v8657 = vpop.f32.mrb[0].mxu0
    %v8658 = vadd.f32 %v8526, %v8657
    %8659 = vmatprep.mubr.f32.mxu0 0.0
    %v8660 = vand.u32 %v294, 4294901760
    %8661 = vmatmul.mubr.f32.gmra.mrb[0].mxu0 %v8660
    %v8662 = vpop.f32.mrb[0].mxu0
    %v8663 = vadd.f32 %v8531, %v8662
    %v8664 = vpop.f32.mrb[0].mxu0
    %v8665 = vadd.f32 %v8533, %v8664
    %8666 = vmatprep.mubr.f32.mxu0 0.0
    %v8667 = vand.u32 %v295, 4294901760
    %8668 = vmatmul.mubr.f32.gmra.mrb[0].mxu0 %v8667
    %v8669 = vpop.f32.mrb[0].mxu0
    %v8670 = vadd.f32 %v8538, %v8669
    %v8671 = vpop.f32.mrb[0].mxu0
    %v8672 = vadd.f32 %v8540, %v8671
    %8673 = vmatprep.mubr.f32.mxu0 0.0
    %v8674 = vand.u32 %v296, 4294901760
    %8675 = vmatmul.mubr.f32.gmra.mrb[0].mxu0 %v8674
    %v8676 = vpop.f32.mrb[0].mxu0
    %v8677 = vadd.f32 %v8545, %v8676
    %v8678 = vpop.f32.mrb[0].mxu0
    %v8679 = vadd.f32 %v8547, %v8678
    %8680 = vmatprep.mubr.f32.mxu0 0.0
    %v8681 = vand.u32 %v297, 4294901760
    %8682 = vmatmul.mubr.f32.gmra.mrb[0].mxu0 %v8681
    %v8683 = vpop.f32.mrb[0].mxu0
    %v8684 = vadd.f32 %v8552, %v8683
    %v8685 = vpop.f32.mrb[0].mxu0
    %v8686 = vadd.f32 %v8554, %v8685
    %8687 = vdwg.mxu0
    %v8688 = vand.u32 %v706, 4294901760
    %8689 = vmatprep.subr.mxu0 %v8688
    %v8690 = vand.u32 %v705, 4294901760
    %8691 = vmatpush1.msra.mxu0 %v8690
    %v8692 = vand.u32 %v722, 4294901760
    %8693 = vmatprep.subr.mxu0 %v8692
    %v8694 = vand.u32 %v721, 4294901760
    %8695 = vmatpush1.msra.mxu0 %v8694
    %v8696 = vand.u32 %v738, 4294901760
    %8697 = vmatprep.subr.mxu0 %v8696
    %v8698 = vand.u32 %v737, 4294901760
    %8699 = vmatpush1.msra.mxu0 %v8698
    %v8700 = vand.u32 %v754, 4294901760
    %8701 = vmatprep.subr.mxu0 %v8700
    %v8702 = vand.u32 %v753, 4294901760
    %8703 = vmatpush1.msra.mxu0 %v8702
    %v8704 = vand.u32 %v770, 4294901760
    %8705 = vmatprep.subr.mxu0 %v8704
    %v8706 = vand.u32 %v769, 4294901760
    %8707 = vmatpush1.msra.mxu0 %v8706
    %v8708 = vand.u32 %v786, 4294901760
    %8709 = vmatprep.subr.mxu0 %v8708
    %v8710 = vand.u32 %v785, 4294901760
    %8711 = vmatpush1.msra.mxu0 %v8710
    %v8712 = vand.u32 %v802, 4294901760
    %8713 = vmatprep.subr.mxu0 %v8712
    %v8714 = vand.u32 %v801, 4294901760
    %8715 = vmatpush1.msra.mxu0 %v8714
    %v8716 = vand.u32 %v818, 4294901760
    %8717 = vmatprep.subr.mxu0 %v8716
    %v8718 = vand.u32 %v817, 4294901760
    %8719 = vmatpush1.msra.mxu0 %v8718
    %v8720 = vand.u32 %v1218, 4294901760
    %8721 = vmatprep.subr.mxu0 %v8720
    %v8722 = vand.u32 %v1217, 4294901760
    %8723 = vmatpush1.msra.mxu0 %v8722
    %v8724 = vand.u32 %v1234, 4294901760
    %8725 = vmatprep.subr.mxu0 %v8724
    %v8726 = vand.u32 %v1233, 4294901760
    %8727 = vmatpush1.msra.mxu0 %v8726
    %v8728 = vand.u32 %v1250, 4294901760
    %8729 = vmatprep.subr.mxu0 %v8728
    %v8730 = vand.u32 %v1249, 4294901760
    %8731 = vmatpush1.msra.mxu0 %v8730
    %v8732 = vand.u32 %v1266, 4294901760
    %8733 = vmatprep.subr.mxu0 %v8732
    %v8734 = vand.u32 %v1265, 4294901760
    %8735 = vmatpush1.msra.mxu0 %v8734
    %v8736 = vand.u32 %v1282, 4294901760
    %8737 = vmatprep.subr.mxu0 %v8736
    %v8738 = vand.u32 %v1281, 4294901760
    %8739 = vmatpush1.msra.mxu0 %v8738
    %v8740 = vand.u32 %v1298, 4294901760
    %8741 = vmatprep.subr.mxu0 %v8740
    %v8742 = vand.u32 %v1297, 4294901760
    %8743 = vmatpush1.msra.mxu0 %v8742
    %v8744 = vand.u32 %v1314, 4294901760
    %8745 = vmatprep.subr.mxu0 %v8744
    %v8746 = vand.u32 %v1313, 4294901760
    %8747 = vmatpush1.msra.mxu0 %v8746
    %v8748 = vand.u32 %v1330, 4294901760
    %8749 = vmatprep.subr.mxu0 %v8748
    %v8750 = vand.u32 %v1329, 4294901760
    %8751 = vmatpush1.msra.mxu0 %v8750
    %8752 = vmatprep.subr.mxu0 0.0
    %8753 = vmatpush1.msra.mxu0 0.0
    %8754 = vmatprep.subr.mxu0 0.0
    %8755 = vmatpush1.msra.mxu0 0.0
    %8756 = vmatprep.subr.mxu0 0.0
    %8757 = vmatpush1.msra.mxu0 0.0
    %8758 = vmatprep.subr.mxu0 0.0
    %8759 = vmatpush1.msra.mxu0 0.0
    %8760 = vmatprep.subr.mxu0 0.0
    %8761 = vmatpush1.msra.mxu0 0.0
    %8762 = vmatprep.subr.mxu0 0.0
    %8763 = vmatpush1.msra.mxu0 0.0
    %8764 = vmatprep.subr.mxu0 0.0
    %8765 = vmatpush1.msra.mxu0 0.0
    %8766 = vmatprep.subr.mxu0 0.0
    %8767 = vmatpush1.msra.mxu0 0.0
    %8768 = vmatprep.subr.mxu0 0.0
    %8769 = vmatpush1.msra.mxu0 0.0
    %8770 = vmatprep.subr.mxu0 0.0
    %8771 = vmatpush1.msra.mxu0 0.0
    %8772 = vmatprep.subr.mxu0 0.0
    %8773 = vmatpush1.msra.mxu0 0.0
    %8774 = vmatprep.subr.mxu0 0.0
    %8775 = vmatpush1.msra.mxu0 0.0
    %8776 = vmatprep.subr.mxu0 0.0
    %8777 = vmatpush1.msra.mxu0 0.0
    %8778 = vmatprep.subr.mxu0 0.0
    %8779 = vmatpush1.msra.mxu0 0.0
    %8780 = vmatprep.subr.mxu0 0.0
    %8781 = vmatpush1.msra.mxu0 0.0
    %8782 = vmatprep.subr.mxu0 0.0
    %8783 = vmatpush1.msra.mxu0 0.0
    %8784 = vmatprep.mubr.f32.mxu0 0.0
    %v8785 = vand.u32 %v293, 4294901760
    %v8786 = vsub.f32 %v293, %v8785
    %v8787 = vand.u32 %v8786, 4294901760
    %v8788 = vsub.f32 %v8786, %v8787
    %v8789 = vand.u32 %v8788, 4294901760
    %8790 = vmatmul.mubr.f32.gmra.mrb[0].mxu0 %v8789
    %v8791 = vpop.f32.mrb[0].mxu0
    %v8792 = vadd.f32 0.0, %v8791
    %v8793 = vpop.f32.mrb[0].mxu0
    %v8794 = vadd.f32 0.0, %v8793
    %8795 = vmatprep.mubr.f32.mxu0 0.0
    %v8796 = vand.u32 %v294, 4294901760
    %v8797 = vsub.f32 %v294, %v8796
    %v8798 = vand.u32 %v8797, 4294901760
    %v8799 = vsub.f32 %v8797, %v8798
    %v8800 = vand.u32 %v8799, 4294901760
    %8801 = vmatmul.mubr.f32.gmra.mrb[0].mxu0 %v8800
    %v8802 = vpop.f32.mrb[0].mxu0
    %v8803 = vadd.f32 0.0, %v8802
    %v8804 = vpop.f32.mrb[0].mxu0
    %v8805 = vadd.f32 0.0, %v8804
    %8806 = vmatprep.mubr.f32.mxu0 0.0
    %v8807 = vand.u32 %v295, 4294901760
    %v8808 = vsub.f32 %v295, %v8807
    %v8809 = vand.u32 %v8808, 4294901760
    %v8810 = vsub.f32 %v8808, %v8809
    %v8811 = vand.u32 %v8810, 4294901760
    %8812 = vmatmul.mubr.f32.gmra.mrb[0].mxu0 %v8811
    %v8813 = vpop.f32.mrb[0].mxu0
    %v8814 = vadd.f32 0.0, %v8813
    %v8815 = vpop.f32.mrb[0].mxu0
    %v8816 = vadd.f32 0.0, %v8815
    %8817 = vmatprep.mubr.f32.mxu0 0.0
    %v8818 = vand.u32 %v296, 4294901760
    %v8819 = vsub.f32 %v296, %v8818
    %v8820 = vand.u32 %v8819, 4294901760
    %v8821 = vsub.f32 %v8819, %v8820
    %v8822 = vand.u32 %v8821, 4294901760
    %8823 = vmatmul.mubr.f32.gmra.mrb[0].mxu0 %v8822
    %v8824 = vpop.f32.mrb[0].mxu0
    %v8825 = vadd.f32 0.0, %v8824
    %v8826 = vpop.f32.mrb[0].mxu0
    %v8827 = vadd.f32 0.0, %v8826
    %8828 = vmatprep.mubr.f32.mxu0 0.0
    %v8829 = vand.u32 %v297, 4294901760
    %v8830 = vsub.f32 %v297, %v8829
    %v8831 = vand.u32 %v8830, 4294901760
    %v8832 = vsub.f32 %v8830, %v8831
    %v8833 = vand.u32 %v8832, 4294901760
    %8834 = vmatmul.mubr.f32.gmra.mrb[0].mxu0 %v8833
    %v8835 = vpop.f32.mrb[0].mxu0
    %v8836 = vadd.f32 0.0, %v8835
    %v8837 = vpop.f32.mrb[0].mxu0
    %v8838 = vadd.f32 0.0, %v8837
    %8839 = vdwg.mxu0
    %v8840 = vand.u32 %v706, 4294901760
    %v8841 = vsub.f32 %v706, %v8840
    %v8842 = vand.u32 %v8841, 4294901760
    %v8843 = vsub.f32 %v8841, %v8842
    %v8844 = vand.u32 %v8843, 4294901760
    %8845 = vmatprep.subr.mxu0 %v8844
    %v8846 = vand.u32 %v705, 4294901760
    %v8847 = vsub.f32 %v705, %v8846
    %v8848 = vand.u32 %v8847, 4294901760
    %v8849 = vsub.f32 %v8847, %v8848
    %v8850 = vand.u32 %v8849, 4294901760
    %8851 = vmatpush1.msra.mxu0 %v8850
    %v8852 = vand.u32 %v722, 4294901760
    %v8853 = vsub.f32 %v722, %v8852
    %v8854 = vand.u32 %v8853, 4294901760
    %v8855 = vsub.f32 %v8853, %v8854
    %v8856 = vand.u32 %v8855, 4294901760
    %8857 = vmatprep.subr.mxu0 %v8856
    %v8858 = vand.u32 %v721, 4294901760
    %v8859 = vsub.f32 %v721, %v8858
    %v8860 = vand.u32 %v8859, 4294901760
    %v8861 = vsub.f32 %v8859, %v8860
    %v8862 = vand.u32 %v8861, 4294901760
    %8863 = vmatpush1.msra.mxu0 %v8862
    %v8864 = vand.u32 %v738, 4294901760
    %v8865 = vsub.f32 %v738, %v8864
    %v8866 = vand.u32 %v8865, 4294901760
    %v8867 = vsub.f32 %v8865, %v8866
    %v8868 = vand.u32 %v8867, 4294901760
    %8869 = vmatprep.subr.mxu0 %v8868
    %v8870 = vand.u32 %v737, 4294901760
    %v8871 = vsub.f32 %v737, %v8870
    %v8872 = vand.u32 %v8871, 4294901760
    %v8873 = vsub.f32 %v8871, %v8872
    %v8874 = vand.u32 %v8873, 4294901760
    %8875 = vmatpush1.msra.mxu0 %v8874
    %v8876 = vand.u32 %v754, 4294901760
    %v8877 = vsub.f32 %v754, %v8876
    %v8878 = vand.u32 %v8877, 4294901760
    %v8879 = vsub.f32 %v8877, %v8878
    %v8880 = vand.u32 %v8879, 4294901760
    %8881 = vmatprep.subr.mxu0 %v8880
    %v8882 = vand.u32 %v753, 4294901760
    %v8883 = vsub.f32 %v753, %v8882
    %v8884 = vand.u32 %v8883, 4294901760
    %v8885 = vsub.f32 %v8883, %v8884
    %v8886 = vand.u32 %v8885, 4294901760
    %8887 = vmatpush1.msra.mxu0 %v8886
    %v8888 = vand.u32 %v770, 4294901760
    %v8889 = vsub.f32 %v770, %v8888
    %v8890 = vand.u32 %v8889, 4294901760
    %v8891 = vsub.f32 %v8889, %v8890
    %v8892 = vand.u32 %v8891, 4294901760
    %8893 = vmatprep.subr.mxu0 %v8892
    %v8894 = vand.u32 %v769, 4294901760
    %v8895 = vsub.f32 %v769, %v8894
    %v8896 = vand.u32 %v8895, 4294901760
    %v8897 = vsub.f32 %v8895, %v8896
    %v8898 = vand.u32 %v8897, 4294901760
    %8899 = vmatpush1.msra.mxu0 %v8898
    %v8900 = vand.u32 %v786, 4294901760
    %v8901 = vsub.f32 %v786, %v8900
    %v8902 = vand.u32 %v8901, 4294901760
    %v8903 = vsub.f32 %v8901, %v8902
    %v8904 = vand.u32 %v8903, 4294901760
    %8905 = vmatprep.subr.mxu0 %v8904
    %v8906 = vand.u32 %v785, 4294901760
    %v8907 = vsub.f32 %v785, %v8906
    %v8908 = vand.u32 %v8907, 4294901760
    %v8909 = vsub.f32 %v8907, %v8908
    %v8910 = vand.u32 %v8909, 4294901760
    %8911 = vmatpush1.msra.mxu0 %v8910
    %v8912 = vand.u32 %v802, 4294901760
    %v8913 = vsub.f32 %v802, %v8912
    %v8914 = vand.u32 %v8913, 4294901760
    %v8915 = vsub.f32 %v8913, %v8914
    %v8916 = vand.u32 %v8915, 4294901760
    %8917 = vmatprep.subr.mxu0 %v8916
    %v8918 = vand.u32 %v801, 4294901760
    %v8919 = vsub.f32 %v801, %v8918
    %v8920 = vand.u32 %v8919, 4294901760
    %v8921 = vsub.f32 %v8919, %v8920
    %v8922 = vand.u32 %v8921, 4294901760
    %8923 = vmatpush1.msra.mxu0 %v8922
    %v8924 = vand.u32 %v818, 4294901760
    %v8925 = vsub.f32 %v818, %v8924
    %v8926 = vand.u32 %v8925, 4294901760
    %v8927 = vsub.f32 %v8925, %v8926
    %v8928 = vand.u32 %v8927, 4294901760
    %8929 = vmatprep.subr.mxu0 %v8928
    %v8930 = vand.u32 %v817, 4294901760
    %v8931 = vsub.f32 %v817, %v8930
    %v8932 = vand.u32 %v8931, 4294901760
    %v8933 = vsub.f32 %v8931, %v8932
    %v8934 = vand.u32 %v8933, 4294901760
    %8935 = vmatpush1.msra.mxu0 %v8934
    %v8936 = vand.u32 %v1218, 4294901760
    %v8937 = vsub.f32 %v1218, %v8936
    %v8938 = vand.u32 %v8937, 4294901760
    %v8939 = vsub.f32 %v8937, %v8938
    %v8940 = vand.u32 %v8939, 4294901760
    %8941 = vmatprep.subr.mxu0 %v8940
    %v8942 = vand.u32 %v1217, 4294901760
    %v8943 = vsub.f32 %v1217, %v8942
    %v8944 = vand.u32 %v8943, 4294901760
    %v8945 = vsub.f32 %v8943, %v8944
    %v8946 = vand.u32 %v8945, 4294901760
    %8947 = vmatpush1.msra.mxu0 %v8946
    %v8948 = vand.u32 %v1234, 4294901760
    %v8949 = vsub.f32 %v1234, %v8948
    %v8950 = vand.u32 %v8949, 4294901760
    %v8951 = vsub.f32 %v8949, %v8950
    %v8952 = vand.u32 %v8951, 4294901760
    %8953 = vmatprep.subr.mxu0 %v8952
    %v8954 = vand.u32 %v1233, 4294901760
    %v8955 = vsub.f32 %v1233, %v8954
    %v8956 = vand.u32 %v8955, 4294901760
    %v8957 = vsub.f32 %v8955, %v8956
    %v8958 = vand.u32 %v8957, 4294901760
    %8959 = vmatpush1.msra.mxu0 %v8958
    %v8960 = vand.u32 %v1250, 4294901760
    %v8961 = vsub.f32 %v1250, %v8960
    %v8962 = vand.u32 %v8961, 4294901760
    %v8963 = vsub.f32 %v8961, %v8962
    %v8964 = vand.u32 %v8963, 4294901760
    %8965 = vmatprep.subr.mxu0 %v8964
    %v8966 = vand.u32 %v1249, 4294901760
    %v8967 = vsub.f32 %v1249, %v8966
    %v8968 = vand.u32 %v8967, 4294901760
    %v8969 = vsub.f32 %v8967, %v8968
    %v8970 = vand.u32 %v8969, 4294901760
    %8971 = vmatpush1.msra.mxu0 %v8970
    %v8972 = vand.u32 %v1266, 4294901760
    %v8973 = vsub.f32 %v1266, %v8972
    %v8974 = vand.u32 %v8973, 4294901760
    %v8975 = vsub.f32 %v8973, %v8974
    %v8976 = vand.u32 %v8975, 4294901760
    %8977 = vmatprep.subr.mxu0 %v8976
    %v8978 = vand.u32 %v1265, 4294901760
    %v8979 = vsub.f32 %v1265, %v8978
    %v8980 = vand.u32 %v8979, 4294901760
    %v8981 = vsub.f32 %v8979, %v8980
    %v8982 = vand.u32 %v8981, 4294901760
    %8983 = vmatpush1.msra.mxu0 %v8982
    %v8984 = vand.u32 %v1282, 4294901760
    %v8985 = vsub.f32 %v1282, %v8984
    %v8986 = vand.u32 %v8985, 4294901760
    %v8987 = vsub.f32 %v8985, %v8986
    %v8988 = vand.u32 %v8987, 4294901760
    %8989 = vmatprep.subr.mxu0 %v8988
    %v8990 = vand.u32 %v1281, 4294901760
    %v8991 = vsub.f32 %v1281, %v8990
    %v8992 = vand.u32 %v8991, 4294901760
    %v8993 = vsub.f32 %v8991, %v8992
    %v8994 = vand.u32 %v8993, 4294901760
    %8995 = vmatpush1.msra.mxu0 %v8994
    %v8996 = vand.u32 %v1298, 4294901760
    %v8997 = vsub.f32 %v1298, %v8996
    %v8998 = vand.u32 %v8997, 4294901760
    %v8999 = vsub.f32 %v8997, %v8998
    %v9000 = vand.u32 %v8999, 4294901760
    %9001 = vmatprep.subr.mxu0 %v9000
    %v9002 = vand.u32 %v1297, 4294901760
    %v9003 = vsub.f32 %v1297, %v9002
    %v9004 = vand.u32 %v9003, 4294901760
    %v9005 = vsub.f32 %v9003, %v9004
    %v9006 = vand.u32 %v9005, 4294901760
    %9007 = vmatpush1.msra.mxu0 %v9006
    %v9008 = vand.u32 %v1314, 4294901760
    %v9009 = vsub.f32 %v1314, %v9008
    %v9010 = vand.u32 %v9009, 4294901760
    %v9011 = vsub.f32 %v9009, %v9010
    %v9012 = vand.u32 %v9011, 4294901760
    %9013 = vmatprep.subr.mxu0 %v9012
    %v9014 = vand.u32 %v1313, 4294901760
    %v9015 = vsub.f32 %v1313, %v9014
    %v9016 = vand.u32 %v9015, 4294901760
    %v9017 = vsub.f32 %v9015, %v9016
    %v9018 = vand.u32 %v9017, 4294901760
    %9019 = vmatpush1.msra.mxu0 %v9018
    %v9020 = vand.u32 %v1330, 4294901760
    %v9021 = vsub.f32 %v1330, %v9020
    %v9022 = vand.u32 %v9021, 4294901760
    %v9023 = vsub.f32 %v9021, %v9022
    %v9024 = vand.u32 %v9023, 4294901760
    %9025 = vmatprep.subr.mxu0 %v9024
    %v9026 = vand.u32 %v1329, 4294901760
    %v9027 = vsub.f32 %v1329, %v9026
    %v9028 = vand.u32 %v9027, 4294901760
    %v9029 = vsub.f32 %v9027, %v9028
    %v9030 = vand.u32 %v9029, 4294901760
    %9031 = vmatpush1.msra.mxu0 %v9030
    %9032 = vmatprep.subr.mxu0 0.0
    %9033 = vmatpush1.msra.mxu0 0.0
    %9034 = vmatprep.subr.mxu0 0.0
    %9035 = vmatpush1.msra.mxu0 0.0
    %9036 = vmatprep.subr.mxu0 0.0
    %9037 = vmatpush1.msra.mxu0 0.0
    %9038 = vmatprep.subr.mxu0 0.0
    %9039 = vmatpush1.msra.mxu0 0.0
    %9040 = vmatprep.subr.mxu0 0.0
    %9041 = vmatpush1.msra.mxu0 0.0
    %9042 = vmatprep.subr.mxu0 0.0
    %9043 = vmatpush1.msra.mxu0 0.0
    %9044 = vmatprep.subr.mxu0 0.0
    %9045 = vmatpush1.msra.mxu0 0.0
    %9046 = vmatprep.subr.mxu0 0.0
    %9047 = vmatpush1.msra.mxu0 0.0
    %9048 = vmatprep.subr.mxu0 0.0
    %9049 = vmatpush1.msra.mxu0 0.0
    %9050 = vmatprep.subr.mxu0 0.0
    %9051 = vmatpush1.msra.mxu0 0.0
    %9052 = vmatprep.subr.mxu0 0.0
    %9053 = vmatpush1.msra.mxu0 0.0
    %9054 = vmatprep.subr.mxu0 0.0
    %9055 = vmatpush1.msra.mxu0 0.0
    %9056 = vmatprep.subr.mxu0 0.0
    %9057 = vmatpush1.msra.mxu0 0.0
    %9058 = vmatprep.subr.mxu0 0.0
    %9059 = vmatpush1.msra.mxu0 0.0
    %9060 = vmatprep.subr.mxu0 0.0
    %9061 = vmatpush1.msra.mxu0 0.0
    %9062 = vmatprep.subr.mxu0 0.0
    %9063 = vmatpush1.msra.mxu0 0.0
    %9064 = vmatprep.mubr.f32.mxu0 0.0
    %v9065 = vand.u32 %v293, 4294901760
    %9066 = vmatmul.mubr.f32.gmra.mrb[0].mxu0 %v9065
    %v9067 = vpop.f32.mrb[0].mxu0
    %v9068 = vadd.f32 %v8792, %v9067
    %v9069 = vpop.f32.mrb[0].mxu0
    %v9070 = vadd.f32 %v8794, %v9069
    %9071 = vmatprep.mubr.f32.mxu0 0.0
    %v9072 = vand.u32 %v294, 4294901760
    %9073 = vmatmul.mubr.f32.gmra.mrb[0].mxu0 %v9072
    %v9074 = vpop.f32.mrb[0].mxu0
    %v9075 = vadd.f32 %v8803, %v9074
    %v9076 = vpop.f32.mrb[0].mxu0
    %v9077 = vadd.f32 %v8805, %v9076
    %9078 = vmatprep.mubr.f32.mxu0 0.0
    %v9079 = vand.u32 %v295, 4294901760
    %9080 = vmatmul.mubr.f32.gmra.mrb[0].mxu0 %v9079
    %v9081 = vpop.f32.mrb[0].mxu0
    %v9082 = vadd.f32 %v8814, %v9081
    %v9083 = vpop.f32.mrb[0].mxu0
    %v9084 = vadd.f32 %v8816, %v9083
    %9085 = vmatprep.mubr.f32.mxu0 0.0
    %v9086 = vand.u32 %v296, 4294901760
    %9087 = vmatmul.mubr.f32.gmra.mrb[0].mxu0 %v9086
    %v9088 = vpop.f32.mrb[0].mxu0
    %v9089 = vadd.f32 %v8825, %v9088
    %v9090 = vpop.f32.mrb[0].mxu0
    %v9091 = vadd.f32 %v8827, %v9090
    %9092 = vmatprep.mubr.f32.mxu0 0.0
    %v9093 = vand.u32 %v297, 4294901760
    %9094 = vmatmul.mubr.f32.gmra.mrb[0].mxu0 %v9093
    %v9095 = vpop.f32.mrb[0].mxu0
    %v9096 = vadd.f32 %v8836, %v9095
    %v9097 = vpop.f32.mrb[0].mxu0
    %v9098 = vadd.f32 %v8838, %v9097
    %9099 = vdwg.mxu0
    %v9100 = vand.u32 %v706, 4294901760
    %v9101 = vsub.f32 %v706, %v9100
    %9102 = vmatprep.subr.mxu0 %v9101
    %v9103 = vand.u32 %v705, 4294901760
    %v9104 = vsub.f32 %v705, %v9103
    %9105 = vmatpush1.msra.mxu0 %v9104
    %v9106 = vand.u32 %v722, 4294901760
    %v9107 = vsub.f32 %v722, %v9106
    %9108 = vmatprep.subr.mxu0 %v9107
    %v9109 = vand.u32 %v721, 4294901760
    %v9110 = vsub.f32 %v721, %v9109
    %9111 = vmatpush1.msra.mxu0 %v9110
    %v9112 = vand.u32 %v738, 4294901760
    %v9113 = vsub.f32 %v738, %v9112
    %9114 = vmatprep.subr.mxu0 %v9113
    %v9115 = vand.u32 %v737, 4294901760
    %v9116 = vsub.f32 %v737, %v9115
    %9117 = vmatpush1.msra.mxu0 %v9116
    %v9118 = vand.u32 %v754, 4294901760
    %v9119 = vsub.f32 %v754, %v9118
    %9120 = vmatprep.subr.mxu0 %v9119
    %v9121 = vand.u32 %v753, 4294901760
    %v9122 = vsub.f32 %v753, %v9121
    %9123 = vmatpush1.msra.mxu0 %v9122
    %v9124 = vand.u32 %v770, 4294901760
    %v9125 = vsub.f32 %v770, %v9124
    %9126 = vmatprep.subr.mxu0 %v9125
    %v9127 = vand.u32 %v769, 4294901760
    %v9128 = vsub.f32 %v769, %v9127
    %9129 = vmatpush1.msra.mxu0 %v9128
    %v9130 = vand.u32 %v786, 4294901760
    %v9131 = vsub.f32 %v786, %v9130
    %9132 = vmatprep.subr.mxu0 %v9131
    %v9133 = vand.u32 %v785, 4294901760
    %v9134 = vsub.f32 %v785, %v9133
    %9135 = vmatpush1.msra.mxu0 %v9134
    %v9136 = vand.u32 %v802, 4294901760
    %v9137 = vsub.f32 %v802, %v9136
    %9138 = vmatprep.subr.mxu0 %v9137
    %v9139 = vand.u32 %v801, 4294901760
    %v9140 = vsub.f32 %v801, %v9139
    %9141 = vmatpush1.msra.mxu0 %v9140
    %v9142 = vand.u32 %v818, 4294901760
    %v9143 = vsub.f32 %v818, %v9142
    %9144 = vmatprep.subr.mxu0 %v9143
    %v9145 = vand.u32 %v817, 4294901760
    %v9146 = vsub.f32 %v817, %v9145
    %9147 = vmatpush1.msra.mxu0 %v9146
    %v9148 = vand.u32 %v1218, 4294901760
    %v9149 = vsub.f32 %v1218, %v9148
    %9150 = vmatprep.subr.mxu0 %v9149
    %v9151 = vand.u32 %v1217, 4294901760
    %v9152 = vsub.f32 %v1217, %v9151
    %9153 = vmatpush1.msra.mxu0 %v9152
    %v9154 = vand.u32 %v1234, 4294901760
    %v9155 = vsub.f32 %v1234, %v9154
    %9156 = vmatprep.subr.mxu0 %v9155
    %v9157 = vand.u32 %v1233, 4294901760
    %v9158 = vsub.f32 %v1233, %v9157
    %9159 = vmatpush1.msra.mxu0 %v9158
    %v9160 = vand.u32 %v1250, 4294901760
    %v9161 = vsub.f32 %v1250, %v9160
    %9162 = vmatprep.subr.mxu0 %v9161
    %v9163 = vand.u32 %v1249, 4294901760
    %v9164 = vsub.f32 %v1249, %v9163
    %9165 = vmatpush1.msra.mxu0 %v9164
    %v9166 = vand.u32 %v1266, 4294901760
    %v9167 = vsub.f32 %v1266, %v9166
    %9168 = vmatprep.subr.mxu0 %v9167
    %v9169 = vand.u32 %v1265, 4294901760
    %v9170 = vsub.f32 %v1265, %v9169
    %9171 = vmatpush1.msra.mxu0 %v9170
    %v9172 = vand.u32 %v1282, 4294901760
    %v9173 = vsub.f32 %v1282, %v9172
    %9174 = vmatprep.subr.mxu0 %v9173
    %v9175 = vand.u32 %v1281, 4294901760
    %v9176 = vsub.f32 %v1281, %v9175
    %9177 = vmatpush1.msra.mxu0 %v9176
    %v9178 = vand.u32 %v1298, 4294901760
    %v9179 = vsub.f32 %v1298, %v9178
    %9180 = vmatprep.subr.mxu0 %v9179
    %v9181 = vand.u32 %v1297, 4294901760
    %v9182 = vsub.f32 %v1297, %v9181
    %9183 = vmatpush1.msra.mxu0 %v9182
    %v9184 = vand.u32 %v1314, 4294901760
    %v9185 = vsub.f32 %v1314, %v9184
    %9186 = vmatprep.subr.mxu0 %v9185
    %v9187 = vand.u32 %v1313, 4294901760
    %v9188 = vsub.f32 %v1313, %v9187
    %9189 = vmatpush1.msra.mxu0 %v9188
    %v9190 = vand.u32 %v1330, 4294901760
    %v9191 = vsub.f32 %v1330, %v9190
    %9192 = vmatprep.subr.mxu0 %v9191
    %v9193 = vand.u32 %v1329, 4294901760
    %v9194 = vsub.f32 %v1329, %v9193
    %9195 = vmatpush1.msra.mxu0 %v9194
    %9196 = vmatprep.subr.mxu0 0.0
    %9197 = vmatpush1.msra.mxu0 0.0
    %9198 = vmatprep.subr.mxu0 0.0
    %9199 = vmatpush1.msra.mxu0 0.0
    %9200 = vmatprep.subr.mxu0 0.0
    %9201 = vmatpush1.msra.mxu0 0.0
    %9202 = vmatprep.subr.mxu0 0.0
    %9203 = vmatpush1.msra.mxu0 0.0
    %9204 = vmatprep.subr.mxu0 0.0
    %9205 = vmatpush1.msra.mxu0 0.0
    %9206 = vmatprep.subr.mxu0 0.0
    %9207 = vmatpush1.msra.mxu0 0.0
    %9208 = vmatprep.subr.mxu0 0.0
    %9209 = vmatpush1.msra.mxu0 0.0
    %9210 = vmatprep.subr.mxu0 0.0
    %9211 = vmatpush1.msra.mxu0 0.0
    %9212 = vmatprep.subr.mxu0 0.0
    %9213 = vmatpush1.msra.mxu0 0.0
    %9214 = vmatprep.subr.mxu0 0.0
    %9215 = vmatpush1.msra.mxu0 0.0
    %9216 = vmatprep.subr.mxu0 0.0
    %9217 = vmatpush1.msra.mxu0 0.0
    %9218 = vmatprep.subr.mxu0 0.0
    %9219 = vmatpush1.msra.mxu0 0.0
    %9220 = vmatprep.subr.mxu0 0.0
    %9221 = vmatpush1.msra.mxu0 0.0
    %9222 = vmatprep.subr.mxu0 0.0
    %9223 = vmatpush1.msra.mxu0 0.0
    %9224 = vmatprep.subr.mxu0 0.0
    %9225 = vmatpush1.msra.mxu0 0.0
    %9226 = vmatprep.subr.mxu0 0.0
    %9227 = vmatpush1.msra.mxu0 0.0
    %9228 = vmatprep.mubr.f32.mxu0 0.0
    %v9229 = vand.u32 %v293, 4294901760
    %v9230 = vsub.f32 %v293, %v9229
    %9231 = vmatmul.mubr.f32.gmra.mrb[0].mxu0 %v9230
    %v9232 = vpop.f32.mrb[0].mxu0
    %v9233 = vadd.f32 %v9068, %v9232
    %v9234 = vpop.f32.mrb[0].mxu0
    %v9235 = vadd.f32 %v9070, %v9234
    %9236 = vmatprep.mubr.f32.mxu0 0.0
    %v9237 = vand.u32 %v294, 4294901760
    %v9238 = vsub.f32 %v294, %v9237
    %9239 = vmatmul.mubr.f32.gmra.mrb[0].mxu0 %v9238
    %v9240 = vpop.f32.mrb[0].mxu0
    %v9241 = vadd.f32 %v9075, %v9240
    %v9242 = vpop.f32.mrb[0].mxu0
    %v9243 = vadd.f32 %v9077, %v9242
    %9244 = vmatprep.mubr.f32.mxu0 0.0
    %v9245 = vand.u32 %v295, 4294901760
    %v9246 = vsub.f32 %v295, %v9245
    %9247 = vmatmul.mubr.f32.gmra.mrb[0].mxu0 %v9246
    %v9248 = vpop.f32.mrb[0].mxu0
    %v9249 = vadd.f32 %v9082, %v9248
    %v9250 = vpop.f32.mrb[0].mxu0
    %v9251 = vadd.f32 %v9084, %v9250
    %9252 = vmatprep.mubr.f32.mxu0 0.0
    %v9253 = vand.u32 %v296, 4294901760
    %v9254 = vsub.f32 %v296, %v9253
    %9255 = vmatmul.mubr.f32.gmra.mrb[0].mxu0 %v9254
    %v9256 = vpop.f32.mrb[0].mxu0
    %v9257 = vadd.f32 %v9089, %v9256
    %v9258 = vpop.f32.mrb[0].mxu0
    %v9259 = vadd.f32 %v9091, %v9258
    %9260 = vmatprep.mubr.f32.mxu0 0.0
    %v9261 = vand.u32 %v297, 4294901760
    %v9262 = vsub.f32 %v297, %v9261
    %9263 = vmatmul.mubr.f32.gmra.mrb[0].mxu0 %v9262
    %v9264 = vpop.f32.mrb[0].mxu0
    %v9265 = vadd.f32 %v9096, %v9264
    %v9266 = vpop.f32.mrb[0].mxu0
    %v9267 = vadd.f32 %v9098, %v9266
    %9268 = vdwg.mxu0
    %v9269 = vand.u32 %v706, 4294901760
    %9270 = vmatprep.subr.mxu0 %v9269
    %v9271 = vand.u32 %v705, 4294901760
    %9272 = vmatpush1.msra.mxu0 %v9271
    %v9273 = vand.u32 %v722, 4294901760
    %9274 = vmatprep.subr.mxu0 %v9273
    %v9275 = vand.u32 %v721, 4294901760
    %9276 = vmatpush1.msra.mxu0 %v9275
    %v9277 = vand.u32 %v738, 4294901760
    %9278 = vmatprep.subr.mxu0 %v9277
    %v9279 = vand.u32 %v737, 4294901760
    %9280 = vmatpush1.msra.mxu0 %v9279
    %v9281 = vand.u32 %v754, 4294901760
    %9282 = vmatprep.subr.mxu0 %v9281
    %v9283 = vand.u32 %v753, 4294901760
    %9284 = vmatpush1.msra.mxu0 %v9283
    %v9285 = vand.u32 %v770, 4294901760
    %9286 = vmatprep.subr.mxu0 %v9285
    %v9287 = vand.u32 %v769, 4294901760
    %9288 = vmatpush1.msra.mxu0 %v9287
    %v9289 = vand.u32 %v786, 4294901760
    %9290 = vmatprep.subr.mxu0 %v9289
    %v9291 = vand.u32 %v785, 4294901760
    %9292 = vmatpush1.msra.mxu0 %v9291
    %v9293 = vand.u32 %v802, 4294901760
    %9294 = vmatprep.subr.mxu0 %v9293
    %v9295 = vand.u32 %v801, 4294901760
    %9296 = vmatpush1.msra.mxu0 %v9295
    %v9297 = vand.u32 %v818, 4294901760
    %9298 = vmatprep.subr.mxu0 %v9297
    %v9299 = vand.u32 %v817, 4294901760
    %9300 = vmatpush1.msra.mxu0 %v9299
    %v9301 = vand.u32 %v1218, 4294901760
    %9302 = vmatprep.subr.mxu0 %v9301
    %v9303 = vand.u32 %v1217, 4294901760
    %9304 = vmatpush1.msra.mxu0 %v9303
    %v9305 = vand.u32 %v1234, 4294901760
    %9306 = vmatprep.subr.mxu0 %v9305
    %v9307 = vand.u32 %v1233, 4294901760
    %9308 = vmatpush1.msra.mxu0 %v9307
    %v9309 = vand.u32 %v1250, 4294901760
    %9310 = vmatprep.subr.mxu0 %v9309
    %v9311 = vand.u32 %v1249, 4294901760
    %9312 = vmatpush1.msra.mxu0 %v9311
    %v9313 = vand.u32 %v1266, 4294901760
    %9314 = vmatprep.subr.mxu0 %v9313
    %v9315 = vand.u32 %v1265, 4294901760
    %9316 = vmatpush1.msra.mxu0 %v9315
    %v9317 = vand.u32 %v1282, 4294901760
    %9318 = vmatprep.subr.mxu0 %v9317
    %v9319 = vand.u32 %v1281, 4294901760
    %9320 = vmatpush1.msra.mxu0 %v9319
    %v9321 = vand.u32 %v1298, 4294901760
    %9322 = vmatprep.subr.mxu0 %v9321
    %v9323 = vand.u32 %v1297, 4294901760
    %9324 = vmatpush1.msra.mxu0 %v9323
    %v9325 = vand.u32 %v1314, 4294901760
    %9326 = vmatprep.subr.mxu0 %v9325
    %v9327 = vand.u32 %v1313, 4294901760
    %9328 = vmatpush1.msra.mxu0 %v9327
    %v9329 = vand.u32 %v1330, 4294901760
    %9330 = vmatprep.subr.mxu0 %v9329
    %v9331 = vand.u32 %v1329, 4294901760
    %9332 = vmatpush1.msra.mxu0 %v9331
    %9333 = vmatprep.subr.mxu0 0.0
    %9334 = vmatpush1.msra.mxu0 0.0
    %9335 = vmatprep.subr.mxu0 0.0
    %9336 = vmatpush1.msra.mxu0 0.0
    %9337 = vmatprep.subr.mxu0 0.0
    %9338 = vmatpush1.msra.mxu0 0.0
    %9339 = vmatprep.subr.mxu0 0.0
    %9340 = vmatpush1.msra.mxu0 0.0
    %9341 = vmatprep.subr.mxu0 0.0
    %9342 = vmatpush1.msra.mxu0 0.0
    %9343 = vmatprep.subr.mxu0 0.0
    %9344 = vmatpush1.msra.mxu0 0.0
    %9345 = vmatprep.subr.mxu0 0.0
    %9346 = vmatpush1.msra.mxu0 0.0
    %9347 = vmatprep.subr.mxu0 0.0
    %9348 = vmatpush1.msra.mxu0 0.0
    %9349 = vmatprep.subr.mxu0 0.0
    %9350 = vmatpush1.msra.mxu0 0.0
    %9351 = vmatprep.subr.mxu0 0.0
    %9352 = vmatpush1.msra.mxu0 0.0
    %9353 = vmatprep.subr.mxu0 0.0
    %9354 = vmatpush1.msra.mxu0 0.0
    %9355 = vmatprep.subr.mxu0 0.0
    %9356 = vmatpush1.msra.mxu0 0.0
    %9357 = vmatprep.subr.mxu0 0.0
    %9358 = vmatpush1.msra.mxu0 0.0
    %9359 = vmatprep.subr.mxu0 0.0
    %9360 = vmatpush1.msra.mxu0 0.0
    %9361 = vmatprep.subr.mxu0 0.0
    %9362 = vmatpush1.msra.mxu0 0.0
    %9363 = vmatprep.subr.mxu0 0.0
    %9364 = vmatpush1.msra.mxu0 0.0
    %9365 = vmatprep.mubr.f32.mxu0 0.0
    %v9366 = vand.u32 %v293, 4294901760
    %v9367 = vsub.f32 %v293, %v9366
    %v9368 = vand.u32 %v9367, 4294901760
    %9369 = vmatmul.mubr.f32.gmra.mrb[0].mxu0 %v9368
    %v9370 = vpop.f32.mrb[0].mxu0
    %v9371 = vadd.f32 %v9233, %v9370
    %v9372 = vpop.f32.mrb[0].mxu0
    %v9373 = vadd.f32 %v9235, %v9372
    %9374 = vmatprep.mubr.f32.mxu0 0.0
    %v9375 = vand.u32 %v294, 4294901760
    %v9376 = vsub.f32 %v294, %v9375
    %v9377 = vand.u32 %v9376, 4294901760
    %9378 = vmatmul.mubr.f32.gmra.mrb[0].mxu0 %v9377
    %v9379 = vpop.f32.mrb[0].mxu0
    %v9380 = vadd.f32 %v9241, %v9379
    %v9381 = vpop.f32.mrb[0].mxu0
    %v9382 = vadd.f32 %v9243, %v9381
    %9383 = vmatprep.mubr.f32.mxu0 0.0
    %v9384 = vand.u32 %v295, 4294901760
    %v9385 = vsub.f32 %v295, %v9384
    %v9386 = vand.u32 %v9385, 4294901760
    %9387 = vmatmul.mubr.f32.gmra.mrb[0].mxu0 %v9386
    %v9388 = vpop.f32.mrb[0].mxu0
    %v9389 = vadd.f32 %v9249, %v9388
    %v9390 = vpop.f32.mrb[0].mxu0
    %v9391 = vadd.f32 %v9251, %v9390
    %9392 = vmatprep.mubr.f32.mxu0 0.0
    %v9393 = vand.u32 %v296, 4294901760
    %v9394 = vsub.f32 %v296, %v9393
    %v9395 = vand.u32 %v9394, 4294901760
    %9396 = vmatmul.mubr.f32.gmra.mrb[0].mxu0 %v9395
    %v9397 = vpop.f32.mrb[0].mxu0
    %v9398 = vadd.f32 %v9257, %v9397
    %v9399 = vpop.f32.mrb[0].mxu0
    %v9400 = vadd.f32 %v9259, %v9399
    %9401 = vmatprep.mubr.f32.mxu0 0.0
    %v9402 = vand.u32 %v297, 4294901760
    %v9403 = vsub.f32 %v297, %v9402
    %v9404 = vand.u32 %v9403, 4294901760
    %9405 = vmatmul.mubr.f32.gmra.mrb[0].mxu0 %v9404
    %v9406 = vpop.f32.mrb[0].mxu0
    %v9407 = vadd.f32 %v9265, %v9406
    %v9408 = vpop.f32.mrb[0].mxu0
    %v9409 = vadd.f32 %v9267, %v9408
    %9410 = vdwg.mxu0
    %v9411 = vand.u32 %v706, 4294901760
    %v9412 = vsub.f32 %v706, %v9411
    %v9413 = vand.u32 %v9412, 4294901760
    %9414 = vmatprep.subr.mxu0 %v9413
    %v9415 = vand.u32 %v705, 4294901760
    %v9416 = vsub.f32 %v705, %v9415
    %v9417 = vand.u32 %v9416, 4294901760
    %9418 = vmatpush1.msra.mxu0 %v9417
    %v9419 = vand.u32 %v722, 4294901760
    %v9420 = vsub.f32 %v722, %v9419
    %v9421 = vand.u32 %v9420, 4294901760
    %9422 = vmatprep.subr.mxu0 %v9421
    %v9423 = vand.u32 %v721, 4294901760
    %v9424 = vsub.f32 %v721, %v9423
    %v9425 = vand.u32 %v9424, 4294901760
    %9426 = vmatpush1.msra.mxu0 %v9425
    %v9427 = vand.u32 %v738, 4294901760
    %v9428 = vsub.f32 %v738, %v9427
    %v9429 = vand.u32 %v9428, 4294901760
    %9430 = vmatprep.subr.mxu0 %v9429
    %v9431 = vand.u32 %v737, 4294901760
    %v9432 = vsub.f32 %v737, %v9431
    %v9433 = vand.u32 %v9432, 4294901760
    %9434 = vmatpush1.msra.mxu0 %v9433
    %v9435 = vand.u32 %v754, 4294901760
    %v9436 = vsub.f32 %v754, %v9435
    %v9437 = vand.u32 %v9436, 4294901760
    %9438 = vmatprep.subr.mxu0 %v9437
    %v9439 = vand.u32 %v753, 4294901760
    %v9440 = vsub.f32 %v753, %v9439
    %v9441 = vand.u32 %v9440, 4294901760
    %9442 = vmatpush1.msra.mxu0 %v9441
    %v9443 = vand.u32 %v770, 4294901760
    %v9444 = vsub.f32 %v770, %v9443
    %v9445 = vand.u32 %v9444, 4294901760
    %9446 = vmatprep.subr.mxu0 %v9445
    %v9447 = vand.u32 %v769, 4294901760
    %v9448 = vsub.f32 %v769, %v9447
    %v9449 = vand.u32 %v9448, 4294901760
    %9450 = vmatpush1.msra.mxu0 %v9449
    %v9451 = vand.u32 %v786, 4294901760
    %v9452 = vsub.f32 %v786, %v9451
    %v9453 = vand.u32 %v9452, 4294901760
    %9454 = vmatprep.subr.mxu0 %v9453
    %v9455 = vand.u32 %v785, 4294901760
    %v9456 = vsub.f32 %v785, %v9455
    %v9457 = vand.u32 %v9456, 4294901760
    %9458 = vmatpush1.msra.mxu0 %v9457
    %v9459 = vand.u32 %v802, 4294901760
    %v9460 = vsub.f32 %v802, %v9459
    %v9461 = vand.u32 %v9460, 4294901760
    %9462 = vmatprep.subr.mxu0 %v9461
    %v9463 = vand.u32 %v801, 4294901760
    %v9464 = vsub.f32 %v801, %v9463
    %v9465 = vand.u32 %v9464, 4294901760
    %9466 = vmatpush1.msra.mxu0 %v9465
    %v9467 = vand.u32 %v818, 4294901760
    %v9468 = vsub.f32 %v818, %v9467
    %v9469 = vand.u32 %v9468, 4294901760
    %9470 = vmatprep.subr.mxu0 %v9469
    %v9471 = vand.u32 %v817, 4294901760
    %v9472 = vsub.f32 %v817, %v9471
    %v9473 = vand.u32 %v9472, 4294901760
    %9474 = vmatpush1.msra.mxu0 %v9473
    %v9475 = vand.u32 %v1218, 4294901760
    %v9476 = vsub.f32 %v1218, %v9475
    %v9477 = vand.u32 %v9476, 4294901760
    %9478 = vmatprep.subr.mxu0 %v9477
    %v9479 = vand.u32 %v1217, 4294901760
    %v9480 = vsub.f32 %v1217, %v9479
    %v9481 = vand.u32 %v9480, 4294901760
    %9482 = vmatpush1.msra.mxu0 %v9481
    %v9483 = vand.u32 %v1234, 4294901760
    %v9484 = vsub.f32 %v1234, %v9483
    %v9485 = vand.u32 %v9484, 4294901760
    %9486 = vmatprep.subr.mxu0 %v9485
    %v9487 = vand.u32 %v1233, 4294901760
    %v9488 = vsub.f32 %v1233, %v9487
    %v9489 = vand.u32 %v9488, 4294901760
    %9490 = vmatpush1.msra.mxu0 %v9489
    %v9491 = vand.u32 %v1250, 4294901760
    %v9492 = vsub.f32 %v1250, %v9491
    %v9493 = vand.u32 %v9492, 4294901760
    %9494 = vmatprep.subr.mxu0 %v9493
    %v9495 = vand.u32 %v1249, 4294901760
    %v9496 = vsub.f32 %v1249, %v9495
    %v9497 = vand.u32 %v9496, 4294901760
    %9498 = vmatpush1.msra.mxu0 %v9497
    %v9499 = vand.u32 %v1266, 4294901760
    %v9500 = vsub.f32 %v1266, %v9499
    %v9501 = vand.u32 %v9500, 4294901760
    %9502 = vmatprep.subr.mxu0 %v9501
    %v9503 = vand.u32 %v1265, 4294901760
    %v9504 = vsub.f32 %v1265, %v9503
    %v9505 = vand.u32 %v9504, 4294901760
    %9506 = vmatpush1.msra.mxu0 %v9505
    %v9507 = vand.u32 %v1282, 4294901760
    %v9508 = vsub.f32 %v1282, %v9507
    %v9509 = vand.u32 %v9508, 4294901760
    %9510 = vmatprep.subr.mxu0 %v9509
    %v9511 = vand.u32 %v1281, 4294901760
    %v9512 = vsub.f32 %v1281, %v9511
    %v9513 = vand.u32 %v9512, 4294901760
    %9514 = vmatpush1.msra.mxu0 %v9513
    %v9515 = vand.u32 %v1298, 4294901760
    %v9516 = vsub.f32 %v1298, %v9515
    %v9517 = vand.u32 %v9516, 4294901760
    %9518 = vmatprep.subr.mxu0 %v9517
    %v9519 = vand.u32 %v1297, 4294901760
    %v9520 = vsub.f32 %v1297, %v9519
    %v9521 = vand.u32 %v9520, 4294901760
    %9522 = vmatpush1.msra.mxu0 %v9521
    %v9523 = vand.u32 %v1314, 4294901760
    %v9524 = vsub.f32 %v1314, %v9523
    %v9525 = vand.u32 %v9524, 4294901760
    %9526 = vmatprep.subr.mxu0 %v9525
    %v9527 = vand.u32 %v1313, 4294901760
    %v9528 = vsub.f32 %v1313, %v9527
    %v9529 = vand.u32 %v9528, 4294901760
    %9530 = vmatpush1.msra.mxu0 %v9529
    %v9531 = vand.u32 %v1330, 4294901760
    %v9532 = vsub.f32 %v1330, %v9531
    %v9533 = vand.u32 %v9532, 4294901760
    %9534 = vmatprep.subr.mxu0 %v9533
    %v9535 = vand.u32 %v1329, 4294901760
    %v9536 = vsub.f32 %v1329, %v9535
    %v9537 = vand.u32 %v9536, 4294901760
    %9538 = vmatpush1.msra.mxu0 %v9537
    %9539 = vmatprep.subr.mxu0 0.0
    %9540 = vmatpush1.msra.mxu0 0.0
    %9541 = vmatprep.subr.mxu0 0.0
    %9542 = vmatpush1.msra.mxu0 0.0
    %9543 = vmatprep.subr.mxu0 0.0
    %9544 = vmatpush1.msra.mxu0 0.0
    %9545 = vmatprep.subr.mxu0 0.0
    %9546 = vmatpush1.msra.mxu0 0.0
    %9547 = vmatprep.subr.mxu0 0.0
    %9548 = vmatpush1.msra.mxu0 0.0
    %9549 = vmatprep.subr.mxu0 0.0
    %9550 = vmatpush1.msra.mxu0 0.0
    %9551 = vmatprep.subr.mxu0 0.0
    %9552 = vmatpush1.msra.mxu0 0.0
    %9553 = vmatprep.subr.mxu0 0.0
    %9554 = vmatpush1.msra.mxu0 0.0
    %9555 = vmatprep.subr.mxu0 0.0
    %9556 = vmatpush1.msra.mxu0 0.0
    %9557 = vmatprep.subr.mxu0 0.0
    %9558 = vmatpush1.msra.mxu0 0.0
    %9559 = vmatprep.subr.mxu0 0.0
    %9560 = vmatpush1.msra.mxu0 0.0
    %9561 = vmatprep.subr.mxu0 0.0
    %9562 = vmatpush1.msra.mxu0 0.0
    %9563 = vmatprep.subr.mxu0 0.0
    %9564 = vmatpush1.msra.mxu0 0.0
    %9565 = vmatprep.subr.mxu0 0.0
    %9566 = vmatpush1.msra.mxu0 0.0
    %9567 = vmatprep.subr.mxu0 0.0
    %9568 = vmatpush1.msra.mxu0 0.0
    %9569 = vmatprep.subr.mxu0 0.0
    %9570 = vmatpush1.msra.mxu0 0.0
    %9571 = vmatprep.mubr.f32.mxu0 0.0
    %v9572 = vand.u32 %v293, 4294901760
    %9573 = vmatmul.mubr.f32.gmra.mrb[0].mxu0 %v9572
    %v9574 = vpop.f32.mrb[0].mxu0
    %v9575 = vadd.f32 %v9371, %v9574
    %v9576 = vpop.f32.mrb[0].mxu0
    %v9577 = vadd.f32 %v9373, %v9576
    %9578 = vmatprep.mubr.f32.mxu0 0.0
    %v9579 = vand.u32 %v294, 4294901760
    %9580 = vmatmul.mubr.f32.gmra.mrb[0].mxu0 %v9579
    %v9581 = vpop.f32.mrb[0].mxu0
    %v9582 = vadd.f32 %v9380, %v9581
    %v9583 = vpop.f32.mrb[0].mxu0
    %v9584 = vadd.f32 %v9382, %v9583
    %9585 = vmatprep.mubr.f32.mxu0 0.0
    %v9586 = vand.u32 %v295, 4294901760
    %9587 = vmatmul.mubr.f32.gmra.mrb[0].mxu0 %v9586
    %v9588 = vpop.f32.mrb[0].mxu0
    %v9589 = vadd.f32 %v9389, %v9588
    %v9590 = vpop.f32.mrb[0].mxu0
    %v9591 = vadd.f32 %v9391, %v9590
    %9592 = vmatprep.mubr.f32.mxu0 0.0
    %v9593 = vand.u32 %v296, 4294901760
    %9594 = vmatmul.mubr.f32.gmra.mrb[0].mxu0 %v9593
    %v9595 = vpop.f32.mrb[0].mxu0
    %v9596 = vadd.f32 %v9398, %v9595
    %v9597 = vpop.f32.mrb[0].mxu0
    %v9598 = vadd.f32 %v9400, %v9597
    %9599 = vmatprep.mubr.f32.mxu0 0.0
    %v9600 = vand.u32 %v297, 4294901760
    %9601 = vmatmul.mubr.f32.gmra.mrb[0].mxu0 %v9600
    %v9602 = vpop.f32.mrb[0].mxu0
    %v9603 = vadd.f32 %v9407, %v9602
    %v9604 = vpop.f32.mrb[0].mxu0
    %v9605 = vadd.f32 %v9409, %v9604
    %9606 = vdwg.mxu0
    %v9607 = vand.u32 %v706, 4294901760
    %9608 = vmatprep.subr.mxu0 %v9607
    %v9609 = vand.u32 %v705, 4294901760
    %9610 = vmatpush1.msra.mxu0 %v9609
    %v9611 = vand.u32 %v722, 4294901760
    %9612 = vmatprep.subr.mxu0 %v9611
    %v9613 = vand.u32 %v721, 4294901760
    %9614 = vmatpush1.msra.mxu0 %v9613
    %v9615 = vand.u32 %v738, 4294901760
    %9616 = vmatprep.subr.mxu0 %v9615
    %v9617 = vand.u32 %v737, 4294901760
    %9618 = vmatpush1.msra.mxu0 %v9617
    %v9619 = vand.u32 %v754, 4294901760
    %9620 = vmatprep.subr.mxu0 %v9619
    %v9621 = vand.u32 %v753, 4294901760
    %9622 = vmatpush1.msra.mxu0 %v9621
    %v9623 = vand.u32 %v770, 4294901760
    %9624 = vmatprep.subr.mxu0 %v9623
    %v9625 = vand.u32 %v769, 4294901760
    %9626 = vmatpush1.msra.mxu0 %v9625
    %v9627 = vand.u32 %v786, 4294901760
    %9628 = vmatprep.subr.mxu0 %v9627
    %v9629 = vand.u32 %v785, 4294901760
    %9630 = vmatpush1.msra.mxu0 %v9629
    %v9631 = vand.u32 %v802, 4294901760
    %9632 = vmatprep.subr.mxu0 %v9631
    %v9633 = vand.u32 %v801, 4294901760
    %9634 = vmatpush1.msra.mxu0 %v9633
    %v9635 = vand.u32 %v818, 4294901760
    %9636 = vmatprep.subr.mxu0 %v9635
    %v9637 = vand.u32 %v817, 4294901760
    %9638 = vmatpush1.msra.mxu0 %v9637
    %v9639 = vand.u32 %v1218, 4294901760
    %9640 = vmatprep.subr.mxu0 %v9639
    %v9641 = vand.u32 %v1217, 4294901760
    %9642 = vmatpush1.msra.mxu0 %v9641
    %v9643 = vand.u32 %v1234, 4294901760
    %9644 = vmatprep.subr.mxu0 %v9643
    %v9645 = vand.u32 %v1233, 4294901760
    %9646 = vmatpush1.msra.mxu0 %v9645
    %v9647 = vand.u32 %v1250, 4294901760
    %9648 = vmatprep.subr.mxu0 %v9647
    %v9649 = vand.u32 %v1249, 4294901760
    %9650 = vmatpush1.msra.mxu0 %v9649
    %v9651 = vand.u32 %v1266, 4294901760
    %9652 = vmatprep.subr.mxu0 %v9651
    %v9653 = vand.u32 %v1265, 4294901760
    %9654 = vmatpush1.msra.mxu0 %v9653
    %v9655 = vand.u32 %v1282, 4294901760
    %9656 = vmatprep.subr.mxu0 %v9655
    %v9657 = vand.u32 %v1281, 4294901760
    %9658 = vmatpush1.msra.mxu0 %v9657
    %v9659 = vand.u32 %v1298, 4294901760
    %9660 = vmatprep.subr.mxu0 %v9659
    %v9661 = vand.u32 %v1297, 4294901760
    %9662 = vmatpush1.msra.mxu0 %v9661
    %v9663 = vand.u32 %v1314, 4294901760
    %9664 = vmatprep.subr.mxu0 %v9663
    %v9665 = vand.u32 %v1313, 4294901760
    %9666 = vmatpush1.msra.mxu0 %v9665
    %v9667 = vand.u32 %v1330, 4294901760
    %9668 = vmatprep.subr.mxu0 %v9667
    %v9669 = vand.u32 %v1329, 4294901760
    %9670 = vmatpush1.msra.mxu0 %v9669
    %9671 = vmatprep.subr.mxu0 0.0
    %9672 = vmatpush1.msra.mxu0 0.0
    %9673 = vmatprep.subr.mxu0 0.0
    %9674 = vmatpush1.msra.mxu0 0.0
    %9675 = vmatprep.subr.mxu0 0.0
    %9676 = vmatpush1.msra.mxu0 0.0
    %9677 = vmatprep.subr.mxu0 0.0
    %9678 = vmatpush1.msra.mxu0 0.0
    %9679 = vmatprep.subr.mxu0 0.0
    %9680 = vmatpush1.msra.mxu0 0.0
    %9681 = vmatprep.subr.mxu0 0.0
    %9682 = vmatpush1.msra.mxu0 0.0
    %9683 = vmatprep.subr.mxu0 0.0
    %9684 = vmatpush1.msra.mxu0 0.0
    %9685 = vmatprep.subr.mxu0 0.0
    %9686 = vmatpush1.msra.mxu0 0.0
    %9687 = vmatprep.subr.mxu0 0.0
    %9688 = vmatpush1.msra.mxu0 0.0
    %9689 = vmatprep.subr.mxu0 0.0
    %9690 = vmatpush1.msra.mxu0 0.0
    %9691 = vmatprep.subr.mxu0 0.0
    %9692 = vmatpush1.msra.mxu0 0.0
    %9693 = vmatprep.subr.mxu0 0.0
    %9694 = vmatpush1.msra.mxu0 0.0
    %9695 = vmatprep.subr.mxu0 0.0
    %9696 = vmatpush1.msra.mxu0 0.0
    %9697 = vmatprep.subr.mxu0 0.0
    %9698 = vmatpush1.msra.mxu0 0.0
    %9699 = vmatprep.subr.mxu0 0.0
    %9700 = vmatpush1.msra.mxu0 0.0
    %9701 = vmatprep.subr.mxu0 0.0
    %9702 = vmatpush1.msra.mxu0 0.0
    %9703 = vmatprep.mubr.f32.mxu0 0.0
    %v9704 = vand.u32 %v293, 4294901760
    %9705 = vmatmul.mubr.f32.gmra.mrb[0].mxu0 %v9704
    %v9706 = vpop.f32.mrb[0].mxu0
    %v9707 = vadd.f32 %v9575, %v9706
    %v9708 = vpop.f32.mrb[0].mxu0
    %v9709 = vadd.f32 %v9577, %v9708
    %9710 = vmatprep.mubr.f32.mxu0 0.0
    %v9711 = vand.u32 %v294, 4294901760
    %9712 = vmatmul.mubr.f32.gmra.mrb[0].mxu0 %v9711
    %v9713 = vpop.f32.mrb[0].mxu0
    %v9714 = vadd.f32 %v9582, %v9713
    %v9715 = vpop.f32.mrb[0].mxu0
    %v9716 = vadd.f32 %v9584, %v9715
    %9717 = vmatprep.mubr.f32.mxu0 0.0
    %v9718 = vand.u32 %v295, 4294901760
    %9719 = vmatmul.mubr.f32.gmra.mrb[0].mxu0 %v9718
    %v9720 = vpop.f32.mrb[0].mxu0
    %v9721 = vadd.f32 %v9589, %v9720
    %v9722 = vpop.f32.mrb[0].mxu0
    %v9723 = vadd.f32 %v9591, %v9722
    %9724 = vmatprep.mubr.f32.mxu0 0.0
    %v9725 = vand.u32 %v296, 4294901760
    %9726 = vmatmul.mubr.f32.gmra.mrb[0].mxu0 %v9725
    %v9727 = vpop.f32.mrb[0].mxu0
    %v9728 = vadd.f32 %v9596, %v9727
    %v9729 = vpop.f32.mrb[0].mxu0
    %v9730 = vadd.f32 %v9598, %v9729
    %9731 = vmatprep.mubr.f32.mxu0 0.0
    %v9732 = vand.u32 %v297, 4294901760
    %9733 = vmatmul.mubr.f32.gmra.mrb[0].mxu0 %v9732
    %v9734 = vpop.f32.mrb[0].mxu0
    %v9735 = vadd.f32 %v9603, %v9734
    %v9736 = vpop.f32.mrb[0].mxu0
    %v9737 = vadd.f32 %v9605, %v9736
    %9738 = vdwg.mxu0
    %v9739 = vlaneseq
    %v9740 = vshrl.u32 %v9739, 7
    %v9741 = vsub.s32 1, %v9740
    %v9742 = vrot.slane %v277, %v9741
    %v9743 = vlaneseq
    %v9744 = vshrl.u32 %v9743, 7
    %v9745 = vsub.s32 5, %v9744
    %v9746 = vrot.slane %v277, %v9745
    %v9747 = vlaneseq
    %v9748 = vshrl.u32 %v9747, 7
    %v9749 = vsub.s32 1, %v9748
    %v9750 = vrot.slane %v278, %v9749
    %v9751 = vlaneseq
    %v9752 = vshrl.u32 %v9751, 7
    %v9753 = vsub.s32 5, %v9752
    %v9754 = vrot.slane %v278, %v9753
    %v9755 = vlaneseq
    %v9756 = vshrl.u32 %v9755, 7
    %v9757 = vsub.s32 1, %v9756
    %v9758 = vrot.slane %v279, %v9757
    %v9759 = vlaneseq
    %v9760 = vshrl.u32 %v9759, 7
    %v9761 = vsub.s32 5, %v9760
    %v9762 = vrot.slane %v279, %v9761
    %v9763 = vlaneseq
    %v9764 = vshrl.u32 %v9763, 7
    %v9765 = vsub.s32 1, %v9764
    %v9766 = vrot.slane %v280, %v9765
    %v9767 = vlaneseq
    %v9768 = vshrl.u32 %v9767, 7
    %v9769 = vsub.s32 5, %v9768
    %v9770 = vrot.slane %v280, %v9769
    %v9771 = vlaneseq
    %v9772 = vshrl.u32 %v9771, 7
    %v9773 = vsub.s32 1, %v9772
    %v9774 = vrot.slane %v281, %v9773
    %v9775 = vlaneseq
    %v9776 = vshrl.u32 %v9775, 7
    %v9777 = vsub.s32 5, %v9776
    %v9778 = vrot.slane %v281, %v9777
    %v9779 = vlaneseq
    %v9780 = vshrl.u32 %v9779, 7
    %v9781 = vsub.s32 1, %v9780
    %v9782 = vrot.slane %v282, %v9781
    %v9783 = vlaneseq
    %v9784 = vshrl.u32 %v9783, 7
    %v9785 = vsub.s32 5, %v9784
    %v9786 = vrot.slane %v282, %v9785
    %v9787 = vlaneseq
    %v9788 = vshrl.u32 %v9787, 7
    %v9789 = vsub.s32 1, %v9788
    %v9790 = vrot.slane %v283, %v9789
    %v9791 = vlaneseq
    %v9792 = vshrl.u32 %v9791, 7
    %v9793 = vsub.s32 5, %v9792
    %v9794 = vrot.slane %v283, %v9793
    %v9795 = vlaneseq
    %v9796 = vshrl.u32 %v9795, 7
    %v9797 = vsub.s32 1, %v9796
    %v9798 = vrot.slane %v284, %v9797
    %v9799 = vlaneseq
    %v9800 = vshrl.u32 %v9799, 7
    %v9801 = vsub.s32 5, %v9800
    %v9802 = vrot.slane %v284, %v9801
    %v9803 = vlaneseq
    %v9804 = vshrl.u32 %v9803, 7
    %v9805 = vsub.s32 1, %v9804
    %v9806 = vrot.slane %v9742, %v9805
    %v9807 = vlaneseq
    %v9808 = vshrl.u32 %v9807, 7
    %v9809 = vsub.s32 1, %v9808
    %v9810 = vrot.slane %v9746, %v9809
    %v9811 = vlaneseq
    %v9812 = vshrl.u32 %v9811, 7
    %v9813 = vsub.s32 1, %v9812
    %v9814 = vrot.slane %v9750, %v9813
    %v9815 = vlaneseq
    %v9816 = vshrl.u32 %v9815, 7
    %v9817 = vsub.s32 1, %v9816
    %v9818 = vrot.slane %v9754, %v9817
    %v9819 = vlaneseq
    %v9820 = vshrl.u32 %v9819, 7
    %v9821 = vsub.s32 1, %v9820
    %v9822 = vrot.slane %v9758, %v9821
    %v9823 = vlaneseq
    %v9824 = vshrl.u32 %v9823, 7
    %v9825 = vsub.s32 1, %v9824
    %v9826 = vrot.slane %v9762, %v9825
    %v9827 = vlaneseq
    %v9828 = vshrl.u32 %v9827, 7
    %v9829 = vsub.s32 1, %v9828
    %v9830 = vrot.slane %v9766, %v9829
    %v9831 = vlaneseq
    %v9832 = vshrl.u32 %v9831, 7
    %v9833 = vsub.s32 1, %v9832
    %v9834 = vrot.slane %v9770, %v9833
    %v9835 = vlaneseq
    %v9836 = vshrl.u32 %v9835, 7
    %v9837 = vsub.s32 1, %v9836
    %v9838 = vrot.slane %v9774, %v9837
    %v9839 = vlaneseq
    %v9840 = vshrl.u32 %v9839, 7
    %v9841 = vsub.s32 1, %v9840
    %v9842 = vrot.slane %v9778, %v9841
    %v9843 = vlaneseq
    %v9844 = vshrl.u32 %v9843, 7
    %v9845 = vsub.s32 1, %v9844
    %v9846 = vrot.slane %v9782, %v9845
    %v9847 = vlaneseq
    %v9848 = vshrl.u32 %v9847, 7
    %v9849 = vsub.s32 1, %v9848
    %v9850 = vrot.slane %v9786, %v9849
    %v9851 = vlaneseq
    %v9852 = vshrl.u32 %v9851, 7
    %v9853 = vsub.s32 1, %v9852
    %v9854 = vrot.slane %v9790, %v9853
    %v9855 = vlaneseq
    %v9856 = vshrl.u32 %v9855, 7
    %v9857 = vsub.s32 1, %v9856
    %v9858 = vrot.slane %v9794, %v9857
    %v9859 = vlaneseq
    %v9860 = vshrl.u32 %v9859, 7
    %v9861 = vsub.s32 1, %v9860
    %v9862 = vrot.slane %v9798, %v9861
    %v9863 = vlaneseq
    %v9864 = vshrl.u32 %v9863, 7
    %v9865 = vsub.s32 1, %v9864
    %v9866 = vrot.slane %v9802, %v9865
    %vm9867 = vcmp.eq.s32.totalorder %v299, %v9806
    %vm9868 = vcmp.eq.s32.totalorder %v299, %v9810
    %vm9869 = vcmp.eq.s32.totalorder %v299, %v9814
    %vm9870 = vcmp.eq.s32.totalorder %v299, %v9818
    %vm9871 = vcmp.eq.s32.totalorder %v299, %v9822
    %vm9872 = vcmp.eq.s32.totalorder %v299, %v9826
    %vm9873 = vcmp.eq.s32.totalorder %v299, %v9830
    %vm9874 = vcmp.eq.s32.totalorder %v299, %v9834
    %vm9875 = vcmp.eq.s32.totalorder %v299, %v9838
    %vm9876 = vcmp.eq.s32.totalorder %v299, %v9842
    %vm9877 = vcmp.eq.s32.totalorder %v299, %v9846
    %vm9878 = vcmp.eq.s32.totalorder %v299, %v9850
    %vm9879 = vcmp.eq.s32.totalorder %v299, %v9854
    %vm9880 = vcmp.eq.s32.totalorder %v299, %v9858
    %vm9881 = vcmp.eq.s32.totalorder %v299, %v9862
    %vm9882 = vcmp.eq.s32.totalorder %v299, %v9866
    %vm9883 = vcmp.eq.s32.totalorder %v300, %v9806
    %vm9884 = vcmp.eq.s32.totalorder %v300, %v9810
    %vm9885 = vcmp.eq.s32.totalorder %v300, %v9814
    %vm9886 = vcmp.eq.s32.totalorder %v300, %v9818
    %vm9887 = vcmp.eq.s32.totalorder %v300, %v9822
    %vm9888 = vcmp.eq.s32.totalorder %v300, %v9826
    %vm9889 = vcmp.eq.s32.totalorder %v300, %v9830
    %vm9890 = vcmp.eq.s32.totalorder %v300, %v9834
    %vm9891 = vcmp.eq.s32.totalorder %v300, %v9838
    %vm9892 = vcmp.eq.s32.totalorder %v300, %v9842
    %vm9893 = vcmp.eq.s32.totalorder %v300, %v9846
    %vm9894 = vcmp.eq.s32.totalorder %v300, %v9850
    %vm9895 = vcmp.eq.s32.totalorder %v300, %v9854
    %vm9896 = vcmp.eq.s32.totalorder %v300, %v9858
    %vm9897 = vcmp.eq.s32.totalorder %v300, %v9862
    %vm9898 = vcmp.eq.s32.totalorder %v300, %v9866
    %v9899 = vsel %vm9867, %v2357, 0.0
    %v9900 = vsel %vm9868, %v2359, 0.0
    %v9901 = vsel %vm9869, %v3408, 0.0
    %v9902 = vsel %vm9870, %v3410, 0.0
    %v9903 = vsel %vm9871, %v4459, 0.0
    %v9904 = vsel %vm9872, %v4461, 0.0
    %v9905 = vsel %vm9873, %v5510, 0.0
    %v9906 = vsel %vm9874, %v5512, 0.0
    %v9907 = vsel %vm9875, %v6561, 0.0
    %v9908 = vsel %vm9876, %v6563, 0.0
    %v9909 = vsel %vm9877, %v7612, 0.0
    %v9910 = vsel %vm9878, %v7614, 0.0
    %v9911 = vsel %vm9879, %v8663, 0.0
    %v9912 = vsel %vm9880, %v8665, 0.0
    %v9913 = vsel %vm9881, %v9714, 0.0
    %v9914 = vsel %vm9882, %v9716, 0.0
    %v9915 = vsel %vm9883, %v2364, 0.0
    %v9916 = vsel %vm9884, %v2366, 0.0
    %v9917 = vsel %vm9885, %v3415, 0.0
    %v9918 = vsel %vm9886, %v3417, 0.0
    %v9919 = vsel %vm9887, %v4466, 0.0
    %v9920 = vsel %vm9888, %v4468, 0.0
    %v9921 = vsel %vm9889, %v5517, 0.0
    %v9922 = vsel %vm9890, %v5519, 0.0
    %v9923 = vsel %vm9891, %v6568, 0.0
    %v9924 = vsel %vm9892, %v6570, 0.0
    %v9925 = vsel %vm9893, %v7619, 0.0
    %v9926 = vsel %vm9894, %v7621, 0.0
    %v9927 = vsel %vm9895, %v8670, 0.0
    %v9928 = vsel %vm9896, %v8672, 0.0
    %v9929 = vsel %vm9897, %v9721, 0.0
    %v9930 = vsel %vm9898, %v9723, 0.0
    %v9931 = vadd.f32 %v9899, %v9915
    %v9932 = vrot.slane %v9931, 4
    %v9933 = vadd.f32 %v9931, %v9932
    %v9934 = vrot.slane %v9933, 2
    %v9935 = vadd.f32 %v9933, %v9934
    %v9936 = vrot.slane %v9935, 1
    %v9937 = vadd.f32 %v9935, %v9936
    %v9938 = vadd.f32 %v9900, %v9916
    %v9939 = vrot.slane %v9938, 4
    %v9940 = vadd.f32 %v9938, %v9939
    %v9941 = vrot.slane %v9940, 2
    %v9942 = vadd.f32 %v9940, %v9941
    %v9943 = vrot.slane %v9942, 1
    %v9944 = vadd.f32 %v9942, %v9943
    %v9945 = vadd.f32 %v9901, %v9917
    %v9946 = vrot.slane %v9945, 4
    %v9947 = vadd.f32 %v9945, %v9946
    %v9948 = vrot.slane %v9947, 2
    %v9949 = vadd.f32 %v9947, %v9948
    %v9950 = vrot.slane %v9949, 1
    %v9951 = vadd.f32 %v9949, %v9950
    %v9952 = vadd.f32 %v9902, %v9918
    %v9953 = vrot.slane %v9952, 4
    %v9954 = vadd.f32 %v9952, %v9953
    %v9955 = vrot.slane %v9954, 2
    %v9956 = vadd.f32 %v9954, %v9955
    %v9957 = vrot.slane %v9956, 1
    %v9958 = vadd.f32 %v9956, %v9957
    %v9959 = vadd.f32 %v9903, %v9919
    %v9960 = vrot.slane %v9959, 4
    %v9961 = vadd.f32 %v9959, %v9960
    %v9962 = vrot.slane %v9961, 2
    %v9963 = vadd.f32 %v9961, %v9962
    %v9964 = vrot.slane %v9963, 1
    %v9965 = vadd.f32 %v9963, %v9964
    %v9966 = vadd.f32 %v9904, %v9920
    %v9967 = vrot.slane %v9966, 4
    %v9968 = vadd.f32 %v9966, %v9967
    %v9969 = vrot.slane %v9968, 2
    %v9970 = vadd.f32 %v9968, %v9969
    %v9971 = vrot.slane %v9970, 1
    %v9972 = vadd.f32 %v9970, %v9971
    %v9973 = vadd.f32 %v9905, %v9921
    %v9974 = vrot.slane %v9973, 4
    %v9975 = vadd.f32 %v9973, %v9974
    %v9976 = vrot.slane %v9975, 2
    %v9977 = vadd.f32 %v9975, %v9976
    %v9978 = vrot.slane %v9977, 1
    %v9979 = vadd.f32 %v9977, %v9978
    %v9980 = vadd.f32 %v9906, %v9922
    %v9981 = vrot.slane %v9980, 4
    %v9982 = vadd.f32 %v9980, %v9981
    %v9983 = vrot.slane %v9982, 2
    %v9984 = vadd.f32 %v9982, %v9983
    %v9985 = vrot.slane %v9984, 1
    %v9986 = vadd.f32 %v9984, %v9985
    %v9987 = vadd.f32 %v9907, %v9923
    %v9988 = vrot.slane %v9987, 4
    %v9989 = vadd.f32 %v9987, %v9988
    %v9990 = vrot.slane %v9989, 2
    %v9991 = vadd.f32 %v9989, %v9990
    %v9992 = vrot.slane %v9991, 1
    %v9993 = vadd.f32 %v9991, %v9992
    %v9994 = vadd.f32 %v9908, %v9924
    %v9995 = vrot.slane %v9994, 4
    %v9996 = vadd.f32 %v9994, %v9995
    %v9997 = vrot.slane %v9996, 2
    %v9998 = vadd.f32 %v9996, %v9997
    %v9999 = vrot.slane %v9998, 1
    %v10000 = vadd.f32 %v9998, %v9999
    %v10001 = vadd.f32 %v9909, %v9925
    %v10002 = vrot.slane %v10001, 4
    %v10003 = vadd.f32 %v10001, %v10002
    %v10004 = vrot.slane %v10003, 2
    %v10005 = vadd.f32 %v10003, %v10004
    %v10006 = vrot.slane %v10005, 1
    %v10007 = vadd.f32 %v10005, %v10006
    %v10008 = vadd.f32 %v9910, %v9926
    %v10009 = vrot.slane %v10008, 4
    %v10010 = vadd.f32 %v10008, %v10009
    %v10011 = vrot.slane %v10010, 2
    %v10012 = vadd.f32 %v10010, %v10011
    %v10013 = vrot.slane %v10012, 1
    %v10014 = vadd.f32 %v10012, %v10013
    %v10015 = vadd.f32 %v9911, %v9927
    %v10016 = vrot.slane %v10015, 4
    %v10017 = vadd.f32 %v10015, %v10016
    %v10018 = vrot.slane %v10017, 2
    %v10019 = vadd.f32 %v10017, %v10018
    %v10020 = vrot.slane %v10019, 1
    %v10021 = vadd.f32 %v10019, %v10020
    %v10022 = vadd.f32 %v9912, %v9928
    %v10023 = vrot.slane %v10022, 4
    %v10024 = vadd.f32 %v10022, %v10023
    %v10025 = vrot.slane %v10024, 2
    %v10026 = vadd.f32 %v10024, %v10025
    %v10027 = vrot.slane %v10026, 1
    %v10028 = vadd.f32 %v10026, %v10027
    %v10029 = vadd.f32 %v9913, %v9929
    %v10030 = vrot.slane %v10029, 4
    %v10031 = vadd.f32 %v10029, %v10030
    %v10032 = vrot.slane %v10031, 2
    %v10033 = vadd.f32 %v10031, %v10032
    %v10034 = vrot.slane %v10033, 1
    %v10035 = vadd.f32 %v10033, %v10034
    %v10036 = vadd.f32 %v9914, %v9930
    %v10037 = vrot.slane %v10036, 4
    %v10038 = vadd.f32 %v10036, %v10037
    %v10039 = vrot.slane %v10038, 2
    %v10040 = vadd.f32 %v10038, %v10039
    %v10041 = vrot.slane %v10040, 1
    %v10042 = vadd.f32 %v10040, %v10041
    %v10043 = vsel %vm9867, %v2371, 0.0
    %v10044 = vsel %vm9868, %v2373, 0.0
    %v10045 = vsel %vm9869, %v3422, 0.0
    %v10046 = vsel %vm9870, %v3424, 0.0
    %v10047 = vsel %vm9871, %v4473, 0.0
    %v10048 = vsel %vm9872, %v4475, 0.0
    %v10049 = vsel %vm9873, %v5524, 0.0
    %v10050 = vsel %vm9874, %v5526, 0.0
    %v10051 = vsel %vm9875, %v6575, 0.0
    %v10052 = vsel %vm9876, %v6577, 0.0
    %v10053 = vsel %vm9877, %v7626, 0.0
    %v10054 = vsel %vm9878, %v7628, 0.0
    %v10055 = vsel %vm9879, %v8677, 0.0
    %v10056 = vsel %vm9880, %v8679, 0.0
    %v10057 = vsel %vm9881, %v9728, 0.0
    %v10058 = vsel %vm9882, %v9730, 0.0
    %v10059 = vsel %vm9883, %v2378, 0.0
    %v10060 = vsel %vm9884, %v2380, 0.0
    %v10061 = vsel %vm9885, %v3429, 0.0
    %v10062 = vsel %vm9886, %v3431, 0.0
    %v10063 = vsel %vm9887, %v4480, 0.0
    %v10064 = vsel %vm9888, %v4482, 0.0
    %v10065 = vsel %vm9889, %v5531, 0.0
    %v10066 = vsel %vm9890, %v5533, 0.0
    %v10067 = vsel %vm9891, %v6582, 0.0
    %v10068 = vsel %vm9892, %v6584, 0.0
    %v10069 = vsel %vm9893, %v7633, 0.0
    %v10070 = vsel %vm9894, %v7635, 0.0
    %v10071 = vsel %vm9895, %v8684, 0.0
    %v10072 = vsel %vm9896, %v8686, 0.0
    %v10073 = vsel %vm9897, %v9735, 0.0
    %v10074 = vsel %vm9898, %v9737, 0.0
    %v10075 = vadd.f32 %v10043, %v10059
    %v10076 = vrot.slane %v10075, 4
    %v10077 = vadd.f32 %v10075, %v10076
    %v10078 = vrot.slane %v10077, 2
    %v10079 = vadd.f32 %v10077, %v10078
    %v10080 = vrot.slane %v10079, 1
    %v10081 = vadd.f32 %v10079, %v10080
    %v10082 = vadd.f32 %v10044, %v10060
    %v10083 = vrot.slane %v10082, 4
    %v10084 = vadd.f32 %v10082, %v10083
    %v10085 = vrot.slane %v10084, 2
    %v10086 = vadd.f32 %v10084, %v10085
    %v10087 = vrot.slane %v10086, 1
    %v10088 = vadd.f32 %v10086, %v10087
    %v10089 = vadd.f32 %v10045, %v10061
    %v10090 = vrot.slane %v10089, 4
    %v10091 = vadd.f32 %v10089, %v10090
    %v10092 = vrot.slane %v10091, 2
    %v10093 = vadd.f32 %v10091, %v10092
    %v10094 = vrot.slane %v10093, 1
    %v10095 = vadd.f32 %v10093, %v10094
    %v10096 = vadd.f32 %v10046, %v10062
    %v10097 = vrot.slane %v10096, 4
    %v10098 = vadd.f32 %v10096, %v10097
    %v10099 = vrot.slane %v10098, 2
    %v10100 = vadd.f32 %v10098, %v10099
    %v10101 = vrot.slane %v10100, 1
    %v10102 = vadd.f32 %v10100, %v10101
    %v10103 = vadd.f32 %v10047, %v10063
    %v10104 = vrot.slane %v10103, 4
    %v10105 = vadd.f32 %v10103, %v10104
    %v10106 = vrot.slane %v10105, 2
    %v10107 = vadd.f32 %v10105, %v10106
    %v10108 = vrot.slane %v10107, 1
    %v10109 = vadd.f32 %v10107, %v10108
    %v10110 = vadd.f32 %v10048, %v10064
    %v10111 = vrot.slane %v10110, 4
    %v10112 = vadd.f32 %v10110, %v10111
    %v10113 = vrot.slane %v10112, 2
    %v10114 = vadd.f32 %v10112, %v10113
    %v10115 = vrot.slane %v10114, 1
    %v10116 = vadd.f32 %v10114, %v10115
    %v10117 = vadd.f32 %v10049, %v10065
    %v10118 = vrot.slane %v10117, 4
    %v10119 = vadd.f32 %v10117, %v10118
    %v10120 = vrot.slane %v10119, 2
    %v10121 = vadd.f32 %v10119, %v10120
    %v10122 = vrot.slane %v10121, 1
    %v10123 = vadd.f32 %v10121, %v10122
    %v10124 = vadd.f32 %v10050, %v10066
    %v10125 = vrot.slane %v10124, 4
    %v10126 = vadd.f32 %v10124, %v10125
    %v10127 = vrot.slane %v10126, 2
    %v10128 = vadd.f32 %v10126, %v10127
    %v10129 = vrot.slane %v10128, 1
    %v10130 = vadd.f32 %v10128, %v10129
    %v10131 = vadd.f32 %v10051, %v10067
    %v10132 = vrot.slane %v10131, 4
    %v10133 = vadd.f32 %v10131, %v10132
    %v10134 = vrot.slane %v10133, 2
    %v10135 = vadd.f32 %v10133, %v10134
    %v10136 = vrot.slane %v10135, 1
    %v10137 = vadd.f32 %v10135, %v10136
    %v10138 = vadd.f32 %v10052, %v10068
    %v10139 = vrot.slane %v10138, 4
    %v10140 = vadd.f32 %v10138, %v10139
    %v10141 = vrot.slane %v10140, 2
    %v10142 = vadd.f32 %v10140, %v10141
    %v10143 = vrot.slane %v10142, 1
    %v10144 = vadd.f32 %v10142, %v10143
    %v10145 = vadd.f32 %v10053, %v10069
    %v10146 = vrot.slane %v10145, 4
    %v10147 = vadd.f32 %v10145, %v10146
    %v10148 = vrot.slane %v10147, 2
    %v10149 = vadd.f32 %v10147, %v10148
    %v10150 = vrot.slane %v10149, 1
    %v10151 = vadd.f32 %v10149, %v10150
    %v10152 = vadd.f32 %v10054, %v10070
    %v10153 = vrot.slane %v10152, 4
    %v10154 = vadd.f32 %v10152, %v10153
    %v10155 = vrot.slane %v10154, 2
    %v10156 = vadd.f32 %v10154, %v10155
    %v10157 = vrot.slane %v10156, 1
    %v10158 = vadd.f32 %v10156, %v10157
    %v10159 = vadd.f32 %v10055, %v10071
    %v10160 = vrot.slane %v10159, 4
    %v10161 = vadd.f32 %v10159, %v10160
    %v10162 = vrot.slane %v10161, 2
    %v10163 = vadd.f32 %v10161, %v10162
    %v10164 = vrot.slane %v10163, 1
    %v10165 = vadd.f32 %v10163, %v10164
    %v10166 = vadd.f32 %v10056, %v10072
    %v10167 = vrot.slane %v10166, 4
    %v10168 = vadd.f32 %v10166, %v10167
    %v10169 = vrot.slane %v10168, 2
    %v10170 = vadd.f32 %v10168, %v10169
    %v10171 = vrot.slane %v10170, 1
    %v10172 = vadd.f32 %v10170, %v10171
    %v10173 = vadd.f32 %v10057, %v10073
    %v10174 = vrot.slane %v10173, 4
    %v10175 = vadd.f32 %v10173, %v10174
    %v10176 = vrot.slane %v10175, 2
    %v10177 = vadd.f32 %v10175, %v10176
    %v10178 = vrot.slane %v10177, 1
    %v10179 = vadd.f32 %v10177, %v10178
    %v10180 = vadd.f32 %v10058, %v10074
    %v10181 = vrot.slane %v10180, 4
    %v10182 = vadd.f32 %v10180, %v10181
    %v10183 = vrot.slane %v10182, 2
    %v10184 = vadd.f32 %v10182, %v10183
    %v10185 = vrot.slane %v10184, 1
    %v10186 = vadd.f32 %v10184, %v10185
    %v10187 = vmul.f32 %v2350, %v9937
    %v10188 = vmul.f32 %v2352, %v9944
    %v10189 = vmul.f32 %v3401, %v9951
    %v10190 = vmul.f32 %v3403, %v9958
    %v10191 = vmul.f32 %v4452, %v9965
    %v10192 = vmul.f32 %v4454, %v9972
    %v10193 = vmul.f32 %v5503, %v9979
    %v10194 = vmul.f32 %v5505, %v9986
    %v10195 = vmul.f32 %v6554, %v9993
    %v10196 = vmul.f32 %v6556, %v10000
    %v10197 = vmul.f32 %v7605, %v10007
    %v10198 = vmul.f32 %v7607, %v10014
    %v10199 = vmul.f32 %v8656, %v10021
    %v10200 = vmul.f32 %v8658, %v10028
    %v10201 = vmul.f32 %v9707, %v10035
    %v10202 = vmul.f32 %v9709, %v10042
    %v10219 = vcombine.low %v10187, %v10188
    %v10220 = vcombine.low %v10189, %v10190
    %v10221 = vcombine.low %v10191, %v10192
    %v10222 = vcombine.low %v10193, %v10194
    %v10224 = vunpack.c.l.s4 1966171168
    %v10225 = vunpack.c.0.s8 %v10224
    %v10226 = vlaneseq
    %v10227 = vshrl.u32 %v10226, 7
    %v10228 = vsub.s32 %v10225, %v10227
    %v10229 = vrot.slane %v10219, %v10228
    %v10231 = vunpack.c.l.s4 1966171168
    %v10232 = vunpack.c.0.s8 %v10231
    %v10233 = vlaneseq
    %v10234 = vshrl.u32 %v10233, 7
    %v10235 = vsub.s32 %v10232, %v10234
    %v10236 = vrot.slane %v10220, %v10235
    %v10238 = vunpack.c.l.s4 1966171168
    %v10239 = vunpack.c.0.s8 %v10238
    %v10240 = vlaneseq
    %v10241 = vshrl.u32 %v10240, 7
    %v10242 = vsub.s32 %v10239, %v10241
    %v10243 = vrot.slane %v10221, %v10242
    %v10245 = vunpack.c.l.s4 1966171168
    %v10246 = vunpack.c.0.s8 %v10245
    %v10247 = vlaneseq
    %v10248 = vshrl.u32 %v10247, 7
    %v10249 = vsub.s32 %v10246, %v10248
    %v10250 = vrot.slane %v10222, %v10249
    %v10251 = vcombine.low %v10229, %v10236
    %v10252 = vcombine.low %v10243, %v10250
    %v10254 = vunpack.c.l.s4 1966171168
    %v10255 = vunpack.c.0.s8 %v10254
    %v10256 = vlaneseq
    %v10257 = vshrl.u32 %v10256, 7
    %v10258 = vsub.s32 %v10255, %v10257
    %v10259 = vrot.slane %v10251, %v10258
    %v10261 = vunpack.c.l.s4 1966171168
    %v10262 = vunpack.c.0.s8 %v10261
    %v10263 = vlaneseq
    %v10264 = vshrl.u32 %v10263, 7
    %v10265 = vsub.s32 %v10262, %v10264
    %v10266 = vrot.slane %v10252, %v10265
    %v10267 = vcombine.low %v10259, %v10266
    %v10268 = vcombine.low %v10195, %v10196
    %v10269 = vcombine.low %v10197, %v10198
    %v10270 = vcombine.low %v10199, %v10200
    %v10271 = vcombine.low %v10201, %v10202
    %v10273 = vunpack.c.l.s4 1966171168
    %v10274 = vunpack.c.0.s8 %v10273
    %v10275 = vlaneseq
    %v10276 = vshrl.u32 %v10275, 7
    %v10277 = vsub.s32 %v10274, %v10276
    %v10278 = vrot.slane %v10268, %v10277
    %v10280 = vunpack.c.l.s4 1966171168
    %v10281 = vunpack.c.0.s8 %v10280
    %v10282 = vlaneseq
    %v10283 = vshrl.u32 %v10282, 7
    %v10284 = vsub.s32 %v10281, %v10283
    %v10285 = vrot.slane %v10269, %v10284
    %v10287 = vunpack.c.l.s4 1966171168
    %v10288 = vunpack.c.0.s8 %v10287
    %v10289 = vlaneseq
    %v10290 = vshrl.u32 %v10289, 7
    %v10291 = vsub.s32 %v10288, %v10290
    %v10292 = vrot.slane %v10270, %v10291
    %v10294 = vunpack.c.l.s4 1966171168
    %v10295 = vunpack.c.0.s8 %v10294
    %v10296 = vlaneseq
    %v10297 = vshrl.u32 %v10296, 7
    %v10298 = vsub.s32 %v10295, %v10297
    %v10299 = vrot.slane %v10271, %v10298
    %v10300 = vcombine.low %v10278, %v10285
    %v10301 = vcombine.low %v10292, %v10299
    %v10303 = vunpack.c.l.s4 1966171168
    %v10304 = vunpack.c.0.s8 %v10303
    %v10305 = vlaneseq
    %v10306 = vshrl.u32 %v10305, 7
    %v10307 = vsub.s32 %v10304, %v10306
    %v10308 = vrot.slane %v10300, %v10307
    %v10310 = vunpack.c.l.s4 1966171168
    %v10311 = vunpack.c.0.s8 %v10310
    %v10312 = vlaneseq
    %v10313 = vshrl.u32 %v10312, 7
    %v10314 = vsub.s32 %v10311, %v10313
    %v10315 = vrot.slane %v10301, %v10314
    %v10316 = vcombine.low %v10308, %v10315
    %10319 = vst [vmem:[#allocation10] sm:$0xff] %v10267
    %10320 = vst [vmem:[#allocation10 + $0x8] sm:$0xff] %v10316
    %v10321 = vcombine.high %v10229, %v10236
    %v10322 = vcombine.high %v10243, %v10250
    %v10324 = vunpack.c.l.s4 1966171168
    %v10325 = vunpack.c.0.s8 %v10324
    %v10326 = vlaneseq
    %v10327 = vshrl.u32 %v10326, 7
    %v10328 = vsub.s32 %v10325, %v10327
    %v10329 = vrot.slane %v10321, %v10328
    %v10331 = vunpack.c.l.s4 1966171168
    %v10332 = vunpack.c.0.s8 %v10331
    %v10333 = vlaneseq
    %v10334 = vshrl.u32 %v10333, 7
    %v10335 = vsub.s32 %v10332, %v10334
    %v10336 = vrot.slane %v10322, %v10335
    %v10337 = vcombine.low %v10329, %v10336
    %v10338 = vcombine.high %v10278, %v10285
    %v10339 = vcombine.high %v10292, %v10299
    %v10341 = vunpack.c.l.s4 1966171168
    %v10342 = vunpack.c.0.s8 %v10341
    %v10343 = vlaneseq
    %v10344 = vshrl.u32 %v10343, 7
    %v10345 = vsub.s32 %v10342, %v10344
    %v10346 = vrot.slane %v10338, %v10345
    %v10348 = vunpack.c.l.s4 1966171168
    %v10349 = vunpack.c.0.s8 %v10348
    %v10350 = vlaneseq
    %v10351 = vshrl.u32 %v10350, 7
    %v10352 = vsub.s32 %v10349, %v10351
    %v10353 = vrot.slane %v10339, %v10352
    %v10354 = vcombine.low %v10346, %v10353
    %10357 = vst [vmem:[#allocation11] sm:$0xff] %v10337
    %10358 = vst [vmem:[#allocation11 + $0x8] sm:$0xff] %v10354
    %v10359 = vmul.f32 %v2350, %v10081
    %v10360 = vmul.f32 %v2352, %v10088
    %v10361 = vmul.f32 %v3401, %v10095
    %v10362 = vmul.f32 %v3403, %v10102
    %v10363 = vmul.f32 %v4452, %v10109
    %v10364 = vmul.f32 %v4454, %v10116
    %v10365 = vmul.f32 %v5503, %v10123
    %v10366 = vmul.f32 %v5505, %v10130
    %v10367 = vmul.f32 %v6554, %v10137
    %v10368 = vmul.f32 %v6556, %v10144
    %v10369 = vmul.f32 %v7605, %v10151
    %v10370 = vmul.f32 %v7607, %v10158
    %v10371 = vmul.f32 %v8656, %v10165
    %v10372 = vmul.f32 %v8658, %v10172
    %v10373 = vmul.f32 %v9707, %v10179
    %v10374 = vmul.f32 %v9709, %v10186
    %v10391 = vcombine.low %v10359, %v10360
    %v10392 = vcombine.low %v10361, %v10362
    %v10393 = vcombine.low %v10363, %v10364
    %v10394 = vcombine.low %v10365, %v10366
    %v10396 = vunpack.c.l.s4 1966171168
    %v10397 = vunpack.c.0.s8 %v10396
    %v10398 = vlaneseq
    %v10399 = vshrl.u32 %v10398, 7
    %v10400 = vsub.s32 %v10397, %v10399
    %v10401 = vrot.slane %v10391, %v10400
    %v10403 = vunpack.c.l.s4 1966171168
    %v10404 = vunpack.c.0.s8 %v10403
    %v10405 = vlaneseq
    %v10406 = vshrl.u32 %v10405, 7
    %v10407 = vsub.s32 %v10404, %v10406
    %v10408 = vrot.slane %v10392, %v10407
    %v10410 = vunpack.c.l.s4 1966171168
    %v10411 = vunpack.c.0.s8 %v10410
    %v10412 = vlaneseq
    %v10413 = vshrl.u32 %v10412, 7
    %v10414 = vsub.s32 %v10411, %v10413
    %v10415 = vrot.slane %v10393, %v10414
    %v10417 = vunpack.c.l.s4 1966171168
    %v10418 = vunpack.c.0.s8 %v10417
    %v10419 = vlaneseq
    %v10420 = vshrl.u32 %v10419, 7
    %v10421 = vsub.s32 %v10418, %v10420
    %v10422 = vrot.slane %v10394, %v10421
    %v10423 = vcombine.low %v10401, %v10408
    %v10424 = vcombine.low %v10415, %v10422
    %v10426 = vunpack.c.l.s4 1966171168
    %v10427 = vunpack.c.0.s8 %v10426
    %v10428 = vlaneseq
    %v10429 = vshrl.u32 %v10428, 7
    %v10430 = vsub.s32 %v10427, %v10429
    %v10431 = vrot.slane %v10423, %v10430
    %v10433 = vunpack.c.l.s4 1966171168
    %v10434 = vunpack.c.0.s8 %v10433
    %v10435 = vlaneseq
    %v10436 = vshrl.u32 %v10435, 7
    %v10437 = vsub.s32 %v10434, %v10436
    %v10438 = vrot.slane %v10424, %v10437
    %v10439 = vcombine.low %v10431, %v10438
    %v10440 = vcombine.low %v10367, %v10368
    %v10441 = vcombine.low %v10369, %v10370
    %v10442 = vcombine.low %v10371, %v10372
    %v10443 = vcombine.low %v10373, %v10374
    %v10445 = vunpack.c.l.s4 1966171168
    %v10446 = vunpack.c.0.s8 %v10445
    %v10447 = vlaneseq
    %v10448 = vshrl.u32 %v10447, 7
    %v10449 = vsub.s32 %v10446, %v10448
    %v10450 = vrot.slane %v10440, %v10449
    %v10452 = vunpack.c.l.s4 1966171168
    %v10453 = vunpack.c.0.s8 %v10452
    %v10454 = vlaneseq
    %v10455 = vshrl.u32 %v10454, 7
    %v10456 = vsub.s32 %v10453, %v10455
    %v10457 = vrot.slane %v10441, %v10456
    %v10459 = vunpack.c.l.s4 1966171168
    %v10460 = vunpack.c.0.s8 %v10459
    %v10461 = vlaneseq
    %v10462 = vshrl.u32 %v10461, 7
    %v10463 = vsub.s32 %v10460, %v10462
    %v10464 = vrot.slane %v10442, %v10463
    %v10466 = vunpack.c.l.s4 1966171168
    %v10467 = vunpack.c.0.s8 %v10466
    %v10468 = vlaneseq
    %v10469 = vshrl.u32 %v10468, 7
    %v10470 = vsub.s32 %v10467, %v10469
    %v10471 = vrot.slane %v10443, %v10470
    %v10472 = vcombine.low %v10450, %v10457
    %v10473 = vcombine.low %v10464, %v10471
    %v10475 = vunpack.c.l.s4 1966171168
    %v10476 = vunpack.c.0.s8 %v10475
    %v10477 = vlaneseq
    %v10478 = vshrl.u32 %v10477, 7
    %v10479 = vsub.s32 %v10476, %v10478
    %v10480 = vrot.slane %v10472, %v10479
    %v10482 = vunpack.c.l.s4 1966171168
    %v10483 = vunpack.c.0.s8 %v10482
    %v10484 = vlaneseq
    %v10485 = vshrl.u32 %v10484, 7
    %v10486 = vsub.s32 %v10483, %v10485
    %v10487 = vrot.slane %v10473, %v10486
    %v10488 = vcombine.low %v10480, %v10487
    %10491 = vst [vmem:[#allocation13] sm:$0xff] %v10439
    %10492 = vst [vmem:[#allocation13 + $0x8] sm:$0xff] %v10488
    // Predicated region
    $region18: #{tpu_custom_call.1} parent=1 // pred_check
      _
    $region19: #{tpu_custom_call.1} parent=1 // pred_check_branch
      %10494 = sbr.rel (0) target = $region21
    $region20: #{tpu_custom_call.1} parent=1 // pred_region
      %s10496 = ssub.s32 256, 256
      %10497 = vsyncadd [#allocation4], %s10496
      %s10499 = sshll.u32 [#allocation7], 4
      %s10500 = int_to_ptr.vmem [resolvable:$true] %s10499
      %10502 = dma.vmem_to_hbm [thread:$0]  %s10500, 256, %s2, [#allocation4]
    $region21: #{tpu_custom_call.1} parent=1 // pred_fallthru
      _
    // Predicated region
    $region22: #{tpu_custom_call.1} parent=1 // pred_check
      _
    $region23: #{tpu_custom_call.1} parent=1 // pred_check_branch
      %10504 = sbr.rel (0) target = $region25
    $region24: #{tpu_custom_call.1} parent=1 // pred_region
      %s10506 = ssub.s32 256, 256
      %10507 = vsyncadd [#allocation9], %s10506
      %s10509 = sshll.u32 [#allocation8], 4
      %s10510 = int_to_ptr.vmem [resolvable:$true] %s10509
      %10512 = dma.vmem_to_hbm [thread:$0]  %s10510, 256, %s3, [#allocation9]
    $region25: #{tpu_custom_call.1} parent=1 // pred_fallthru
      _
    // Predicated region
    $region26: #{tpu_custom_call.1} parent=1 // pred_check
      _
    $region27: #{tpu_custom_call.1} parent=1 // pred_check_branch
      %10514 = sbr.rel (0) target = $region29
    $region28: #{tpu_custom_call.1} parent=1 // pred_region
      %s10516 = ssub.s32 256, 256
      %10517 = vsyncadd [#allocation9], %s10516
      %s10519 = sshll.u32 [#allocation10], 4
      %s10520 = int_to_ptr.vmem [resolvable:$true] %s10519
      %10522 = dma.vmem_to_hbm [thread:$0]  %s10520, 256, %s4, [#allocation9]
    $region29: #{tpu_custom_call.1} parent=1 // pred_fallthru
      _
    // Predicated region
    $region30: #{tpu_custom_call.1} parent=1 // pred_check
      _
    $region31: #{tpu_custom_call.1} parent=1 // pred_check_branch
      %10524 = sbr.rel (0) target = $region33
    $region32: #{tpu_custom_call.1} parent=1 // pred_region
      %s10526 = ssub.s32 256, 256
      %10527 = vsyncadd [#allocation12], %s10526
      %s10529 = sshll.u32 [#allocation11], 4
      %s10530 = int_to_ptr.vmem [resolvable:$true] %s10529
      %10532 = dma.vmem_to_hbm [thread:$0]  %s10530, 256, %s5, [#allocation12]
    $region33: #{tpu_custom_call.1} parent=1 // pred_fallthru
      _
    // Predicated region
    $region34: #{tpu_custom_call.1} parent=1 // pred_check
      _
    $region35: #{tpu_custom_call.1} parent=1 // pred_check_branch
      %10534 = sbr.rel (0) target = $region37
    $region36: #{tpu_custom_call.1} parent=1 // pred_region
      %s10536 = ssub.s32 256, 256
      %10537 = vsyncadd [#allocation12], %s10536
      %s10539 = sshll.u32 [#allocation13], 4
      %s10540 = int_to_ptr.vmem [resolvable:$true] %s10539
      %10542 = dma.vmem_to_hbm [thread:$0]  %s10540, 256, %s6, [#allocation12]
    $region37: #{tpu_custom_call.1} parent=1 // pred_fallthru
      _
    // Predicated region
    $region38: #{tpu_custom_call.1} parent=1 // pred_check
      _
    $region39: #{tpu_custom_call.1} parent=1 // pred_check_branch
      %10544 = sbr.rel (0) target = $region41
    $region40: #{tpu_custom_call.1} parent=1 // pred_region
      %10545 = dma.done [#allocation4], 256
    $region41: #{tpu_custom_call.1} parent=1 // pred_fallthru
      _
    // Predicated region
    $region42: #{tpu_custom_call.1} parent=1 // pred_check
      _
    $region43: #{tpu_custom_call.1} parent=1 // pred_check_branch
      %10547 = sbr.rel (0) target = $region45
    $region44: #{tpu_custom_call.1} parent=1 // pred_region
      %10548 = dma.done [#allocation9], 256
    $region45: #{tpu_custom_call.1} parent=1 // pred_fallthru
      _
    // Predicated region
    $region46: #{tpu_custom_call.1} parent=1 // pred_check
      _
    $region47: #{tpu_custom_call.1} parent=1 // pred_check_branch
      %10550 = sbr.rel (0) target = $region49
    $region48: #{tpu_custom_call.1} parent=1 // pred_region
      %10551 = dma.done [#allocation9], 256
    $region49: #{tpu_custom_call.1} parent=1 // pred_fallthru
      _
    // Predicated region
    $region50: #{tpu_custom_call.1} parent=1 // pred_check
      _
    $region51: #{tpu_custom_call.1} parent=1 // pred_check_branch
      %10553 = sbr.rel (0) target = $region53
    $region52: #{tpu_custom_call.1} parent=1 // pred_region
      %10554 = dma.done [#allocation12], 256
    $region53: #{tpu_custom_call.1} parent=1 // pred_fallthru
      _
    // Predicated region
    $region54: #{tpu_custom_call.1} parent=1 // pred_check
      _
    $region55: #{tpu_custom_call.1} parent=1 // pred_check_branch
      %10556 = sbr.rel (0) target = $region57
    $region56: #{tpu_custom_call.1} parent=1 // pred_region
      %10557 = dma.done [#allocation12], 256
    $region57: #{tpu_custom_call.1} parent=1 // pred_fallthru
      _
    %10558 = vsyncpa [#allocation3], 1
    %10559 = vsyncpa [#allocation6], 1
    %10560 = vsyncpa [#allocation4], 1
    %10561 = vsyncpa [#allocation9], 1
    %10562 = vsyncpa [#allocation12], 1

</llo_original>
